<compile_context>
chip_gen: v7x
topology: tpu7x:2x2x1
jax: 0.10.0
libtpu: 0.0.40
codegen_flags: <defaults>
</compile_context>

<pallas_src>
import jax
import jax.numpy as jnp
from jax import lax
from jax.experimental import pallas as pl
from jax.experimental.pallas import tpu as pltpu


# --------------------------- in-kernel helpers (traced) ---------------------------

def _dup_matrix(n_out, n_in):
    """(n_out, n_in) 0/1 matrix, D[i, j] = 1 iff j == i // 2  (n_out == 2 * n_in).
    D @ x duplicates every row of x -> nearest-neighbour 2x upsample along that axis."""
    i = lax.broadcasted_iota(jnp.int32, (n_out, n_in), 0)
    j = lax.broadcasted_iota(jnp.int32, (n_out, n_in), 1)
    return jnp.where((i == 2 * j) | (i == 2 * j + 1), 1.0, 0.0).astype(jnp.float32)


def _select_matrices(n_out, n_in):
    """Se[j, i] = 1 iff i == 2j ; So[j, i] = 1 iff i == 2j + 1  (n_in == 2 * n_out).
    Se @ x / So @ x select the even / odd rows of x (used for 2x2 max-pool columns)."""
    j = lax.broadcasted_iota(jnp.int32, (n_out, n_in), 0)
    i = lax.broadcasted_iota(jnp.int32, (n_out, n_in), 1)
    se = jnp.where(i == 2 * j, 1.0, 0.0).astype(jnp.float32)
    so = jnp.where(i == 2 * j + 1, 1.0, 0.0).astype(jnp.float32)
    return se, so


def _conv3x3(srcs_and_weights, b_ref, hout, wout, dst_ref, dy, dx, relu=True):
    """3x3 'same' conv (+bias, +ReLU) as 9 accumulated shifted matmuls per output row.
    `srcs_and_weights` = tuple of (padded_src_ref, (9,Cin,Cout) weight_ref) pairs whose
    contributions are summed (== conv over their channel concatenation, so the decoder
    skip-concat never has to be materialized)."""
    cout = b_ref.shape[-1]
    bias = b_ref[...]                                      # (1, Cout), hoisted

    def body(y, carry):
        acc = jnp.zeros((wout, cout), jnp.float32) + bias
        for src_ref, w_ref in srcs_and_weights:
            cin = w_ref.shape[1]
            for t in range(9):
                ky, kx = divmod(t, 3)
                lhs = src_ref[y + ky, pl.ds(kx, wout), :]  # (wout, cin), VMEM load
                if cin == 1:                               # outer product -> VPU broadcast
                    acc = acc + lhs * w_ref[t]
                else:                                      # MXU
                    acc = acc + jnp.dot(lhs, w_ref[t],
                                        preferred_element_type=jnp.float32)
        if relu:
            acc = jnp.maximum(acc, 0.0)
        dst_ref[y + dy, pl.ds(dx, wout), :] = acc
        return carry

    lax.fori_loop(0, hout, body, 0)


def _pool2x2(src_pad_ref, wsrc, hdst, wdst, se, so, dst_pad_ref):
    """2x2 max-pool of the interior of the padded src into the padded dst interior."""
    def body(r, carry):
        r0 = src_pad_ref[2 * r + 1, pl.ds(1, wsrc), :]
        r1 = src_pad_ref[2 * r + 2, pl.ds(1, wsrc), :]
        m = jnp.maximum(r0, r1)                            # (wsrc, C)  row-pair max
        pooled = jnp.maximum(                              # column-pair max via selection
            jnp.dot(se, m, preferred_element_type=jnp.float32),
            jnp.dot(so, m, preferred_element_type=jnp.float32))
        dst_pad_ref[r + 1, pl.ds(1, wdst), :] = pooled
        return carry

    lax.fori_loop(0, hdst, body, 0)


def _upsample_1x1(src_ref, hs, ws, wu_ref, bu_ref, dup, dst_pad_ref):
    """Nearest 2x upsample fused with the decoder 1x1 conv (they commute): each source
    row is projected, column-duplicated via a constant matmul, and written to two
    consecutive rows of the padded destination."""
    wu = wu_ref[...]
    bu = bu_ref[...]

    def body(ys, carry):
        g = jnp.dot(src_ref[ys], wu, preferred_element_type=jnp.float32) + bu  # (ws, Co)
        row = jnp.dot(dup, g, preferred_element_type=jnp.float32)              # (2ws, Co)
        dst_pad_ref[2 * ys + 1, pl.ds(1, 2 * ws), :] = row
        dst_pad_ref[2 * ys + 2, pl.ds(1, 2 * ws), :] = row
        return carry

    lax.fori_loop(0, hs, body, 0)


# ------------------------------- fused U-Net kernel --------------------------------

def _make_unet_kernel(H, W, F):
    H2, W2, H4, W4 = H // 2, W // 2, H // 4, W // 4

    def kernel(x_ref,
               w1, b1, w2, b2, w3, b3,
               wu1, bu1, w4a, w4b, b4,
               wu2, bu2, w5a, w5b, b5,
               wf, bf,
               o_ref,
               padin, skip1p, pool1p, skip2p, pool2p,
               bott, up1p, dec1, up2p, dec2):
        # zero padded scratch buffers (their borders must stay 0)
        for r in (padin, skip1p, pool1p, skip2p, pool2p, up1p, up2p):
            r[...] = jnp.zeros_like(r)

        # constant selection / duplication matrices, built once per image
        se1, so1 = _select_matrices(W2, W)     # pool stage 1: W   -> W/2
        se2, so2 = _select_matrices(W4, W2)    # pool stage 2: W/2 -> W/4
        dup1 = _dup_matrix(W2, W4)             # upsample dec1: W/4 -> W/2
        dup2 = _dup_matrix(W, W2)              # upsample dec2: W/2 -> W

        # input image -> padded VMEM buffer
        padin[pl.ds(1, H), pl.ds(1, W), :] = x_ref[0]

        # ---------------- encoder ----------------
        _conv3x3(((padin, w1),), b1, H, W, skip1p, 1, 1)           # (H,  W,  F)
        _pool2x2(skip1p, W, H2, W2, se1, so1, pool1p)              # (H/2,W/2,F)
        _conv3x3(((pool1p, w2),), b2, H2, W2, skip2p, 1, 1)        # (H/2,W/2,2F)
        _pool2x2(skip2p, W2, H4, W4, se2, so2, pool2p)             # (H/4,W/4,2F)

        # ---------------- bottleneck ----------------
        _conv3x3(((pool2p, w3),), b3, H4, W4, bott, 0, 0)          # (H/4,W/4,4F)

        # ------- decoder (skip-concat split into two accumulated matmul halves) -----
        _upsample_1x1(bott, H4, W4, wu1, bu1, dup1, up1p)          # (H/2,W/2,2F)
        _conv3x3(((up1p, w4a), (skip2p, w4b)), b4, H2, W2, dec1, 0, 0)
        _upsample_1x1(dec1, H2, W2, wu2, bu2, dup2, up2p)          # (H,  W,  F)
        _conv3x3(((up2p, w5a), (skip1p, w5b)), b5, H, W, dec2, 0, 0)

        # ---------------- final 1x1 conv (F -> 1), whole image at once --------------
        o_ref[0] = (jnp.sum(dec2[...] * wf[...], axis=-1, keepdims=True)
                    + bf[...]).astype(o_ref.dtype)

    return kernel


# ------------------------------- parameters ----------------------------------------

def _xavier_taps(key, k, cin, cout):
    """torch.nn.init.xavier_uniform_ for a conv weight, stored tap-major (k*k,Cin,Cout)."""
    fan_in = cin * k * k
    fan_out = cout * k * k
    bound = (6.0 / (fan_in + fan_out)) ** 0.5
    return jax.random.uniform(key, (k * k, cin, cout), jnp.float32, -bound, bound)


def init_params(key, nbr_filters=8):
    """Parameters for nbr_cell=2 (two encoder cells, bottleneck, two decoder cells,
    final 1x1 conv), matching Model.compile()'s channel schedule with C_in=1."""
    F = nbr_filters
    F2, F4 = 2 * F, 4 * F
    ks = jax.random.split(key, 8)
    z = lambda *s: jnp.zeros(s, jnp.float32)
    p = {}
    p['w1'], p['b1'] = _xavier_taps(ks[0], 3, 1, F), z(1, F)            # EncoderCell(1, F)
    p['w2'], p['b2'] = _xavier_taps(ks[1], 3, F, F2), z(1, F2)          # EncoderCell(F, 2F)
    p['w3'], p['b3'] = _xavier_taps(ks[2], 3, F2, F4), z(1, F4)         # bottleneck(2F, 4F)
    p['wu1'], p['bu1'] = _xavier_taps(ks[3], 1, F4, F2)[0], z(1, F2)    # dec1 up 1x1: 4F->2F
    w4 = _xavier_taps(ks[4], 3, 2 * F2, F2)                             # dec1 conv: 4F->2F
    p['w4a'], p['w4b'], p['b4'] = w4[:, :F2, :], w4[:, F2:, :], z(1, F2)
    p['wu2'], p['bu2'] = _xavier_taps(ks[5], 1, F2, F)[0], z(1, F)      # dec2 up 1x1: 2F->F
    w5 = _xavier_taps(ks[6], 3, 2 * F, F)                               # dec2 conv: 2F->F
    p['w5a'], p['w5b'], p['b5'] = w5[:, :F, :], w5[:, F:, :], z(1, F)
    wf = _xavier_taps(ks[7], 1, F, 1)[0]                                # final Conv2d(F,1,1)
    p['wf'], p['bf'] = wf.reshape(1, 1, F), z(1, 1, 1)
    return p


# ------------------------------- forward wrapper ------------------------------------

def unet_forward(params, x_nchw):
    """Forward pass: x (N, 1, H, W) NCHW -> (N, 1, H, W)."""
    # TODO(synk): EncoderCell / DecoderCell / ops_dict internals (the NAS cell graphs)
    # are defined outside the provided module source; cells are approximated as
    # conv3x3+ReLU (encoder / bottleneck) and nearest-upsample + 1x1 conv + skip-concat
    # + conv3x3+ReLU (decoder), preserving the Model's U-Net wiring, channel schedule,
    # 2x2 max-pooling and output shapes.
    x = jnp.transpose(x_nchw, (0, 2, 3, 1)).astype(jnp.float32)     # NCHW -> NHWC
    N, H, W, C = x.shape
    assert C == 1 and H % 4 == 0 and W % 4 == 0
    F = params['b1'].shape[-1]
    H2, W2, H4, W4 = H // 2, W // 2, H // 4, W // 4
    F2, F4 = 2 * F, 4 * F

    def cspec(shape):
        zeros = (0,) * len(shape)
        return pl.BlockSpec(shape, lambda n, zeros=zeros: zeros)    # whole-array block

    weight_order = ('w1', 'b1', 'w2', 'b2', 'w3', 'b3',
                    'wu1', 'bu1', 'w4a', 'w4b', 'b4',
                    'wu2', 'bu2', 'w5a', 'w5b', 'b5',
                    'wf', 'bf')
    weights = [params[k] for k in weight_order]

    out = pl.pallas_call(
        _make_unet_kernel(H, W, F),
        out_shape=jax.ShapeDtypeStruct((N, H, W, 1), jnp.float32),
        grid_spec=pltpu.PrefetchScalarGridSpec(
            num_scalar_prefetch=0,
            grid=(N,),
            in_specs=[pl.BlockSpec((1, H, W, 1), lambda n: (n, 0, 0, 0))]
                     + [cspec(w.shape) for w in weights],
            out_specs=pl.BlockSpec((1, H, W, 1), lambda n: (n, 0, 0, 0)),
            scratch_shapes=[
                pltpu.VMEM((H + 2, W + 2, 1), jnp.float32),      # padded input
                pltpu.VMEM((H + 2, W + 2, F), jnp.float32),      # enc1 out (padded)
                pltpu.VMEM((H2 + 2, W2 + 2, F), jnp.float32),    # pooled enc1 (padded)
                pltpu.VMEM((H2 + 2, W2 + 2, F2), jnp.float32),   # enc2 out (padded)
                pltpu.VMEM((H4 + 2, W4 + 2, F2), jnp.float32),   # pooled enc2 (padded)
                pltpu.VMEM((H4, W4, F4), jnp.float32),           # bottleneck out
                pltpu.VMEM((H2 + 2, W2 + 2, F2), jnp.float32),   # dec1 upsample+1x1 (padded)
                pltpu.VMEM((H2, W2, F2), jnp.float32),           # dec1 out
                pltpu.VMEM((H + 2, W + 2, F), jnp.float32),      # dec2 upsample+1x1 (padded)
                pltpu.VMEM((H, W, F), jnp.float32),              # dec2 out
            ]),
        compiler_params=pltpu.CompilerParams(
            dimension_semantics=("parallel",)),                  # batch axis -> 2 TCs on v7x
    )(x, *weights)
    return jnp.transpose(out, (0, 3, 1, 2))                      # NHWC -> NCHW


# ------------------------------------ main ------------------------------------------

if __name__ == "__main__":
    key = jax.random.PRNGKey(0)
    kx, kp = jax.random.split(key)
    x = jax.random.normal(kx, (2, 1, 16, 16), jnp.float32)       # (N, C=1, H, W) as in PyTorch
    params = init_params(kp, nbr_filters=8)
    out = jax.jit(unet_forward)(params, x)
    out = jax.block_until_ready(out)
    assert out.shape == (2, 1, 16, 16), out.shape
    assert bool(jnp.all(jnp.isfinite(out)))
    print("KERNEL_OK")
</pallas_src>

<mosaic_0001>
module attributes {stable_mosaic.version = 11 : i64} {
  func.func @kernel(%arg0: i32, %arg1: memref<1x16x16x1xf32, #tpu.memory_space<vmem>>, %arg2: memref<9x1x8xf32, #tpu.memory_space<vmem>>, %arg3: memref<1x8xf32, #tpu.memory_space<vmem>>, %arg4: memref<9x8x16xf32, #tpu.memory_space<vmem>>, %arg5: memref<1x16xf32, #tpu.memory_space<vmem>>, %arg6: memref<9x16x32xf32, #tpu.memory_space<vmem>>, %arg7: memref<1x32xf32, #tpu.memory_space<vmem>>, %arg8: memref<32x16xf32, #tpu.memory_space<vmem>>, %arg9: memref<1x16xf32, #tpu.memory_space<vmem>>, %arg10: memref<9x16x16xf32, #tpu.memory_space<vmem>>, %arg11: memref<9x16x16xf32, #tpu.memory_space<vmem>>, %arg12: memref<1x16xf32, #tpu.memory_space<vmem>>, %arg13: memref<16x8xf32, #tpu.memory_space<vmem>>, %arg14: memref<1x8xf32, #tpu.memory_space<vmem>>, %arg15: memref<9x8x8xf32, #tpu.memory_space<vmem>>, %arg16: memref<9x8x8xf32, #tpu.memory_space<vmem>>, %arg17: memref<1x8xf32, #tpu.memory_space<vmem>>, %arg18: memref<1x1x8xf32, #tpu.memory_space<vmem>>, %arg19: memref<1x1x1xf32, #tpu.memory_space<vmem>>, %arg20: memref<1x16x16x1xf32, #tpu.memory_space<vmem>>, %arg21: memref<18x18x1xf32, #tpu.memory_space<vmem>>, %arg22: memref<18x18x8xf32, #tpu.memory_space<vmem>>, %arg23: memref<10x10x8xf32, #tpu.memory_space<vmem>>, %arg24: memref<10x10x16xf32, #tpu.memory_space<vmem>>, %arg25: memref<6x6x16xf32, #tpu.memory_space<vmem>>, %arg26: memref<4x4x32xf32, #tpu.memory_space<vmem>>, %arg27: memref<10x10x16xf32, #tpu.memory_space<vmem>>, %arg28: memref<8x8x16xf32, #tpu.memory_space<vmem>>, %arg29: memref<18x18x8xf32, #tpu.memory_space<vmem>>, %arg30: memref<16x16x8xf32, #tpu.memory_space<vmem>>) attributes {dimension_semantics = [#tpu.dimension_semantics<parallel>], iteration_bounds = array<i64: 2>, scalar_prefetch = 0 : i64, scratch_operands = 10 : i64, tpu.core_type = #tpu.core_type<tc>, window_params = [{transform_indices = @transform_0, window_bounds = array<i64: 1, 16, 16, 1>}, {pipeline_mode = #tpu.pipeline_mode<synchronous>, transform_indices = @transform_1, window_bounds = array<i64: 9, 1, 8>}, {pipeline_mode = #tpu.pipeline_mode<synchronous>, transform_indices = @transform_2, window_bounds = array<i64: 1, 8>}, {pipeline_mode = #tpu.pipeline_mode<synchronous>, transform_indices = @transform_3, window_bounds = array<i64: 9, 8, 16>}, {pipeline_mode = #tpu.pipeline_mode<synchronous>, transform_indices = @transform_4, window_bounds = array<i64: 1, 16>}, {pipeline_mode = #tpu.pipeline_mode<synchronous>, transform_indices = @transform_5, window_bounds = array<i64: 9, 16, 32>}, {pipeline_mode = #tpu.pipeline_mode<synchronous>, transform_indices = @transform_6, window_bounds = array<i64: 1, 32>}, {pipeline_mode = #tpu.pipeline_mode<synchronous>, transform_indices = @transform_7, window_bounds = array<i64: 32, 16>}, {pipeline_mode = #tpu.pipeline_mode<synchronous>, transform_indices = @transform_8, window_bounds = array<i64: 1, 16>}, {pipeline_mode = #tpu.pipeline_mode<synchronous>, transform_indices = @transform_9, window_bounds = array<i64: 9, 16, 16>}, {pipeline_mode = #tpu.pipeline_mode<synchronous>, transform_indices = @transform_10, window_bounds = array<i64: 9, 16, 16>}, {pipeline_mode = #tpu.pipeline_mode<synchronous>, transform_indices = @transform_11, window_bounds = array<i64: 1, 16>}, {pipeline_mode = #tpu.pipeline_mode<synchronous>, transform_indices = @transform_12, window_bounds = array<i64: 16, 8>}, {pipeline_mode = #tpu.pipeline_mode<synchronous>, transform_indices = @transform_13, window_bounds = array<i64: 1, 8>}, {pipeline_mode = #tpu.pipeline_mode<synchronous>, transform_indices = @transform_14, window_bounds = array<i64: 9, 8, 8>}, {pipeline_mode = #tpu.pipeline_mode<synchronous>, transform_indices = @transform_15, window_bounds = array<i64: 9, 8, 8>}, {pipeline_mode = #tpu.pipeline_mode<synchronous>, transform_indices = @transform_16, window_bounds = array<i64: 1, 8>}, {pipeline_mode = #tpu.pipeline_mode<synchronous>, transform_indices = @transform_17, window_bounds = array<i64: 1, 1, 8>}, {pipeline_mode = #tpu.pipeline_mode<synchronous>, transform_indices = @transform_18, window_bounds = array<i64: 1, 1, 1>}, {transform_indices = @transform_19, window_bounds = array<i64: 1, 16, 16, 1>}]} {
    %cst = arith.constant 0.000000e+00 : f32
    %0 = vector.broadcast %cst : f32 to vector<18x18x1xf32>
    %c0 = arith.constant 0 : index
    %c0_0 = arith.constant 0 : index
    %c0_1 = arith.constant 0 : index
    %1 = vector.load %arg21[%c0, %c0_0, %c0_1] : memref<18x18x1xf32, #tpu.memory_space<vmem>>, vector<18x18x1xf32>
    tpu.vector_store %arg21[%c0, %c0_0, %c0_1], %0 {strides = array<i32>} : memref<18x18x1xf32, #tpu.memory_space<vmem>>, vector<18x18x1xf32>,
    %cst_2 = arith.constant 0.000000e+00 : f32
    %2 = vector.broadcast %cst_2 : f32 to vector<18x18x8xf32>
    %c0_3 = arith.constant 0 : index
    %c0_4 = arith.constant 0 : index
    %c0_5 = arith.constant 0 : index
    %3 = vector.load %arg22[%c0_3, %c0_4, %c0_5] : memref<18x18x8xf32, #tpu.memory_space<vmem>>, vector<18x18x8xf32>
    tpu.vector_store %arg22[%c0_3, %c0_4, %c0_5], %2 {strides = array<i32>} : memref<18x18x8xf32, #tpu.memory_space<vmem>>, vector<18x18x8xf32>,
    %cst_6 = arith.constant 0.000000e+00 : f32
    %4 = vector.broadcast %cst_6 : f32 to vector<10x10x8xf32>
    %c0_7 = arith.constant 0 : index
    %c0_8 = arith.constant 0 : index
    %c0_9 = arith.constant 0 : index
    %5 = vector.load %arg23[%c0_7, %c0_8, %c0_9] : memref<10x10x8xf32, #tpu.memory_space<vmem>>, vector<10x10x8xf32>
    tpu.vector_store %arg23[%c0_7, %c0_8, %c0_9], %4 {strides = array<i32>} : memref<10x10x8xf32, #tpu.memory_space<vmem>>, vector<10x10x8xf32>,
    %cst_10 = arith.constant 0.000000e+00 : f32
    %6 = vector.broadcast %cst_10 : f32 to vector<10x10x16xf32>
    %c0_11 = arith.constant 0 : index
    %c0_12 = arith.constant 0 : index
    %c0_13 = arith.constant 0 : index
    %7 = vector.load %arg24[%c0_11, %c0_12, %c0_13] : memref<10x10x16xf32, #tpu.memory_space<vmem>>, vector<10x10x16xf32>
    tpu.vector_store %arg24[%c0_11, %c0_12, %c0_13], %6 {strides = array<i32>} : memref<10x10x16xf32, #tpu.memory_space<vmem>>, vector<10x10x16xf32>,
    %cst_14 = arith.constant 0.000000e+00 : f32
    %8 = vector.broadcast %cst_14 : f32 to vector<6x6x16xf32>
    %c0_15 = arith.constant 0 : index
    %c0_16 = arith.constant 0 : index
    %c0_17 = arith.constant 0 : index
    %9 = vector.load %arg25[%c0_15, %c0_16, %c0_17] : memref<6x6x16xf32, #tpu.memory_space<vmem>>, vector<6x6x16xf32>
    tpu.vector_store %arg25[%c0_15, %c0_16, %c0_17], %8 {strides = array<i32>} : memref<6x6x16xf32, #tpu.memory_space<vmem>>, vector<6x6x16xf32>,
    %cst_18 = arith.constant 0.000000e+00 : f32
    %10 = vector.broadcast %cst_18 : f32 to vector<10x10x16xf32>
    %c0_19 = arith.constant 0 : index
    %c0_20 = arith.constant 0 : index
    %c0_21 = arith.constant 0 : index
    %11 = vector.load %arg27[%c0_19, %c0_20, %c0_21] : memref<10x10x16xf32, #tpu.memory_space<vmem>>, vector<10x10x16xf32>
    tpu.vector_store %arg27[%c0_19, %c0_20, %c0_21], %10 {strides = array<i32>} : memref<10x10x16xf32, #tpu.memory_space<vmem>>, vector<10x10x16xf32>,
    %cst_22 = arith.constant 0.000000e+00 : f32
    %12 = vector.broadcast %cst_22 : f32 to vector<18x18x8xf32>
    %c0_23 = arith.constant 0 : index
    %c0_24 = arith.constant 0 : index
    %c0_25 = arith.constant 0 : index
    %13 = vector.load %arg29[%c0_23, %c0_24, %c0_25] : memref<18x18x8xf32, #tpu.memory_space<vmem>>, vector<18x18x8xf32>
    tpu.vector_store %arg29[%c0_23, %c0_24, %c0_25], %12 {strides = array<i32>} : memref<18x18x8xf32, #tpu.memory_space<vmem>>, vector<18x18x8xf32>,
    %14 = tpu.iota {dimensions = array<i32: 0>} : vector<8x16xi32>
    %15 = tpu.iota {dimensions = array<i32: 1>} : vector<8x16xi32>
    %c2_i32 = arith.constant 2 : i32
    %16 = vector.broadcast %c2_i32 : i32 to vector<8x16xi32>
    %17 = arith.muli %16, %14 : vector<8x16xi32>
    %18 = arith.cmpi eq, %15, %17 : vector<8x16xi32>
    %cst_26 = arith.constant 1.000000e+00 : f32
    %cst_27 = arith.constant 0.000000e+00 : f32
    %19 = vector.broadcast %cst_26 : f32 to vector<8x16xf32>
    %20 = vector.broadcast %cst_27 : f32 to vector<8x16xf32>
    %21 = arith.select %18, %19, %20 : vector<8x16xi1>, vector<8x16xf32>
    %c2_i32_28 = arith.constant 2 : i32
    %22 = vector.broadcast %c2_i32_28 : i32 to vector<8x16xi32>
    %23 = arith.muli %22, %14 : vector<8x16xi32>
    %c1_i32 = arith.constant 1 : i32
    %24 = vector.broadcast %c1_i32 : i32 to vector<8x16xi32>
    %25 = arith.addi %23, %24 : vector<8x16xi32>
    %26 = arith.cmpi eq, %15, %25 : vector<8x16xi32>
    %cst_29 = arith.constant 1.000000e+00 : f32
    %cst_30 = arith.constant 0.000000e+00 : f32
    %27 = vector.broadcast %cst_29 : f32 to vector<8x16xf32>
    %28 = vector.broadcast %cst_30 : f32 to vector<8x16xf32>
    %29 = arith.select %26, %27, %28 : vector<8x16xi1>, vector<8x16xf32>
    %30 = tpu.iota {dimensions = array<i32: 0>} : vector<4x8xi32>
    %31 = tpu.iota {dimensions = array<i32: 1>} : vector<4x8xi32>
    %c2_i32_31 = arith.constant 2 : i32
    %32 = vector.broadcast %c2_i32_31 : i32 to vector<4x8xi32>
    %33 = arith.muli %32, %30 : vector<4x8xi32>
    %34 = arith.cmpi eq, %31, %33 : vector<4x8xi32>
    %cst_32 = arith.constant 1.000000e+00 : f32
    %cst_33 = arith.constant 0.000000e+00 : f32
    %35 = vector.broadcast %cst_32 : f32 to vector<4x8xf32>
    %36 = vector.broadcast %cst_33 : f32 to vector<4x8xf32>
    %37 = arith.select %34, %35, %36 : vector<4x8xi1>, vector<4x8xf32>
    %c2_i32_34 = arith.constant 2 : i32
    %38 = vector.broadcast %c2_i32_34 : i32 to vector<4x8xi32>
    %39 = arith.muli %38, %30 : vector<4x8xi32>
    %c1_i32_35 = arith.constant 1 : i32
    %40 = vector.broadcast %c1_i32_35 : i32 to vector<4x8xi32>
    %41 = arith.addi %39, %40 : vector<4x8xi32>
    %42 = arith.cmpi eq, %31, %41 : vector<4x8xi32>
    %cst_36 = arith.constant 1.000000e+00 : f32
    %cst_37 = arith.constant 0.000000e+00 : f32
    %43 = vector.broadcast %cst_36 : f32 to vector<4x8xf32>
    %44 = vector.broadcast %cst_37 : f32 to vector<4x8xf32>
    %45 = arith.select %42, %43, %44 : vector<4x8xi1>, vector<4x8xf32>
    %46 = tpu.iota {dimensions = array<i32: 0>} : vector<8x4xi32>
    %47 = tpu.iota {dimensions = array<i32: 1>} : vector<8x4xi32>
    %c2_i32_38 = arith.constant 2 : i32
    %48 = vector.broadcast %c2_i32_38 : i32 to vector<8x4xi32>
    %49 = arith.muli %48, %47 : vector<8x4xi32>
    %50 = arith.cmpi eq, %46, %49 : vector<8x4xi32>
    %c2_i32_39 = arith.constant 2 : i32
    %51 = vector.broadcast %c2_i32_39 : i32 to vector<8x4xi32>
    %52 = arith.muli %51, %47 : vector<8x4xi32>
    %c1_i32_40 = arith.constant 1 : i32
    %53 = vector.broadcast %c1_i32_40 : i32 to vector<8x4xi32>
    %54 = arith.addi %52, %53 : vector<8x4xi32>
    %55 = arith.cmpi eq, %46, %54 : vector<8x4xi32>
    %56 = arith.ori %50, %55 : vector<8x4xi1>
    %cst_41 = arith.constant 1.000000e+00 : f32
    %cst_42 = arith.constant 0.000000e+00 : f32
    %57 = vector.broadcast %cst_41 : f32 to vector<8x4xf32>
    %58 = vector.broadcast %cst_42 : f32 to vector<8x4xf32>
    %59 = arith.select %56, %57, %58 : vector<8x4xi1>, vector<8x4xf32>
    %60 = tpu.iota {dimensions = array<i32: 0>} : vector<16x8xi32>
    %61 = tpu.iota {dimensions = array<i32: 1>} : vector<16x8xi32>
    %c2_i32_43 = arith.constant 2 : i32
    %62 = vector.broadcast %c2_i32_43 : i32 to vector<16x8xi32>
    %63 = arith.muli %62, %61 : vector<16x8xi32>
    %64 = arith.cmpi eq, %60, %63 : vector<16x8xi32>
    %c2_i32_44 = arith.constant 2 : i32
    %65 = vector.broadcast %c2_i32_44 : i32 to vector<16x8xi32>
    %66 = arith.muli %65, %61 : vector<16x8xi32>
    %c1_i32_45 = arith.constant 1 : i32
    %67 = vector.broadcast %c1_i32_45 : i32 to vector<16x8xi32>
    %68 = arith.addi %66, %67 : vector<16x8xi32>
    %69 = arith.cmpi eq, %60, %68 : vector<16x8xi32>
    %70 = arith.ori %64, %69 : vector<16x8xi1>
    %cst_46 = arith.constant 1.000000e+00 : f32
    %cst_47 = arith.constant 0.000000e+00 : f32
    %71 = vector.broadcast %cst_46 : f32 to vector<16x8xf32>
    %72 = vector.broadcast %cst_47 : f32 to vector<16x8xf32>
    %73 = arith.select %70, %71, %72 : vector<16x8xi1>, vector<16x8xf32>
    %c0_48 = arith.constant 0 : index
    %c0_49 = arith.constant 0 : index
    %c0_50 = arith.constant 0 : index
    %c0_51 = arith.constant 0 : index
    %74 = vector.load %arg1[%c0_48, %c0_49, %c0_50, %c0_51] : memref<1x16x16x1xf32, #tpu.memory_space<vmem>>, vector<1x16x16x1xf32>
    %75 = vector.shape_cast %74 : vector<1x16x16x1xf32> to vector<16x16x1xf32>
    %c1 = arith.constant 1 : index
    %c1_52 = arith.constant 1 : index
    %c0_53 = arith.constant 0 : index
    %76 = vector.load %arg21[%c1, %c1_52, %c0_53] : memref<18x18x1xf32, #tpu.memory_space<vmem>>, vector<16x16x1xf32>
    tpu.vector_store %arg21[%c1, %c1_52, %c0_53], %75 {strides = array<i32>} : memref<18x18x1xf32, #tpu.memory_space<vmem>>, vector<16x16x1xf32>,
    %c0_54 = arith.constant 0 : index
    %c0_55 = arith.constant 0 : index
    %77 = vector.load %arg3[%c0_54, %c0_55] : memref<1x8xf32, #tpu.memory_space<vmem>>, vector<1x8xf32>
    %c0_i32 = arith.constant 0 : i32
    %c16_i32 = arith.constant 16 : i32
    %78 = arith.addi %c0_i32, %c16_i32 : i32
    %c1_i32_56 = arith.constant 1 : i32
    scf.for %arg31 = %c0_i32 to %78 step %c1_i32_56  : i32 {
      %cst_118 = arith.constant 0.000000e+00 : f32
      %107 = vector.broadcast %cst_118 : f32 to vector<16x8xf32>
      %108 = vector.broadcast %77 : vector<1x8xf32> to vector<16x8xf32>
      %109 = arith.addf %107, %108 : vector<16x8xf32>
      %c0_i32_119 = arith.constant 0 : i32
      %110 = arith.addi %arg31, %c0_i32_119 : i32
      %111 = arith.index_cast %110 : i32 to index
      %c0_120 = arith.constant 0 : index
      %c0_121 = arith.constant 0 : index
      %112 = vector.load %arg21[%111, %c0_120, %c0_121] : memref<18x18x1xf32, #tpu.memory_space<vmem>>, vector<1x16x1xf32>
      %113 = vector.shape_cast %112 : vector<1x16x1xf32> to vector<16x1xf32>
      %c0_122 = arith.constant 0 : index
      %c0_123 = arith.constant 0 : index
      %c0_124 = arith.constant 0 : index
      %114 = vector.load %arg2[%c0_122, %c0_123, %c0_124] : memref<9x1x8xf32, #tpu.memory_space<vmem>>, vector<1x1x8xf32>
      %115 = vector.shape_cast %114 : vector<1x1x8xf32> to vector<1x8xf32>
      %116 = vector.broadcast %113 : vector<16x1xf32> to vector<16x8xf32>
      %117 = vector.broadcast %115 : vector<1x8xf32> to vector<16x8xf32>
      %118 = arith.mulf %116, %117 : vector<16x8xf32>
      %119 = arith.addf %109, %118 : vector<16x8xf32>
      %c0_i32_125 = arith.constant 0 : i32
      %120 = arith.addi %arg31, %c0_i32_125 : i32
      %121 = arith.index_cast %120 : i32 to index
      %c1_126 = arith.constant 1 : index
      %c0_127 = arith.constant 0 : index
      %122 = vector.load %arg21[%121, %c1_126, %c0_127] : memref<18x18x1xf32, #tpu.memory_space<vmem>>, vector<1x16x1xf32>
      %123 = vector.shape_cast %122 : vector<1x16x1xf32> to vector<16x1xf32>
      %c1_128 = arith.constant 1 : index
      %c0_129 = arith.constant 0 : index
      %c0_130 = arith.constant 0 : index
      %124 = vector.load %arg2[%c1_128, %c0_129, %c0_130] : memref<9x1x8xf32, #tpu.memory_space<vmem>>, vector<1x1x8xf32>
      %125 = vector.shape_cast %124 : vector<1x1x8xf32> to vector<1x8xf32>
      %126 = vector.broadcast %123 : vector<16x1xf32> to vector<16x8xf32>
      %127 = vector.broadcast %125 : vector<1x8xf32> to vector<16x8xf32>
      %128 = arith.mulf %126, %127 : vector<16x8xf32>
      %129 = arith.addf %119, %128 : vector<16x8xf32>
      %c0_i32_131 = arith.constant 0 : i32
      %130 = arith.addi %arg31, %c0_i32_131 : i32
      %131 = arith.index_cast %130 : i32 to index
      %c2 = arith.constant 2 : index
      %c0_132 = arith.constant 0 : index
      %132 = vector.load %arg21[%131, %c2, %c0_132] : memref<18x18x1xf32, #tpu.memory_space<vmem>>, vector<1x16x1xf32>
      %133 = vector.shape_cast %132 : vector<1x16x1xf32> to vector<16x1xf32>
      %c2_133 = arith.constant 2 : index
      %c0_134 = arith.constant 0 : index
      %c0_135 = arith.constant 0 : index
      %134 = vector.load %arg2[%c2_133, %c0_134, %c0_135] : memref<9x1x8xf32, #tpu.memory_space<vmem>>, vector<1x1x8xf32>
      %135 = vector.shape_cast %134 : vector<1x1x8xf32> to vector<1x8xf32>
      %136 = vector.broadcast %133 : vector<16x1xf32> to vector<16x8xf32>
      %137 = vector.broadcast %135 : vector<1x8xf32> to vector<16x8xf32>
      %138 = arith.mulf %136, %137 : vector<16x8xf32>
      %139 = arith.addf %129, %138 : vector<16x8xf32>
      %c1_i32_136 = arith.constant 1 : i32
      %140 = arith.addi %arg31, %c1_i32_136 : i32
      %141 = arith.index_cast %140 : i32 to index
      %c0_137 = arith.constant 0 : index
      %c0_138 = arith.constant 0 : index
      %142 = vector.load %arg21[%141, %c0_137, %c0_138] : memref<18x18x1xf32, #tpu.memory_space<vmem>>, vector<1x16x1xf32>
      %143 = vector.shape_cast %142 : vector<1x16x1xf32> to vector<16x1xf32>
      %c3 = arith.constant 3 : index
      %c0_139 = arith.constant 0 : index
      %c0_140 = arith.constant 0 : index
      %144 = vector.load %arg2[%c3, %c0_139, %c0_140] : memref<9x1x8xf32, #tpu.memory_space<vmem>>, vector<1x1x8xf32>
      %145 = vector.shape_cast %144 : vector<1x1x8xf32> to vector<1x8xf32>
      %146 = vector.broadcast %143 : vector<16x1xf32> to vector<16x8xf32>
      %147 = vector.broadcast %145 : vector<1x8xf32> to vector<16x8xf32>
      %148 = arith.mulf %146, %147 : vector<16x8xf32>
      %149 = arith.addf %139, %148 : vector<16x8xf32>
      %c1_i32_141 = arith.constant 1 : i32
      %150 = arith.addi %arg31, %c1_i32_141 : i32
      %151 = arith.index_cast %150 : i32 to index
      %c1_142 = arith.constant 1 : index
      %c0_143 = arith.constant 0 : index
      %152 = vector.load %arg21[%151, %c1_142, %c0_143] : memref<18x18x1xf32, #tpu.memory_space<vmem>>, vector<1x16x1xf32>
      %153 = vector.shape_cast %152 : vector<1x16x1xf32> to vector<16x1xf32>
      %c4 = arith.constant 4 : index
      %c0_144 = arith.constant 0 : index
      %c0_145 = arith.constant 0 : index
      %154 = vector.load %arg2[%c4, %c0_144, %c0_145] : memref<9x1x8xf32, #tpu.memory_space<vmem>>, vector<1x1x8xf32>
      %155 = vector.shape_cast %154 : vector<1x1x8xf32> to vector<1x8xf32>
      %156 = vector.broadcast %153 : vector<16x1xf32> to vector<16x8xf32>
      %157 = vector.broadcast %155 : vector<1x8xf32> to vector<16x8xf32>
      %158 = arith.mulf %156, %157 : vector<16x8xf32>
      %159 = arith.addf %149, %158 : vector<16x8xf32>
      %c1_i32_146 = arith.constant 1 : i32
      %160 = arith.addi %arg31, %c1_i32_146 : i32
      %161 = arith.index_cast %160 : i32 to index
      %c2_147 = arith.constant 2 : index
      %c0_148 = arith.constant 0 : index
      %162 = vector.load %arg21[%161, %c2_147, %c0_148] : memref<18x18x1xf32, #tpu.memory_space<vmem>>, vector<1x16x1xf32>
      %163 = vector.shape_cast %162 : vector<1x16x1xf32> to vector<16x1xf32>
      %c5 = arith.constant 5 : index
      %c0_149 = arith.constant 0 : index
      %c0_150 = arith.constant 0 : index
      %164 = vector.load %arg2[%c5, %c0_149, %c0_150] : memref<9x1x8xf32, #tpu.memory_space<vmem>>, vector<1x1x8xf32>
      %165 = vector.shape_cast %164 : vector<1x1x8xf32> to vector<1x8xf32>
      %166 = vector.broadcast %163 : vector<16x1xf32> to vector<16x8xf32>
      %167 = vector.broadcast %165 : vector<1x8xf32> to vector<16x8xf32>
      %168 = arith.mulf %166, %167 : vector<16x8xf32>
      %169 = arith.addf %159, %168 : vector<16x8xf32>
      %c2_i32_151 = arith.constant 2 : i32
      %170 = arith.addi %arg31, %c2_i32_151 : i32
      %171 = arith.index_cast %170 : i32 to index
      %c0_152 = arith.constant 0 : index
      %c0_153 = arith.constant 0 : index
      %172 = vector.load %arg21[%171, %c0_152, %c0_153] : memref<18x18x1xf32, #tpu.memory_space<vmem>>, vector<1x16x1xf32>
      %173 = vector.shape_cast %172 : vector<1x16x1xf32> to vector<16x1xf32>
      %c6 = arith.constant 6 : index
      %c0_154 = arith.constant 0 : index
      %c0_155 = arith.constant 0 : index
      %174 = vector.load %arg2[%c6, %c0_154, %c0_155] : memref<9x1x8xf32, #tpu.memory_space<vmem>>, vector<1x1x8xf32>
      %175 = vector.shape_cast %174 : vector<1x1x8xf32> to vector<1x8xf32>
      %176 = vector.broadcast %173 : vector<16x1xf32> to vector<16x8xf32>
      %177 = vector.broadcast %175 : vector<1x8xf32> to vector<16x8xf32>
      %178 = arith.mulf %176, %177 : vector<16x8xf32>
      %179 = arith.addf %169, %178 : vector<16x8xf32>
      %c2_i32_156 = arith.constant 2 : i32
      %180 = arith.addi %arg31, %c2_i32_156 : i32
      %181 = arith.index_cast %180 : i32 to index
      %c1_157 = arith.constant 1 : index
      %c0_158 = arith.constant 0 : index
      %182 = vector.load %arg21[%181, %c1_157, %c0_158] : memref<18x18x1xf32, #tpu.memory_space<vmem>>, vector<1x16x1xf32>
      %183 = vector.shape_cast %182 : vector<1x16x1xf32> to vector<16x1xf32>
      %c7 = arith.constant 7 : index
      %c0_159 = arith.constant 0 : index
      %c0_160 = arith.constant 0 : index
      %184 = vector.load %arg2[%c7, %c0_159, %c0_160] : memref<9x1x8xf32, #tpu.memory_space<vmem>>, vector<1x1x8xf32>
      %185 = vector.shape_cast %184 : vector<1x1x8xf32> to vector<1x8xf32>
      %186 = vector.broadcast %183 : vector<16x1xf32> to vector<16x8xf32>
      %187 = vector.broadcast %185 : vector<1x8xf32> to vector<16x8xf32>
      %188 = arith.mulf %186, %187 : vector<16x8xf32>
      %189 = arith.addf %179, %188 : vector<16x8xf32>
      %c2_i32_161 = arith.constant 2 : i32
      %190 = arith.addi %arg31, %c2_i32_161 : i32
      %191 = arith.index_cast %190 : i32 to index
      %c2_162 = arith.constant 2 : index
      %c0_163 = arith.constant 0 : index
      %192 = vector.load %arg21[%191, %c2_162, %c0_163] : memref<18x18x1xf32, #tpu.memory_space<vmem>>, vector<1x16x1xf32>
      %193 = vector.shape_cast %192 : vector<1x16x1xf32> to vector<16x1xf32>
      %c8 = arith.constant 8 : index
      %c0_164 = arith.constant 0 : index
      %c0_165 = arith.constant 0 : index
      %194 = vector.load %arg2[%c8, %c0_164, %c0_165] : memref<9x1x8xf32, #tpu.memory_space<vmem>>, vector<1x1x8xf32>
      %195 = vector.shape_cast %194 : vector<1x1x8xf32> to vector<1x8xf32>
      %196 = vector.broadcast %193 : vector<16x1xf32> to vector<16x8xf32>
      %197 = vector.broadcast %195 : vector<1x8xf32> to vector<16x8xf32>
      %198 = arith.mulf %196, %197 : vector<16x8xf32>
      %199 = arith.addf %189, %198 : vector<16x8xf32>
      %cst_166 = arith.constant 0.000000e+00 : f32
      %200 = vector.broadcast %cst_166 : f32 to vector<16x8xf32>
      %201 = arith.maximumf %199, %200 : vector<16x8xf32>
      %c1_i32_167 = arith.constant 1 : i32
      %202 = arith.addi %arg31, %c1_i32_167 : i32
      %203 = arith.index_cast %202 : i32 to index
      %c1_168 = arith.constant 1 : index
      %c0_169 = arith.constant 0 : index
      %204 = vector.load %arg22[%203, %c1_168, %c0_169] : memref<18x18x8xf32, #tpu.memory_space<vmem>>, vector<1x16x8xf32>
      %205 = vector.shape_cast %204 : vector<1x16x8xf32> to vector<16x8xf32>
      %206 = vector.shape_cast %201 : vector<16x8xf32> to vector<1x16x8xf32>
      tpu.vector_store %arg22[%203, %c1_168, %c0_169], %206 {strides = array<i32>} : memref<18x18x8xf32, #tpu.memory_space<vmem>>, vector<1x16x8xf32>,
    }
    %c16_i32_57 = arith.constant 16 : i32
    %c0_i32_58 = arith.constant 0 : i32
    %c8_i32 = arith.constant 8 : i32
    %79 = arith.addi %c0_i32_58, %c8_i32 : i32
    %c1_i32_59 = arith.constant 1 : i32
    scf.for %arg31 = %c0_i32_58 to %79 step %c1_i32_59  : i32 {
      %c2_i32_118 = arith.constant 2 : i32
      %107 = arith.muli %c2_i32_118, %arg31 : i32
      %c1_i32_119 = arith.constant 1 : i32
      %108 = arith.addi %107, %c1_i32_119 : i32
      %109 = arith.index_cast %108 : i32 to index
      %c1_120 = arith.constant 1 : index
      %c0_121 = arith.constant 0 : index
      %110 = vector.load %arg22[%109, %c1_120, %c0_121] : memref<18x18x8xf32, #tpu.memory_space<vmem>>, vector<1x16x8xf32>
      %111 = vector.shape_cast %110 : vector<1x16x8xf32> to vector<16x8xf32>
      %c2_i32_122 = arith.constant 2 : i32
      %112 = arith.muli %c2_i32_122, %arg31 : i32
      %c2_i32_123 = arith.constant 2 : i32
      %113 = arith.addi %112, %c2_i32_123 : i32
      %114 = arith.index_cast %113 : i32 to index
      %c1_124 = arith.constant 1 : index
      %c0_125 = arith.constant 0 : index
      %115 = vector.load %arg22[%114, %c1_124, %c0_125] : memref<18x18x8xf32, #tpu.memory_space<vmem>>, vector<1x16x8xf32>
      %116 = vector.shape_cast %115 : vector<1x16x8xf32> to vector<16x8xf32>
      %117 = arith.maximumf %111, %116 : vector<16x8xf32>
      %cst_126 = arith.constant dense<0.000000e+00> : vector<8x8xf32>
      %118 = tpu.matmul %21, %117, %cst_126 {dimension_numbers = #tpu.dot_dimension_numbers<[1], [0], [0], [1], [0, 0, 1, 1], [], []>} : vector<8x16xf32>, vector<16x8xf32>, vector<8x8xf32> -> vector<8x8xf32>
      %cst_127 = arith.constant dense<0.000000e+00> : vector<8x8xf32>
      %119 = tpu.matmul %29, %117, %cst_127 {dimension_numbers = #tpu.dot_dimension_numbers<[1], [0], [0], [1], [0, 0, 1, 1], [], []>} : vector<8x16xf32>, vector<16x8xf32>, vector<8x8xf32> -> vector<8x8xf32>
      %120 = arith.maximumf %118, %119 : vector<8x8xf32>
      %c1_i32_128 = arith.constant 1 : i32
      %121 = arith.addi %arg31, %c1_i32_128 : i32
      %122 = arith.index_cast %121 : i32 to index
      %c1_129 = arith.constant 1 : index
      %c0_130 = arith.constant 0 : index
      %123 = vector.load %arg23[%122, %c1_129, %c0_130] : memref<10x10x8xf32, #tpu.memory_space<vmem>>, vector<1x8x8xf32>
      %124 = vector.shape_cast %123 : vector<1x8x8xf32> to vector<8x8xf32>
      %125 = vector.shape_cast %120 : vector<8x8xf32> to vector<1x8x8xf32>
      tpu.vector_store %arg23[%122, %c1_129, %c0_130], %125 {strides = array<i32>} : memref<10x10x8xf32, #tpu.memory_space<vmem>>, vector<1x8x8xf32>,
    }
    %c8_i32_60 = arith.constant 8 : i32
    %c0_61 = arith.constant 0 : index
    %c0_62 = arith.constant 0 : index
    %80 = vector.load %arg5[%c0_61, %c0_62] : memref<1x16xf32, #tpu.memory_space<vmem>>, vector<1x16xf32>
    %c0_i32_63 = arith.constant 0 : i32
    %c8_i32_64 = arith.constant 8 : i32
    %81 = arith.addi %c0_i32_63, %c8_i32_64 : i32
    %c1_i32_65 = arith.constant 1 : i32
    scf.for %arg31 = %c0_i32_63 to %81 step %c1_i32_65  : i32 {
      %cst_118 = arith.constant 0.000000e+00 : f32
      %107 = vector.broadcast %cst_118 : f32 to vector<8x16xf32>
      %108 = vector.broadcast %80 : vector<1x16xf32> to vector<8x16xf32>
      %109 = arith.addf %107, %108 : vector<8x16xf32>
      %c0_i32_119 = arith.constant 0 : i32
      %110 = arith.addi %arg31, %c0_i32_119 : i32
      %111 = arith.index_cast %110 : i32 to index
      %c0_120 = arith.constant 0 : index
      %c0_121 = arith.constant 0 : index
      %112 = vector.load %arg23[%111, %c0_120, %c0_121] : memref<10x10x8xf32, #tpu.memory_space<vmem>>, vector<1x8x8xf32>
      %113 = vector.shape_cast %112 : vector<1x8x8xf32> to vector<8x8xf32>
      %c0_122 = arith.constant 0 : index
      %c0_123 = arith.constant 0 : index
      %c0_124 = arith.constant 0 : index
      %114 = vector.load %arg4[%c0_122, %c0_123, %c0_124] : memref<9x8x16xf32, #tpu.memory_space<vmem>>, vector<1x8x16xf32>
      %115 = vector.shape_cast %114 : vector<1x8x16xf32> to vector<8x16xf32>
      %cst_125 = arith.constant dense<0.000000e+00> : vector<8x16xf32>
      %116 = tpu.matmul %113, %115, %cst_125 {dimension_numbers = #tpu.dot_dimension_numbers<[1], [0], [0], [1], [0, 0, 1, 1], [], []>} : vector<8x8xf32>, vector<8x16xf32>, vector<8x16xf32> -> vector<8x16xf32>
      %117 = arith.addf %109, %116 : vector<8x16xf32>
      %c0_i32_126 = arith.constant 0 : i32
      %118 = arith.addi %arg31, %c0_i32_126 : i32
      %119 = arith.index_cast %118 : i32 to index
      %c1_127 = arith.constant 1 : index
      %c0_128 = arith.constant 0 : index
      %120 = vector.load %arg23[%119, %c1_127, %c0_128] : memref<10x10x8xf32, #tpu.memory_space<vmem>>, vector<1x8x8xf32>
      %121 = vector.shape_cast %120 : vector<1x8x8xf32> to vector<8x8xf32>
      %c1_129 = arith.constant 1 : index
      %c0_130 = arith.constant 0 : index
      %c0_131 = arith.constant 0 : index
      %122 = vector.load %arg4[%c1_129, %c0_130, %c0_131] : memref<9x8x16xf32, #tpu.memory_space<vmem>>, vector<1x8x16xf32>
      %123 = vector.shape_cast %122 : vector<1x8x16xf32> to vector<8x16xf32>
      %cst_132 = arith.constant dense<0.000000e+00> : vector<8x16xf32>
      %124 = tpu.matmul %121, %123, %cst_132 {dimension_numbers = #tpu.dot_dimension_numbers<[1], [0], [0], [1], [0, 0, 1, 1], [], []>} : vector<8x8xf32>, vector<8x16xf32>, vector<8x16xf32> -> vector<8x16xf32>
      %125 = arith.addf %117, %124 : vector<8x16xf32>
      %c0_i32_133 = arith.constant 0 : i32
      %126 = arith.addi %arg31, %c0_i32_133 : i32
      %127 = arith.index_cast %126 : i32 to index
      %c2 = arith.constant 2 : index
      %c0_134 = arith.constant 0 : index
      %128 = vector.load %arg23[%127, %c2, %c0_134] : memref<10x10x8xf32, #tpu.memory_space<vmem>>, vector<1x8x8xf32>
      %129 = vector.shape_cast %128 : vector<1x8x8xf32> to vector<8x8xf32>
      %c2_135 = arith.constant 2 : index
      %c0_136 = arith.constant 0 : index
      %c0_137 = arith.constant 0 : index
      %130 = vector.load %arg4[%c2_135, %c0_136, %c0_137] : memref<9x8x16xf32, #tpu.memory_space<vmem>>, vector<1x8x16xf32>
      %131 = vector.shape_cast %130 : vector<1x8x16xf32> to vector<8x16xf32>
      %cst_138 = arith.constant dense<0.000000e+00> : vector<8x16xf32>
      %132 = tpu.matmul %129, %131, %cst_138 {dimension_numbers = #tpu.dot_dimension_numbers<[1], [0], [0], [1], [0, 0, 1, 1], [], []>} : vector<8x8xf32>, vector<8x16xf32>, vector<8x16xf32> -> vector<8x16xf32>
      %133 = arith.addf %125, %132 : vector<8x16xf32>
      %c1_i32_139 = arith.constant 1 : i32
      %134 = arith.addi %arg31, %c1_i32_139 : i32
      %135 = arith.index_cast %134 : i32 to index
      %c0_140 = arith.constant 0 : index
      %c0_141 = arith.constant 0 : index
      %136 = vector.load %arg23[%135, %c0_140, %c0_141] : memref<10x10x8xf32, #tpu.memory_space<vmem>>, vector<1x8x8xf32>
      %137 = vector.shape_cast %136 : vector<1x8x8xf32> to vector<8x8xf32>
      %c3 = arith.constant 3 : index
      %c0_142 = arith.constant 0 : index
      %c0_143 = arith.constant 0 : index
      %138 = vector.load %arg4[%c3, %c0_142, %c0_143] : memref<9x8x16xf32, #tpu.memory_space<vmem>>, vector<1x8x16xf32>
      %139 = vector.shape_cast %138 : vector<1x8x16xf32> to vector<8x16xf32>
      %cst_144 = arith.constant dense<0.000000e+00> : vector<8x16xf32>
      %140 = tpu.matmul %137, %139, %cst_144 {dimension_numbers = #tpu.dot_dimension_numbers<[1], [0], [0], [1], [0, 0, 1, 1], [], []>} : vector<8x8xf32>, vector<8x16xf32>, vector<8x16xf32> -> vector<8x16xf32>
      %141 = arith.addf %133, %140 : vector<8x16xf32>
      %c1_i32_145 = arith.constant 1 : i32
      %142 = arith.addi %arg31, %c1_i32_145 : i32
      %143 = arith.index_cast %142 : i32 to index
      %c1_146 = arith.constant 1 : index
      %c0_147 = arith.constant 0 : index
      %144 = vector.load %arg23[%143, %c1_146, %c0_147] : memref<10x10x8xf32, #tpu.memory_space<vmem>>, vector<1x8x8xf32>
      %145 = vector.shape_cast %144 : vector<1x8x8xf32> to vector<8x8xf32>
      %c4 = arith.constant 4 : index
      %c0_148 = arith.constant 0 : index
      %c0_149 = arith.constant 0 : index
      %146 = vector.load %arg4[%c4, %c0_148, %c0_149] : memref<9x8x16xf32, #tpu.memory_space<vmem>>, vector<1x8x16xf32>
      %147 = vector.shape_cast %146 : vector<1x8x16xf32> to vector<8x16xf32>
      %cst_150 = arith.constant dense<0.000000e+00> : vector<8x16xf32>
      %148 = tpu.matmul %145, %147, %cst_150 {dimension_numbers = #tpu.dot_dimension_numbers<[1], [0], [0], [1], [0, 0, 1, 1], [], []>} : vector<8x8xf32>, vector<8x16xf32>, vector<8x16xf32> -> vector<8x16xf32>
      %149 = arith.addf %141, %148 : vector<8x16xf32>
      %c1_i32_151 = arith.constant 1 : i32
      %150 = arith.addi %arg31, %c1_i32_151 : i32
      %151 = arith.index_cast %150 : i32 to index
      %c2_152 = arith.constant 2 : index
      %c0_153 = arith.constant 0 : index
      %152 = vector.load %arg23[%151, %c2_152, %c0_153] : memref<10x10x8xf32, #tpu.memory_space<vmem>>, vector<1x8x8xf32>
      %153 = vector.shape_cast %152 : vector<1x8x8xf32> to vector<8x8xf32>
      %c5 = arith.constant 5 : index
      %c0_154 = arith.constant 0 : index
      %c0_155 = arith.constant 0 : index
      %154 = vector.load %arg4[%c5, %c0_154, %c0_155] : memref<9x8x16xf32, #tpu.memory_space<vmem>>, vector<1x8x16xf32>
      %155 = vector.shape_cast %154 : vector<1x8x16xf32> to vector<8x16xf32>
      %cst_156 = arith.constant dense<0.000000e+00> : vector<8x16xf32>
      %156 = tpu.matmul %153, %155, %cst_156 {dimension_numbers = #tpu.dot_dimension_numbers<[1], [0], [0], [1], [0, 0, 1, 1], [], []>} : vector<8x8xf32>, vector<8x16xf32>, vector<8x16xf32> -> vector<8x16xf32>
      %157 = arith.addf %149, %156 : vector<8x16xf32>
      %c2_i32_157 = arith.constant 2 : i32
      %158 = arith.addi %arg31, %c2_i32_157 : i32
      %159 = arith.index_cast %158 : i32 to index
      %c0_158 = arith.constant 0 : index
      %c0_159 = arith.constant 0 : index
      %160 = vector.load %arg23[%159, %c0_158, %c0_159] : memref<10x10x8xf32, #tpu.memory_space<vmem>>, vector<1x8x8xf32>
      %161 = vector.shape_cast %160 : vector<1x8x8xf32> to vector<8x8xf32>
      %c6 = arith.constant 6 : index
      %c0_160 = arith.constant 0 : index
      %c0_161 = arith.constant 0 : index
      %162 = vector.load %arg4[%c6, %c0_160, %c0_161] : memref<9x8x16xf32, #tpu.memory_space<vmem>>, vector<1x8x16xf32>
      %163 = vector.shape_cast %162 : vector<1x8x16xf32> to vector<8x16xf32>
      %cst_162 = arith.constant dense<0.000000e+00> : vector<8x16xf32>
      %164 = tpu.matmul %161, %163, %cst_162 {dimension_numbers = #tpu.dot_dimension_numbers<[1], [0], [0], [1], [0, 0, 1, 1], [], []>} : vector<8x8xf32>, vector<8x16xf32>, vector<8x16xf32> -> vector<8x16xf32>
      %165 = arith.addf %157, %164 : vector<8x16xf32>
      %c2_i32_163 = arith.constant 2 : i32
      %166 = arith.addi %arg31, %c2_i32_163 : i32
      %167 = arith.index_cast %166 : i32 to index
      %c1_164 = arith.constant 1 : index
      %c0_165 = arith.constant 0 : index
      %168 = vector.load %arg23[%167, %c1_164, %c0_165] : memref<10x10x8xf32, #tpu.memory_space<vmem>>, vector<1x8x8xf32>
      %169 = vector.shape_cast %168 : vector<1x8x8xf32> to vector<8x8xf32>
      %c7 = arith.constant 7 : index
      %c0_166 = arith.constant 0 : index
      %c0_167 = arith.constant 0 : index
      %170 = vector.load %arg4[%c7, %c0_166, %c0_167] : memref<9x8x16xf32, #tpu.memory_space<vmem>>, vector<1x8x16xf32>
      %171 = vector.shape_cast %170 : vector<1x8x16xf32> to vector<8x16xf32>
      %cst_168 = arith.constant dense<0.000000e+00> : vector<8x16xf32>
      %172 = tpu.matmul %169, %171, %cst_168 {dimension_numbers = #tpu.dot_dimension_numbers<[1], [0], [0], [1], [0, 0, 1, 1], [], []>} : vector<8x8xf32>, vector<8x16xf32>, vector<8x16xf32> -> vector<8x16xf32>
      %173 = arith.addf %165, %172 : vector<8x16xf32>
      %c2_i32_169 = arith.constant 2 : i32
      %174 = arith.addi %arg31, %c2_i32_169 : i32
      %175 = arith.index_cast %174 : i32 to index
      %c2_170 = arith.constant 2 : index
      %c0_171 = arith.constant 0 : index
      %176 = vector.load %arg23[%175, %c2_170, %c0_171] : memref<10x10x8xf32, #tpu.memory_space<vmem>>, vector<1x8x8xf32>
      %177 = vector.shape_cast %176 : vector<1x8x8xf32> to vector<8x8xf32>
      %c8 = arith.constant 8 : index
      %c0_172 = arith.constant 0 : index
      %c0_173 = arith.constant 0 : index
      %178 = vector.load %arg4[%c8, %c0_172, %c0_173] : memref<9x8x16xf32, #tpu.memory_space<vmem>>, vector<1x8x16xf32>
      %179 = vector.shape_cast %178 : vector<1x8x16xf32> to vector<8x16xf32>
      %cst_174 = arith.constant dense<0.000000e+00> : vector<8x16xf32>
      %180 = tpu.matmul %177, %179, %cst_174 {dimension_numbers = #tpu.dot_dimension_numbers<[1], [0], [0], [1], [0, 0, 1, 1], [], []>} : vector<8x8xf32>, vector<8x16xf32>, vector<8x16xf32> -> vector<8x16xf32>
      %181 = arith.addf %173, %180 : vector<8x16xf32>
      %cst_175 = arith.constant 0.000000e+00 : f32
      %182 = vector.broadcast %cst_175 : f32 to vector<8x16xf32>
      %183 = arith.maximumf %181, %182 : vector<8x16xf32>
      %c1_i32_176 = arith.constant 1 : i32
      %184 = arith.addi %arg31, %c1_i32_176 : i32
      %185 = arith.index_cast %184 : i32 to index
      %c1_177 = arith.constant 1 : index
      %c0_178 = arith.constant 0 : index
      %186 = vector.load %arg24[%185, %c1_177, %c0_178] : memref<10x10x16xf32, #tpu.memory_space<vmem>>, vector<1x8x16xf32>
      %187 = vector.shape_cast %186 : vector<1x8x16xf32> to vector<8x16xf32>
      %188 = vector.shape_cast %183 : vector<8x16xf32> to vector<1x8x16xf32>
      tpu.vector_store %arg24[%185, %c1_177, %c0_178], %188 {strides = array<i32>} : memref<10x10x16xf32, #tpu.memory_space<vmem>>, vector<1x8x16xf32>,
    }
    %c8_i32_66 = arith.constant 8 : i32
    %c0_i32_67 = arith.constant 0 : i32
    %c4_i32 = arith.constant 4 : i32
    %82 = arith.addi %c0_i32_67, %c4_i32 : i32
    %c1_i32_68 = arith.constant 1 : i32
    scf.for %arg31 = %c0_i32_67 to %82 step %c1_i32_68  : i32 {
      %c2_i32_118 = arith.constant 2 : i32
      %107 = arith.muli %c2_i32_118, %arg31 : i32
      %c1_i32_119 = arith.constant 1 : i32
      %108 = arith.addi %107, %c1_i32_119 : i32
      %109 = arith.index_cast %108 : i32 to index
      %c1_120 = arith.constant 1 : index
      %c0_121 = arith.constant 0 : index
      %110 = vector.load %arg24[%109, %c1_120, %c0_121] : memref<10x10x16xf32, #tpu.memory_space<vmem>>, vector<1x8x16xf32>
      %111 = vector.shape_cast %110 : vector<1x8x16xf32> to vector<8x16xf32>
      %c2_i32_122 = arith.constant 2 : i32
      %112 = arith.muli %c2_i32_122, %arg31 : i32
      %c2_i32_123 = arith.constant 2 : i32
      %113 = arith.addi %112, %c2_i32_123 : i32
      %114 = arith.index_cast %113 : i32 to index
      %c1_124 = arith.constant 1 : index
      %c0_125 = arith.constant 0 : index
      %115 = vector.load %arg24[%114, %c1_124, %c0_125] : memref<10x10x16xf32, #tpu.memory_space<vmem>>, vector<1x8x16xf32>
      %116 = vector.shape_cast %115 : vector<1x8x16xf32> to vector<8x16xf32>
      %117 = arith.maximumf %111, %116 : vector<8x16xf32>
      %cst_126 = arith.constant dense<0.000000e+00> : vector<4x16xf32>
      %118 = tpu.matmul %37, %117, %cst_126 {dimension_numbers = #tpu.dot_dimension_numbers<[1], [0], [0], [1], [0, 0, 1, 1], [], []>} : vector<4x8xf32>, vector<8x16xf32>, vector<4x16xf32> -> vector<4x16xf32>
      %cst_127 = arith.constant dense<0.000000e+00> : vector<4x16xf32>
      %119 = tpu.matmul %45, %117, %cst_127 {dimension_numbers = #tpu.dot_dimension_numbers<[1], [0], [0], [1], [0, 0, 1, 1], [], []>} : vector<4x8xf32>, vector<8x16xf32>, vector<4x16xf32> -> vector<4x16xf32>
      %120 = arith.maximumf %118, %119 : vector<4x16xf32>
      %c1_i32_128 = arith.constant 1 : i32
      %121 = arith.addi %arg31, %c1_i32_128 : i32
      %122 = arith.index_cast %121 : i32 to index
      %c1_129 = arith.constant 1 : index
      %c0_130 = arith.constant 0 : index
      %123 = vector.load %arg25[%122, %c1_129, %c0_130] : memref<6x6x16xf32, #tpu.memory_space<vmem>>, vector<1x4x16xf32>
      %124 = vector.shape_cast %123 : vector<1x4x16xf32> to vector<4x16xf32>
      %125 = vector.shape_cast %120 : vector<4x16xf32> to vector<1x4x16xf32>
      tpu.vector_store %arg25[%122, %c1_129, %c0_130], %125 {strides = array<i32>} : memref<6x6x16xf32, #tpu.memory_space<vmem>>, vector<1x4x16xf32>,
    }
    %c4_i32_69 = arith.constant 4 : i32
    %c0_70 = arith.constant 0 : index
    %c0_71 = arith.constant 0 : index
    %83 = vector.load %arg7[%c0_70, %c0_71] : memref<1x32xf32, #tpu.memory_space<vmem>>, vector<1x32xf32>
    %c0_i32_72 = arith.constant 0 : i32
    %c4_i32_73 = arith.constant 4 : i32
    %84 = arith.addi %c0_i32_72, %c4_i32_73 : i32
    %c1_i32_74 = arith.constant 1 : i32
    scf.for %arg31 = %c0_i32_72 to %84 step %c1_i32_74  : i32 {
      %cst_118 = arith.constant 0.000000e+00 : f32
      %107 = vector.broadcast %cst_118 : f32 to vector<4x32xf32>
      %108 = vector.broadcast %83 : vector<1x32xf32> to vector<4x32xf32>
      %109 = arith.addf %107, %108 : vector<4x32xf32>
      %c0_i32_119 = arith.constant 0 : i32
      %110 = arith.addi %arg31, %c0_i32_119 : i32
      %111 = arith.index_cast %110 : i32 to index
      %c0_120 = arith.constant 0 : index
      %c0_121 = arith.constant 0 : index
      %112 = vector.load %arg25[%111, %c0_120, %c0_121] : memref<6x6x16xf32, #tpu.memory_space<vmem>>, vector<1x4x16xf32>
      %113 = vector.shape_cast %112 : vector<1x4x16xf32> to vector<4x16xf32>
      %c0_122 = arith.constant 0 : index
      %c0_123 = arith.constant 0 : index
      %c0_124 = arith.constant 0 : index
      %114 = vector.load %arg6[%c0_122, %c0_123, %c0_124] : memref<9x16x32xf32, #tpu.memory_space<vmem>>, vector<1x16x32xf32>
      %115 = vector.shape_cast %114 : vector<1x16x32xf32> to vector<16x32xf32>
      %cst_125 = arith.constant dense<0.000000e+00> : vector<4x32xf32>
      %116 = tpu.matmul %113, %115, %cst_125 {dimension_numbers = #tpu.dot_dimension_numbers<[1], [0], [0], [1], [0, 0, 1, 1], [], []>} : vector<4x16xf32>, vector<16x32xf32>, vector<4x32xf32> -> vector<4x32xf32>
      %117 = arith.addf %109, %116 : vector<4x32xf32>
      %c0_i32_126 = arith.constant 0 : i32
      %118 = arith.addi %arg31, %c0_i32_126 : i32
      %119 = arith.index_cast %118 : i32 to index
      %c1_127 = arith.constant 1 : index
      %c0_128 = arith.constant 0 : index
      %120 = vector.load %arg25[%119, %c1_127, %c0_128] : memref<6x6x16xf32, #tpu.memory_space<vmem>>, vector<1x4x16xf32>
      %121 = vector.shape_cast %120 : vector<1x4x16xf32> to vector<4x16xf32>
      %c1_129 = arith.constant 1 : index
      %c0_130 = arith.constant 0 : index
      %c0_131 = arith.constant 0 : index
      %122 = vector.load %arg6[%c1_129, %c0_130, %c0_131] : memref<9x16x32xf32, #tpu.memory_space<vmem>>, vector<1x16x32xf32>
      %123 = vector.shape_cast %122 : vector<1x16x32xf32> to vector<16x32xf32>
      %cst_132 = arith.constant dense<0.000000e+00> : vector<4x32xf32>
      %124 = tpu.matmul %121, %123, %cst_132 {dimension_numbers = #tpu.dot_dimension_numbers<[1], [0], [0], [1], [0, 0, 1, 1], [], []>} : vector<4x16xf32>, vector<16x32xf32>, vector<4x32xf32> -> vector<4x32xf32>
      %125 = arith.addf %117, %124 : vector<4x32xf32>
      %c0_i32_133 = arith.constant 0 : i32
      %126 = arith.addi %arg31, %c0_i32_133 : i32
      %127 = arith.index_cast %126 : i32 to index
      %c2 = arith.constant 2 : index
      %c0_134 = arith.constant 0 : index
      %128 = vector.load %arg25[%127, %c2, %c0_134] : memref<6x6x16xf32, #tpu.memory_space<vmem>>, vector<1x4x16xf32>
      %129 = vector.shape_cast %128 : vector<1x4x16xf32> to vector<4x16xf32>
      %c2_135 = arith.constant 2 : index
      %c0_136 = arith.constant 0 : index
      %c0_137 = arith.constant 0 : index
      %130 = vector.load %arg6[%c2_135, %c0_136, %c0_137] : memref<9x16x32xf32, #tpu.memory_space<vmem>>, vector<1x16x32xf32>
      %131 = vector.shape_cast %130 : vector<1x16x32xf32> to vector<16x32xf32>
      %cst_138 = arith.constant dense<0.000000e+00> : vector<4x32xf32>
      %132 = tpu.matmul %129, %131, %cst_138 {dimension_numbers = #tpu.dot_dimension_numbers<[1], [0], [0], [1], [0, 0, 1, 1], [], []>} : vector<4x16xf32>, vector<16x32xf32>, vector<4x32xf32> -> vector<4x32xf32>
      %133 = arith.addf %125, %132 : vector<4x32xf32>
      %c1_i32_139 = arith.constant 1 : i32
      %134 = arith.addi %arg31, %c1_i32_139 : i32
      %135 = arith.index_cast %134 : i32 to index
      %c0_140 = arith.constant 0 : index
      %c0_141 = arith.constant 0 : index
      %136 = vector.load %arg25[%135, %c0_140, %c0_141] : memref<6x6x16xf32, #tpu.memory_space<vmem>>, vector<1x4x16xf32>
      %137 = vector.shape_cast %136 : vector<1x4x16xf32> to vector<4x16xf32>
      %c3 = arith.constant 3 : index
      %c0_142 = arith.constant 0 : index
      %c0_143 = arith.constant 0 : index
      %138 = vector.load %arg6[%c3, %c0_142, %c0_143] : memref<9x16x32xf32, #tpu.memory_space<vmem>>, vector<1x16x32xf32>
      %139 = vector.shape_cast %138 : vector<1x16x32xf32> to vector<16x32xf32>
      %cst_144 = arith.constant dense<0.000000e+00> : vector<4x32xf32>
      %140 = tpu.matmul %137, %139, %cst_144 {dimension_numbers = #tpu.dot_dimension_numbers<[1], [0], [0], [1], [0, 0, 1, 1], [], []>} : vector<4x16xf32>, vector<16x32xf32>, vector<4x32xf32> -> vector<4x32xf32>
      %141 = arith.addf %133, %140 : vector<4x32xf32>
      %c1_i32_145 = arith.constant 1 : i32
      %142 = arith.addi %arg31, %c1_i32_145 : i32
      %143 = arith.index_cast %142 : i32 to index
      %c1_146 = arith.constant 1 : index
      %c0_147 = arith.constant 0 : index
      %144 = vector.load %arg25[%143, %c1_146, %c0_147] : memref<6x6x16xf32, #tpu.memory_space<vmem>>, vector<1x4x16xf32>
      %145 = vector.shape_cast %144 : vector<1x4x16xf32> to vector<4x16xf32>
      %c4 = arith.constant 4 : index
      %c0_148 = arith.constant 0 : index
      %c0_149 = arith.constant 0 : index
      %146 = vector.load %arg6[%c4, %c0_148, %c0_149] : memref<9x16x32xf32, #tpu.memory_space<vmem>>, vector<1x16x32xf32>
      %147 = vector.shape_cast %146 : vector<1x16x32xf32> to vector<16x32xf32>
      %cst_150 = arith.constant dense<0.000000e+00> : vector<4x32xf32>
      %148 = tpu.matmul %145, %147, %cst_150 {dimension_numbers = #tpu.dot_dimension_numbers<[1], [0], [0], [1], [0, 0, 1, 1], [], []>} : vector<4x16xf32>, vector<16x32xf32>, vector<4x32xf32> -> vector<4x32xf32>
      %149 = arith.addf %141, %148 : vector<4x32xf32>
      %c1_i32_151 = arith.constant 1 : i32
      %150 = arith.addi %arg31, %c1_i32_151 : i32
      %151 = arith.index_cast %150 : i32 to index
      %c2_152 = arith.constant 2 : index
      %c0_153 = arith.constant 0 : index
      %152 = vector.load %arg25[%151, %c2_152, %c0_153] : memref<6x6x16xf32, #tpu.memory_space<vmem>>, vector<1x4x16xf32>
      %153 = vector.shape_cast %152 : vector<1x4x16xf32> to vector<4x16xf32>
      %c5 = arith.constant 5 : index
      %c0_154 = arith.constant 0 : index
      %c0_155 = arith.constant 0 : index
      %154 = vector.load %arg6[%c5, %c0_154, %c0_155] : memref<9x16x32xf32, #tpu.memory_space<vmem>>, vector<1x16x32xf32>
      %155 = vector.shape_cast %154 : vector<1x16x32xf32> to vector<16x32xf32>
      %cst_156 = arith.constant dense<0.000000e+00> : vector<4x32xf32>
      %156 = tpu.matmul %153, %155, %cst_156 {dimension_numbers = #tpu.dot_dimension_numbers<[1], [0], [0], [1], [0, 0, 1, 1], [], []>} : vector<4x16xf32>, vector<16x32xf32>, vector<4x32xf32> -> vector<4x32xf32>
      %157 = arith.addf %149, %156 : vector<4x32xf32>
      %c2_i32_157 = arith.constant 2 : i32
      %158 = arith.addi %arg31, %c2_i32_157 : i32
      %159 = arith.index_cast %158 : i32 to index
      %c0_158 = arith.constant 0 : index
      %c0_159 = arith.constant 0 : index
      %160 = vector.load %arg25[%159, %c0_158, %c0_159] : memref<6x6x16xf32, #tpu.memory_space<vmem>>, vector<1x4x16xf32>
      %161 = vector.shape_cast %160 : vector<1x4x16xf32> to vector<4x16xf32>
      %c6 = arith.constant 6 : index
      %c0_160 = arith.constant 0 : index
      %c0_161 = arith.constant 0 : index
      %162 = vector.load %arg6[%c6, %c0_160, %c0_161] : memref<9x16x32xf32, #tpu.memory_space<vmem>>, vector<1x16x32xf32>
      %163 = vector.shape_cast %162 : vector<1x16x32xf32> to vector<16x32xf32>
      %cst_162 = arith.constant dense<0.000000e+00> : vector<4x32xf32>
      %164 = tpu.matmul %161, %163, %cst_162 {dimension_numbers = #tpu.dot_dimension_numbers<[1], [0], [0], [1], [0, 0, 1, 1], [], []>} : vector<4x16xf32>, vector<16x32xf32>, vector<4x32xf32> -> vector<4x32xf32>
      %165 = arith.addf %157, %164 : vector<4x32xf32>
      %c2_i32_163 = arith.constant 2 : i32
      %166 = arith.addi %arg31, %c2_i32_163 : i32
      %167 = arith.index_cast %166 : i32 to index
      %c1_164 = arith.constant 1 : index
      %c0_165 = arith.constant 0 : index
      %168 = vector.load %arg25[%167, %c1_164, %c0_165] : memref<6x6x16xf32, #tpu.memory_space<vmem>>, vector<1x4x16xf32>
      %169 = vector.shape_cast %168 : vector<1x4x16xf32> to vector<4x16xf32>
      %c7 = arith.constant 7 : index
      %c0_166 = arith.constant 0 : index
      %c0_167 = arith.constant 0 : index
      %170 = vector.load %arg6[%c7, %c0_166, %c0_167] : memref<9x16x32xf32, #tpu.memory_space<vmem>>, vector<1x16x32xf32>
      %171 = vector.shape_cast %170 : vector<1x16x32xf32> to vector<16x32xf32>
      %cst_168 = arith.constant dense<0.000000e+00> : vector<4x32xf32>
      %172 = tpu.matmul %169, %171, %cst_168 {dimension_numbers = #tpu.dot_dimension_numbers<[1], [0], [0], [1], [0, 0, 1, 1], [], []>} : vector<4x16xf32>, vector<16x32xf32>, vector<4x32xf32> -> vector<4x32xf32>
      %173 = arith.addf %165, %172 : vector<4x32xf32>
      %c2_i32_169 = arith.constant 2 : i32
      %174 = arith.addi %arg31, %c2_i32_169 : i32
      %175 = arith.index_cast %174 : i32 to index
      %c2_170 = arith.constant 2 : index
      %c0_171 = arith.constant 0 : index
      %176 = vector.load %arg25[%175, %c2_170, %c0_171] : memref<6x6x16xf32, #tpu.memory_space<vmem>>, vector<1x4x16xf32>
      %177 = vector.shape_cast %176 : vector<1x4x16xf32> to vector<4x16xf32>
      %c8 = arith.constant 8 : index
      %c0_172 = arith.constant 0 : index
      %c0_173 = arith.constant 0 : index
      %178 = vector.load %arg6[%c8, %c0_172, %c0_173] : memref<9x16x32xf32, #tpu.memory_space<vmem>>, vector<1x16x32xf32>
      %179 = vector.shape_cast %178 : vector<1x16x32xf32> to vector<16x32xf32>
      %cst_174 = arith.constant dense<0.000000e+00> : vector<4x32xf32>
      %180 = tpu.matmul %177, %179, %cst_174 {dimension_numbers = #tpu.dot_dimension_numbers<[1], [0], [0], [1], [0, 0, 1, 1], [], []>} : vector<4x16xf32>, vector<16x32xf32>, vector<4x32xf32> -> vector<4x32xf32>
      %181 = arith.addf %173, %180 : vector<4x32xf32>
      %cst_175 = arith.constant 0.000000e+00 : f32
      %182 = vector.broadcast %cst_175 : f32 to vector<4x32xf32>
      %183 = arith.maximumf %181, %182 : vector<4x32xf32>
      %c0_i32_176 = arith.constant 0 : i32
      %184 = arith.addi %arg31, %c0_i32_176 : i32
      %185 = arith.index_cast %184 : i32 to index
      %c0_177 = arith.constant 0 : index
      %c0_178 = arith.constant 0 : index
      %186 = vector.load %arg26[%185, %c0_177, %c0_178] : memref<4x4x32xf32, #tpu.memory_space<vmem>>, vector<1x4x32xf32>
      %187 = vector.shape_cast %186 : vector<1x4x32xf32> to vector<4x32xf32>
      %188 = vector.shape_cast %183 : vector<4x32xf32> to vector<1x4x32xf32>
      tpu.vector_store %arg26[%185, %c0_177, %c0_178], %188 {strides = array<i32>} : memref<4x4x32xf32, #tpu.memory_space<vmem>>, vector<1x4x32xf32>,
    }
    %c4_i32_75 = arith.constant 4 : i32
    %c0_76 = arith.constant 0 : index
    %c0_77 = arith.constant 0 : index
    %85 = vector.load %arg8[%c0_76, %c0_77] : memref<32x16xf32, #tpu.memory_space<vmem>>, vector<32x16xf32>
    %c0_78 = arith.constant 0 : index
    %c0_79 = arith.constant 0 : index
    %86 = vector.load %arg9[%c0_78, %c0_79] : memref<1x16xf32, #tpu.memory_space<vmem>>, vector<1x16xf32>
    %c0_i32_80 = arith.constant 0 : i32
    %c4_i32_81 = arith.constant 4 : i32
    %87 = arith.addi %c0_i32_80, %c4_i32_81 : i32
    %c1_i32_82 = arith.constant 1 : i32
    scf.for %arg31 = %c0_i32_80 to %87 step %c1_i32_82  : i32 {
      %107 = arith.index_cast %arg31 : i32 to index
      %c0_118 = arith.constant 0 : index
      %c0_119 = arith.constant 0 : index
      %108 = vector.load %arg26[%107, %c0_118, %c0_119] : memref<4x4x32xf32, #tpu.memory_space<vmem>>, vector<1x4x32xf32>
      %109 = vector.shape_cast %108 : vector<1x4x32xf32> to vector<4x32xf32>
      %cst_120 = arith.constant dense<0.000000e+00> : vector<4x16xf32>
      %110 = tpu.matmul %109, %85, %cst_120 {dimension_numbers = #tpu.dot_dimension_numbers<[1], [0], [0], [1], [0, 0, 1, 1], [], []>} : vector<4x32xf32>, vector<32x16xf32>, vector<4x16xf32> -> vector<4x16xf32>
      %111 = vector.broadcast %86 : vector<1x16xf32> to vector<4x16xf32>
      %112 = arith.addf %110, %111 : vector<4x16xf32>
      %cst_121 = arith.constant dense<0.000000e+00> : vector<8x16xf32>
      %113 = tpu.matmul %59, %112, %cst_121 {dimension_numbers = #tpu.dot_dimension_numbers<[1], [0], [0], [1], [0, 0, 1, 1], [], []>} : vector<8x4xf32>, vector<4x16xf32>, vector<8x16xf32> -> vector<8x16xf32>
      %c2_i32_122 = arith.constant 2 : i32
      %114 = arith.muli %c2_i32_122, %arg31 : i32
      %c1_i32_123 = arith.constant 1 : i32
      %115 = arith.addi %114, %c1_i32_123 : i32
      %116 = arith.index_cast %115 : i32 to index
      %c1_124 = arith.constant 1 : index
      %c0_125 = arith.constant 0 : index
      %117 = vector.load %arg27[%116, %c1_124, %c0_125] : memref<10x10x16xf32, #tpu.memory_space<vmem>>, vector<1x8x16xf32>
      %118 = vector.shape_cast %117 : vector<1x8x16xf32> to vector<8x16xf32>
      %119 = vector.shape_cast %113 : vector<8x16xf32> to vector<1x8x16xf32>
      tpu.vector_store %arg27[%116, %c1_124, %c0_125], %119 {strides = array<i32>} : memref<10x10x16xf32, #tpu.memory_space<vmem>>, vector<1x8x16xf32>,
      %c2_i32_126 = arith.constant 2 : i32
      %120 = arith.muli %c2_i32_126, %arg31 : i32
      %c2_i32_127 = arith.constant 2 : i32
      %121 = arith.addi %120, %c2_i32_127 : i32
      %122 = arith.index_cast %121 : i32 to index
      %c1_128 = arith.constant 1 : index
      %c0_129 = arith.constant 0 : index
      %123 = vector.load %arg27[%122, %c1_128, %c0_129] : memref<10x10x16xf32, #tpu.memory_space<vmem>>, vector<1x8x16xf32>
      %124 = vector.shape_cast %123 : vector<1x8x16xf32> to vector<8x16xf32>
      %125 = vector.shape_cast %113 : vector<8x16xf32> to vector<1x8x16xf32>
      tpu.vector_store %arg27[%122, %c1_128, %c0_129], %125 {strides = array<i32>} : memref<10x10x16xf32, #tpu.memory_space<vmem>>, vector<1x8x16xf32>,
    }
    %c4_i32_83 = arith.constant 4 : i32
    %c0_84 = arith.constant 0 : index
    %c0_85 = arith.constant 0 : index
    %88 = vector.load %arg12[%c0_84, %c0_85] : memref<1x16xf32, #tpu.memory_space<vmem>>, vector<1x16xf32>
    %c0_i32_86 = arith.constant 0 : i32
    %c8_i32_87 = arith.constant 8 : i32
    %89 = arith.addi %c0_i32_86, %c8_i32_87 : i32
    %c1_i32_88 = arith.constant 1 : i32
    scf.for %arg31 = %c0_i32_86 to %89 step %c1_i32_88  : i32 {
      %cst_118 = arith.constant 0.000000e+00 : f32
      %107 = vector.broadcast %cst_118 : f32 to vector<8x16xf32>
      %108 = vector.broadcast %88 : vector<1x16xf32> to vector<8x16xf32>
      %109 = arith.addf %107, %108 : vector<8x16xf32>
      %c0_i32_119 = arith.constant 0 : i32
      %110 = arith.addi %arg31, %c0_i32_119 : i32
      %111 = arith.index_cast %110 : i32 to index
      %c0_120 = arith.constant 0 : index
      %c0_121 = arith.constant 0 : index
      %112 = vector.load %arg27[%111, %c0_120, %c0_121] : memref<10x10x16xf32, #tpu.memory_space<vmem>>, vector<1x8x16xf32>
      %113 = vector.shape_cast %112 : vector<1x8x16xf32> to vector<8x16xf32>
      %c0_122 = arith.constant 0 : index
      %c0_123 = arith.constant 0 : index
      %c0_124 = arith.constant 0 : index
      %114 = vector.load %arg10[%c0_122, %c0_123, %c0_124] : memref<9x16x16xf32, #tpu.memory_space<vmem>>, vector<1x16x16xf32>
      %115 = vector.shape_cast %114 : vector<1x16x16xf32> to vector<16x16xf32>
      %cst_125 = arith.constant dense<0.000000e+00> : vector<8x16xf32>
      %116 = tpu.matmul %113, %115, %cst_125 {dimension_numbers = #tpu.dot_dimension_numbers<[1], [0], [0], [1], [0, 0, 1, 1], [], []>} : vector<8x16xf32>, vector<16x16xf32>, vector<8x16xf32> -> vector<8x16xf32>
      %117 = arith.addf %109, %116 : vector<8x16xf32>
      %c0_i32_126 = arith.constant 0 : i32
      %118 = arith.addi %arg31, %c0_i32_126 : i32
      %119 = arith.index_cast %118 : i32 to index
      %c1_127 = arith.constant 1 : index
      %c0_128 = arith.constant 0 : index
      %120 = vector.load %arg27[%119, %c1_127, %c0_128] : memref<10x10x16xf32, #tpu.memory_space<vmem>>, vector<1x8x16xf32>
      %121 = vector.shape_cast %120 : vector<1x8x16xf32> to vector<8x16xf32>
      %c1_129 = arith.constant 1 : index
      %c0_130 = arith.constant 0 : index
      %c0_131 = arith.constant 0 : index
      %122 = vector.load %arg10[%c1_129, %c0_130, %c0_131] : memref<9x16x16xf32, #tpu.memory_space<vmem>>, vector<1x16x16xf32>
      %123 = vector.shape_cast %122 : vector<1x16x16xf32> to vector<16x16xf32>
      %cst_132 = arith.constant dense<0.000000e+00> : vector<8x16xf32>
      %124 = tpu.matmul %121, %123, %cst_132 {dimension_numbers = #tpu.dot_dimension_numbers<[1], [0], [0], [1], [0, 0, 1, 1], [], []>} : vector<8x16xf32>, vector<16x16xf32>, vector<8x16xf32> -> vector<8x16xf32>
      %125 = arith.addf %117, %124 : vector<8x16xf32>
      %c0_i32_133 = arith.constant 0 : i32
      %126 = arith.addi %arg31, %c0_i32_133 : i32
      %127 = arith.index_cast %126 : i32 to index
      %c2 = arith.constant 2 : index
      %c0_134 = arith.constant 0 : index
      %128 = vector.load %arg27[%127, %c2, %c0_134] : memref<10x10x16xf32, #tpu.memory_space<vmem>>, vector<1x8x16xf32>
      %129 = vector.shape_cast %128 : vector<1x8x16xf32> to vector<8x16xf32>
      %c2_135 = arith.constant 2 : index
      %c0_136 = arith.constant 0 : index
      %c0_137 = arith.constant 0 : index
      %130 = vector.load %arg10[%c2_135, %c0_136, %c0_137] : memref<9x16x16xf32, #tpu.memory_space<vmem>>, vector<1x16x16xf32>
      %131 = vector.shape_cast %130 : vector<1x16x16xf32> to vector<16x16xf32>
      %cst_138 = arith.constant dense<0.000000e+00> : vector<8x16xf32>
      %132 = tpu.matmul %129, %131, %cst_138 {dimension_numbers = #tpu.dot_dimension_numbers<[1], [0], [0], [1], [0, 0, 1, 1], [], []>} : vector<8x16xf32>, vector<16x16xf32>, vector<8x16xf32> -> vector<8x16xf32>
      %133 = arith.addf %125, %132 : vector<8x16xf32>
      %c1_i32_139 = arith.constant 1 : i32
      %134 = arith.addi %arg31, %c1_i32_139 : i32
      %135 = arith.index_cast %134 : i32 to index
      %c0_140 = arith.constant 0 : index
      %c0_141 = arith.constant 0 : index
      %136 = vector.load %arg27[%135, %c0_140, %c0_141] : memref<10x10x16xf32, #tpu.memory_space<vmem>>, vector<1x8x16xf32>
      %137 = vector.shape_cast %136 : vector<1x8x16xf32> to vector<8x16xf32>
      %c3 = arith.constant 3 : index
      %c0_142 = arith.constant 0 : index
      %c0_143 = arith.constant 0 : index
      %138 = vector.load %arg10[%c3, %c0_142, %c0_143] : memref<9x16x16xf32, #tpu.memory_space<vmem>>, vector<1x16x16xf32>
      %139 = vector.shape_cast %138 : vector<1x16x16xf32> to vector<16x16xf32>
      %cst_144 = arith.constant dense<0.000000e+00> : vector<8x16xf32>
      %140 = tpu.matmul %137, %139, %cst_144 {dimension_numbers = #tpu.dot_dimension_numbers<[1], [0], [0], [1], [0, 0, 1, 1], [], []>} : vector<8x16xf32>, vector<16x16xf32>, vector<8x16xf32> -> vector<8x16xf32>
      %141 = arith.addf %133, %140 : vector<8x16xf32>
      %c1_i32_145 = arith.constant 1 : i32
      %142 = arith.addi %arg31, %c1_i32_145 : i32
      %143 = arith.index_cast %142 : i32 to index
      %c1_146 = arith.constant 1 : index
      %c0_147 = arith.constant 0 : index
      %144 = vector.load %arg27[%143, %c1_146, %c0_147] : memref<10x10x16xf32, #tpu.memory_space<vmem>>, vector<1x8x16xf32>
      %145 = vector.shape_cast %144 : vector<1x8x16xf32> to vector<8x16xf32>
      %c4 = arith.constant 4 : index
      %c0_148 = arith.constant 0 : index
      %c0_149 = arith.constant 0 : index
      %146 = vector.load %arg10[%c4, %c0_148, %c0_149] : memref<9x16x16xf32, #tpu.memory_space<vmem>>, vector<1x16x16xf32>
      %147 = vector.shape_cast %146 : vector<1x16x16xf32> to vector<16x16xf32>
      %cst_150 = arith.constant dense<0.000000e+00> : vector<8x16xf32>
      %148 = tpu.matmul %145, %147, %cst_150 {dimension_numbers = #tpu.dot_dimension_numbers<[1], [0], [0], [1], [0, 0, 1, 1], [], []>} : vector<8x16xf32>, vector<16x16xf32>, vector<8x16xf32> -> vector<8x16xf32>
      %149 = arith.addf %141, %148 : vector<8x16xf32>
      %c1_i32_151 = arith.constant 1 : i32
      %150 = arith.addi %arg31, %c1_i32_151 : i32
      %151 = arith.index_cast %150 : i32 to index
      %c2_152 = arith.constant 2 : index
      %c0_153 = arith.constant 0 : index
      %152 = vector.load %arg27[%151, %c2_152, %c0_153] : memref<10x10x16xf32, #tpu.memory_space<vmem>>, vector<1x8x16xf32>
      %153 = vector.shape_cast %152 : vector<1x8x16xf32> to vector<8x16xf32>
      %c5 = arith.constant 5 : index
      %c0_154 = arith.constant 0 : index
      %c0_155 = arith.constant 0 : index
      %154 = vector.load %arg10[%c5, %c0_154, %c0_155] : memref<9x16x16xf32, #tpu.memory_space<vmem>>, vector<1x16x16xf32>
      %155 = vector.shape_cast %154 : vector<1x16x16xf32> to vector<16x16xf32>
      %cst_156 = arith.constant dense<0.000000e+00> : vector<8x16xf32>
      %156 = tpu.matmul %153, %155, %cst_156 {dimension_numbers = #tpu.dot_dimension_numbers<[1], [0], [0], [1], [0, 0, 1, 1], [], []>} : vector<8x16xf32>, vector<16x16xf32>, vector<8x16xf32> -> vector<8x16xf32>
      %157 = arith.addf %149, %156 : vector<8x16xf32>
      %c2_i32_157 = arith.constant 2 : i32
      %158 = arith.addi %arg31, %c2_i32_157 : i32
      %159 = arith.index_cast %158 : i32 to index
      %c0_158 = arith.constant 0 : index
      %c0_159 = arith.constant 0 : index
      %160 = vector.load %arg27[%159, %c0_158, %c0_159] : memref<10x10x16xf32, #tpu.memory_space<vmem>>, vector<1x8x16xf32>
      %161 = vector.shape_cast %160 : vector<1x8x16xf32> to vector<8x16xf32>
      %c6 = arith.constant 6 : index
      %c0_160 = arith.constant 0 : index
      %c0_161 = arith.constant 0 : index
      %162 = vector.load %arg10[%c6, %c0_160, %c0_161] : memref<9x16x16xf32, #tpu.memory_space<vmem>>, vector<1x16x16xf32>
      %163 = vector.shape_cast %162 : vector<1x16x16xf32> to vector<16x16xf32>
      %cst_162 = arith.constant dense<0.000000e+00> : vector<8x16xf32>
      %164 = tpu.matmul %161, %163, %cst_162 {dimension_numbers = #tpu.dot_dimension_numbers<[1], [0], [0], [1], [0, 0, 1, 1], [], []>} : vector<8x16xf32>, vector<16x16xf32>, vector<8x16xf32> -> vector<8x16xf32>
      %165 = arith.addf %157, %164 : vector<8x16xf32>
      %c2_i32_163 = arith.constant 2 : i32
      %166 = arith.addi %arg31, %c2_i32_163 : i32
      %167 = arith.index_cast %166 : i32 to index
      %c1_164 = arith.constant 1 : index
      %c0_165 = arith.constant 0 : index
      %168 = vector.load %arg27[%167, %c1_164, %c0_165] : memref<10x10x16xf32, #tpu.memory_space<vmem>>, vector<1x8x16xf32>
      %169 = vector.shape_cast %168 : vector<1x8x16xf32> to vector<8x16xf32>
      %c7 = arith.constant 7 : index
      %c0_166 = arith.constant 0 : index
      %c0_167 = arith.constant 0 : index
      %170 = vector.load %arg10[%c7, %c0_166, %c0_167] : memref<9x16x16xf32, #tpu.memory_space<vmem>>, vector<1x16x16xf32>
      %171 = vector.shape_cast %170 : vector<1x16x16xf32> to vector<16x16xf32>
      %cst_168 = arith.constant dense<0.000000e+00> : vector<8x16xf32>
      %172 = tpu.matmul %169, %171, %cst_168 {dimension_numbers = #tpu.dot_dimension_numbers<[1], [0], [0], [1], [0, 0, 1, 1], [], []>} : vector<8x16xf32>, vector<16x16xf32>, vector<8x16xf32> -> vector<8x16xf32>
      %173 = arith.addf %165, %172 : vector<8x16xf32>
      %c2_i32_169 = arith.constant 2 : i32
      %174 = arith.addi %arg31, %c2_i32_169 : i32
      %175 = arith.index_cast %174 : i32 to index
      %c2_170 = arith.constant 2 : index
      %c0_171 = arith.constant 0 : index
      %176 = vector.load %arg27[%175, %c2_170, %c0_171] : memref<10x10x16xf32, #tpu.memory_space<vmem>>, vector<1x8x16xf32>
      %177 = vector.shape_cast %176 : vector<1x8x16xf32> to vector<8x16xf32>
      %c8 = arith.constant 8 : index
      %c0_172 = arith.constant 0 : index
      %c0_173 = arith.constant 0 : index
      %178 = vector.load %arg10[%c8, %c0_172, %c0_173] : memref<9x16x16xf32, #tpu.memory_space<vmem>>, vector<1x16x16xf32>
      %179 = vector.shape_cast %178 : vector<1x16x16xf32> to vector<16x16xf32>
      %cst_174 = arith.constant dense<0.000000e+00> : vector<8x16xf32>
      %180 = tpu.matmul %177, %179, %cst_174 {dimension_numbers = #tpu.dot_dimension_numbers<[1], [0], [0], [1], [0, 0, 1, 1], [], []>} : vector<8x16xf32>, vector<16x16xf32>, vector<8x16xf32> -> vector<8x16xf32>
      %181 = arith.addf %173, %180 : vector<8x16xf32>
      %c0_i32_175 = arith.constant 0 : i32
      %182 = arith.addi %arg31, %c0_i32_175 : i32
      %183 = arith.index_cast %182 : i32 to index
      %c0_176 = arith.constant 0 : index
      %c0_177 = arith.constant 0 : index
      %184 = vector.load %arg24[%183, %c0_176, %c0_177] : memref<10x10x16xf32, #tpu.memory_space<vmem>>, vector<1x8x16xf32>
      %185 = vector.shape_cast %184 : vector<1x8x16xf32> to vector<8x16xf32>
      %c0_178 = arith.constant 0 : index
      %c0_179 = arith.constant 0 : index
      %c0_180 = arith.constant 0 : index
      %186 = vector.load %arg11[%c0_178, %c0_179, %c0_180] : memref<9x16x16xf32, #tpu.memory_space<vmem>>, vector<1x16x16xf32>
      %187 = vector.shape_cast %186 : vector<1x16x16xf32> to vector<16x16xf32>
      %cst_181 = arith.constant dense<0.000000e+00> : vector<8x16xf32>
      %188 = tpu.matmul %185, %187, %cst_181 {dimension_numbers = #tpu.dot_dimension_numbers<[1], [0], [0], [1], [0, 0, 1, 1], [], []>} : vector<8x16xf32>, vector<16x16xf32>, vector<8x16xf32> -> vector<8x16xf32>
      %189 = arith.addf %181, %188 : vector<8x16xf32>
      %c0_i32_182 = arith.constant 0 : i32
      %190 = arith.addi %arg31, %c0_i32_182 : i32
      %191 = arith.index_cast %190 : i32 to index
      %c1_183 = arith.constant 1 : index
      %c0_184 = arith.constant 0 : index
      %192 = vector.load %arg24[%191, %c1_183, %c0_184] : memref<10x10x16xf32, #tpu.memory_space<vmem>>, vector<1x8x16xf32>
      %193 = vector.shape_cast %192 : vector<1x8x16xf32> to vector<8x16xf32>
      %c1_185 = arith.constant 1 : index
      %c0_186 = arith.constant 0 : index
      %c0_187 = arith.constant 0 : index
      %194 = vector.load %arg11[%c1_185, %c0_186, %c0_187] : memref<9x16x16xf32, #tpu.memory_space<vmem>>, vector<1x16x16xf32>
      %195 = vector.shape_cast %194 : vector<1x16x16xf32> to vector<16x16xf32>
      %cst_188 = arith.constant dense<0.000000e+00> : vector<8x16xf32>
      %196 = tpu.matmul %193, %195, %cst_188 {dimension_numbers = #tpu.dot_dimension_numbers<[1], [0], [0], [1], [0, 0, 1, 1], [], []>} : vector<8x16xf32>, vector<16x16xf32>, vector<8x16xf32> -> vector<8x16xf32>
      %197 = arith.addf %189, %196 : vector<8x16xf32>
      %c0_i32_189 = arith.constant 0 : i32
      %198 = arith.addi %arg31, %c0_i32_189 : i32
      %199 = arith.index_cast %198 : i32 to index
      %c2_190 = arith.constant 2 : index
      %c0_191 = arith.constant 0 : index
      %200 = vector.load %arg24[%199, %c2_190, %c0_191] : memref<10x10x16xf32, #tpu.memory_space<vmem>>, vector<1x8x16xf32>
      %201 = vector.shape_cast %200 : vector<1x8x16xf32> to vector<8x16xf32>
      %c2_192 = arith.constant 2 : index
      %c0_193 = arith.constant 0 : index
      %c0_194 = arith.constant 0 : index
      %202 = vector.load %arg11[%c2_192, %c0_193, %c0_194] : memref<9x16x16xf32, #tpu.memory_space<vmem>>, vector<1x16x16xf32>
      %203 = vector.shape_cast %202 : vector<1x16x16xf32> to vector<16x16xf32>
      %cst_195 = arith.constant dense<0.000000e+00> : vector<8x16xf32>
      %204 = tpu.matmul %201, %203, %cst_195 {dimension_numbers = #tpu.dot_dimension_numbers<[1], [0], [0], [1], [0, 0, 1, 1], [], []>} : vector<8x16xf32>, vector<16x16xf32>, vector<8x16xf32> -> vector<8x16xf32>
      %205 = arith.addf %197, %204 : vector<8x16xf32>
      %c1_i32_196 = arith.constant 1 : i32
      %206 = arith.addi %arg31, %c1_i32_196 : i32
      %207 = arith.index_cast %206 : i32 to index
      %c0_197 = arith.constant 0 : index
      %c0_198 = arith.constant 0 : index
      %208 = vector.load %arg24[%207, %c0_197, %c0_198] : memref<10x10x16xf32, #tpu.memory_space<vmem>>, vector<1x8x16xf32>
      %209 = vector.shape_cast %208 : vector<1x8x16xf32> to vector<8x16xf32>
      %c3_199 = arith.constant 3 : index
      %c0_200 = arith.constant 0 : index
      %c0_201 = arith.constant 0 : index
      %210 = vector.load %arg11[%c3_199, %c0_200, %c0_201] : memref<9x16x16xf32, #tpu.memory_space<vmem>>, vector<1x16x16xf32>
      %211 = vector.shape_cast %210 : vector<1x16x16xf32> to vector<16x16xf32>
      %cst_202 = arith.constant dense<0.000000e+00> : vector<8x16xf32>
      %212 = tpu.matmul %209, %211, %cst_202 {dimension_numbers = #tpu.dot_dimension_numbers<[1], [0], [0], [1], [0, 0, 1, 1], [], []>} : vector<8x16xf32>, vector<16x16xf32>, vector<8x16xf32> -> vector<8x16xf32>
      %213 = arith.addf %205, %212 : vector<8x16xf32>
      %c1_i32_203 = arith.constant 1 : i32
      %214 = arith.addi %arg31, %c1_i32_203 : i32
      %215 = arith.index_cast %214 : i32 to index
      %c1_204 = arith.constant 1 : index
      %c0_205 = arith.constant 0 : index
      %216 = vector.load %arg24[%215, %c1_204, %c0_205] : memref<10x10x16xf32, #tpu.memory_space<vmem>>, vector<1x8x16xf32>
      %217 = vector.shape_cast %216 : vector<1x8x16xf32> to vector<8x16xf32>
      %c4_206 = arith.constant 4 : index
      %c0_207 = arith.constant 0 : index
      %c0_208 = arith.constant 0 : index
      %218 = vector.load %arg11[%c4_206, %c0_207, %c0_208] : memref<9x16x16xf32, #tpu.memory_space<vmem>>, vector<1x16x16xf32>
      %219 = vector.shape_cast %218 : vector<1x16x16xf32> to vector<16x16xf32>
      %cst_209 = arith.constant dense<0.000000e+00> : vector<8x16xf32>
      %220 = tpu.matmul %217, %219, %cst_209 {dimension_numbers = #tpu.dot_dimension_numbers<[1], [0], [0], [1], [0, 0, 1, 1], [], []>} : vector<8x16xf32>, vector<16x16xf32>, vector<8x16xf32> -> vector<8x16xf32>
      %221 = arith.addf %213, %220 : vector<8x16xf32>
      %c1_i32_210 = arith.constant 1 : i32
      %222 = arith.addi %arg31, %c1_i32_210 : i32
      %223 = arith.index_cast %222 : i32 to index
      %c2_211 = arith.constant 2 : index
      %c0_212 = arith.constant 0 : index
      %224 = vector.load %arg24[%223, %c2_211, %c0_212] : memref<10x10x16xf32, #tpu.memory_space<vmem>>, vector<1x8x16xf32>
      %225 = vector.shape_cast %224 : vector<1x8x16xf32> to vector<8x16xf32>
      %c5_213 = arith.constant 5 : index
      %c0_214 = arith.constant 0 : index
      %c0_215 = arith.constant 0 : index
      %226 = vector.load %arg11[%c5_213, %c0_214, %c0_215] : memref<9x16x16xf32, #tpu.memory_space<vmem>>, vector<1x16x16xf32>
      %227 = vector.shape_cast %226 : vector<1x16x16xf32> to vector<16x16xf32>
      %cst_216 = arith.constant dense<0.000000e+00> : vector<8x16xf32>
      %228 = tpu.matmul %225, %227, %cst_216 {dimension_numbers = #tpu.dot_dimension_numbers<[1], [0], [0], [1], [0, 0, 1, 1], [], []>} : vector<8x16xf32>, vector<16x16xf32>, vector<8x16xf32> -> vector<8x16xf32>
      %229 = arith.addf %221, %228 : vector<8x16xf32>
      %c2_i32_217 = arith.constant 2 : i32
      %230 = arith.addi %arg31, %c2_i32_217 : i32
      %231 = arith.index_cast %230 : i32 to index
      %c0_218 = arith.constant 0 : index
      %c0_219 = arith.constant 0 : index
      %232 = vector.load %arg24[%231, %c0_218, %c0_219] : memref<10x10x16xf32, #tpu.memory_space<vmem>>, vector<1x8x16xf32>
      %233 = vector.shape_cast %232 : vector<1x8x16xf32> to vector<8x16xf32>
      %c6_220 = arith.constant 6 : index
      %c0_221 = arith.constant 0 : index
      %c0_222 = arith.constant 0 : index
      %234 = vector.load %arg11[%c6_220, %c0_221, %c0_222] : memref<9x16x16xf32, #tpu.memory_space<vmem>>, vector<1x16x16xf32>
      %235 = vector.shape_cast %234 : vector<1x16x16xf32> to vector<16x16xf32>
      %cst_223 = arith.constant dense<0.000000e+00> : vector<8x16xf32>
      %236 = tpu.matmul %233, %235, %cst_223 {dimension_numbers = #tpu.dot_dimension_numbers<[1], [0], [0], [1], [0, 0, 1, 1], [], []>} : vector<8x16xf32>, vector<16x16xf32>, vector<8x16xf32> -> vector<8x16xf32>
      %237 = arith.addf %229, %236 : vector<8x16xf32>
      %c2_i32_224 = arith.constant 2 : i32
      %238 = arith.addi %arg31, %c2_i32_224 : i32
      %239 = arith.index_cast %238 : i32 to index
      %c1_225 = arith.constant 1 : index
      %c0_226 = arith.constant 0 : index
      %240 = vector.load %arg24[%239, %c1_225, %c0_226] : memref<10x10x16xf32, #tpu.memory_space<vmem>>, vector<1x8x16xf32>
      %241 = vector.shape_cast %240 : vector<1x8x16xf32> to vector<8x16xf32>
      %c7_227 = arith.constant 7 : index
      %c0_228 = arith.constant 0 : index
      %c0_229 = arith.constant 0 : index
      %242 = vector.load %arg11[%c7_227, %c0_228, %c0_229] : memref<9x16x16xf32, #tpu.memory_space<vmem>>, vector<1x16x16xf32>
      %243 = vector.shape_cast %242 : vector<1x16x16xf32> to vector<16x16xf32>
      %cst_230 = arith.constant dense<0.000000e+00> : vector<8x16xf32>
      %244 = tpu.matmul %241, %243, %cst_230 {dimension_numbers = #tpu.dot_dimension_numbers<[1], [0], [0], [1], [0, 0, 1, 1], [], []>} : vector<8x16xf32>, vector<16x16xf32>, vector<8x16xf32> -> vector<8x16xf32>
      %245 = arith.addf %237, %244 : vector<8x16xf32>
      %c2_i32_231 = arith.constant 2 : i32
      %246 = arith.addi %arg31, %c2_i32_231 : i32
      %247 = arith.index_cast %246 : i32 to index
      %c2_232 = arith.constant 2 : index
      %c0_233 = arith.constant 0 : index
      %248 = vector.load %arg24[%247, %c2_232, %c0_233] : memref<10x10x16xf32, #tpu.memory_space<vmem>>, vector<1x8x16xf32>
      %249 = vector.shape_cast %248 : vector<1x8x16xf32> to vector<8x16xf32>
      %c8_234 = arith.constant 8 : index
      %c0_235 = arith.constant 0 : index
      %c0_236 = arith.constant 0 : index
      %250 = vector.load %arg11[%c8_234, %c0_235, %c0_236] : memref<9x16x16xf32, #tpu.memory_space<vmem>>, vector<1x16x16xf32>
      %251 = vector.shape_cast %250 : vector<1x16x16xf32> to vector<16x16xf32>
      %cst_237 = arith.constant dense<0.000000e+00> : vector<8x16xf32>
      %252 = tpu.matmul %249, %251, %cst_237 {dimension_numbers = #tpu.dot_dimension_numbers<[1], [0], [0], [1], [0, 0, 1, 1], [], []>} : vector<8x16xf32>, vector<16x16xf32>, vector<8x16xf32> -> vector<8x16xf32>
      %253 = arith.addf %245, %252 : vector<8x16xf32>
      %cst_238 = arith.constant 0.000000e+00 : f32
      %254 = vector.broadcast %cst_238 : f32 to vector<8x16xf32>
      %255 = arith.maximumf %253, %254 : vector<8x16xf32>
      %c0_i32_239 = arith.constant 0 : i32
      %256 = arith.addi %arg31, %c0_i32_239 : i32
      %257 = arith.index_cast %256 : i32 to index
      %c0_240 = arith.constant 0 : index
      %c0_241 = arith.constant 0 : index
      %258 = vector.load %arg28[%257, %c0_240, %c0_241] : memref<8x8x16xf32, #tpu.memory_space<vmem>>, vector<1x8x16xf32>
      %259 = vector.shape_cast %258 : vector<1x8x16xf32> to vector<8x16xf32>
      %260 = vector.shape_cast %255 : vector<8x16xf32> to vector<1x8x16xf32>
      tpu.vector_store %arg28[%257, %c0_240, %c0_241], %260 {strides = array<i32>} : memref<8x8x16xf32, #tpu.memory_space<vmem>>, vector<1x8x16xf32>,
    }
    %c8_i32_89 = arith.constant 8 : i32
    %c0_90 = arith.constant 0 : index
    %c0_91 = arith.constant 0 : index
    %90 = vector.load %arg13[%c0_90, %c0_91] : memref<16x8xf32, #tpu.memory_space<vmem>>, vector<16x8xf32>
    %c0_92 = arith.constant 0 : index
    %c0_93 = arith.constant 0 : index
    %91 = vector.load %arg14[%c0_92, %c0_93] : memref<1x8xf32, #tpu.memory_space<vmem>>, vector<1x8xf32>
    %c0_i32_94 = arith.constant 0 : i32
    %c8_i32_95 = arith.constant 8 : i32
    %92 = arith.addi %c0_i32_94, %c8_i32_95 : i32
    %c1_i32_96 = arith.constant 1 : i32
    scf.for %arg31 = %c0_i32_94 to %92 step %c1_i32_96  : i32 {
      %107 = arith.index_cast %arg31 : i32 to index
      %c0_118 = arith.constant 0 : index
      %c0_119 = arith.constant 0 : index
      %108 = vector.load %arg28[%107, %c0_118, %c0_119] : memref<8x8x16xf32, #tpu.memory_space<vmem>>, vector<1x8x16xf32>
      %109 = vector.shape_cast %108 : vector<1x8x16xf32> to vector<8x16xf32>
      %cst_120 = arith.constant dense<0.000000e+00> : vector<8x8xf32>
      %110 = tpu.matmul %109, %90, %cst_120 {dimension_numbers = #tpu.dot_dimension_numbers<[1], [0], [0], [1], [0, 0, 1, 1], [], []>} : vector<8x16xf32>, vector<16x8xf32>, vector<8x8xf32> -> vector<8x8xf32>
      %111 = vector.broadcast %91 : vector<1x8xf32> to vector<8x8xf32>
      %112 = arith.addf %110, %111 : vector<8x8xf32>
      %cst_121 = arith.constant dense<0.000000e+00> : vector<16x8xf32>
      %113 = tpu.matmul %73, %112, %cst_121 {dimension_numbers = #tpu.dot_dimension_numbers<[1], [0], [0], [1], [0, 0, 1, 1], [], []>} : vector<16x8xf32>, vector<8x8xf32>, vector<16x8xf32> -> vector<16x8xf32>
      %c2_i32_122 = arith.constant 2 : i32
      %114 = arith.muli %c2_i32_122, %arg31 : i32
      %c1_i32_123 = arith.constant 1 : i32
      %115 = arith.addi %114, %c1_i32_123 : i32
      %116 = arith.index_cast %115 : i32 to index
      %c1_124 = arith.constant 1 : index
      %c0_125 = arith.constant 0 : index
      %117 = vector.load %arg29[%116, %c1_124, %c0_125] : memref<18x18x8xf32, #tpu.memory_space<vmem>>, vector<1x16x8xf32>
      %118 = vector.shape_cast %117 : vector<1x16x8xf32> to vector<16x8xf32>
      %119 = vector.shape_cast %113 : vector<16x8xf32> to vector<1x16x8xf32>
      tpu.vector_store %arg29[%116, %c1_124, %c0_125], %119 {strides = array<i32>} : memref<18x18x8xf32, #tpu.memory_space<vmem>>, vector<1x16x8xf32>,
      %c2_i32_126 = arith.constant 2 : i32
      %120 = arith.muli %c2_i32_126, %arg31 : i32
      %c2_i32_127 = arith.constant 2 : i32
      %121 = arith.addi %120, %c2_i32_127 : i32
      %122 = arith.index_cast %121 : i32 to index
      %c1_128 = arith.constant 1 : index
      %c0_129 = arith.constant 0 : index
      %123 = vector.load %arg29[%122, %c1_128, %c0_129] : memref<18x18x8xf32, #tpu.memory_space<vmem>>, vector<1x16x8xf32>
      %124 = vector.shape_cast %123 : vector<1x16x8xf32> to vector<16x8xf32>
      %125 = vector.shape_cast %113 : vector<16x8xf32> to vector<1x16x8xf32>
      tpu.vector_store %arg29[%122, %c1_128, %c0_129], %125 {strides = array<i32>} : memref<18x18x8xf32, #tpu.memory_space<vmem>>, vector<1x16x8xf32>,
    }
    %c8_i32_97 = arith.constant 8 : i32
    %c0_98 = arith.constant 0 : index
    %c0_99 = arith.constant 0 : index
    %93 = vector.load %arg17[%c0_98, %c0_99] : memref<1x8xf32, #tpu.memory_space<vmem>>, vector<1x8xf32>
    %c0_i32_100 = arith.constant 0 : i32
    %c16_i32_101 = arith.constant 16 : i32
    %94 = arith.addi %c0_i32_100, %c16_i32_101 : i32
    %c1_i32_102 = arith.constant 1 : i32
    scf.for %arg31 = %c0_i32_100 to %94 step %c1_i32_102  : i32 {
      %cst_118 = arith.constant 0.000000e+00 : f32
      %107 = vector.broadcast %cst_118 : f32 to vector<16x8xf32>
      %108 = vector.broadcast %93 : vector<1x8xf32> to vector<16x8xf32>
      %109 = arith.addf %107, %108 : vector<16x8xf32>
      %c0_i32_119 = arith.constant 0 : i32
      %110 = arith.addi %arg31, %c0_i32_119 : i32
      %111 = arith.index_cast %110 : i32 to index
      %c0_120 = arith.constant 0 : index
      %c0_121 = arith.constant 0 : index
      %112 = vector.load %arg29[%111, %c0_120, %c0_121] : memref<18x18x8xf32, #tpu.memory_space<vmem>>, vector<1x16x8xf32>
      %113 = vector.shape_cast %112 : vector<1x16x8xf32> to vector<16x8xf32>
      %c0_122 = arith.constant 0 : index
      %c0_123 = arith.constant 0 : index
      %c0_124 = arith.constant 0 : index
      %114 = vector.load %arg15[%c0_122, %c0_123, %c0_124] : memref<9x8x8xf32, #tpu.memory_space<vmem>>, vector<1x8x8xf32>
      %115 = vector.shape_cast %114 : vector<1x8x8xf32> to vector<8x8xf32>
      %cst_125 = arith.constant dense<0.000000e+00> : vector<16x8xf32>
      %116 = tpu.matmul %113, %115, %cst_125 {dimension_numbers = #tpu.dot_dimension_numbers<[1], [0], [0], [1], [0, 0, 1, 1], [], []>} : vector<16x8xf32>, vector<8x8xf32>, vector<16x8xf32> -> vector<16x8xf32>
      %117 = arith.addf %109, %116 : vector<16x8xf32>
      %c0_i32_126 = arith.constant 0 : i32
      %118 = arith.addi %arg31, %c0_i32_126 : i32
      %119 = arith.index_cast %118 : i32 to index
      %c1_127 = arith.constant 1 : index
      %c0_128 = arith.constant 0 : index
      %120 = vector.load %arg29[%119, %c1_127, %c0_128] : memref<18x18x8xf32, #tpu.memory_space<vmem>>, vector<1x16x8xf32>
      %121 = vector.shape_cast %120 : vector<1x16x8xf32> to vector<16x8xf32>
      %c1_129 = arith.constant 1 : index
      %c0_130 = arith.constant 0 : index
      %c0_131 = arith.constant 0 : index
      %122 = vector.load %arg15[%c1_129, %c0_130, %c0_131] : memref<9x8x8xf32, #tpu.memory_space<vmem>>, vector<1x8x8xf32>
      %123 = vector.shape_cast %122 : vector<1x8x8xf32> to vector<8x8xf32>
      %cst_132 = arith.constant dense<0.000000e+00> : vector<16x8xf32>
      %124 = tpu.matmul %121, %123, %cst_132 {dimension_numbers = #tpu.dot_dimension_numbers<[1], [0], [0], [1], [0, 0, 1, 1], [], []>} : vector<16x8xf32>, vector<8x8xf32>, vector<16x8xf32> -> vector<16x8xf32>
      %125 = arith.addf %117, %124 : vector<16x8xf32>
      %c0_i32_133 = arith.constant 0 : i32
      %126 = arith.addi %arg31, %c0_i32_133 : i32
      %127 = arith.index_cast %126 : i32 to index
      %c2 = arith.constant 2 : index
      %c0_134 = arith.constant 0 : index
      %128 = vector.load %arg29[%127, %c2, %c0_134] : memref<18x18x8xf32, #tpu.memory_space<vmem>>, vector<1x16x8xf32>
      %129 = vector.shape_cast %128 : vector<1x16x8xf32> to vector<16x8xf32>
      %c2_135 = arith.constant 2 : index
      %c0_136 = arith.constant 0 : index
      %c0_137 = arith.constant 0 : index
      %130 = vector.load %arg15[%c2_135, %c0_136, %c0_137] : memref<9x8x8xf32, #tpu.memory_space<vmem>>, vector<1x8x8xf32>
      %131 = vector.shape_cast %130 : vector<1x8x8xf32> to vector<8x8xf32>
      %cst_138 = arith.constant dense<0.000000e+00> : vector<16x8xf32>
      %132 = tpu.matmul %129, %131, %cst_138 {dimension_numbers = #tpu.dot_dimension_numbers<[1], [0], [0], [1], [0, 0, 1, 1], [], []>} : vector<16x8xf32>, vector<8x8xf32>, vector<16x8xf32> -> vector<16x8xf32>
      %133 = arith.addf %125, %132 : vector<16x8xf32>
      %c1_i32_139 = arith.constant 1 : i32
      %134 = arith.addi %arg31, %c1_i32_139 : i32
      %135 = arith.index_cast %134 : i32 to index
      %c0_140 = arith.constant 0 : index
      %c0_141 = arith.constant 0 : index
      %136 = vector.load %arg29[%135, %c0_140, %c0_141] : memref<18x18x8xf32, #tpu.memory_space<vmem>>, vector<1x16x8xf32>
      %137 = vector.shape_cast %136 : vector<1x16x8xf32> to vector<16x8xf32>
      %c3 = arith.constant 3 : index
      %c0_142 = arith.constant 0 : index
      %c0_143 = arith.constant 0 : index
      %138 = vector.load %arg15[%c3, %c0_142, %c0_143] : memref<9x8x8xf32, #tpu.memory_space<vmem>>, vector<1x8x8xf32>
      %139 = vector.shape_cast %138 : vector<1x8x8xf32> to vector<8x8xf32>
      %cst_144 = arith.constant dense<0.000000e+00> : vector<16x8xf32>
      %140 = tpu.matmul %137, %139, %cst_144 {dimension_numbers = #tpu.dot_dimension_numbers<[1], [0], [0], [1], [0, 0, 1, 1], [], []>} : vector<16x8xf32>, vector<8x8xf32>, vector<16x8xf32> -> vector<16x8xf32>
      %141 = arith.addf %133, %140 : vector<16x8xf32>
      %c1_i32_145 = arith.constant 1 : i32
      %142 = arith.addi %arg31, %c1_i32_145 : i32
      %143 = arith.index_cast %142 : i32 to index
      %c1_146 = arith.constant 1 : index
      %c0_147 = arith.constant 0 : index
      %144 = vector.load %arg29[%143, %c1_146, %c0_147] : memref<18x18x8xf32, #tpu.memory_space<vmem>>, vector<1x16x8xf32>
      %145 = vector.shape_cast %144 : vector<1x16x8xf32> to vector<16x8xf32>
      %c4 = arith.constant 4 : index
      %c0_148 = arith.constant 0 : index
      %c0_149 = arith.constant 0 : index
      %146 = vector.load %arg15[%c4, %c0_148, %c0_149] : memref<9x8x8xf32, #tpu.memory_space<vmem>>, vector<1x8x8xf32>
      %147 = vector.shape_cast %146 : vector<1x8x8xf32> to vector<8x8xf32>
      %cst_150 = arith.constant dense<0.000000e+00> : vector<16x8xf32>
      %148 = tpu.matmul %145, %147, %cst_150 {dimension_numbers = #tpu.dot_dimension_numbers<[1], [0], [0], [1], [0, 0, 1, 1], [], []>} : vector<16x8xf32>, vector<8x8xf32>, vector<16x8xf32> -> vector<16x8xf32>
      %149 = arith.addf %141, %148 : vector<16x8xf32>
      %c1_i32_151 = arith.constant 1 : i32
      %150 = arith.addi %arg31, %c1_i32_151 : i32
      %151 = arith.index_cast %150 : i32 to index
      %c2_152 = arith.constant 2 : index
      %c0_153 = arith.constant 0 : index
      %152 = vector.load %arg29[%151, %c2_152, %c0_153] : memref<18x18x8xf32, #tpu.memory_space<vmem>>, vector<1x16x8xf32>
      %153 = vector.shape_cast %152 : vector<1x16x8xf32> to vector<16x8xf32>
      %c5 = arith.constant 5 : index
      %c0_154 = arith.constant 0 : index
      %c0_155 = arith.constant 0 : index
      %154 = vector.load %arg15[%c5, %c0_154, %c0_155] : memref<9x8x8xf32, #tpu.memory_space<vmem>>, vector<1x8x8xf32>
      %155 = vector.shape_cast %154 : vector<1x8x8xf32> to vector<8x8xf32>
      %cst_156 = arith.constant dense<0.000000e+00> : vector<16x8xf32>
      %156 = tpu.matmul %153, %155, %cst_156 {dimension_numbers = #tpu.dot_dimension_numbers<[1], [0], [0], [1], [0, 0, 1, 1], [], []>} : vector<16x8xf32>, vector<8x8xf32>, vector<16x8xf32> -> vector<16x8xf32>
      %157 = arith.addf %149, %156 : vector<16x8xf32>
      %c2_i32_157 = arith.constant 2 : i32
      %158 = arith.addi %arg31, %c2_i32_157 : i32
      %159 = arith.index_cast %158 : i32 to index
      %c0_158 = arith.constant 0 : index
      %c0_159 = arith.constant 0 : index
      %160 = vector.load %arg29[%159, %c0_158, %c0_159] : memref<18x18x8xf32, #tpu.memory_space<vmem>>, vector<1x16x8xf32>
      %161 = vector.shape_cast %160 : vector<1x16x8xf32> to vector<16x8xf32>
      %c6 = arith.constant 6 : index
      %c0_160 = arith.constant 0 : index
      %c0_161 = arith.constant 0 : index
      %162 = vector.load %arg15[%c6, %c0_160, %c0_161] : memref<9x8x8xf32, #tpu.memory_space<vmem>>, vector<1x8x8xf32>
      %163 = vector.shape_cast %162 : vector<1x8x8xf32> to vector<8x8xf32>
      %cst_162 = arith.constant dense<0.000000e+00> : vector<16x8xf32>
      %164 = tpu.matmul %161, %163, %cst_162 {dimension_numbers = #tpu.dot_dimension_numbers<[1], [0], [0], [1], [0, 0, 1, 1], [], []>} : vector<16x8xf32>, vector<8x8xf32>, vector<16x8xf32> -> vector<16x8xf32>
      %165 = arith.addf %157, %164 : vector<16x8xf32>
      %c2_i32_163 = arith.constant 2 : i32
      %166 = arith.addi %arg31, %c2_i32_163 : i32
      %167 = arith.index_cast %166 : i32 to index
      %c1_164 = arith.constant 1 : index
      %c0_165 = arith.constant 0 : index
      %168 = vector.load %arg29[%167, %c1_164, %c0_165] : memref<18x18x8xf32, #tpu.memory_space<vmem>>, vector<1x16x8xf32>
      %169 = vector.shape_cast %168 : vector<1x16x8xf32> to vector<16x8xf32>
      %c7 = arith.constant 7 : index
      %c0_166 = arith.constant 0 : index
      %c0_167 = arith.constant 0 : index
      %170 = vector.load %arg15[%c7, %c0_166, %c0_167] : memref<9x8x8xf32, #tpu.memory_space<vmem>>, vector<1x8x8xf32>
      %171 = vector.shape_cast %170 : vector<1x8x8xf32> to vector<8x8xf32>
      %cst_168 = arith.constant dense<0.000000e+00> : vector<16x8xf32>
      %172 = tpu.matmul %169, %171, %cst_168 {dimension_numbers = #tpu.dot_dimension_numbers<[1], [0], [0], [1], [0, 0, 1, 1], [], []>} : vector<16x8xf32>, vector<8x8xf32>, vector<16x8xf32> -> vector<16x8xf32>
      %173 = arith.addf %165, %172 : vector<16x8xf32>
      %c2_i32_169 = arith.constant 2 : i32
      %174 = arith.addi %arg31, %c2_i32_169 : i32
      %175 = arith.index_cast %174 : i32 to index
      %c2_170 = arith.constant 2 : index
      %c0_171 = arith.constant 0 : index
      %176 = vector.load %arg29[%175, %c2_170, %c0_171] : memref<18x18x8xf32, #tpu.memory_space<vmem>>, vector<1x16x8xf32>
      %177 = vector.shape_cast %176 : vector<1x16x8xf32> to vector<16x8xf32>
      %c8 = arith.constant 8 : index
      %c0_172 = arith.constant 0 : index
      %c0_173 = arith.constant 0 : index
      %178 = vector.load %arg15[%c8, %c0_172, %c0_173] : memref<9x8x8xf32, #tpu.memory_space<vmem>>, vector<1x8x8xf32>
      %179 = vector.shape_cast %178 : vector<1x8x8xf32> to vector<8x8xf32>
      %cst_174 = arith.constant dense<0.000000e+00> : vector<16x8xf32>
      %180 = tpu.matmul %177, %179, %cst_174 {dimension_numbers = #tpu.dot_dimension_numbers<[1], [0], [0], [1], [0, 0, 1, 1], [], []>} : vector<16x8xf32>, vector<8x8xf32>, vector<16x8xf32> -> vector<16x8xf32>
      %181 = arith.addf %173, %180 : vector<16x8xf32>
      %c0_i32_175 = arith.constant 0 : i32
      %182 = arith.addi %arg31, %c0_i32_175 : i32
      %183 = arith.index_cast %182 : i32 to index
      %c0_176 = arith.constant 0 : index
      %c0_177 = arith.constant 0 : index
      %184 = vector.load %arg22[%183, %c0_176, %c0_177] : memref<18x18x8xf32, #tpu.memory_space<vmem>>, vector<1x16x8xf32>
      %185 = vector.shape_cast %184 : vector<1x16x8xf32> to vector<16x8xf32>
      %c0_178 = arith.constant 0 : index
      %c0_179 = arith.constant 0 : index
      %c0_180 = arith.constant 0 : index
      %186 = vector.load %arg16[%c0_178, %c0_179, %c0_180] : memref<9x8x8xf32, #tpu.memory_space<vmem>>, vector<1x8x8xf32>
      %187 = vector.shape_cast %186 : vector<1x8x8xf32> to vector<8x8xf32>
      %cst_181 = arith.constant dense<0.000000e+00> : vector<16x8xf32>
      %188 = tpu.matmul %185, %187, %cst_181 {dimension_numbers = #tpu.dot_dimension_numbers<[1], [0], [0], [1], [0, 0, 1, 1], [], []>} : vector<16x8xf32>, vector<8x8xf32>, vector<16x8xf32> -> vector<16x8xf32>
      %189 = arith.addf %181, %188 : vector<16x8xf32>
      %c0_i32_182 = arith.constant 0 : i32
      %190 = arith.addi %arg31, %c0_i32_182 : i32
      %191 = arith.index_cast %190 : i32 to index
      %c1_183 = arith.constant 1 : index
      %c0_184 = arith.constant 0 : index
      %192 = vector.load %arg22[%191, %c1_183, %c0_184] : memref<18x18x8xf32, #tpu.memory_space<vmem>>, vector<1x16x8xf32>
      %193 = vector.shape_cast %192 : vector<1x16x8xf32> to vector<16x8xf32>
      %c1_185 = arith.constant 1 : index
      %c0_186 = arith.constant 0 : index
      %c0_187 = arith.constant 0 : index
      %194 = vector.load %arg16[%c1_185, %c0_186, %c0_187] : memref<9x8x8xf32, #tpu.memory_space<vmem>>, vector<1x8x8xf32>
      %195 = vector.shape_cast %194 : vector<1x8x8xf32> to vector<8x8xf32>
      %cst_188 = arith.constant dense<0.000000e+00> : vector<16x8xf32>
      %196 = tpu.matmul %193, %195, %cst_188 {dimension_numbers = #tpu.dot_dimension_numbers<[1], [0], [0], [1], [0, 0, 1, 1], [], []>} : vector<16x8xf32>, vector<8x8xf32>, vector<16x8xf32> -> vector<16x8xf32>
      %197 = arith.addf %189, %196 : vector<16x8xf32>
      %c0_i32_189 = arith.constant 0 : i32
      %198 = arith.addi %arg31, %c0_i32_189 : i32
      %199 = arith.index_cast %198 : i32 to index
      %c2_190 = arith.constant 2 : index
      %c0_191 = arith.constant 0 : index
      %200 = vector.load %arg22[%199, %c2_190, %c0_191] : memref<18x18x8xf32, #tpu.memory_space<vmem>>, vector<1x16x8xf32>
      %201 = vector.shape_cast %200 : vector<1x16x8xf32> to vector<16x8xf32>
      %c2_192 = arith.constant 2 : index
      %c0_193 = arith.constant 0 : index
      %c0_194 = arith.constant 0 : index
      %202 = vector.load %arg16[%c2_192, %c0_193, %c0_194] : memref<9x8x8xf32, #tpu.memory_space<vmem>>, vector<1x8x8xf32>
      %203 = vector.shape_cast %202 : vector<1x8x8xf32> to vector<8x8xf32>
      %cst_195 = arith.constant dense<0.000000e+00> : vector<16x8xf32>
      %204 = tpu.matmul %201, %203, %cst_195 {dimension_numbers = #tpu.dot_dimension_numbers<[1], [0], [0], [1], [0, 0, 1, 1], [], []>} : vector<16x8xf32>, vector<8x8xf32>, vector<16x8xf32> -> vector<16x8xf32>
      %205 = arith.addf %197, %204 : vector<16x8xf32>
      %c1_i32_196 = arith.constant 1 : i32
      %206 = arith.addi %arg31, %c1_i32_196 : i32
      %207 = arith.index_cast %206 : i32 to index
      %c0_197 = arith.constant 0 : index
      %c0_198 = arith.constant 0 : index
      %208 = vector.load %arg22[%207, %c0_197, %c0_198] : memref<18x18x8xf32, #tpu.memory_space<vmem>>, vector<1x16x8xf32>
      %209 = vector.shape_cast %208 : vector<1x16x8xf32> to vector<16x8xf32>
      %c3_199 = arith.constant 3 : index
      %c0_200 = arith.constant 0 : index
      %c0_201 = arith.constant 0 : index
      %210 = vector.load %arg16[%c3_199, %c0_200, %c0_201] : memref<9x8x8xf32, #tpu.memory_space<vmem>>, vector<1x8x8xf32>
      %211 = vector.shape_cast %210 : vector<1x8x8xf32> to vector<8x8xf32>
      %cst_202 = arith.constant dense<0.000000e+00> : vector<16x8xf32>
      %212 = tpu.matmul %209, %211, %cst_202 {dimension_numbers = #tpu.dot_dimension_numbers<[1], [0], [0], [1], [0, 0, 1, 1], [], []>} : vector<16x8xf32>, vector<8x8xf32>, vector<16x8xf32> -> vector<16x8xf32>
      %213 = arith.addf %205, %212 : vector<16x8xf32>
      %c1_i32_203 = arith.constant 1 : i32
      %214 = arith.addi %arg31, %c1_i32_203 : i32
      %215 = arith.index_cast %214 : i32 to index
      %c1_204 = arith.constant 1 : index
      %c0_205 = arith.constant 0 : index
      %216 = vector.load %arg22[%215, %c1_204, %c0_205] : memref<18x18x8xf32, #tpu.memory_space<vmem>>, vector<1x16x8xf32>
      %217 = vector.shape_cast %216 : vector<1x16x8xf32> to vector<16x8xf32>
      %c4_206 = arith.constant 4 : index
      %c0_207 = arith.constant 0 : index
      %c0_208 = arith.constant 0 : index
      %218 = vector.load %arg16[%c4_206, %c0_207, %c0_208] : memref<9x8x8xf32, #tpu.memory_space<vmem>>, vector<1x8x8xf32>
      %219 = vector.shape_cast %218 : vector<1x8x8xf32> to vector<8x8xf32>
      %cst_209 = arith.constant dense<0.000000e+00> : vector<16x8xf32>
      %220 = tpu.matmul %217, %219, %cst_209 {dimension_numbers = #tpu.dot_dimension_numbers<[1], [0], [0], [1], [0, 0, 1, 1], [], []>} : vector<16x8xf32>, vector<8x8xf32>, vector<16x8xf32> -> vector<16x8xf32>
      %221 = arith.addf %213, %220 : vector<16x8xf32>
      %c1_i32_210 = arith.constant 1 : i32
      %222 = arith.addi %arg31, %c1_i32_210 : i32
      %223 = arith.index_cast %222 : i32 to index
      %c2_211 = arith.constant 2 : index
      %c0_212 = arith.constant 0 : index
      %224 = vector.load %arg22[%223, %c2_211, %c0_212] : memref<18x18x8xf32, #tpu.memory_space<vmem>>, vector<1x16x8xf32>
      %225 = vector.shape_cast %224 : vector<1x16x8xf32> to vector<16x8xf32>
      %c5_213 = arith.constant 5 : index
      %c0_214 = arith.constant 0 : index
      %c0_215 = arith.constant 0 : index
      %226 = vector.load %arg16[%c5_213, %c0_214, %c0_215] : memref<9x8x8xf32, #tpu.memory_space<vmem>>, vector<1x8x8xf32>
      %227 = vector.shape_cast %226 : vector<1x8x8xf32> to vector<8x8xf32>
      %cst_216 = arith.constant dense<0.000000e+00> : vector<16x8xf32>
      %228 = tpu.matmul %225, %227, %cst_216 {dimension_numbers = #tpu.dot_dimension_numbers<[1], [0], [0], [1], [0, 0, 1, 1], [], []>} : vector<16x8xf32>, vector<8x8xf32>, vector<16x8xf32> -> vector<16x8xf32>
      %229 = arith.addf %221, %228 : vector<16x8xf32>
      %c2_i32_217 = arith.constant 2 : i32
      %230 = arith.addi %arg31, %c2_i32_217 : i32
      %231 = arith.index_cast %230 : i32 to index
      %c0_218 = arith.constant 0 : index
      %c0_219 = arith.constant 0 : index
      %232 = vector.load %arg22[%231, %c0_218, %c0_219] : memref<18x18x8xf32, #tpu.memory_space<vmem>>, vector<1x16x8xf32>
      %233 = vector.shape_cast %232 : vector<1x16x8xf32> to vector<16x8xf32>
      %c6_220 = arith.constant 6 : index
      %c0_221 = arith.constant 0 : index
      %c0_222 = arith.constant 0 : index
      %234 = vector.load %arg16[%c6_220, %c0_221, %c0_222] : memref<9x8x8xf32, #tpu.memory_space<vmem>>, vector<1x8x8xf32>
      %235 = vector.shape_cast %234 : vector<1x8x8xf32> to vector<8x8xf32>
      %cst_223 = arith.constant dense<0.000000e+00> : vector<16x8xf32>
      %236 = tpu.matmul %233, %235, %cst_223 {dimension_numbers = #tpu.dot_dimension_numbers<[1], [0], [0], [1], [0, 0, 1, 1], [], []>} : vector<16x8xf32>, vector<8x8xf32>, vector<16x8xf32> -> vector<16x8xf32>
      %237 = arith.addf %229, %236 : vector<16x8xf32>
      %c2_i32_224 = arith.constant 2 : i32
      %238 = arith.addi %arg31, %c2_i32_224 : i32
      %239 = arith.index_cast %238 : i32 to index
      %c1_225 = arith.constant 1 : index
      %c0_226 = arith.constant 0 : index
      %240 = vector.load %arg22[%239, %c1_225, %c0_226] : memref<18x18x8xf32, #tpu.memory_space<vmem>>, vector<1x16x8xf32>
      %241 = vector.shape_cast %240 : vector<1x16x8xf32> to vector<16x8xf32>
      %c7_227 = arith.constant 7 : index
      %c0_228 = arith.constant 0 : index
      %c0_229 = arith.constant 0 : index
      %242 = vector.load %arg16[%c7_227, %c0_228, %c0_229] : memref<9x8x8xf32, #tpu.memory_space<vmem>>, vector<1x8x8xf32>
      %243 = vector.shape_cast %242 : vector<1x8x8xf32> to vector<8x8xf32>
      %cst_230 = arith.constant dense<0.000000e+00> : vector<16x8xf32>
      %244 = tpu.matmul %241, %243, %cst_230 {dimension_numbers = #tpu.dot_dimension_numbers<[1], [0], [0], [1], [0, 0, 1, 1], [], []>} : vector<16x8xf32>, vector<8x8xf32>, vector<16x8xf32> -> vector<16x8xf32>
      %245 = arith.addf %237, %244 : vector<16x8xf32>
      %c2_i32_231 = arith.constant 2 : i32
      %246 = arith.addi %arg31, %c2_i32_231 : i32
      %247 = arith.index_cast %246 : i32 to index
      %c2_232 = arith.constant 2 : index
      %c0_233 = arith.constant 0 : index
      %248 = vector.load %arg22[%247, %c2_232, %c0_233] : memref<18x18x8xf32, #tpu.memory_space<vmem>>, vector<1x16x8xf32>
      %249 = vector.shape_cast %248 : vector<1x16x8xf32> to vector<16x8xf32>
      %c8_234 = arith.constant 8 : index
      %c0_235 = arith.constant 0 : index
      %c0_236 = arith.constant 0 : index
      %250 = vector.load %arg16[%c8_234, %c0_235, %c0_236] : memref<9x8x8xf32, #tpu.memory_space<vmem>>, vector<1x8x8xf32>
      %251 = vector.shape_cast %250 : vector<1x8x8xf32> to vector<8x8xf32>
      %cst_237 = arith.constant dense<0.000000e+00> : vector<16x8xf32>
      %252 = tpu.matmul %249, %251, %cst_237 {dimension_numbers = #tpu.dot_dimension_numbers<[1], [0], [0], [1], [0, 0, 1, 1], [], []>} : vector<16x8xf32>, vector<8x8xf32>, vector<16x8xf32> -> vector<16x8xf32>
      %253 = arith.addf %245, %252 : vector<16x8xf32>
      %cst_238 = arith.constant 0.000000e+00 : f32
      %254 = vector.broadcast %cst_238 : f32 to vector<16x8xf32>
      %255 = arith.maximumf %253, %254 : vector<16x8xf32>
      %c0_i32_239 = arith.constant 0 : i32
      %256 = arith.addi %arg31, %c0_i32_239 : i32
      %257 = arith.index_cast %256 : i32 to index
      %c0_240 = arith.constant 0 : index
      %c0_241 = arith.constant 0 : index
      %258 = vector.load %arg30[%257, %c0_240, %c0_241] : memref<16x16x8xf32, #tpu.memory_space<vmem>>, vector<1x16x8xf32>
      %259 = vector.shape_cast %258 : vector<1x16x8xf32> to vector<16x8xf32>
      %260 = vector.shape_cast %255 : vector<16x8xf32> to vector<1x16x8xf32>
      tpu.vector_store %arg30[%257, %c0_240, %c0_241], %260 {strides = array<i32>} : memref<16x16x8xf32, #tpu.memory_space<vmem>>, vector<1x16x8xf32>,
    }
    %c16_i32_103 = arith.constant 16 : i32
    %c0_104 = arith.constant 0 : index
    %c0_105 = arith.constant 0 : index
    %c0_106 = arith.constant 0 : index
    %95 = vector.load %arg30[%c0_104, %c0_105, %c0_106] : memref<16x16x8xf32, #tpu.memory_space<vmem>>, vector<16x16x8xf32>
    %c0_107 = arith.constant 0 : index
    %c0_108 = arith.constant 0 : index
    %c0_109 = arith.constant 0 : index
    %96 = vector.load %arg18[%c0_107, %c0_108, %c0_109] : memref<1x1x8xf32, #tpu.memory_space<vmem>>, vector<1x1x8xf32>
    %97 = vector.broadcast %96 : vector<1x1x8xf32> to vector<16x16x8xf32>
    %98 = arith.mulf %95, %97 : vector<16x16x8xf32>
    %cst_110 = arith.constant dense<0.000000e+00> : vector<16x16xf32>
    %99 = vector.multi_reduction <add>, %98, %cst_110 [2] : vector<16x16x8xf32> to vector<16x16xf32>
    %100 = vector.shape_cast %99 : vector<16x16xf32> to vector<16x16x1xf32>
    %c0_111 = arith.constant 0 : index
    %c0_112 = arith.constant 0 : index
    %c0_113 = arith.constant 0 : index
    %101 = vector.load %arg19[%c0_111, %c0_112, %c0_113] : memref<1x1x1xf32, #tpu.memory_space<vmem>>, vector<1x1x1xf32>
    %102 = vector.broadcast %101 : vector<1x1x1xf32> to vector<16x16x1xf32>
    %103 = arith.addf %100, %102 : vector<16x16x1xf32>
    %c0_114 = arith.constant 0 : index
    %c0_115 = arith.constant 0 : index
    %c0_116 = arith.constant 0 : index
    %c0_117 = arith.constant 0 : index
    %104 = vector.load %arg20[%c0_114, %c0_115, %c0_116, %c0_117] : memref<1x16x16x1xf32, #tpu.memory_space<vmem>>, vector<1x16x16x1xf32>
    %105 = vector.shape_cast %104 : vector<1x16x16x1xf32> to vector<16x16x1xf32>
    %106 = vector.shape_cast %103 : vector<16x16x1xf32> to vector<1x16x16x1xf32>
    tpu.vector_store %arg20[%c0_114, %c0_115, %c0_116, %c0_117], %106 {strides = array<i32>} : memref<1x16x16x1xf32, #tpu.memory_space<vmem>>, vector<1x16x16x1xf32>,
    return
  }
  func.func @transform_0(%arg0: i32) -> (i32, i32, i32, i32) {
    %c0_i32 = arith.constant 0 : i32
    %c0_i32_0 = arith.constant 0 : i32
    %c0_i32_1 = arith.constant 0 : i32
    %c0_i32_2 = arith.constant 0 : i32
    return %arg0, %c0_i32, %c0_i32_0, %c0_i32_1 : i32, i32, i32, i32
  }
  func.func @transform_1(%arg0: i32) -> (i32, i32, i32) {
    %c0_i32 = arith.constant 0 : i32
    %c0_i32_0 = arith.constant 0 : i32
    %c0_i32_1 = arith.constant 0 : i32
    %c0_i32_2 = arith.constant 0 : i32
    return %c0_i32, %c0_i32_0, %c0_i32_1 : i32, i32, i32
  }
  func.func @transform_2(%arg0: i32) -> (i32, i32) {
    %c0_i32 = arith.constant 0 : i32
    %c0_i32_0 = arith.constant 0 : i32
    %c0_i32_1 = arith.constant 0 : i32
    return %c0_i32, %c0_i32_0 : i32, i32
  }
  func.func @transform_3(%arg0: i32) -> (i32, i32, i32) {
    %c0_i32 = arith.constant 0 : i32
    %c0_i32_0 = arith.constant 0 : i32
    %c0_i32_1 = arith.constant 0 : i32
    %c0_i32_2 = arith.constant 0 : i32
    return %c0_i32, %c0_i32_0, %c0_i32_1 : i32, i32, i32
  }
  func.func @transform_4(%arg0: i32) -> (i32, i32) {
    %c0_i32 = arith.constant 0 : i32
    %c0_i32_0 = arith.constant 0 : i32
    %c0_i32_1 = arith.constant 0 : i32
    return %c0_i32, %c0_i32_0 : i32, i32
  }
  func.func @transform_5(%arg0: i32) -> (i32, i32, i32) {
    %c0_i32 = arith.constant 0 : i32
    %c0_i32_0 = arith.constant 0 : i32
    %c0_i32_1 = arith.constant 0 : i32
    %c0_i32_2 = arith.constant 0 : i32
    return %c0_i32, %c0_i32_0, %c0_i32_1 : i32, i32, i32
  }
  func.func @transform_6(%arg0: i32) -> (i32, i32) {
    %c0_i32 = arith.constant 0 : i32
    %c0_i32_0 = arith.constant 0 : i32
    %c0_i32_1 = arith.constant 0 : i32
    return %c0_i32, %c0_i32_0 : i32, i32
  }
  func.func @transform_7(%arg0: i32) -> (i32, i32) {
    %c0_i32 = arith.constant 0 : i32
    %c0_i32_0 = arith.constant 0 : i32
    %c0_i32_1 = arith.constant 0 : i32
    return %c0_i32, %c0_i32_0 : i32, i32
  }
  func.func @transform_8(%arg0: i32) -> (i32, i32) {
    %c0_i32 = arith.constant 0 : i32
    %c0_i32_0 = arith.constant 0 : i32
    %c0_i32_1 = arith.constant 0 : i32
    return %c0_i32, %c0_i32_0 : i32, i32
  }
  func.func @transform_9(%arg0: i32) -> (i32, i32, i32) {
    %c0_i32 = arith.constant 0 : i32
    %c0_i32_0 = arith.constant 0 : i32
    %c0_i32_1 = arith.constant 0 : i32
    %c0_i32_2 = arith.constant 0 : i32
    return %c0_i32, %c0_i32_0, %c0_i32_1 : i32, i32, i32
  }
  func.func @transform_10(%arg0: i32) -> (i32, i32, i32) {
    %c0_i32 = arith.constant 0 : i32
    %c0_i32_0 = arith.constant 0 : i32
    %c0_i32_1 = arith.constant 0 : i32
    %c0_i32_2 = arith.constant 0 : i32
    return %c0_i32, %c0_i32_0, %c0_i32_1 : i32, i32, i32
  }
  func.func @transform_11(%arg0: i32) -> (i32, i32) {
    %c0_i32 = arith.constant 0 : i32
    %c0_i32_0 = arith.constant 0 : i32
    %c0_i32_1 = arith.constant 0 : i32
    return %c0_i32, %c0_i32_0 : i32, i32
  }
  func.func @transform_12(%arg0: i32) -> (i32, i32) {
    %c0_i32 = arith.constant 0 : i32
    %c0_i32_0 = arith.constant 0 : i32
    %c0_i32_1 = arith.constant 0 : i32
    return %c0_i32, %c0_i32_0 : i32, i32
  }
  func.func @transform_13(%arg0: i32) -> (i32, i32) {
    %c0_i32 = arith.constant 0 : i32
    %c0_i32_0 = arith.constant 0 : i32
    %c0_i32_1 = arith.constant 0 : i32
    return %c0_i32, %c0_i32_0 : i32, i32
  }
  func.func @transform_14(%arg0: i32) -> (i32, i32, i32) {
    %c0_i32 = arith.constant 0 : i32
    %c0_i32_0 = arith.constant 0 : i32
    %c0_i32_1 = arith.constant 0 : i32
    %c0_i32_2 = arith.constant 0 : i32
    return %c0_i32, %c0_i32_0, %c0_i32_1 : i32, i32, i32
  }
  func.func @transform_15(%arg0: i32) -> (i32, i32, i32) {
    %c0_i32 = arith.constant 0 : i32
    %c0_i32_0 = arith.constant 0 : i32
    %c0_i32_1 = arith.constant 0 : i32
    %c0_i32_2 = arith.constant 0 : i32
    return %c0_i32, %c0_i32_0, %c0_i32_1 : i32, i32, i32
  }
  func.func @transform_16(%arg0: i32) -> (i32, i32) {
    %c0_i32 = arith.constant 0 : i32
    %c0_i32_0 = arith.constant 0 : i32
    %c0_i32_1 = arith.constant 0 : i32
    return %c0_i32, %c0_i32_0 : i32, i32
  }
  func.func @transform_17(%arg0: i32) -> (i32, i32, i32) {
    %c0_i32 = arith.constant 0 : i32
    %c0_i32_0 = arith.constant 0 : i32
    %c0_i32_1 = arith.constant 0 : i32
    %c0_i32_2 = arith.constant 0 : i32
    return %c0_i32, %c0_i32_0, %c0_i32_1 : i32, i32, i32
  }
  func.func @transform_18(%arg0: i32) -> (i32, i32, i32) {
    %c0_i32 = arith.constant 0 : i32
    %c0_i32_0 = arith.constant 0 : i32
    %c0_i32_1 = arith.constant 0 : i32
    %c0_i32_2 = arith.constant 0 : i32
    return %c0_i32, %c0_i32_0, %c0_i32_1 : i32, i32, i32
  }
  func.func @transform_19(%arg0: i32) -> (i32, i32, i32, i32) {
    %c0_i32 = arith.constant 0 : i32
    %c0_i32_0 = arith.constant 0 : i32
    %c0_i32_1 = arith.constant 0 : i32
    %c0_i32_2 = arith.constant 0 : i32
    return %arg0, %c0_i32, %c0_i32_0, %c0_i32_1 : i32, i32, i32, i32
  }
}

</mosaic_0001>

<llo_original>
// kernel: unet_forward.1
$region0: #{unet_forward.1}
  #allocation0 [shape = 'u32[]', space=smem, size = 0x4, offset = 0x4, fixed_abs, tag = 'smem constant byte address 0x4 - core index']
  #allocation1 [shape = 'u32[144,128]{1,0:T(1,128)}', space=vmem, size = 0x12000, scoped, tag = 'internal scratch']
  #allocation2 [shape = 'f32[18,18,1]{2,1,0:T(8,128)}', space=vmem, size = 0x36000, scoped, tag = 'scratch operand']
  #allocation3 [shape = 'f32[18,18,8]{2,1,0:T(8,128)}', space=vmem, size = 0x36000, scoped, tag = 'scratch operand']
  #allocation4 [shape = 'f32[10,10,8]{2,1,0:T(8,128)}', space=vmem, size = 0x14000, scoped, tag = 'scratch operand']
  #allocation5 [shape = 'f32[10,10,16]{2,1,0:T(8,128)}', space=vmem, size = 0x14000, scoped, tag = 'scratch operand']
  #allocation6 [shape = 'f32[6,6,16]{2,1,0:T(8,128)}', space=vmem, size = 0x6000, scoped, tag = 'scratch operand']
  #allocation7 [shape = 'f32[4,4,32]{2,1,0:T(4,128)}', space=vmem, size = 0x2000, scoped, tag = 'scratch operand']
  #allocation8 [shape = 'f32[10,10,16]{2,1,0:T(8,128)}', space=vmem, size = 0x14000, scoped, tag = 'scratch operand']
  #allocation9 [shape = 'f32[8,8,16]{2,1,0:T(8,128)}', space=vmem, size = 0x8000, scoped, tag = 'scratch operand']
  #allocation10 [shape = 'f32[18,18,8]{2,1,0:T(8,128)}', space=vmem, size = 0x36000, scoped, tag = 'scratch operand']
  #allocation11 [shape = 'f32[16,16,8]{2,1,0:T(8,128)}', space=vmem, size = 0x20000, scoped, tag = 'scratch operand']
  #allocation12 [shape = 'f32[1,1,1]{2,1,0:T(1,128)S(1)}', space=vmem, size = 0x200, scoped, tag = 'scoped memory for unet_forward.1']
  %s0 = inlined_call_operand.vmem [shape: f32[2,16,16,1], index: 0, kind: input, shape index: {}]
  %s1 = inlined_call_operand.vmem [shape: f32[9,1,8], index: 1, kind: input, shape index: {}]
  %s2 = inlined_call_operand.vmem [shape: f32[1,8], index: 2, kind: input, shape index: {}]
  %s3 = inlined_call_operand.vmem [shape: f32[9,8,16], index: 3, kind: input, shape index: {}]
  %s4 = inlined_call_operand.vmem [shape: f32[1,16], index: 4, kind: input, shape index: {}]
  %s5 = inlined_call_operand.vmem [shape: f32[9,16,32], index: 5, kind: input, shape index: {}]
  %s6 = inlined_call_operand.vmem [shape: f32[1,32], index: 6, kind: input, shape index: {}]
  %s7 = inlined_call_operand.vmem [shape: f32[32,16], index: 7, kind: input, shape index: {}]
  %s8 = inlined_call_operand.vmem [shape: f32[1,16], index: 8, kind: input, shape index: {}]
  %s9 = inlined_call_operand.vmem [shape: f32[9,16,16], index: 9, kind: input, shape index: {}]
  %s10 = inlined_call_operand.vmem [shape: f32[9,16,16], index: 10, kind: input, shape index: {}]
  %s11 = inlined_call_operand.vmem [shape: f32[1,16], index: 11, kind: input, shape index: {}]
  %s12 = inlined_call_operand.vmem [shape: f32[16,8], index: 12, kind: input, shape index: {}]
  %s13 = inlined_call_operand.vmem [shape: f32[1,8], index: 13, kind: input, shape index: {}]
  %s14 = inlined_call_operand.vmem [shape: f32[9,8,8], index: 14, kind: input, shape index: {}]
  %s15 = inlined_call_operand.vmem [shape: f32[9,8,8], index: 15, kind: input, shape index: {}]
  %s16 = inlined_call_operand.vmem [shape: f32[1,8], index: 16, kind: input, shape index: {}]
  %s17 = inlined_call_operand.vmem [shape: f32[1,1,8], index: 17, kind: input, shape index: {}]
  %s18 = inlined_call_operand.<no memory space> [shape: f32[1,1,1], index: 18, kind: input, shape index: {}]
  %s19 = inlined_call_operand.vmem [shape: f32[2,16,16,1], index: 19, kind: output, shape index: {}]
  %s20 = sld [smem:[#allocation0]]
  $region172: #{unet_forward.1} parent=0
    _
  %s22 = ssub.s32 1, %s20
  %s23 = scalar_select 0, %s22, %s20
  %v24 = vstv %s18
  %25 = vst [vmem:[#allocation12] sm:$0x1] %v24
  loop: start=0, step=1, limit=4
  $region2: #{unet_forward.1} parent=0 // loop_pre_header
    _
  $region3: #{unet_forward.1} parent=0 // loop_header
    %s27 = sphi 0, %s31
    %p28 = scmp.ge.s32.totalorder %s27, 4
    %s37 = sphi 0, %s39
    %s40 = sphi 0, %s37
    %s41 = sphi 0, %s40
    %s57 = sphi 0, %s41
    %s61 = sphi 0, %s61
    %s63 = sphi 0, %s61
    %s64 = sphi 0, %s63
    %s78 = sphi 0, %s64
    %s82 = sphi 0, %s82
    %s84 = sphi 0, %s82
    %s85 = sphi 0, %s84
    %s99 = sphi 0, %s85
    %s103 = sphi 0, %s103
    %s105 = sphi 0, %s103
    %s106 = sphi 0, %s105
    %s120 = sphi 0, %s106
    %s124 = sphi 0, %s124
    %s126 = sphi 0, %s124
    %s127 = sphi 0, %s126
    %s141 = sphi 0, %s127
    %s145 = sphi 0, %s145
    %s147 = sphi 0, %s145
    %s148 = sphi 0, %s147
    %s162 = sphi 0, %s148
    %s166 = sphi 0, %s166
    %s168 = sphi 0, %s166
    %s169 = sphi 0, %s168
    %s183 = sphi 0, %s169
    %s187 = sphi 0, %s187
    %s189 = sphi 0, %s187
    %s190 = sphi 0, %s189
    %s204 = sphi 0, %s190
    %s208 = sphi 0, %s208
    %s210 = sphi 0, %s208
    %s211 = sphi 0, %s210
    %s225 = sphi 0, %s211
    %s229 = sphi 0, %s229
    %s231 = sphi 0, %s229
    %s232 = sphi 0, %s231
    %s246 = sphi 0, %s232
    %s250 = sphi 0, %s250
    %s252 = sphi 0, %s250
    %s253 = sphi 0, %s252
    %s267 = sphi 0, %s253
    %s271 = sphi 0, %s271
    %s273 = sphi 0, %s271
    %s274 = sphi 0, %s273
    %s288 = sphi 0, %s274
    %s292 = sphi 0, %s292
    %s294 = sphi 0, %s292
    %s295 = sphi 0, %s294
    %s309 = sphi 0, %s295
    %s313 = sphi 0, %s313
    %s315 = sphi 0, %s313
    %s316 = sphi 0, %s315
    %s330 = sphi 0, %s316
    %s334 = sphi 0, %s334
    %s336 = sphi 0, %s334
    %s337 = sphi 0, %s336
    %s351 = sphi 0, %s337
    %s355 = sphi 0, %s355
    %s357 = sphi 0, %s355
    %s358 = sphi 0, %s357
    %s372 = sphi 0, %s358
    %s376 = sphi 0, %s376
    %s378 = sphi 0, %s376
    %s379 = sphi 0, %s378
    %s393 = sphi 0, %s379
    %s397 = sphi 0, %s397
    %s399 = sphi 0, %s397
    %s400 = sphi 0, %s399
    %s414 = sphi 0, %s400
    %s418 = sphi 0, %s418
    %s420 = sphi 0, %s418
    %s421 = sphi 0, %s420
    %s435 = sphi 0, %s421
    %s441 = sphi 0, %s443
    %s444 = sphi 0, %s441
    %s445 = sphi 0, %s444
    %s461 = sphi 0, %s445
  $region4: #{unet_forward.1} parent=0 // loop_header_branch
    %30 = sbr.rel (%p28) target = $region8
  $region5: #{unet_forward.1} parent=0 // loop_body
    %s32 = ssub.s32 %s27, 1
    %s33 = ssub.s32 %s27, 2
    %s34 = sadd.s32 %s27, 1
    %s35 = ssub.s32 %s27, %s34
    %p36 = scmp.eq.s32.totalorder %s35, 0
    %s38 = sadd.s32 %s37, 1
    %s39 = scalar_select %p36, %s37, %s38
    %p42 = pneg %p36
    %p43 = scmp.eq.s32.totalorder %s27, 1
    %p44 = por %p42, %p43
    %p45 = scmp.ne.s32.totalorder %s37, %s40
    %p46 = scmp.eq.s32.totalorder %s27, 0
    %p47 = por %p45, %p46
    %p48 = scmp.ne.s32.totalorder %s37, %s40
    %p49 = scmp.eq.s32.totalorder %s32, 1
    %p50 = por %p48, %p49
    %p51 = scmp.ne.s32.totalorder %s40, %s41
    %p52 = scmp.eq.s32.totalorder %s32, 0
    %p53 = por %p51, %p52
    %p54 = scmp.ne.s32.totalorder %s40, %s41
    %p55 = scmp.eq.s32.totalorder %s33, 1
    %p56 = por %p54, %p55
    %p58 = scmp.ne.s32.totalorder %s41, %s57
    %p59 = scmp.eq.s32.totalorder %s33, 0
    %p60 = por %p58, %p59
    %s62 = sadd.s32 %s61, 1
    %p65 = scmp.eq.s32.totalorder %s27, 1
    %p66 = scmp.ne.s32.totalorder %s61, %s63
    %p67 = scmp.eq.s32.totalorder %s27, 0
    %p68 = por %p66, %p67
    %p69 = scmp.ne.s32.totalorder %s61, %s63
    %p70 = scmp.eq.s32.totalorder %s32, 1
    %p71 = por %p69, %p70
    %p72 = scmp.ne.s32.totalorder %s63, %s64
    %p73 = scmp.eq.s32.totalorder %s32, 0
    %p74 = por %p72, %p73
    %p75 = scmp.ne.s32.totalorder %s63, %s64
    %p76 = scmp.eq.s32.totalorder %s33, 1
    %p77 = por %p75, %p76
    %p79 = scmp.ne.s32.totalorder %s64, %s78
    %p80 = scmp.eq.s32.totalorder %s33, 0
    %p81 = por %p79, %p80
    %s83 = sadd.s32 %s82, 1
    %p86 = scmp.eq.s32.totalorder %s27, 1
    %p87 = scmp.ne.s32.totalorder %s82, %s84
    %p88 = scmp.eq.s32.totalorder %s27, 0
    %p89 = por %p87, %p88
    %p90 = scmp.ne.s32.totalorder %s82, %s84
    %p91 = scmp.eq.s32.totalorder %s32, 1
    %p92 = por %p90, %p91
    %p93 = scmp.ne.s32.totalorder %s84, %s85
    %p94 = scmp.eq.s32.totalorder %s32, 0
    %p95 = por %p93, %p94
    %p96 = scmp.ne.s32.totalorder %s84, %s85
    %p97 = scmp.eq.s32.totalorder %s33, 1
    %p98 = por %p96, %p97
    %p100 = scmp.ne.s32.totalorder %s85, %s99
    %p101 = scmp.eq.s32.totalorder %s33, 0
    %p102 = por %p100, %p101
    %s104 = sadd.s32 %s103, 1
    %p107 = scmp.eq.s32.totalorder %s27, 1
    %p108 = scmp.ne.s32.totalorder %s103, %s105
    %p109 = scmp.eq.s32.totalorder %s27, 0
    %p110 = por %p108, %p109
    %p111 = scmp.ne.s32.totalorder %s103, %s105
    %p112 = scmp.eq.s32.totalorder %s32, 1
    %p113 = por %p111, %p112
    %p114 = scmp.ne.s32.totalorder %s105, %s106
    %p115 = scmp.eq.s32.totalorder %s32, 0
    %p116 = por %p114, %p115
    %p117 = scmp.ne.s32.totalorder %s105, %s106
    %p118 = scmp.eq.s32.totalorder %s33, 1
    %p119 = por %p117, %p118
    %p121 = scmp.ne.s32.totalorder %s106, %s120
    %p122 = scmp.eq.s32.totalorder %s33, 0
    %p123 = por %p121, %p122
    %s125 = sadd.s32 %s124, 1
    %p128 = scmp.eq.s32.totalorder %s27, 1
    %p129 = scmp.ne.s32.totalorder %s124, %s126
    %p130 = scmp.eq.s32.totalorder %s27, 0
    %p131 = por %p129, %p130
    %p132 = scmp.ne.s32.totalorder %s124, %s126
    %p133 = scmp.eq.s32.totalorder %s32, 1
    %p134 = por %p132, %p133
    %p135 = scmp.ne.s32.totalorder %s126, %s127
    %p136 = scmp.eq.s32.totalorder %s32, 0
    %p137 = por %p135, %p136
    %p138 = scmp.ne.s32.totalorder %s126, %s127
    %p139 = scmp.eq.s32.totalorder %s33, 1
    %p140 = por %p138, %p139
    %p142 = scmp.ne.s32.totalorder %s127, %s141
    %p143 = scmp.eq.s32.totalorder %s33, 0
    %p144 = por %p142, %p143
    %s146 = sadd.s32 %s145, 1
    %p149 = scmp.eq.s32.totalorder %s27, 1
    %p150 = scmp.ne.s32.totalorder %s145, %s147
    %p151 = scmp.eq.s32.totalorder %s27, 0
    %p152 = por %p150, %p151
    %p153 = scmp.ne.s32.totalorder %s145, %s147
    %p154 = scmp.eq.s32.totalorder %s32, 1
    %p155 = por %p153, %p154
    %p156 = scmp.ne.s32.totalorder %s147, %s148
    %p157 = scmp.eq.s32.totalorder %s32, 0
    %p158 = por %p156, %p157
    %p159 = scmp.ne.s32.totalorder %s147, %s148
    %p160 = scmp.eq.s32.totalorder %s33, 1
    %p161 = por %p159, %p160
    %p163 = scmp.ne.s32.totalorder %s148, %s162
    %p164 = scmp.eq.s32.totalorder %s33, 0
    %p165 = por %p163, %p164
    %s167 = sadd.s32 %s166, 1
    %p170 = scmp.eq.s32.totalorder %s27, 1
    %p171 = scmp.ne.s32.totalorder %s166, %s168
    %p172 = scmp.eq.s32.totalorder %s27, 0
    %p173 = por %p171, %p172
    %p174 = scmp.ne.s32.totalorder %s166, %s168
    %p175 = scmp.eq.s32.totalorder %s32, 1
    %p176 = por %p174, %p175
    %p177 = scmp.ne.s32.totalorder %s168, %s169
    %p178 = scmp.eq.s32.totalorder %s32, 0
    %p179 = por %p177, %p178
    %p180 = scmp.ne.s32.totalorder %s168, %s169
    %p181 = scmp.eq.s32.totalorder %s33, 1
    %p182 = por %p180, %p181
    %p184 = scmp.ne.s32.totalorder %s169, %s183
    %p185 = scmp.eq.s32.totalorder %s33, 0
    %p186 = por %p184, %p185
    %s188 = sadd.s32 %s187, 1
    %p191 = scmp.eq.s32.totalorder %s27, 1
    %p192 = scmp.ne.s32.totalorder %s187, %s189
    %p193 = scmp.eq.s32.totalorder %s27, 0
    %p194 = por %p192, %p193
    %p195 = scmp.ne.s32.totalorder %s187, %s189
    %p196 = scmp.eq.s32.totalorder %s32, 1
    %p197 = por %p195, %p196
    %p198 = scmp.ne.s32.totalorder %s189, %s190
    %p199 = scmp.eq.s32.totalorder %s32, 0
    %p200 = por %p198, %p199
    %p201 = scmp.ne.s32.totalorder %s189, %s190
    %p202 = scmp.eq.s32.totalorder %s33, 1
    %p203 = por %p201, %p202
    %p205 = scmp.ne.s32.totalorder %s190, %s204
    %p206 = scmp.eq.s32.totalorder %s33, 0
    %p207 = por %p205, %p206
    %s209 = sadd.s32 %s208, 1
    %p212 = scmp.eq.s32.totalorder %s27, 1
    %p213 = scmp.ne.s32.totalorder %s208, %s210
    %p214 = scmp.eq.s32.totalorder %s27, 0
    %p215 = por %p213, %p214
    %p216 = scmp.ne.s32.totalorder %s208, %s210
    %p217 = scmp.eq.s32.totalorder %s32, 1
    %p218 = por %p216, %p217
    %p219 = scmp.ne.s32.totalorder %s210, %s211
    %p220 = scmp.eq.s32.totalorder %s32, 0
    %p221 = por %p219, %p220
    %p222 = scmp.ne.s32.totalorder %s210, %s211
    %p223 = scmp.eq.s32.totalorder %s33, 1
    %p224 = por %p222, %p223
    %p226 = scmp.ne.s32.totalorder %s211, %s225
    %p227 = scmp.eq.s32.totalorder %s33, 0
    %p228 = por %p226, %p227
    %s230 = sadd.s32 %s229, 1
    %p233 = scmp.eq.s32.totalorder %s27, 1
    %p234 = scmp.ne.s32.totalorder %s229, %s231
    %p235 = scmp.eq.s32.totalorder %s27, 0
    %p236 = por %p234, %p235
    %p237 = scmp.ne.s32.totalorder %s229, %s231
    %p238 = scmp.eq.s32.totalorder %s32, 1
    %p239 = por %p237, %p238
    %p240 = scmp.ne.s32.totalorder %s231, %s232
    %p241 = scmp.eq.s32.totalorder %s32, 0
    %p242 = por %p240, %p241
    %p243 = scmp.ne.s32.totalorder %s231, %s232
    %p244 = scmp.eq.s32.totalorder %s33, 1
    %p245 = por %p243, %p244
    %p247 = scmp.ne.s32.totalorder %s232, %s246
    %p248 = scmp.eq.s32.totalorder %s33, 0
    %p249 = por %p247, %p248
    %s251 = sadd.s32 %s250, 1
    %p254 = scmp.eq.s32.totalorder %s27, 1
    %p255 = scmp.ne.s32.totalorder %s250, %s252
    %p256 = scmp.eq.s32.totalorder %s27, 0
    %p257 = por %p255, %p256
    %p258 = scmp.ne.s32.totalorder %s250, %s252
    %p259 = scmp.eq.s32.totalorder %s32, 1
    %p260 = por %p258, %p259
    %p261 = scmp.ne.s32.totalorder %s252, %s253
    %p262 = scmp.eq.s32.totalorder %s32, 0
    %p263 = por %p261, %p262
    %p264 = scmp.ne.s32.totalorder %s252, %s253
    %p265 = scmp.eq.s32.totalorder %s33, 1
    %p266 = por %p264, %p265
    %p268 = scmp.ne.s32.totalorder %s253, %s267
    %p269 = scmp.eq.s32.totalorder %s33, 0
    %p270 = por %p268, %p269
    %s272 = sadd.s32 %s271, 1
    %p275 = scmp.eq.s32.totalorder %s27, 1
    %p276 = scmp.ne.s32.totalorder %s271, %s273
    %p277 = scmp.eq.s32.totalorder %s27, 0
    %p278 = por %p276, %p277
    %p279 = scmp.ne.s32.totalorder %s271, %s273
    %p280 = scmp.eq.s32.totalorder %s32, 1
    %p281 = por %p279, %p280
    %p282 = scmp.ne.s32.totalorder %s273, %s274
    %p283 = scmp.eq.s32.totalorder %s32, 0
    %p284 = por %p282, %p283
    %p285 = scmp.ne.s32.totalorder %s273, %s274
    %p286 = scmp.eq.s32.totalorder %s33, 1
    %p287 = por %p285, %p286
    %p289 = scmp.ne.s32.totalorder %s274, %s288
    %p290 = scmp.eq.s32.totalorder %s33, 0
    %p291 = por %p289, %p290
    %s293 = sadd.s32 %s292, 1
    %p296 = scmp.eq.s32.totalorder %s27, 1
    %p297 = scmp.ne.s32.totalorder %s292, %s294
    %p298 = scmp.eq.s32.totalorder %s27, 0
    %p299 = por %p297, %p298
    %p300 = scmp.ne.s32.totalorder %s292, %s294
    %p301 = scmp.eq.s32.totalorder %s32, 1
    %p302 = por %p300, %p301
    %p303 = scmp.ne.s32.totalorder %s294, %s295
    %p304 = scmp.eq.s32.totalorder %s32, 0
    %p305 = por %p303, %p304
    %p306 = scmp.ne.s32.totalorder %s294, %s295
    %p307 = scmp.eq.s32.totalorder %s33, 1
    %p308 = por %p306, %p307
    %p310 = scmp.ne.s32.totalorder %s295, %s309
    %p311 = scmp.eq.s32.totalorder %s33, 0
    %p312 = por %p310, %p311
    %s314 = sadd.s32 %s313, 1
    %p317 = scmp.eq.s32.totalorder %s27, 1
    %p318 = scmp.ne.s32.totalorder %s313, %s315
    %p319 = scmp.eq.s32.totalorder %s27, 0
    %p320 = por %p318, %p319
    %p321 = scmp.ne.s32.totalorder %s313, %s315
    %p322 = scmp.eq.s32.totalorder %s32, 1
    %p323 = por %p321, %p322
    %p324 = scmp.ne.s32.totalorder %s315, %s316
    %p325 = scmp.eq.s32.totalorder %s32, 0
    %p326 = por %p324, %p325
    %p327 = scmp.ne.s32.totalorder %s315, %s316
    %p328 = scmp.eq.s32.totalorder %s33, 1
    %p329 = por %p327, %p328
    %p331 = scmp.ne.s32.totalorder %s316, %s330
    %p332 = scmp.eq.s32.totalorder %s33, 0
    %p333 = por %p331, %p332
    %s335 = sadd.s32 %s334, 1
    %p338 = scmp.eq.s32.totalorder %s27, 1
    %p339 = scmp.ne.s32.totalorder %s334, %s336
    %p340 = scmp.eq.s32.totalorder %s27, 0
    %p341 = por %p339, %p340
    %p342 = scmp.ne.s32.totalorder %s334, %s336
    %p343 = scmp.eq.s32.totalorder %s32, 1
    %p344 = por %p342, %p343
    %p345 = scmp.ne.s32.totalorder %s336, %s337
    %p346 = scmp.eq.s32.totalorder %s32, 0
    %p347 = por %p345, %p346
    %p348 = scmp.ne.s32.totalorder %s336, %s337
    %p349 = scmp.eq.s32.totalorder %s33, 1
    %p350 = por %p348, %p349
    %p352 = scmp.ne.s32.totalorder %s337, %s351
    %p353 = scmp.eq.s32.totalorder %s33, 0
    %p354 = por %p352, %p353
    %s356 = sadd.s32 %s355, 1
    %p359 = scmp.eq.s32.totalorder %s27, 1
    %p360 = scmp.ne.s32.totalorder %s355, %s357
    %p361 = scmp.eq.s32.totalorder %s27, 0
    %p362 = por %p360, %p361
    %p363 = scmp.ne.s32.totalorder %s355, %s357
    %p364 = scmp.eq.s32.totalorder %s32, 1
    %p365 = por %p363, %p364
    %p366 = scmp.ne.s32.totalorder %s357, %s358
    %p367 = scmp.eq.s32.totalorder %s32, 0
    %p368 = por %p366, %p367
    %p369 = scmp.ne.s32.totalorder %s357, %s358
    %p370 = scmp.eq.s32.totalorder %s33, 1
    %p371 = por %p369, %p370
    %p373 = scmp.ne.s32.totalorder %s358, %s372
    %p374 = scmp.eq.s32.totalorder %s33, 0
    %p375 = por %p373, %p374
    %s377 = sadd.s32 %s376, 1
    %p380 = scmp.eq.s32.totalorder %s27, 1
    %p381 = scmp.ne.s32.totalorder %s376, %s378
    %p382 = scmp.eq.s32.totalorder %s27, 0
    %p383 = por %p381, %p382
    %p384 = scmp.ne.s32.totalorder %s376, %s378
    %p385 = scmp.eq.s32.totalorder %s32, 1
    %p386 = por %p384, %p385
    %p387 = scmp.ne.s32.totalorder %s378, %s379
    %p388 = scmp.eq.s32.totalorder %s32, 0
    %p389 = por %p387, %p388
    %p390 = scmp.ne.s32.totalorder %s378, %s379
    %p391 = scmp.eq.s32.totalorder %s33, 1
    %p392 = por %p390, %p391
    %p394 = scmp.ne.s32.totalorder %s379, %s393
    %p395 = scmp.eq.s32.totalorder %s33, 0
    %p396 = por %p394, %p395
    %s398 = sadd.s32 %s397, 1
    %p401 = scmp.eq.s32.totalorder %s27, 1
    %p402 = scmp.ne.s32.totalorder %s397, %s399
    %p403 = scmp.eq.s32.totalorder %s27, 0
    %p404 = por %p402, %p403
    %p405 = scmp.ne.s32.totalorder %s397, %s399
    %p406 = scmp.eq.s32.totalorder %s32, 1
    %p407 = por %p405, %p406
    %p408 = scmp.ne.s32.totalorder %s399, %s400
    %p409 = scmp.eq.s32.totalorder %s32, 0
    %p410 = por %p408, %p409
    %p411 = scmp.ne.s32.totalorder %s399, %s400
    %p412 = scmp.eq.s32.totalorder %s33, 1
    %p413 = por %p411, %p412
    %p415 = scmp.ne.s32.totalorder %s400, %s414
    %p416 = scmp.eq.s32.totalorder %s33, 0
    %p417 = por %p415, %p416
    %s419 = sadd.s32 %s418, 1
    %p422 = scmp.eq.s32.totalorder %s27, 1
    %p423 = scmp.ne.s32.totalorder %s418, %s420
    %p424 = scmp.eq.s32.totalorder %s27, 0
    %p425 = por %p423, %p424
    %p426 = scmp.ne.s32.totalorder %s418, %s420
    %p427 = scmp.eq.s32.totalorder %s32, 1
    %p428 = por %p426, %p427
    %p429 = scmp.ne.s32.totalorder %s420, %s421
    %p430 = scmp.eq.s32.totalorder %s32, 0
    %p431 = por %p429, %p430
    %p432 = scmp.ne.s32.totalorder %s420, %s421
    %p433 = scmp.eq.s32.totalorder %s33, 1
    %p434 = por %p432, %p433
    %p436 = scmp.ne.s32.totalorder %s421, %s435
    %p437 = scmp.eq.s32.totalorder %s33, 0
    %p438 = por %p436, %p437
    %s439 = ssub.s32 %s27, %s34
    %p440 = scmp.eq.s32.totalorder %s439, 0
    %s442 = sadd.s32 %s441, 1
    %s443 = scalar_select %p440, %s441, %s442
    %p446 = pneg %p440
    %p447 = scmp.eq.s32.totalorder %s27, 1
    %p448 = por %p446, %p447
    %p449 = scmp.ne.s32.totalorder %s441, %s444
    %p450 = scmp.eq.s32.totalorder %s27, 0
    %p451 = por %p449, %p450
    %p452 = scmp.ne.s32.totalorder %s441, %s444
    %p453 = scmp.eq.s32.totalorder %s32, 1
    %p454 = por %p452, %p453
    %p455 = scmp.ne.s32.totalorder %s444, %s445
    %p456 = scmp.eq.s32.totalorder %s32, 0
    %p457 = por %p455, %p456
    %p458 = scmp.ne.s32.totalorder %s444, %s445
    %p459 = scmp.eq.s32.totalorder %s33, 1
    %p460 = por %p458, %p459
    %p462 = scmp.ne.s32.totalorder %s445, %s461
    %p463 = scmp.eq.s32.totalorder %s33, 0
    %p464 = por %p462, %p463
    %p465 = scmp.le.s32.totalorder 1, %s27
    %p466 = scmp.lt.s32.totalorder %s27, 3
    %p467 = pnand %p465, %p466
    %p468 = pneg %p467
    // Predicated region
    $region9: #{unet_forward.1} parent=5 // pred_check
      _
    $region10: #{unet_forward.1} parent=5 // pred_check_branch
      %470 = sbr.rel (%p467) target = $region12
    $region11: #{unet_forward.1} parent=5 // pred_region
      %s471 = ssub.s32 %s27, 1
      // Predicated region
      $region13: #{unet_forward.1} parent=11 // pred_check
        %p472 = pneg %p74
      $region14: #{unet_forward.1} parent=11 // pred_check_branch
        %474 = sbr.rel (%p472) target = $region16
      $region15: #{unet_forward.1} parent=11 // pred_region
        _
      $region16: #{unet_forward.1} parent=11 // pred_fallthru
        _
      // Predicated region
      $region17: #{unet_forward.1} parent=11 // pred_check
        %p475 = pneg %p95
      $region18: #{unet_forward.1} parent=11 // pred_check_branch
        %477 = sbr.rel (%p475) target = $region20
      $region19: #{unet_forward.1} parent=11 // pred_region
        _
      $region20: #{unet_forward.1} parent=11 // pred_fallthru
        _
      // Predicated region
      $region21: #{unet_forward.1} parent=11 // pred_check
        %p478 = pneg %p116
      $region22: #{unet_forward.1} parent=11 // pred_check_branch
        %480 = sbr.rel (%p478) target = $region24
      $region23: #{unet_forward.1} parent=11 // pred_region
        _
      $region24: #{unet_forward.1} parent=11 // pred_fallthru
        _
      // Predicated region
      $region25: #{unet_forward.1} parent=11 // pred_check
        %p481 = pneg %p137
      $region26: #{unet_forward.1} parent=11 // pred_check_branch
        %483 = sbr.rel (%p481) target = $region28
      $region27: #{unet_forward.1} parent=11 // pred_region
        _
      $region28: #{unet_forward.1} parent=11 // pred_fallthru
        _
      // Predicated region
      $region29: #{unet_forward.1} parent=11 // pred_check
        %p484 = pneg %p158
      $region30: #{unet_forward.1} parent=11 // pred_check_branch
        %486 = sbr.rel (%p484) target = $region32
      $region31: #{unet_forward.1} parent=11 // pred_region
        _
      $region32: #{unet_forward.1} parent=11 // pred_fallthru
        _
      // Predicated region
      $region33: #{unet_forward.1} parent=11 // pred_check
        %p487 = pneg %p179
      $region34: #{unet_forward.1} parent=11 // pred_check_branch
        %489 = sbr.rel (%p487) target = $region36
      $region35: #{unet_forward.1} parent=11 // pred_region
        _
      $region36: #{unet_forward.1} parent=11 // pred_fallthru
        _
      // Predicated region
      $region37: #{unet_forward.1} parent=11 // pred_check
        %p490 = pneg %p200
      $region38: #{unet_forward.1} parent=11 // pred_check_branch
        %492 = sbr.rel (%p490) target = $region40
      $region39: #{unet_forward.1} parent=11 // pred_region
        _
      $region40: #{unet_forward.1} parent=11 // pred_fallthru
        _
      // Predicated region
      $region41: #{unet_forward.1} parent=11 // pred_check
        %p493 = pneg %p221
      $region42: #{unet_forward.1} parent=11 // pred_check_branch
        %495 = sbr.rel (%p493) target = $region44
      $region43: #{unet_forward.1} parent=11 // pred_region
        _
      $region44: #{unet_forward.1} parent=11 // pred_fallthru
        _
      // Predicated region
      $region45: #{unet_forward.1} parent=11 // pred_check
        %p496 = pneg %p242
      $region46: #{unet_forward.1} parent=11 // pred_check_branch
        %498 = sbr.rel (%p496) target = $region48
      $region47: #{unet_forward.1} parent=11 // pred_region
        _
      $region48: #{unet_forward.1} parent=11 // pred_fallthru
        _
      // Predicated region
      $region49: #{unet_forward.1} parent=11 // pred_check
        %p499 = pneg %p263
      $region50: #{unet_forward.1} parent=11 // pred_check_branch
        %501 = sbr.rel (%p499) target = $region52
      $region51: #{unet_forward.1} parent=11 // pred_region
        _
      $region52: #{unet_forward.1} parent=11 // pred_fallthru
        _
      // Predicated region
      $region53: #{unet_forward.1} parent=11 // pred_check
        %p502 = pneg %p284
      $region54: #{unet_forward.1} parent=11 // pred_check_branch
        %504 = sbr.rel (%p502) target = $region56
      $region55: #{unet_forward.1} parent=11 // pred_region
        _
      $region56: #{unet_forward.1} parent=11 // pred_fallthru
        _
      // Predicated region
      $region57: #{unet_forward.1} parent=11 // pred_check
        %p505 = pneg %p305
      $region58: #{unet_forward.1} parent=11 // pred_check_branch
        %507 = sbr.rel (%p505) target = $region60
      $region59: #{unet_forward.1} parent=11 // pred_region
        _
      $region60: #{unet_forward.1} parent=11 // pred_fallthru
        _
      // Predicated region
      $region61: #{unet_forward.1} parent=11 // pred_check
        %p508 = pneg %p326
      $region62: #{unet_forward.1} parent=11 // pred_check_branch
        %510 = sbr.rel (%p508) target = $region64
      $region63: #{unet_forward.1} parent=11 // pred_region
        _
      $region64: #{unet_forward.1} parent=11 // pred_fallthru
        _
      // Predicated region
      $region65: #{unet_forward.1} parent=11 // pred_check
        %p511 = pneg %p347
      $region66: #{unet_forward.1} parent=11 // pred_check_branch
        %513 = sbr.rel (%p511) target = $region68
      $region67: #{unet_forward.1} parent=11 // pred_region
        _
      $region68: #{unet_forward.1} parent=11 // pred_fallthru
        _
      // Predicated region
      $region69: #{unet_forward.1} parent=11 // pred_check
        %p514 = pneg %p368
      $region70: #{unet_forward.1} parent=11 // pred_check_branch
        %516 = sbr.rel (%p514) target = $region72
      $region71: #{unet_forward.1} parent=11 // pred_region
        _
      $region72: #{unet_forward.1} parent=11 // pred_fallthru
        _
      // Predicated region
      $region73: #{unet_forward.1} parent=11 // pred_check
        %p517 = pneg %p389
      $region74: #{unet_forward.1} parent=11 // pred_check_branch
        %519 = sbr.rel (%p517) target = $region76
      $region75: #{unet_forward.1} parent=11 // pred_region
        _
      $region76: #{unet_forward.1} parent=11 // pred_fallthru
        _
      // Predicated region
      $region77: #{unet_forward.1} parent=11 // pred_check
        %p520 = pneg %p410
      $region78: #{unet_forward.1} parent=11 // pred_check_branch
        %522 = sbr.rel (%p520) target = $region80
      $region79: #{unet_forward.1} parent=11 // pred_region
        _
      $region80: #{unet_forward.1} parent=11 // pred_fallthru
        _
      // Predicated region
      $region81: #{unet_forward.1} parent=11 // pred_check
        %p523 = pneg %p431
      $region82: #{unet_forward.1} parent=11 // pred_check_branch
        %525 = sbr.rel (%p523) target = $region84
      $region83: #{unet_forward.1} parent=11 // pred_region
        _
      $region84: #{unet_forward.1} parent=11 // pred_fallthru
        _
    $region12: #{unet_forward.1} parent=5 // pred_fallthru
      _
    %p526 = scmp.lt.s32.totalorder %s27, 2
    // Predicated region
    $region85: #{unet_forward.1} parent=5 // pred_check
      %p527 = pneg %p526
    $region86: #{unet_forward.1} parent=5 // pred_check_branch
      %529 = sbr.rel (%p527) target = $region88
    $region87: #{unet_forward.1} parent=5 // pred_region
      // Predicated region
      $region89: #{unet_forward.1} parent=87 // pred_check
        %p530 = pneg %p47
      $region90: #{unet_forward.1} parent=87 // pred_check_branch
        %532 = sbr.rel (%p530) target = $region92
      $region91: #{unet_forward.1} parent=87 // pred_region
        %p533 = scmp.lt.s32.totalorder %s27, 1
        %s534 = scalar_select %p533, %s27, 1
        %s535 = smul.addr %s534, 32
        %s536 = smul.addr %s535, 8
        %s537 = scalar_lea.vmem %s0, %s536
      $region92: #{unet_forward.1} parent=87 // pred_fallthru
        _
    $region88: #{unet_forward.1} parent=5 // pred_fallthru
      _
    %p538 = scmp.le.s32.totalorder 1, %s27
    %p539 = scmp.lt.s32.totalorder %s27, 3
    %p540 = pnand %p538, %p539
    %p541 = pneg %p540
    // Predicated region
    $region93: #{unet_forward.1} parent=5 // pred_check
      _
    $region94: #{unet_forward.1} parent=5 // pred_check_branch
      %543 = sbr.rel (%p540) target = $region96
    $region95: #{unet_forward.1} parent=5 // pred_region
      %s544 = ssub.s32 %s27, 1
      %p545 = scmp.lt.s32.totalorder %s32, 1
      %s546 = scalar_select %p545, %s32, 1
      %s547 = smul.addr %s546, 32
      %s548 = smul.addr %s547, 8
      %s549 = scalar_lea.vmem %s0, %s548
      %p550 = pneg %p53
      %p551 = pneg %p50
      %p552 = pneg %p74
      %p553 = pneg %p71
      %p554 = pneg %p95
      %p555 = pneg %p92
      %p556 = pneg %p116
      %p557 = pneg %p113
      %p558 = pneg %p137
      %p559 = pneg %p134
      %p560 = pneg %p158
      %p561 = pneg %p155
      %p562 = pneg %p179
      %p563 = pneg %p176
      %p564 = pneg %p200
      %p565 = pneg %p197
      %p566 = pneg %p221
      %p567 = pneg %p218
      %p568 = pneg %p242
      %p569 = pneg %p239
      %p570 = pneg %p263
      %p571 = pneg %p260
      %p572 = pneg %p284
      %p573 = pneg %p281
      %p574 = pneg %p305
      %p575 = pneg %p302
      %p576 = pneg %p326
      %p577 = pneg %p323
      %p578 = pneg %p347
      %p579 = pneg %p344
      %p580 = pneg %p368
      %p581 = pneg %p365
      %p582 = pneg %p389
      %p583 = pneg %p386
      %p584 = pneg %p410
      %p585 = pneg %p407
      %p586 = pneg %p431
      %p587 = pneg %p428
      %p588 = pneg %p457
      %p589 = pneg %p454
      %p590 = scmp.lt.s32.totalorder %s32, 1
      %s591 = scalar_select %p590, %s32, 1
      %s592 = smul.addr %s591, 32
      %s593 = smul.addr %s592, 8
      %s594 = scalar_lea.vmem %s19, %s593
      %p595 = scmp.lt.s32.totalorder %s32, 1
      %s596 = scalar_select %p595, %s32, 1
      %s597 = smul.addr %s596, 32
      %s598 = smul.addr %s597, 8
      %s599 = scalar_lea.vmem %s0, %s598
      %p600 = scmp.lt.s32.totalorder %s32, 1
      %s601 = scalar_select %p600, %s32, 1
      %s602 = smul.addr %s601, 32
      %s603 = smul.addr %s602, 8
      %s604 = scalar_lea.vmem %s19, %s603
      %vm605 = vcmask 7168
      %606 = vst.msk [vmem:[#allocation2] sm:$0xff] %vm605, 0.0
      %607 = vst.msk [vmem:[#allocation2 + $0x8] sm:$0xff] %vm605, 0.0
      %vm608 = vcmask 1024
      %609 = vst.msk [vmem:[#allocation2 + $0x10] sm:$0x3] %vm608, 0.0
      %610 = vst.msk [vmem:[#allocation2 + $0x18] sm:$0xff] %vm605, 0.0
      %611 = vst.msk [vmem:[#allocation2 + $0x20] sm:$0xff] %vm605, 0.0
      %612 = vst.msk [vmem:[#allocation2 + $0x28] sm:$0x3] %vm608, 0.0
      %613 = vst.msk [vmem:[#allocation2 + $0x30] sm:$0xff] %vm605, 0.0
      %614 = vst.msk [vmem:[#allocation2 + $0x38] sm:$0xff] %vm605, 0.0
      %615 = vst.msk [vmem:[#allocation2 + $0x40] sm:$0x3] %vm608, 0.0
      %616 = vst.msk [vmem:[#allocation2 + $0x48] sm:$0xff] %vm605, 0.0
      %617 = vst.msk [vmem:[#allocation2 + $0x50] sm:$0xff] %vm605, 0.0
      %618 = vst.msk [vmem:[#allocation2 + $0x58] sm:$0x3] %vm608, 0.0
      %619 = vst.msk [vmem:[#allocation2 + $0x60] sm:$0xff] %vm605, 0.0
      %620 = vst.msk [vmem:[#allocation2 + $0x68] sm:$0xff] %vm605, 0.0
      %621 = vst.msk [vmem:[#allocation2 + $0x70] sm:$0x3] %vm608, 0.0
      %622 = vst.msk [vmem:[#allocation2 + $0x78] sm:$0xff] %vm605, 0.0
      %623 = vst.msk [vmem:[#allocation2 + $0x80] sm:$0xff] %vm605, 0.0
      %624 = vst.msk [vmem:[#allocation2 + $0x88] sm:$0x3] %vm608, 0.0
      %625 = vst.msk [vmem:[#allocation2 + $0x90] sm:$0xff] %vm605, 0.0
      %626 = vst.msk [vmem:[#allocation2 + $0x98] sm:$0xff] %vm605, 0.0
      %627 = vst.msk [vmem:[#allocation2 + $0xa0] sm:$0x3] %vm608, 0.0
      %628 = vst.msk [vmem:[#allocation2 + $0xa8] sm:$0xff] %vm605, 0.0
      %629 = vst.msk [vmem:[#allocation2 + $0xb0] sm:$0xff] %vm605, 0.0
      %630 = vst.msk [vmem:[#allocation2 + $0xb8] sm:$0x3] %vm608, 0.0
      %631 = vst.msk [vmem:[#allocation2 + $0xc0] sm:$0xff] %vm605, 0.0
      %632 = vst.msk [vmem:[#allocation2 + $0xc8] sm:$0xff] %vm605, 0.0
      %633 = vst.msk [vmem:[#allocation2 + $0xd0] sm:$0x3] %vm608, 0.0
      %634 = vst.msk [vmem:[#allocation2 + $0xd8] sm:$0xff] %vm605, 0.0
      %635 = vst.msk [vmem:[#allocation2 + $0xe0] sm:$0xff] %vm605, 0.0
      %636 = vst.msk [vmem:[#allocation2 + $0xe8] sm:$0x3] %vm608, 0.0
      %637 = vst.msk [vmem:[#allocation2 + $0xf0] sm:$0xff] %vm605, 0.0
      %638 = vst.msk [vmem:[#allocation2 + $0xf8] sm:$0xff] %vm605, 0.0
      %639 = vst.msk [vmem:[#allocation2 + $0x100] sm:$0x3] %vm608, 0.0
      %640 = vst.msk [vmem:[#allocation2 + $0x108] sm:$0xff] %vm605, 0.0
      %641 = vst.msk [vmem:[#allocation2 + $0x110] sm:$0xff] %vm605, 0.0
      %642 = vst.msk [vmem:[#allocation2 + $0x118] sm:$0x3] %vm608, 0.0
      %643 = vst.msk [vmem:[#allocation2 + $0x120] sm:$0xff] %vm605, 0.0
      %644 = vst.msk [vmem:[#allocation2 + $0x128] sm:$0xff] %vm605, 0.0
      %645 = vst.msk [vmem:[#allocation2 + $0x130] sm:$0x3] %vm608, 0.0
      %646 = vst.msk [vmem:[#allocation2 + $0x138] sm:$0xff] %vm605, 0.0
      %647 = vst.msk [vmem:[#allocation2 + $0x140] sm:$0xff] %vm605, 0.0
      %648 = vst.msk [vmem:[#allocation2 + $0x148] sm:$0x3] %vm608, 0.0
      %649 = vst.msk [vmem:[#allocation2 + $0x150] sm:$0xff] %vm605, 0.0
      %650 = vst.msk [vmem:[#allocation2 + $0x158] sm:$0xff] %vm605, 0.0
      %651 = vst.msk [vmem:[#allocation2 + $0x160] sm:$0x3] %vm608, 0.0
      %652 = vst.msk [vmem:[#allocation2 + $0x168] sm:$0xff] %vm605, 0.0
      %653 = vst.msk [vmem:[#allocation2 + $0x170] sm:$0xff] %vm605, 0.0
      %654 = vst.msk [vmem:[#allocation2 + $0x178] sm:$0x3] %vm608, 0.0
      %655 = vst.msk [vmem:[#allocation2 + $0x180] sm:$0xff] %vm605, 0.0
      %656 = vst.msk [vmem:[#allocation2 + $0x188] sm:$0xff] %vm605, 0.0
      %657 = vst.msk [vmem:[#allocation2 + $0x190] sm:$0x3] %vm608, 0.0
      %658 = vst.msk [vmem:[#allocation2 + $0x198] sm:$0xff] %vm605, 0.0
      %659 = vst.msk [vmem:[#allocation2 + $0x1a0] sm:$0xff] %vm605, 0.0
      %660 = vst.msk [vmem:[#allocation2 + $0x1a8] sm:$0x3] %vm608, 0.0
      %vm661 = vcmask 64512
      %662 = vst.msk [vmem:[#allocation3] sm:$0xff] %vm661, 0.0
      %663 = vst.msk [vmem:[#allocation3 + $0x8] sm:$0xff] %vm661, 0.0
      %vm664 = vcmask 58368
      %665 = vst.msk [vmem:[#allocation3 + $0x10] sm:$0x3] %vm664, 0.0
      %666 = vst.msk [vmem:[#allocation3 + $0x18] sm:$0xff] %vm661, 0.0
      %667 = vst.msk [vmem:[#allocation3 + $0x20] sm:$0xff] %vm661, 0.0
      %668 = vst.msk [vmem:[#allocation3 + $0x28] sm:$0x3] %vm664, 0.0
      %669 = vst.msk [vmem:[#allocation3 + $0x30] sm:$0xff] %vm661, 0.0
      %670 = vst.msk [vmem:[#allocation3 + $0x38] sm:$0xff] %vm661, 0.0
      %671 = vst.msk [vmem:[#allocation3 + $0x40] sm:$0x3] %vm664, 0.0
      %672 = vst.msk [vmem:[#allocation3 + $0x48] sm:$0xff] %vm661, 0.0
      %673 = vst.msk [vmem:[#allocation3 + $0x50] sm:$0xff] %vm661, 0.0
      %674 = vst.msk [vmem:[#allocation3 + $0x58] sm:$0x3] %vm664, 0.0
      %675 = vst.msk [vmem:[#allocation3 + $0x60] sm:$0xff] %vm661, 0.0
      %676 = vst.msk [vmem:[#allocation3 + $0x68] sm:$0xff] %vm661, 0.0
      %677 = vst.msk [vmem:[#allocation3 + $0x70] sm:$0x3] %vm664, 0.0
      %678 = vst.msk [vmem:[#allocation3 + $0x78] sm:$0xff] %vm661, 0.0
      %679 = vst.msk [vmem:[#allocation3 + $0x80] sm:$0xff] %vm661, 0.0
      %680 = vst.msk [vmem:[#allocation3 + $0x88] sm:$0x3] %vm664, 0.0
      %681 = vst.msk [vmem:[#allocation3 + $0x90] sm:$0xff] %vm661, 0.0
      %682 = vst.msk [vmem:[#allocation3 + $0x98] sm:$0xff] %vm661, 0.0
      %683 = vst.msk [vmem:[#allocation3 + $0xa0] sm:$0x3] %vm664, 0.0
      %684 = vst.msk [vmem:[#allocation3 + $0xa8] sm:$0xff] %vm661, 0.0
      %685 = vst.msk [vmem:[#allocation3 + $0xb0] sm:$0xff] %vm661, 0.0
      %686 = vst.msk [vmem:[#allocation3 + $0xb8] sm:$0x3] %vm664, 0.0
      %687 = vst.msk [vmem:[#allocation3 + $0xc0] sm:$0xff] %vm661, 0.0
      %688 = vst.msk [vmem:[#allocation3 + $0xc8] sm:$0xff] %vm661, 0.0
      %689 = vst.msk [vmem:[#allocation3 + $0xd0] sm:$0x3] %vm664, 0.0
      %690 = vst.msk [vmem:[#allocation3 + $0xd8] sm:$0xff] %vm661, 0.0
      %691 = vst.msk [vmem:[#allocation3 + $0xe0] sm:$0xff] %vm661, 0.0
      %692 = vst.msk [vmem:[#allocation3 + $0xe8] sm:$0x3] %vm664, 0.0
      %693 = vst.msk [vmem:[#allocation3 + $0xf0] sm:$0xff] %vm661, 0.0
      %694 = vst.msk [vmem:[#allocation3 + $0xf8] sm:$0xff] %vm661, 0.0
      %695 = vst.msk [vmem:[#allocation3 + $0x100] sm:$0x3] %vm664, 0.0
      %696 = vst.msk [vmem:[#allocation3 + $0x108] sm:$0xff] %vm661, 0.0
      %697 = vst.msk [vmem:[#allocation3 + $0x110] sm:$0xff] %vm661, 0.0
      %698 = vst.msk [vmem:[#allocation3 + $0x118] sm:$0x3] %vm664, 0.0
      %699 = vst.msk [vmem:[#allocation3 + $0x120] sm:$0xff] %vm661, 0.0
      %700 = vst.msk [vmem:[#allocation3 + $0x128] sm:$0xff] %vm661, 0.0
      %701 = vst.msk [vmem:[#allocation3 + $0x130] sm:$0x3] %vm664, 0.0
      %702 = vst.msk [vmem:[#allocation3 + $0x138] sm:$0xff] %vm661, 0.0
      %703 = vst.msk [vmem:[#allocation3 + $0x140] sm:$0xff] %vm661, 0.0
      %704 = vst.msk [vmem:[#allocation3 + $0x148] sm:$0x3] %vm664, 0.0
      %705 = vst.msk [vmem:[#allocation3 + $0x150] sm:$0xff] %vm661, 0.0
      %706 = vst.msk [vmem:[#allocation3 + $0x158] sm:$0xff] %vm661, 0.0
      %707 = vst.msk [vmem:[#allocation3 + $0x160] sm:$0x3] %vm664, 0.0
      %708 = vst.msk [vmem:[#allocation3 + $0x168] sm:$0xff] %vm661, 0.0
      %709 = vst.msk [vmem:[#allocation3 + $0x170] sm:$0xff] %vm661, 0.0
      %710 = vst.msk [vmem:[#allocation3 + $0x178] sm:$0x3] %vm664, 0.0
      %711 = vst.msk [vmem:[#allocation3 + $0x180] sm:$0xff] %vm661, 0.0
      %712 = vst.msk [vmem:[#allocation3 + $0x188] sm:$0xff] %vm661, 0.0
      %713 = vst.msk [vmem:[#allocation3 + $0x190] sm:$0x3] %vm664, 0.0
      %714 = vst.msk [vmem:[#allocation3 + $0x198] sm:$0xff] %vm661, 0.0
      %715 = vst.msk [vmem:[#allocation3 + $0x1a0] sm:$0xff] %vm661, 0.0
      %716 = vst.msk [vmem:[#allocation3 + $0x1a8] sm:$0x3] %vm664, 0.0
      %717 = vst.msk [vmem:[#allocation4] sm:$0xff] %vm661, 0.0
      %718 = vst.msk [vmem:[#allocation4 + $0x8] sm:$0x3] %vm664, 0.0
      %719 = vst.msk [vmem:[#allocation4 + $0x10] sm:$0xff] %vm661, 0.0
      %720 = vst.msk [vmem:[#allocation4 + $0x18] sm:$0x3] %vm664, 0.0
      %721 = vst.msk [vmem:[#allocation4 + $0x20] sm:$0xff] %vm661, 0.0
      %722 = vst.msk [vmem:[#allocation4 + $0x28] sm:$0x3] %vm664, 0.0
      %723 = vst.msk [vmem:[#allocation4 + $0x30] sm:$0xff] %vm661, 0.0
      %724 = vst.msk [vmem:[#allocation4 + $0x38] sm:$0x3] %vm664, 0.0
      %725 = vst.msk [vmem:[#allocation4 + $0x40] sm:$0xff] %vm661, 0.0
      %726 = vst.msk [vmem:[#allocation4 + $0x48] sm:$0x3] %vm664, 0.0
      %727 = vst.msk [vmem:[#allocation4 + $0x50] sm:$0xff] %vm661, 0.0
      %728 = vst.msk [vmem:[#allocation4 + $0x58] sm:$0x3] %vm664, 0.0
      %729 = vst.msk [vmem:[#allocation4 + $0x60] sm:$0xff] %vm661, 0.0
      %730 = vst.msk [vmem:[#allocation4 + $0x68] sm:$0x3] %vm664, 0.0
      %731 = vst.msk [vmem:[#allocation4 + $0x70] sm:$0xff] %vm661, 0.0
      %732 = vst.msk [vmem:[#allocation4 + $0x78] sm:$0x3] %vm664, 0.0
      %733 = vst.msk [vmem:[#allocation4 + $0x80] sm:$0xff] %vm661, 0.0
      %734 = vst.msk [vmem:[#allocation4 + $0x88] sm:$0x3] %vm664, 0.0
      %735 = vst.msk [vmem:[#allocation4 + $0x90] sm:$0xff] %vm661, 0.0
      %736 = vst.msk [vmem:[#allocation4 + $0x98] sm:$0x3] %vm664, 0.0
      %vm737 = vcmask 130048
      %738 = vst.msk [vmem:[#allocation5] sm:$0xff] %vm737, 0.0
      %vm739 = vcmask 123904
      %740 = vst.msk [vmem:[#allocation5 + $0x8] sm:$0x3] %vm739, 0.0
      %741 = vst.msk [vmem:[#allocation5 + $0x10] sm:$0xff] %vm737, 0.0
      %742 = vst.msk [vmem:[#allocation5 + $0x18] sm:$0x3] %vm739, 0.0
      %743 = vst.msk [vmem:[#allocation5 + $0x20] sm:$0xff] %vm737, 0.0
      %744 = vst.msk [vmem:[#allocation5 + $0x28] sm:$0x3] %vm739, 0.0
      %745 = vst.msk [vmem:[#allocation5 + $0x30] sm:$0xff] %vm737, 0.0
      %746 = vst.msk [vmem:[#allocation5 + $0x38] sm:$0x3] %vm739, 0.0
      %747 = vst.msk [vmem:[#allocation5 + $0x40] sm:$0xff] %vm737, 0.0
      %748 = vst.msk [vmem:[#allocation5 + $0x48] sm:$0x3] %vm739, 0.0
      %749 = vst.msk [vmem:[#allocation5 + $0x50] sm:$0xff] %vm737, 0.0
      %750 = vst.msk [vmem:[#allocation5 + $0x58] sm:$0x3] %vm739, 0.0
      %751 = vst.msk [vmem:[#allocation5 + $0x60] sm:$0xff] %vm737, 0.0
      %752 = vst.msk [vmem:[#allocation5 + $0x68] sm:$0x3] %vm739, 0.0
      %753 = vst.msk [vmem:[#allocation5 + $0x70] sm:$0xff] %vm737, 0.0
      %754 = vst.msk [vmem:[#allocation5 + $0x78] sm:$0x3] %vm739, 0.0
      %755 = vst.msk [vmem:[#allocation5 + $0x80] sm:$0xff] %vm737, 0.0
      %756 = vst.msk [vmem:[#allocation5 + $0x88] sm:$0x3] %vm739, 0.0
      %757 = vst.msk [vmem:[#allocation5 + $0x90] sm:$0xff] %vm737, 0.0
      %758 = vst.msk [vmem:[#allocation5 + $0x98] sm:$0x3] %vm739, 0.0
      %vm759 = vcmask 128000
      %760 = vst.msk [vmem:[#allocation6] sm:$0x3f] %vm759, 0.0
      %761 = vst.msk [vmem:[#allocation6 + $0x8] sm:$0x3f] %vm759, 0.0
      %762 = vst.msk [vmem:[#allocation6 + $0x10] sm:$0x3f] %vm759, 0.0
      %763 = vst.msk [vmem:[#allocation6 + $0x18] sm:$0x3f] %vm759, 0.0
      %764 = vst.msk [vmem:[#allocation6 + $0x20] sm:$0x3f] %vm759, 0.0
      %765 = vst.msk [vmem:[#allocation6 + $0x28] sm:$0x3f] %vm759, 0.0
      %766 = vst.msk [vmem:[#allocation8] sm:$0xff] %vm737, 0.0
      %767 = vst.msk [vmem:[#allocation8 + $0x8] sm:$0x3] %vm739, 0.0
      %768 = vst.msk [vmem:[#allocation8 + $0x10] sm:$0xff] %vm737, 0.0
      %769 = vst.msk [vmem:[#allocation8 + $0x18] sm:$0x3] %vm739, 0.0
      %770 = vst.msk [vmem:[#allocation8 + $0x20] sm:$0xff] %vm737, 0.0
      %771 = vst.msk [vmem:[#allocation8 + $0x28] sm:$0x3] %vm739, 0.0
      %772 = vst.msk [vmem:[#allocation8 + $0x30] sm:$0xff] %vm737, 0.0
      %773 = vst.msk [vmem:[#allocation8 + $0x38] sm:$0x3] %vm739, 0.0
      %774 = vst.msk [vmem:[#allocation8 + $0x40] sm:$0xff] %vm737, 0.0
      %775 = vst.msk [vmem:[#allocation8 + $0x48] sm:$0x3] %vm739, 0.0
      %776 = vst.msk [vmem:[#allocation8 + $0x50] sm:$0xff] %vm737, 0.0
      %777 = vst.msk [vmem:[#allocation8 + $0x58] sm:$0x3] %vm739, 0.0
      %778 = vst.msk [vmem:[#allocation8 + $0x60] sm:$0xff] %vm737, 0.0
      %779 = vst.msk [vmem:[#allocation8 + $0x68] sm:$0x3] %vm739, 0.0
      %780 = vst.msk [vmem:[#allocation8 + $0x70] sm:$0xff] %vm737, 0.0
      %781 = vst.msk [vmem:[#allocation8 + $0x78] sm:$0x3] %vm739, 0.0
      %782 = vst.msk [vmem:[#allocation8 + $0x80] sm:$0xff] %vm737, 0.0
      %783 = vst.msk [vmem:[#allocation8 + $0x88] sm:$0x3] %vm739, 0.0
      %784 = vst.msk [vmem:[#allocation8 + $0x90] sm:$0xff] %vm737, 0.0
      %785 = vst.msk [vmem:[#allocation8 + $0x98] sm:$0x3] %vm739, 0.0
      %786 = vst.msk [vmem:[#allocation10] sm:$0xff] %vm661, 0.0
      %787 = vst.msk [vmem:[#allocation10 + $0x8] sm:$0xff] %vm661, 0.0
      %788 = vst.msk [vmem:[#allocation10 + $0x10] sm:$0x3] %vm664, 0.0
      %789 = vst.msk [vmem:[#allocation10 + $0x18] sm:$0xff] %vm661, 0.0
      %790 = vst.msk [vmem:[#allocation10 + $0x20] sm:$0xff] %vm661, 0.0
      %791 = vst.msk [vmem:[#allocation10 + $0x28] sm:$0x3] %vm664, 0.0
      %792 = vst.msk [vmem:[#allocation10 + $0x30] sm:$0xff] %vm661, 0.0
      %793 = vst.msk [vmem:[#allocation10 + $0x38] sm:$0xff] %vm661, 0.0
      %794 = vst.msk [vmem:[#allocation10 + $0x40] sm:$0x3] %vm664, 0.0
      %795 = vst.msk [vmem:[#allocation10 + $0x48] sm:$0xff] %vm661, 0.0
      %796 = vst.msk [vmem:[#allocation10 + $0x50] sm:$0xff] %vm661, 0.0
      %797 = vst.msk [vmem:[#allocation10 + $0x58] sm:$0x3] %vm664, 0.0
      %798 = vst.msk [vmem:[#allocation10 + $0x60] sm:$0xff] %vm661, 0.0
      %799 = vst.msk [vmem:[#allocation10 + $0x68] sm:$0xff] %vm661, 0.0
      %800 = vst.msk [vmem:[#allocation10 + $0x70] sm:$0x3] %vm664, 0.0
      %801 = vst.msk [vmem:[#allocation10 + $0x78] sm:$0xff] %vm661, 0.0
      %802 = vst.msk [vmem:[#allocation10 + $0x80] sm:$0xff] %vm661, 0.0
      %803 = vst.msk [vmem:[#allocation10 + $0x88] sm:$0x3] %vm664, 0.0
      %804 = vst.msk [vmem:[#allocation10 + $0x90] sm:$0xff] %vm661, 0.0
      %805 = vst.msk [vmem:[#allocation10 + $0x98] sm:$0xff] %vm661, 0.0
      %806 = vst.msk [vmem:[#allocation10 + $0xa0] sm:$0x3] %vm664, 0.0
      %807 = vst.msk [vmem:[#allocation10 + $0xa8] sm:$0xff] %vm661, 0.0
      %808 = vst.msk [vmem:[#allocation10 + $0xb0] sm:$0xff] %vm661, 0.0
      %809 = vst.msk [vmem:[#allocation10 + $0xb8] sm:$0x3] %vm664, 0.0
      %810 = vst.msk [vmem:[#allocation10 + $0xc0] sm:$0xff] %vm661, 0.0
      %811 = vst.msk [vmem:[#allocation10 + $0xc8] sm:$0xff] %vm661, 0.0
      %812 = vst.msk [vmem:[#allocation10 + $0xd0] sm:$0x3] %vm664, 0.0
      %813 = vst.msk [vmem:[#allocation10 + $0xd8] sm:$0xff] %vm661, 0.0
      %814 = vst.msk [vmem:[#allocation10 + $0xe0] sm:$0xff] %vm661, 0.0
      %815 = vst.msk [vmem:[#allocation10 + $0xe8] sm:$0x3] %vm664, 0.0
      %816 = vst.msk [vmem:[#allocation10 + $0xf0] sm:$0xff] %vm661, 0.0
      %817 = vst.msk [vmem:[#allocation10 + $0xf8] sm:$0xff] %vm661, 0.0
      %818 = vst.msk [vmem:[#allocation10 + $0x100] sm:$0x3] %vm664, 0.0
      %819 = vst.msk [vmem:[#allocation10 + $0x108] sm:$0xff] %vm661, 0.0
      %820 = vst.msk [vmem:[#allocation10 + $0x110] sm:$0xff] %vm661, 0.0
      %821 = vst.msk [vmem:[#allocation10 + $0x118] sm:$0x3] %vm664, 0.0
      %822 = vst.msk [vmem:[#allocation10 + $0x120] sm:$0xff] %vm661, 0.0
      %823 = vst.msk [vmem:[#allocation10 + $0x128] sm:$0xff] %vm661, 0.0
      %824 = vst.msk [vmem:[#allocation10 + $0x130] sm:$0x3] %vm664, 0.0
      %825 = vst.msk [vmem:[#allocation10 + $0x138] sm:$0xff] %vm661, 0.0
      %826 = vst.msk [vmem:[#allocation10 + $0x140] sm:$0xff] %vm661, 0.0
      %827 = vst.msk [vmem:[#allocation10 + $0x148] sm:$0x3] %vm664, 0.0
      %828 = vst.msk [vmem:[#allocation10 + $0x150] sm:$0xff] %vm661, 0.0
      %829 = vst.msk [vmem:[#allocation10 + $0x158] sm:$0xff] %vm661, 0.0
      %830 = vst.msk [vmem:[#allocation10 + $0x160] sm:$0x3] %vm664, 0.0
      %831 = vst.msk [vmem:[#allocation10 + $0x168] sm:$0xff] %vm661, 0.0
      %832 = vst.msk [vmem:[#allocation10 + $0x170] sm:$0xff] %vm661, 0.0
      %833 = vst.msk [vmem:[#allocation10 + $0x178] sm:$0x3] %vm664, 0.0
      %834 = vst.msk [vmem:[#allocation10 + $0x180] sm:$0xff] %vm661, 0.0
      %835 = vst.msk [vmem:[#allocation10 + $0x188] sm:$0xff] %vm661, 0.0
      %836 = vst.msk [vmem:[#allocation10 + $0x190] sm:$0x3] %vm664, 0.0
      %837 = vst.msk [vmem:[#allocation10 + $0x198] sm:$0xff] %vm661, 0.0
      %838 = vst.msk [vmem:[#allocation10 + $0x1a0] sm:$0xff] %vm661, 0.0
      %839 = vst.msk [vmem:[#allocation10 + $0x1a8] sm:$0x3] %vm664, 0.0
      %v840 = vlaneseq
      %v841 = vshrl.u32 %v840, 7
      %v842 = vlaneseq
      %v843 = vand.u32 %v842, 127
      %v844 = vmul.u32 %v841, 2
      %vm845 = vcmp.eq.s32.totalorder %v843, %v844
      %v846 = vsel %vm845, 1.0, 0.0
      %v847 = vadd.s32 %v844, 1
      %vm848 = vcmp.eq.s32.totalorder %v843, %v847
      %v849 = vsel %vm848, 1.0, 0.0
      %v850 = vmul.u32 %v843, 2
      %vm851 = vcmp.eq.s32.totalorder %v841, %v850
      %v852 = vadd.s32 %v850, 1
      %vm853 = vcmp.eq.s32.totalorder %v841, %v852
      %vm854 = vmor %vm851, %vm853
      %v855 = vsel %vm854, 1.0, 0.0
      %v856 = vadd.s32 %v841, 8
      %vm857 = vcmp.eq.s32.totalorder %v856, %v850
      %vm858 = vcmp.eq.s32.totalorder %v856, %v852
      %vm859 = vmor %vm857, %vm858
      %v860 = vsel %vm859, 1.0, 0.0
      %v861 = vld [vmem:[%s599] sm:$0xff]
      %v862 = vld [vmem:[%s599 + $0x8] sm:$0xff]
      %v863 = vld [vmem:[%s599 + $0x10] sm:$0xff]
      %v864 = vld [vmem:[%s599 + $0x18] sm:$0xff]
      %v865 = vld [vmem:[%s599 + $0x20] sm:$0xff]
      %v866 = vld [vmem:[%s599 + $0x28] sm:$0xff]
      %v867 = vld [vmem:[%s599 + $0x30] sm:$0xff]
      %v868 = vld [vmem:[%s599 + $0x38] sm:$0xff]
      %v869 = vld [vmem:[%s599 + $0x40] sm:$0xff]
      %v870 = vld [vmem:[%s599 + $0x48] sm:$0xff]
      %v871 = vld [vmem:[%s599 + $0x50] sm:$0xff]
      %v872 = vld [vmem:[%s599 + $0x58] sm:$0xff]
      %v873 = vld [vmem:[%s599 + $0x60] sm:$0xff]
      %v874 = vld [vmem:[%s599 + $0x68] sm:$0xff]
      %v875 = vld [vmem:[%s599 + $0x70] sm:$0xff]
      %v876 = vld [vmem:[%s599 + $0x78] sm:$0xff]
      %v877 = vld [vmem:[%s599 + $0x80] sm:$0xff]
      %v878 = vld [vmem:[%s599 + $0x88] sm:$0xff]
      %v879 = vld [vmem:[%s599 + $0x90] sm:$0xff]
      %v880 = vld [vmem:[%s599 + $0x98] sm:$0xff]
      %v881 = vld [vmem:[%s599 + $0xa0] sm:$0xff]
      %v882 = vld [vmem:[%s599 + $0xa8] sm:$0xff]
      %v883 = vld [vmem:[%s599 + $0xb0] sm:$0xff]
      %v884 = vld [vmem:[%s599 + $0xb8] sm:$0xff]
      %v885 = vld [vmem:[%s599 + $0xc0] sm:$0xff]
      %v886 = vld [vmem:[%s599 + $0xc8] sm:$0xff]
      %v887 = vld [vmem:[%s599 + $0xd0] sm:$0xff]
      %v888 = vld [vmem:[%s599 + $0xd8] sm:$0xff]
      %v889 = vld [vmem:[%s599 + $0xe0] sm:$0xff]
      %v890 = vld [vmem:[%s599 + $0xe8] sm:$0xff]
      %v891 = vld [vmem:[%s599 + $0xf0] sm:$0xff]
      %v892 = vld [vmem:[%s599 + $0xf8] sm:$0xff]
      %s893 = scalar_lea.vmem [#allocation2], 24
      %894 = vst.msk [vmem:[%s893 + $0x1] sm:$0xff] %vm605, %v861
      %895 = vst.msk [vmem:[%s893 + $0x9] sm:$0xff] %vm605, %v862
      %896 = vst.msk [vmem:[%s893 + $0x19] sm:$0xff] %vm605, %v863
      %897 = vst.msk [vmem:[%s893 + $0x21] sm:$0xff] %vm605, %v864
      %898 = vst.msk [vmem:[%s893 + $0x31] sm:$0xff] %vm605, %v865
      %899 = vst.msk [vmem:[%s893 + $0x39] sm:$0xff] %vm605, %v866
      %900 = vst.msk [vmem:[%s893 + $0x49] sm:$0xff] %vm605, %v867
      %901 = vst.msk [vmem:[%s893 + $0x51] sm:$0xff] %vm605, %v868
      %902 = vst.msk [vmem:[%s893 + $0x61] sm:$0xff] %vm605, %v869
      %903 = vst.msk [vmem:[%s893 + $0x69] sm:$0xff] %vm605, %v870
      %904 = vst.msk [vmem:[%s893 + $0x79] sm:$0xff] %vm605, %v871
      %905 = vst.msk [vmem:[%s893 + $0x81] sm:$0xff] %vm605, %v872
      %906 = vst.msk [vmem:[%s893 + $0x91] sm:$0xff] %vm605, %v873
      %907 = vst.msk [vmem:[%s893 + $0x99] sm:$0xff] %vm605, %v874
      %908 = vst.msk [vmem:[%s893 + $0xa9] sm:$0xff] %vm605, %v875
      %909 = vst.msk [vmem:[%s893 + $0xb1] sm:$0xff] %vm605, %v876
      %910 = vst.msk [vmem:[%s893 + $0xc1] sm:$0xff] %vm605, %v877
      %911 = vst.msk [vmem:[%s893 + $0xc9] sm:$0xff] %vm605, %v878
      %912 = vst.msk [vmem:[%s893 + $0xd9] sm:$0xff] %vm605, %v879
      %913 = vst.msk [vmem:[%s893 + $0xe1] sm:$0xff] %vm605, %v880
      %914 = vst.msk [vmem:[%s893 + $0xf1] sm:$0xff] %vm605, %v881
      %915 = vst.msk [vmem:[%s893 + $0xf9] sm:$0xff] %vm605, %v882
      %916 = vst.msk [vmem:[%s893 + $0x109] sm:$0xff] %vm605, %v883
      %917 = vst.msk [vmem:[%s893 + $0x111] sm:$0xff] %vm605, %v884
      %918 = vst.msk [vmem:[%s893 + $0x121] sm:$0xff] %vm605, %v885
      %919 = vst.msk [vmem:[%s893 + $0x129] sm:$0xff] %vm605, %v886
      %920 = vst.msk [vmem:[%s893 + $0x139] sm:$0xff] %vm605, %v887
      %921 = vst.msk [vmem:[%s893 + $0x141] sm:$0xff] %vm605, %v888
      %922 = vst.msk [vmem:[%s893 + $0x151] sm:$0xff] %vm605, %v889
      %923 = vst.msk [vmem:[%s893 + $0x159] sm:$0xff] %vm605, %v890
      %924 = vst.msk [vmem:[%s893 + $0x169] sm:$0xff] %vm605, %v891
      %925 = vst.msk [vmem:[%s893 + $0x171] sm:$0xff] %vm605, %v892
      %v926 = vld [vmem:[%s2] sm:$0x1]
      loop: start=0, step=1, limit=16
      $region97: #{unet_forward.1} parent=95 // loop_pre_header
        _
      $region98: #{unet_forward.1} parent=95 // loop_header
        %s928 = sphi 0, %s932
        %p929 = scmp.ge.s32.totalorder %s928, 16
      $region99: #{unet_forward.1} parent=95 // loop_header_branch
        %931 = sbr.rel (%p929) target = $region103
      $region100: #{unet_forward.1} parent=95 // loop_body
        %v934 = vlaneseq
        %v935 = vshrl.u32 %v934, 7
        %v936 = vsub.s32 0, %v935
        %v937 = vrot.slane %v926, %v936
        %v939 = vadd.f32 %v937, 0.0
        %s940 = smul.u32 %s928, 24
        %s941 = scalar_lea.vmem [#allocation2], %s940
        %v942 = vld [vmem:[%s941] sm:$0xff]
        %v943 = vld [vmem:[%s941 + $0x8] sm:$0xff]
        %v944 = vld [vmem:[%s1] sm:$0x1]
        %946 = vset.pattern.permute.xlu0 0
        %947 = vperm.xlu0 %946, %v942
        %v948 = vpop.permute.xlu0 %947
        %951 = vset.pattern.permute.xlu0 0
        %952 = vperm.xlu0 %951, %v943
        %v953 = vpop.permute.xlu0 %952
        %v956 = vlaneseq
        %v957 = vshrl.u32 %v956, 7
        %v958 = vsub.s32 0, %v957
        %v959 = vrot.slane %v944, %v958
        %v961 = vmul.f32 %v948, %v959
        %v962 = vmul.f32 %v953, %v959
        %v963 = vadd.f32 %v939, %v961
        %v964 = vadd.f32 %v939, %v962
        %v965 = vld [vmem:[%s941 + $0x1] sm:$0xff]
        %v966 = vld [vmem:[%s941 + $0x9] sm:$0xff]
        %s967 = scalar_lea.vmem %s1, 1
        %v968 = vld [vmem:[%s967] sm:$0x1]
        %970 = vset.pattern.permute.xlu0 0
        %971 = vperm.xlu0 %970, %v965
        %v972 = vpop.permute.xlu0 %971
        %975 = vset.pattern.permute.xlu0 0
        %976 = vperm.xlu0 %975, %v966
        %v977 = vpop.permute.xlu0 %976
        %v980 = vlaneseq
        %v981 = vshrl.u32 %v980, 7
        %v982 = vsub.s32 0, %v981
        %v983 = vrot.slane %v968, %v982
        %v985 = vmul.f32 %v972, %v983
        %v986 = vmul.f32 %v977, %v983
        %v987 = vadd.f32 %v963, %v985
        %v988 = vadd.f32 %v964, %v986
        %v989 = vld [vmem:[%s941 + $0x2] sm:$0xff]
        %v990 = vld [vmem:[%s941 + $0xa] sm:$0xff]
        %s991 = scalar_lea.vmem %s1, 2
        %v992 = vld [vmem:[%s991] sm:$0x1]
        %994 = vset.pattern.permute.xlu0 0
        %995 = vperm.xlu0 %994, %v989
        %v996 = vpop.permute.xlu0 %995
        %999 = vset.pattern.permute.xlu0 0
        %1000 = vperm.xlu0 %999, %v990
        %v1001 = vpop.permute.xlu0 %1000
        %v1004 = vlaneseq
        %v1005 = vshrl.u32 %v1004, 7
        %v1006 = vsub.s32 0, %v1005
        %v1007 = vrot.slane %v992, %v1006
        %v1009 = vmul.f32 %v996, %v1007
        %v1010 = vmul.f32 %v1001, %v1007
        %v1011 = vadd.f32 %v987, %v1009
        %v1012 = vadd.f32 %v988, %v1010
        %s1013 = sadd.s32 %s928, 1
        %s1014 = smul.u32 %s1013, 24
        %s1015 = scalar_lea.vmem [#allocation2], %s1014
        %v1016 = vld [vmem:[%s1015] sm:$0xff]
        %v1017 = vld [vmem:[%s1015 + $0x8] sm:$0xff]
        %s1018 = scalar_lea.vmem %s1, 3
        %v1019 = vld [vmem:[%s1018] sm:$0x1]
        %1021 = vset.pattern.permute.xlu0 0
        %1022 = vperm.xlu0 %1021, %v1016
        %v1023 = vpop.permute.xlu0 %1022
        %1026 = vset.pattern.permute.xlu0 0
        %1027 = vperm.xlu0 %1026, %v1017
        %v1028 = vpop.permute.xlu0 %1027
        %v1031 = vlaneseq
        %v1032 = vshrl.u32 %v1031, 7
        %v1033 = vsub.s32 0, %v1032
        %v1034 = vrot.slane %v1019, %v1033
        %v1036 = vmul.f32 %v1023, %v1034
        %v1037 = vmul.f32 %v1028, %v1034
        %v1038 = vadd.f32 %v1011, %v1036
        %v1039 = vadd.f32 %v1012, %v1037
        %v1040 = vld [vmem:[%s1015 + $0x1] sm:$0xff]
        %v1041 = vld [vmem:[%s1015 + $0x9] sm:$0xff]
        %s1042 = scalar_lea.vmem %s1, 4
        %v1043 = vld [vmem:[%s1042] sm:$0x1]
        %1045 = vset.pattern.permute.xlu0 0
        %1046 = vperm.xlu0 %1045, %v1040
        %v1047 = vpop.permute.xlu0 %1046
        %1050 = vset.pattern.permute.xlu0 0
        %1051 = vperm.xlu0 %1050, %v1041
        %v1052 = vpop.permute.xlu0 %1051
        %v1055 = vlaneseq
        %v1056 = vshrl.u32 %v1055, 7
        %v1057 = vsub.s32 0, %v1056
        %v1058 = vrot.slane %v1043, %v1057
        %v1060 = vmul.f32 %v1047, %v1058
        %v1061 = vmul.f32 %v1052, %v1058
        %v1062 = vadd.f32 %v1038, %v1060
        %v1063 = vadd.f32 %v1039, %v1061
        %v1064 = vld [vmem:[%s1015 + $0x2] sm:$0xff]
        %v1065 = vld [vmem:[%s1015 + $0xa] sm:$0xff]
        %s1066 = scalar_lea.vmem %s1, 5
        %v1067 = vld [vmem:[%s1066] sm:$0x1]
        %1069 = vset.pattern.permute.xlu0 0
        %1070 = vperm.xlu0 %1069, %v1064
        %v1071 = vpop.permute.xlu0 %1070
        %1074 = vset.pattern.permute.xlu0 0
        %1075 = vperm.xlu0 %1074, %v1065
        %v1076 = vpop.permute.xlu0 %1075
        %v1079 = vlaneseq
        %v1080 = vshrl.u32 %v1079, 7
        %v1081 = vsub.s32 0, %v1080
        %v1082 = vrot.slane %v1067, %v1081
        %v1084 = vmul.f32 %v1071, %v1082
        %v1085 = vmul.f32 %v1076, %v1082
        %v1086 = vadd.f32 %v1062, %v1084
        %v1087 = vadd.f32 %v1063, %v1085
        %s1088 = sadd.s32 %s928, 2
        %s1089 = smul.u32 %s1088, 24
        %s1090 = scalar_lea.vmem [#allocation2], %s1089
        %v1091 = vld [vmem:[%s1090] sm:$0xff]
        %v1092 = vld [vmem:[%s1090 + $0x8] sm:$0xff]
        %s1093 = scalar_lea.vmem %s1, 6
        %v1094 = vld [vmem:[%s1093] sm:$0x1]
        %1096 = vset.pattern.permute.xlu0 0
        %1097 = vperm.xlu0 %1096, %v1091
        %v1098 = vpop.permute.xlu0 %1097
        %1101 = vset.pattern.permute.xlu0 0
        %1102 = vperm.xlu0 %1101, %v1092
        %v1103 = vpop.permute.xlu0 %1102
        %v1106 = vlaneseq
        %v1107 = vshrl.u32 %v1106, 7
        %v1108 = vsub.s32 0, %v1107
        %v1109 = vrot.slane %v1094, %v1108
        %v1111 = vmul.f32 %v1098, %v1109
        %v1112 = vmul.f32 %v1103, %v1109
        %v1113 = vadd.f32 %v1086, %v1111
        %v1114 = vadd.f32 %v1087, %v1112
        %v1115 = vld [vmem:[%s1090 + $0x1] sm:$0xff]
        %v1116 = vld [vmem:[%s1090 + $0x9] sm:$0xff]
        %s1117 = scalar_lea.vmem %s1, 7
        %v1118 = vld [vmem:[%s1117] sm:$0x1]
        %1120 = vset.pattern.permute.xlu0 0
        %1121 = vperm.xlu0 %1120, %v1115
        %v1122 = vpop.permute.xlu0 %1121
        %1125 = vset.pattern.permute.xlu0 0
        %1126 = vperm.xlu0 %1125, %v1116
        %v1127 = vpop.permute.xlu0 %1126
        %v1130 = vlaneseq
        %v1131 = vshrl.u32 %v1130, 7
        %v1132 = vsub.s32 0, %v1131
        %v1133 = vrot.slane %v1118, %v1132
        %v1135 = vmul.f32 %v1122, %v1133
        %v1136 = vmul.f32 %v1127, %v1133
        %v1137 = vadd.f32 %v1113, %v1135
        %v1138 = vadd.f32 %v1114, %v1136
        %v1139 = vld [vmem:[%s1090 + $0x2] sm:$0xff]
        %v1140 = vld [vmem:[%s1090 + $0xa] sm:$0xff]
        %s1141 = scalar_lea.vmem %s1, 8
        %v1142 = vld [vmem:[%s1141] sm:$0x1]
        %1144 = vset.pattern.permute.xlu0 0
        %1145 = vperm.xlu0 %1144, %v1139
        %v1146 = vpop.permute.xlu0 %1145
        %1149 = vset.pattern.permute.xlu0 0
        %1150 = vperm.xlu0 %1149, %v1140
        %v1151 = vpop.permute.xlu0 %1150
        %v1154 = vlaneseq
        %v1155 = vshrl.u32 %v1154, 7
        %v1156 = vsub.s32 0, %v1155
        %v1157 = vrot.slane %v1142, %v1156
        %v1159 = vmul.f32 %v1146, %v1157
        %v1160 = vmul.f32 %v1151, %v1157
        %v1161 = vadd.f32 %v1137, %v1159
        %v1162 = vadd.f32 %v1138, %v1160
        %v1163 = vmax.f32 %v1161, 0.0
        %v1164 = vmax.f32 %v1162, 0.0
        %s1165 = scalar_lea.vmem [#allocation3], %s1014
        %1166 = vst.msk [vmem:[%s1165 + $0x1] sm:$0xff] %vm661, %v1163
        %1167 = vst.msk [vmem:[%s1165 + $0x9] sm:$0xff] %vm661, %v1164
      $region101: #{unet_forward.1} parent=95 // loop_footer
        %s932 = sadd.s32 1, %s928
      $region102: #{unet_forward.1} parent=95 // loop_footer_branch
        %927 = sbr.rel target = $region98
      $region103: #{unet_forward.1} parent=95 // loop_exit
        _
      loop: start=0, step=1, limit=8
      $region104: #{unet_forward.1} parent=95 // loop_pre_header
        _
      $region105: #{unet_forward.1} parent=95 // loop_header
        %s1169 = sphi 0, %s1173
        %p1170 = scmp.ge.s32.totalorder %s1169, 8
      $region106: #{unet_forward.1} parent=95 // loop_header_branch
        %1172 = sbr.rel (%p1170) target = $region110
      $region107: #{unet_forward.1} parent=95 // loop_body
        %s1174 = smul.u32 %s1169, 2
        %s1175 = sadd.s32 %s1174, 1
        %s1176 = smul.u32 %s1175, 24
        %s1177 = scalar_lea.vmem [#allocation3], %s1176
        %v1178 = vld [vmem:[%s1177 + $0x1] sm:$0xff]
        %v1179 = vld [vmem:[%s1177 + $0x9] sm:$0xff]
        %s1180 = sadd.s32 %s1174, 2
        %s1181 = smul.u32 %s1180, 24
        %s1182 = scalar_lea.vmem [#allocation3], %s1181
        %v1183 = vld [vmem:[%s1182 + $0x1] sm:$0xff]
        %v1184 = vld [vmem:[%s1182 + $0x9] sm:$0xff]
        %v1185 = vmax.f32 %v1178, %v1183
        %v1186 = vmax.f32 %v1179, %v1184
        %v1188 = vsel %vm737, %v846, 0
        %1190 = vmatprep.subr.mxu0 0.0
        %1191 = vmatpush1.msra.mxu0 %v1185
        %1192 = vmatprep.subr.mxu0 0.0
        %1193 = vmatpush1.msra.mxu0 %v1186
        %1194 = vmatprep.subr.mxu0 0.0
        %1195 = vmatpush1.msra.mxu0 0.0
        %1196 = vmatprep.subr.mxu0 0.0
        %1197 = vmatpush1.msra.mxu0 0.0
        %1198 = vmatprep.subr.mxu0 0.0
        %1199 = vmatpush1.msra.mxu0 0.0
        %1200 = vmatprep.subr.mxu0 0.0
        %1201 = vmatpush1.msra.mxu0 0.0
        %1202 = vmatprep.subr.mxu0 0.0
        %1203 = vmatpush1.msra.mxu0 0.0
        %1204 = vmatprep.subr.mxu0 0.0
        %1205 = vmatpush1.msra.mxu0 0.0
        %1206 = vmatprep.subr.mxu0 0.0
        %1207 = vmatpush1.msra.mxu0 0.0
        %1208 = vmatprep.subr.mxu0 0.0
        %1209 = vmatpush1.msra.mxu0 0.0
        %1210 = vmatprep.subr.mxu0 0.0
        %1211 = vmatpush1.msra.mxu0 0.0
        %1212 = vmatprep.subr.mxu0 0.0
        %1213 = vmatpush1.msra.mxu0 0.0
        %1214 = vmatprep.subr.mxu0 0.0
        %1215 = vmatpush1.msra.mxu0 0.0
        %1216 = vmatprep.subr.mxu0 0.0
        %1217 = vmatpush1.msra.mxu0 0.0
        %1218 = vmatprep.subr.mxu0 0.0
        %1219 = vmatpush1.msra.mxu0 0.0
        %1220 = vmatprep.subr.mxu0 0.0
        %1221 = vmatpush1.msra.mxu0 0.0
        %1222 = vmatprep.subr.mxu0 0.0
        %1223 = vmatpush1.msra.mxu0 0.0
        %1224 = vmatprep.subr.mxu0 0.0
        %1225 = vmatpush1.msra.mxu0 0.0
        %1226 = vmatprep.subr.mxu0 0.0
        %1227 = vmatpush1.msra.mxu0 0.0
        %1228 = vmatprep.subr.mxu0 0.0
        %1229 = vmatpush1.msra.mxu0 0.0
        %1230 = vmatprep.subr.mxu0 0.0
        %1231 = vmatpush1.msra.mxu0 0.0
        %1232 = vmatprep.subr.mxu0 0.0
        %1233 = vmatpush1.msra.mxu0 0.0
        %1234 = vmatprep.subr.mxu0 0.0
        %1235 = vmatpush1.msra.mxu0 0.0
        %1236 = vmatprep.subr.mxu0 0.0
        %1237 = vmatpush1.msra.mxu0 0.0
        %1238 = vmatprep.subr.mxu0 0.0
        %1239 = vmatpush1.msra.mxu0 0.0
        %1240 = vmatprep.subr.mxu0 0.0
        %1241 = vmatpush1.msra.mxu0 0.0
        %1242 = vmatprep.subr.mxu0 0.0
        %1243 = vmatpush1.msra.mxu0 0.0
        %1244 = vmatprep.subr.mxu0 0.0
        %1245 = vmatpush1.msra.mxu0 0.0
        %1246 = vmatprep.subr.mxu0 0.0
        %1247 = vmatpush1.msra.mxu0 0.0
        %1248 = vmatprep.subr.mxu0 0.0
        %1249 = vmatpush1.msra.mxu0 0.0
        %1250 = vmatprep.subr.mxu0 0.0
        %1251 = vmatpush1.msra.mxu0 0.0
        %1252 = vmatprep.subr.mxu0 0.0
        %1253 = vmatpush1.msra.mxu0 0.0
        %1254 = vmatprep.mubr.f32.mxu0 0.0
        %1255 = vmatmul.mubr.f32.gmra.mrb[0].mxu0 %v1188
        %v1256 = vpop.f32.mrb[0].mxu0
        %v1257 = vadd.f32 0.0, %v1256
        %v1258 = vpop.f32.mrb[0].mxu0
        %1259 = vdwg.mxu0
        %v1261 = vsel %vm737, %v849, 0
        %1263 = vmatprep.subr.mxu0 0.0
        %1264 = vmatpush1.msra.mxu0 %v1185
        %1265 = vmatprep.subr.mxu0 0.0
        %1266 = vmatpush1.msra.mxu0 %v1186
        %1267 = vmatprep.subr.mxu0 0.0
        %1268 = vmatpush1.msra.mxu0 0.0
        %1269 = vmatprep.subr.mxu0 0.0
        %1270 = vmatpush1.msra.mxu0 0.0
        %1271 = vmatprep.subr.mxu0 0.0
        %1272 = vmatpush1.msra.mxu0 0.0
        %1273 = vmatprep.subr.mxu0 0.0
        %1274 = vmatpush1.msra.mxu0 0.0
        %1275 = vmatprep.subr.mxu0 0.0
        %1276 = vmatpush1.msra.mxu0 0.0
        %1277 = vmatprep.subr.mxu0 0.0
        %1278 = vmatpush1.msra.mxu0 0.0
        %1279 = vmatprep.subr.mxu0 0.0
        %1280 = vmatpush1.msra.mxu0 0.0
        %1281 = vmatprep.subr.mxu0 0.0
        %1282 = vmatpush1.msra.mxu0 0.0
        %1283 = vmatprep.subr.mxu0 0.0
        %1284 = vmatpush1.msra.mxu0 0.0
        %1285 = vmatprep.subr.mxu0 0.0
        %1286 = vmatpush1.msra.mxu0 0.0
        %1287 = vmatprep.subr.mxu0 0.0
        %1288 = vmatpush1.msra.mxu0 0.0
        %1289 = vmatprep.subr.mxu0 0.0
        %1290 = vmatpush1.msra.mxu0 0.0
        %1291 = vmatprep.subr.mxu0 0.0
        %1292 = vmatpush1.msra.mxu0 0.0
        %1293 = vmatprep.subr.mxu0 0.0
        %1294 = vmatpush1.msra.mxu0 0.0
        %1295 = vmatprep.subr.mxu0 0.0
        %1296 = vmatpush1.msra.mxu0 0.0
        %1297 = vmatprep.subr.mxu0 0.0
        %1298 = vmatpush1.msra.mxu0 0.0
        %1299 = vmatprep.subr.mxu0 0.0
        %1300 = vmatpush1.msra.mxu0 0.0
        %1301 = vmatprep.subr.mxu0 0.0
        %1302 = vmatpush1.msra.mxu0 0.0
        %1303 = vmatprep.subr.mxu0 0.0
        %1304 = vmatpush1.msra.mxu0 0.0
        %1305 = vmatprep.subr.mxu0 0.0
        %1306 = vmatpush1.msra.mxu0 0.0
        %1307 = vmatprep.subr.mxu0 0.0
        %1308 = vmatpush1.msra.mxu0 0.0
        %1309 = vmatprep.subr.mxu0 0.0
        %1310 = vmatpush1.msra.mxu0 0.0
        %1311 = vmatprep.subr.mxu0 0.0
        %1312 = vmatpush1.msra.mxu0 0.0
        %1313 = vmatprep.subr.mxu0 0.0
        %1314 = vmatpush1.msra.mxu0 0.0
        %1315 = vmatprep.subr.mxu0 0.0
        %1316 = vmatpush1.msra.mxu0 0.0
        %1317 = vmatprep.subr.mxu0 0.0
        %1318 = vmatpush1.msra.mxu0 0.0
        %1319 = vmatprep.subr.mxu0 0.0
        %1320 = vmatpush1.msra.mxu0 0.0
        %1321 = vmatprep.subr.mxu0 0.0
        %1322 = vmatpush1.msra.mxu0 0.0
        %1323 = vmatprep.subr.mxu0 0.0
        %1324 = vmatpush1.msra.mxu0 0.0
        %1325 = vmatprep.subr.mxu0 0.0
        %1326 = vmatpush1.msra.mxu0 0.0
        %1327 = vmatprep.mubr.f32.mxu0 0.0
        %1328 = vmatmul.mubr.f32.gmra.mrb[0].mxu0 %v1261
        %v1329 = vpop.f32.mrb[0].mxu0
        %v1330 = vadd.f32 0.0, %v1329
        %v1331 = vpop.f32.mrb[0].mxu0
        %1332 = vdwg.mxu0
        %v1333 = vmax.f32 %v1257, %v1330
        %s1334 = sadd.s32 %s1169, 1
        %s1335 = smul.u32 %s1334, 16
        %s1336 = scalar_lea.vmem [#allocation4], %s1335
        %1337 = vst.msk [vmem:[%s1336 + $0x1] sm:$0xff] %vm661, %v1333
      $region108: #{unet_forward.1} parent=95 // loop_footer
        %s1173 = sadd.s32 1, %s1169
      $region109: #{unet_forward.1} parent=95 // loop_footer_branch
        %1168 = sbr.rel target = $region105
      $region110: #{unet_forward.1} parent=95 // loop_exit
        _
      %v1338 = vld [vmem:[%s4] sm:$0x1]
      loop: start=0, step=1, limit=8
      $region111: #{unet_forward.1} parent=95 // loop_pre_header
        _
      $region112: #{unet_forward.1} parent=95 // loop_header
        %s1340 = sphi 0, %s1344
        %p1341 = scmp.ge.s32.totalorder %s1340, 8
      $region113: #{unet_forward.1} parent=95 // loop_header_branch
        %1343 = sbr.rel (%p1341) target = $region117
      $region114: #{unet_forward.1} parent=95 // loop_body
        %v1346 = vlaneseq
        %v1347 = vshrl.u32 %v1346, 7
        %v1348 = vsub.s32 0, %v1347
        %v1349 = vrot.slane %v1338, %v1348
        %v1351 = vadd.f32 %v1349, 0.0
        %s1352 = smul.u32 %s1340, 16
        %s1353 = scalar_lea.vmem [#allocation4], %s1352
        %v1354 = vld [vmem:[%s1353] sm:$0xff]
        %v1355 = vld [vmem:[%s3] sm:$0xff]
        %v1357 = vsel %vm661, %v1354, 0
        %1359 = vmatprep.subr.mxu0 0.0
        %1360 = vmatpush1.msra.mxu0 %v1355
        %1361 = vmatprep.subr.mxu0 0.0
        %1362 = vmatpush1.msra.mxu0 0.0
        %1363 = vmatprep.subr.mxu0 0.0
        %1364 = vmatpush1.msra.mxu0 0.0
        %1365 = vmatprep.subr.mxu0 0.0
        %1366 = vmatpush1.msra.mxu0 0.0
        %1367 = vmatprep.subr.mxu0 0.0
        %1368 = vmatpush1.msra.mxu0 0.0
        %1369 = vmatprep.subr.mxu0 0.0
        %1370 = vmatpush1.msra.mxu0 0.0
        %1371 = vmatprep.subr.mxu0 0.0
        %1372 = vmatpush1.msra.mxu0 0.0
        %1373 = vmatprep.subr.mxu0 0.0
        %1374 = vmatpush1.msra.mxu0 0.0
        %1375 = vmatprep.subr.mxu0 0.0
        %1376 = vmatpush1.msra.mxu0 0.0
        %1377 = vmatprep.subr.mxu0 0.0
        %1378 = vmatpush1.msra.mxu0 0.0
        %1379 = vmatprep.subr.mxu0 0.0
        %1380 = vmatpush1.msra.mxu0 0.0
        %1381 = vmatprep.subr.mxu0 0.0
        %1382 = vmatpush1.msra.mxu0 0.0
        %1383 = vmatprep.subr.mxu0 0.0
        %1384 = vmatpush1.msra.mxu0 0.0
        %1385 = vmatprep.subr.mxu0 0.0
        %1386 = vmatpush1.msra.mxu0 0.0
        %1387 = vmatprep.subr.mxu0 0.0
        %1388 = vmatpush1.msra.mxu0 0.0
        %1389 = vmatprep.subr.mxu0 0.0
        %1390 = vmatpush1.msra.mxu0 0.0
        %1391 = vmatprep.subr.mxu0 0.0
        %1392 = vmatpush1.msra.mxu0 0.0
        %1393 = vmatprep.subr.mxu0 0.0
        %1394 = vmatpush1.msra.mxu0 0.0
        %1395 = vmatprep.subr.mxu0 0.0
        %1396 = vmatpush1.msra.mxu0 0.0
        %1397 = vmatprep.subr.mxu0 0.0
        %1398 = vmatpush1.msra.mxu0 0.0
        %1399 = vmatprep.subr.mxu0 0.0
        %1400 = vmatpush1.msra.mxu0 0.0
        %1401 = vmatprep.subr.mxu0 0.0
        %1402 = vmatpush1.msra.mxu0 0.0
        %1403 = vmatprep.subr.mxu0 0.0
        %1404 = vmatpush1.msra.mxu0 0.0
        %1405 = vmatprep.subr.mxu0 0.0
        %1406 = vmatpush1.msra.mxu0 0.0
        %1407 = vmatprep.subr.mxu0 0.0
        %1408 = vmatpush1.msra.mxu0 0.0
        %1409 = vmatprep.subr.mxu0 0.0
        %1410 = vmatpush1.msra.mxu0 0.0
        %1411 = vmatprep.subr.mxu0 0.0
        %1412 = vmatpush1.msra.mxu0 0.0
        %1413 = vmatprep.subr.mxu0 0.0
        %1414 = vmatpush1.msra.mxu0 0.0
        %1415 = vmatprep.subr.mxu0 0.0
        %1416 = vmatpush1.msra.mxu0 0.0
        %1417 = vmatprep.subr.mxu0 0.0
        %1418 = vmatpush1.msra.mxu0 0.0
        %1419 = vmatprep.subr.mxu0 0.0
        %1420 = vmatpush1.msra.mxu0 0.0
        %1421 = vmatprep.subr.mxu0 0.0
        %1422 = vmatpush1.msra.mxu0 0.0
        %1423 = vmatprep.mubr.f32.mxu0 0.0
        %1424 = vmatmul.mubr.f32.gmra.mrb[0].mxu0 %v1357
        %v1425 = vpop.f32.mrb[0].mxu0
        %v1426 = vadd.f32 0.0, %v1425
        %v1427 = vpop.f32.mrb[0].mxu0
        %1428 = vdwg.mxu0
        %v1429 = vadd.f32 %v1351, %v1426
        %v1430 = vld [vmem:[%s1353 + $0x1] sm:$0xff]
        %s1431 = scalar_lea.vmem %s3, 8
        %v1432 = vld [vmem:[%s1431] sm:$0xff]
        %v1434 = vsel %vm661, %v1430, 0
        %1436 = vmatprep.subr.mxu0 0.0
        %1437 = vmatpush1.msra.mxu0 %v1432
        %1438 = vmatprep.subr.mxu0 0.0
        %1439 = vmatpush1.msra.mxu0 0.0
        %1440 = vmatprep.subr.mxu0 0.0
        %1441 = vmatpush1.msra.mxu0 0.0
        %1442 = vmatprep.subr.mxu0 0.0
        %1443 = vmatpush1.msra.mxu0 0.0
        %1444 = vmatprep.subr.mxu0 0.0
        %1445 = vmatpush1.msra.mxu0 0.0
        %1446 = vmatprep.subr.mxu0 0.0
        %1447 = vmatpush1.msra.mxu0 0.0
        %1448 = vmatprep.subr.mxu0 0.0
        %1449 = vmatpush1.msra.mxu0 0.0
        %1450 = vmatprep.subr.mxu0 0.0
        %1451 = vmatpush1.msra.mxu0 0.0
        %1452 = vmatprep.subr.mxu0 0.0
        %1453 = vmatpush1.msra.mxu0 0.0
        %1454 = vmatprep.subr.mxu0 0.0
        %1455 = vmatpush1.msra.mxu0 0.0
        %1456 = vmatprep.subr.mxu0 0.0
        %1457 = vmatpush1.msra.mxu0 0.0
        %1458 = vmatprep.subr.mxu0 0.0
        %1459 = vmatpush1.msra.mxu0 0.0
        %1460 = vmatprep.subr.mxu0 0.0
        %1461 = vmatpush1.msra.mxu0 0.0
        %1462 = vmatprep.subr.mxu0 0.0
        %1463 = vmatpush1.msra.mxu0 0.0
        %1464 = vmatprep.subr.mxu0 0.0
        %1465 = vmatpush1.msra.mxu0 0.0
        %1466 = vmatprep.subr.mxu0 0.0
        %1467 = vmatpush1.msra.mxu0 0.0
        %1468 = vmatprep.subr.mxu0 0.0
        %1469 = vmatpush1.msra.mxu0 0.0
        %1470 = vmatprep.subr.mxu0 0.0
        %1471 = vmatpush1.msra.mxu0 0.0
        %1472 = vmatprep.subr.mxu0 0.0
        %1473 = vmatpush1.msra.mxu0 0.0
        %1474 = vmatprep.subr.mxu0 0.0
        %1475 = vmatpush1.msra.mxu0 0.0
        %1476 = vmatprep.subr.mxu0 0.0
        %1477 = vmatpush1.msra.mxu0 0.0
        %1478 = vmatprep.subr.mxu0 0.0
        %1479 = vmatpush1.msra.mxu0 0.0
        %1480 = vmatprep.subr.mxu0 0.0
        %1481 = vmatpush1.msra.mxu0 0.0
        %1482 = vmatprep.subr.mxu0 0.0
        %1483 = vmatpush1.msra.mxu0 0.0
        %1484 = vmatprep.subr.mxu0 0.0
        %1485 = vmatpush1.msra.mxu0 0.0
        %1486 = vmatprep.subr.mxu0 0.0
        %1487 = vmatpush1.msra.mxu0 0.0
        %1488 = vmatprep.subr.mxu0 0.0
        %1489 = vmatpush1.msra.mxu0 0.0
        %1490 = vmatprep.subr.mxu0 0.0
        %1491 = vmatpush1.msra.mxu0 0.0
        %1492 = vmatprep.subr.mxu0 0.0
        %1493 = vmatpush1.msra.mxu0 0.0
        %1494 = vmatprep.subr.mxu0 0.0
        %1495 = vmatpush1.msra.mxu0 0.0
        %1496 = vmatprep.subr.mxu0 0.0
        %1497 = vmatpush1.msra.mxu0 0.0
        %1498 = vmatprep.subr.mxu0 0.0
        %1499 = vmatpush1.msra.mxu0 0.0
        %1500 = vmatprep.mubr.f32.mxu0 0.0
        %1501 = vmatmul.mubr.f32.gmra.mrb[0].mxu0 %v1434
        %v1502 = vpop.f32.mrb[0].mxu0
        %v1503 = vadd.f32 0.0, %v1502
        %v1504 = vpop.f32.mrb[0].mxu0
        %1505 = vdwg.mxu0
        %v1506 = vadd.f32 %v1429, %v1503
        %v1507 = vld [vmem:[%s1353 + $0x2] sm:$0xff]
        %s1508 = scalar_lea.vmem %s3, 16
        %v1509 = vld [vmem:[%s1508] sm:$0xff]
        %v1511 = vsel %vm661, %v1507, 0
        %1513 = vmatprep.subr.mxu0 0.0
        %1514 = vmatpush1.msra.mxu0 %v1509
        %1515 = vmatprep.subr.mxu0 0.0
        %1516 = vmatpush1.msra.mxu0 0.0
        %1517 = vmatprep.subr.mxu0 0.0
        %1518 = vmatpush1.msra.mxu0 0.0
        %1519 = vmatprep.subr.mxu0 0.0
        %1520 = vmatpush1.msra.mxu0 0.0
        %1521 = vmatprep.subr.mxu0 0.0
        %1522 = vmatpush1.msra.mxu0 0.0
        %1523 = vmatprep.subr.mxu0 0.0
        %1524 = vmatpush1.msra.mxu0 0.0
        %1525 = vmatprep.subr.mxu0 0.0
        %1526 = vmatpush1.msra.mxu0 0.0
        %1527 = vmatprep.subr.mxu0 0.0
        %1528 = vmatpush1.msra.mxu0 0.0
        %1529 = vmatprep.subr.mxu0 0.0
        %1530 = vmatpush1.msra.mxu0 0.0
        %1531 = vmatprep.subr.mxu0 0.0
        %1532 = vmatpush1.msra.mxu0 0.0
        %1533 = vmatprep.subr.mxu0 0.0
        %1534 = vmatpush1.msra.mxu0 0.0
        %1535 = vmatprep.subr.mxu0 0.0
        %1536 = vmatpush1.msra.mxu0 0.0
        %1537 = vmatprep.subr.mxu0 0.0
        %1538 = vmatpush1.msra.mxu0 0.0
        %1539 = vmatprep.subr.mxu0 0.0
        %1540 = vmatpush1.msra.mxu0 0.0
        %1541 = vmatprep.subr.mxu0 0.0
        %1542 = vmatpush1.msra.mxu0 0.0
        %1543 = vmatprep.subr.mxu0 0.0
        %1544 = vmatpush1.msra.mxu0 0.0
        %1545 = vmatprep.subr.mxu0 0.0
        %1546 = vmatpush1.msra.mxu0 0.0
        %1547 = vmatprep.subr.mxu0 0.0
        %1548 = vmatpush1.msra.mxu0 0.0
        %1549 = vmatprep.subr.mxu0 0.0
        %1550 = vmatpush1.msra.mxu0 0.0
        %1551 = vmatprep.subr.mxu0 0.0
        %1552 = vmatpush1.msra.mxu0 0.0
        %1553 = vmatprep.subr.mxu0 0.0
        %1554 = vmatpush1.msra.mxu0 0.0
        %1555 = vmatprep.subr.mxu0 0.0
        %1556 = vmatpush1.msra.mxu0 0.0
        %1557 = vmatprep.subr.mxu0 0.0
        %1558 = vmatpush1.msra.mxu0 0.0
        %1559 = vmatprep.subr.mxu0 0.0
        %1560 = vmatpush1.msra.mxu0 0.0
        %1561 = vmatprep.subr.mxu0 0.0
        %1562 = vmatpush1.msra.mxu0 0.0
        %1563 = vmatprep.subr.mxu0 0.0
        %1564 = vmatpush1.msra.mxu0 0.0
        %1565 = vmatprep.subr.mxu0 0.0
        %1566 = vmatpush1.msra.mxu0 0.0
        %1567 = vmatprep.subr.mxu0 0.0
        %1568 = vmatpush1.msra.mxu0 0.0
        %1569 = vmatprep.subr.mxu0 0.0
        %1570 = vmatpush1.msra.mxu0 0.0
        %1571 = vmatprep.subr.mxu0 0.0
        %1572 = vmatpush1.msra.mxu0 0.0
        %1573 = vmatprep.subr.mxu0 0.0
        %1574 = vmatpush1.msra.mxu0 0.0
        %1575 = vmatprep.subr.mxu0 0.0
        %1576 = vmatpush1.msra.mxu0 0.0
        %1577 = vmatprep.mubr.f32.mxu0 0.0
        %1578 = vmatmul.mubr.f32.gmra.mrb[0].mxu0 %v1511
        %v1579 = vpop.f32.mrb[0].mxu0
        %v1580 = vadd.f32 0.0, %v1579
        %v1581 = vpop.f32.mrb[0].mxu0
        %1582 = vdwg.mxu0
        %v1583 = vadd.f32 %v1506, %v1580
        %s1584 = sadd.s32 %s1340, 1
        %s1585 = smul.u32 %s1584, 16
        %s1586 = scalar_lea.vmem [#allocation4], %s1585
        %v1587 = vld [vmem:[%s1586] sm:$0xff]
        %s1588 = scalar_lea.vmem %s3, 24
        %v1589 = vld [vmem:[%s1588] sm:$0xff]
        %v1591 = vsel %vm661, %v1587, 0
        %1593 = vmatprep.subr.mxu0 0.0
        %1594 = vmatpush1.msra.mxu0 %v1589
        %1595 = vmatprep.subr.mxu0 0.0
        %1596 = vmatpush1.msra.mxu0 0.0
        %1597 = vmatprep.subr.mxu0 0.0
        %1598 = vmatpush1.msra.mxu0 0.0
        %1599 = vmatprep.subr.mxu0 0.0
        %1600 = vmatpush1.msra.mxu0 0.0
        %1601 = vmatprep.subr.mxu0 0.0
        %1602 = vmatpush1.msra.mxu0 0.0
        %1603 = vmatprep.subr.mxu0 0.0
        %1604 = vmatpush1.msra.mxu0 0.0
        %1605 = vmatprep.subr.mxu0 0.0
        %1606 = vmatpush1.msra.mxu0 0.0
        %1607 = vmatprep.subr.mxu0 0.0
        %1608 = vmatpush1.msra.mxu0 0.0
        %1609 = vmatprep.subr.mxu0 0.0
        %1610 = vmatpush1.msra.mxu0 0.0
        %1611 = vmatprep.subr.mxu0 0.0
        %1612 = vmatpush1.msra.mxu0 0.0
        %1613 = vmatprep.subr.mxu0 0.0
        %1614 = vmatpush1.msra.mxu0 0.0
        %1615 = vmatprep.subr.mxu0 0.0
        %1616 = vmatpush1.msra.mxu0 0.0
        %1617 = vmatprep.subr.mxu0 0.0
        %1618 = vmatpush1.msra.mxu0 0.0
        %1619 = vmatprep.subr.mxu0 0.0
        %1620 = vmatpush1.msra.mxu0 0.0
        %1621 = vmatprep.subr.mxu0 0.0
        %1622 = vmatpush1.msra.mxu0 0.0
        %1623 = vmatprep.subr.mxu0 0.0
        %1624 = vmatpush1.msra.mxu0 0.0
        %1625 = vmatprep.subr.mxu0 0.0
        %1626 = vmatpush1.msra.mxu0 0.0
        %1627 = vmatprep.subr.mxu0 0.0
        %1628 = vmatpush1.msra.mxu0 0.0
        %1629 = vmatprep.subr.mxu0 0.0
        %1630 = vmatpush1.msra.mxu0 0.0
        %1631 = vmatprep.subr.mxu0 0.0
        %1632 = vmatpush1.msra.mxu0 0.0
        %1633 = vmatprep.subr.mxu0 0.0
        %1634 = vmatpush1.msra.mxu0 0.0
        %1635 = vmatprep.subr.mxu0 0.0
        %1636 = vmatpush1.msra.mxu0 0.0
        %1637 = vmatprep.subr.mxu0 0.0
        %1638 = vmatpush1.msra.mxu0 0.0
        %1639 = vmatprep.subr.mxu0 0.0
        %1640 = vmatpush1.msra.mxu0 0.0
        %1641 = vmatprep.subr.mxu0 0.0
        %1642 = vmatpush1.msra.mxu0 0.0
        %1643 = vmatprep.subr.mxu0 0.0
        %1644 = vmatpush1.msra.mxu0 0.0
        %1645 = vmatprep.subr.mxu0 0.0
        %1646 = vmatpush1.msra.mxu0 0.0
        %1647 = vmatprep.subr.mxu0 0.0
        %1648 = vmatpush1.msra.mxu0 0.0
        %1649 = vmatprep.subr.mxu0 0.0
        %1650 = vmatpush1.msra.mxu0 0.0
        %1651 = vmatprep.subr.mxu0 0.0
        %1652 = vmatpush1.msra.mxu0 0.0
        %1653 = vmatprep.subr.mxu0 0.0
        %1654 = vmatpush1.msra.mxu0 0.0
        %1655 = vmatprep.subr.mxu0 0.0
        %1656 = vmatpush1.msra.mxu0 0.0
        %1657 = vmatprep.mubr.f32.mxu0 0.0
        %1658 = vmatmul.mubr.f32.gmra.mrb[0].mxu0 %v1591
        %v1659 = vpop.f32.mrb[0].mxu0
        %v1660 = vadd.f32 0.0, %v1659
        %v1661 = vpop.f32.mrb[0].mxu0
        %1662 = vdwg.mxu0
        %v1663 = vadd.f32 %v1583, %v1660
        %v1664 = vld [vmem:[%s1586 + $0x1] sm:$0xff]
        %s1665 = scalar_lea.vmem %s3, 32
        %v1666 = vld [vmem:[%s1665] sm:$0xff]
        %v1668 = vsel %vm661, %v1664, 0
        %1670 = vmatprep.subr.mxu0 0.0
        %1671 = vmatpush1.msra.mxu0 %v1666
        %1672 = vmatprep.subr.mxu0 0.0
        %1673 = vmatpush1.msra.mxu0 0.0
        %1674 = vmatprep.subr.mxu0 0.0
        %1675 = vmatpush1.msra.mxu0 0.0
        %1676 = vmatprep.subr.mxu0 0.0
        %1677 = vmatpush1.msra.mxu0 0.0
        %1678 = vmatprep.subr.mxu0 0.0
        %1679 = vmatpush1.msra.mxu0 0.0
        %1680 = vmatprep.subr.mxu0 0.0
        %1681 = vmatpush1.msra.mxu0 0.0
        %1682 = vmatprep.subr.mxu0 0.0
        %1683 = vmatpush1.msra.mxu0 0.0
        %1684 = vmatprep.subr.mxu0 0.0
        %1685 = vmatpush1.msra.mxu0 0.0
        %1686 = vmatprep.subr.mxu0 0.0
        %1687 = vmatpush1.msra.mxu0 0.0
        %1688 = vmatprep.subr.mxu0 0.0
        %1689 = vmatpush1.msra.mxu0 0.0
        %1690 = vmatprep.subr.mxu0 0.0
        %1691 = vmatpush1.msra.mxu0 0.0
        %1692 = vmatprep.subr.mxu0 0.0
        %1693 = vmatpush1.msra.mxu0 0.0
        %1694 = vmatprep.subr.mxu0 0.0
        %1695 = vmatpush1.msra.mxu0 0.0
        %1696 = vmatprep.subr.mxu0 0.0
        %1697 = vmatpush1.msra.mxu0 0.0
        %1698 = vmatprep.subr.mxu0 0.0
        %1699 = vmatpush1.msra.mxu0 0.0
        %1700 = vmatprep.subr.mxu0 0.0
        %1701 = vmatpush1.msra.mxu0 0.0
        %1702 = vmatprep.subr.mxu0 0.0
        %1703 = vmatpush1.msra.mxu0 0.0
        %1704 = vmatprep.subr.mxu0 0.0
        %1705 = vmatpush1.msra.mxu0 0.0
        %1706 = vmatprep.subr.mxu0 0.0
        %1707 = vmatpush1.msra.mxu0 0.0
        %1708 = vmatprep.subr.mxu0 0.0
        %1709 = vmatpush1.msra.mxu0 0.0
        %1710 = vmatprep.subr.mxu0 0.0
        %1711 = vmatpush1.msra.mxu0 0.0
        %1712 = vmatprep.subr.mxu0 0.0
        %1713 = vmatpush1.msra.mxu0 0.0
        %1714 = vmatprep.subr.mxu0 0.0
        %1715 = vmatpush1.msra.mxu0 0.0
        %1716 = vmatprep.subr.mxu0 0.0
        %1717 = vmatpush1.msra.mxu0 0.0
        %1718 = vmatprep.subr.mxu0 0.0
        %1719 = vmatpush1.msra.mxu0 0.0
        %1720 = vmatprep.subr.mxu0 0.0
        %1721 = vmatpush1.msra.mxu0 0.0
        %1722 = vmatprep.subr.mxu0 0.0
        %1723 = vmatpush1.msra.mxu0 0.0
        %1724 = vmatprep.subr.mxu0 0.0
        %1725 = vmatpush1.msra.mxu0 0.0
        %1726 = vmatprep.subr.mxu0 0.0
        %1727 = vmatpush1.msra.mxu0 0.0
        %1728 = vmatprep.subr.mxu0 0.0
        %1729 = vmatpush1.msra.mxu0 0.0
        %1730 = vmatprep.subr.mxu0 0.0
        %1731 = vmatpush1.msra.mxu0 0.0
        %1732 = vmatprep.subr.mxu0 0.0
        %1733 = vmatpush1.msra.mxu0 0.0
        %1734 = vmatprep.mubr.f32.mxu0 0.0
        %1735 = vmatmul.mubr.f32.gmra.mrb[0].mxu0 %v1668
        %v1736 = vpop.f32.mrb[0].mxu0
        %v1737 = vadd.f32 0.0, %v1736
        %v1738 = vpop.f32.mrb[0].mxu0
        %1739 = vdwg.mxu0
        %v1740 = vadd.f32 %v1663, %v1737
        %v1741 = vld [vmem:[%s1586 + $0x2] sm:$0xff]
        %s1742 = scalar_lea.vmem %s3, 40
        %v1743 = vld [vmem:[%s1742] sm:$0xff]
        %v1745 = vsel %vm661, %v1741, 0
        %1747 = vmatprep.subr.mxu0 0.0
        %1748 = vmatpush1.msra.mxu0 %v1743
        %1749 = vmatprep.subr.mxu0 0.0
        %1750 = vmatpush1.msra.mxu0 0.0
        %1751 = vmatprep.subr.mxu0 0.0
        %1752 = vmatpush1.msra.mxu0 0.0
        %1753 = vmatprep.subr.mxu0 0.0
        %1754 = vmatpush1.msra.mxu0 0.0
        %1755 = vmatprep.subr.mxu0 0.0
        %1756 = vmatpush1.msra.mxu0 0.0
        %1757 = vmatprep.subr.mxu0 0.0
        %1758 = vmatpush1.msra.mxu0 0.0
        %1759 = vmatprep.subr.mxu0 0.0
        %1760 = vmatpush1.msra.mxu0 0.0
        %1761 = vmatprep.subr.mxu0 0.0
        %1762 = vmatpush1.msra.mxu0 0.0
        %1763 = vmatprep.subr.mxu0 0.0
        %1764 = vmatpush1.msra.mxu0 0.0
        %1765 = vmatprep.subr.mxu0 0.0
        %1766 = vmatpush1.msra.mxu0 0.0
        %1767 = vmatprep.subr.mxu0 0.0
        %1768 = vmatpush1.msra.mxu0 0.0
        %1769 = vmatprep.subr.mxu0 0.0
        %1770 = vmatpush1.msra.mxu0 0.0
        %1771 = vmatprep.subr.mxu0 0.0
        %1772 = vmatpush1.msra.mxu0 0.0
        %1773 = vmatprep.subr.mxu0 0.0
        %1774 = vmatpush1.msra.mxu0 0.0
        %1775 = vmatprep.subr.mxu0 0.0
        %1776 = vmatpush1.msra.mxu0 0.0
        %1777 = vmatprep.subr.mxu0 0.0
        %1778 = vmatpush1.msra.mxu0 0.0
        %1779 = vmatprep.subr.mxu0 0.0
        %1780 = vmatpush1.msra.mxu0 0.0
        %1781 = vmatprep.subr.mxu0 0.0
        %1782 = vmatpush1.msra.mxu0 0.0
        %1783 = vmatprep.subr.mxu0 0.0
        %1784 = vmatpush1.msra.mxu0 0.0
        %1785 = vmatprep.subr.mxu0 0.0
        %1786 = vmatpush1.msra.mxu0 0.0
        %1787 = vmatprep.subr.mxu0 0.0
        %1788 = vmatpush1.msra.mxu0 0.0
        %1789 = vmatprep.subr.mxu0 0.0
        %1790 = vmatpush1.msra.mxu0 0.0
        %1791 = vmatprep.subr.mxu0 0.0
        %1792 = vmatpush1.msra.mxu0 0.0
        %1793 = vmatprep.subr.mxu0 0.0
        %1794 = vmatpush1.msra.mxu0 0.0
        %1795 = vmatprep.subr.mxu0 0.0
        %1796 = vmatpush1.msra.mxu0 0.0
        %1797 = vmatprep.subr.mxu0 0.0
        %1798 = vmatpush1.msra.mxu0 0.0
        %1799 = vmatprep.subr.mxu0 0.0
        %1800 = vmatpush1.msra.mxu0 0.0
        %1801 = vmatprep.subr.mxu0 0.0
        %1802 = vmatpush1.msra.mxu0 0.0
        %1803 = vmatprep.subr.mxu0 0.0
        %1804 = vmatpush1.msra.mxu0 0.0
        %1805 = vmatprep.subr.mxu0 0.0
        %1806 = vmatpush1.msra.mxu0 0.0
        %1807 = vmatprep.subr.mxu0 0.0
        %1808 = vmatpush1.msra.mxu0 0.0
        %1809 = vmatprep.subr.mxu0 0.0
        %1810 = vmatpush1.msra.mxu0 0.0
        %1811 = vmatprep.mubr.f32.mxu0 0.0
        %1812 = vmatmul.mubr.f32.gmra.mrb[0].mxu0 %v1745
        %v1813 = vpop.f32.mrb[0].mxu0
        %v1814 = vadd.f32 0.0, %v1813
        %v1815 = vpop.f32.mrb[0].mxu0
        %1816 = vdwg.mxu0
        %v1817 = vadd.f32 %v1740, %v1814
        %s1818 = sadd.s32 %s1340, 2
        %s1819 = smul.u32 %s1818, 16
        %s1820 = scalar_lea.vmem [#allocation4], %s1819
        %v1821 = vld [vmem:[%s1820] sm:$0xff]
        %s1822 = scalar_lea.vmem %s3, 48
        %v1823 = vld [vmem:[%s1822] sm:$0xff]
        %v1825 = vsel %vm661, %v1821, 0
        %1827 = vmatprep.subr.mxu0 0.0
        %1828 = vmatpush1.msra.mxu0 %v1823
        %1829 = vmatprep.subr.mxu0 0.0
        %1830 = vmatpush1.msra.mxu0 0.0
        %1831 = vmatprep.subr.mxu0 0.0
        %1832 = vmatpush1.msra.mxu0 0.0
        %1833 = vmatprep.subr.mxu0 0.0
        %1834 = vmatpush1.msra.mxu0 0.0
        %1835 = vmatprep.subr.mxu0 0.0
        %1836 = vmatpush1.msra.mxu0 0.0
        %1837 = vmatprep.subr.mxu0 0.0
        %1838 = vmatpush1.msra.mxu0 0.0
        %1839 = vmatprep.subr.mxu0 0.0
        %1840 = vmatpush1.msra.mxu0 0.0
        %1841 = vmatprep.subr.mxu0 0.0
        %1842 = vmatpush1.msra.mxu0 0.0
        %1843 = vmatprep.subr.mxu0 0.0
        %1844 = vmatpush1.msra.mxu0 0.0
        %1845 = vmatprep.subr.mxu0 0.0
        %1846 = vmatpush1.msra.mxu0 0.0
        %1847 = vmatprep.subr.mxu0 0.0
        %1848 = vmatpush1.msra.mxu0 0.0
        %1849 = vmatprep.subr.mxu0 0.0
        %1850 = vmatpush1.msra.mxu0 0.0
        %1851 = vmatprep.subr.mxu0 0.0
        %1852 = vmatpush1.msra.mxu0 0.0
        %1853 = vmatprep.subr.mxu0 0.0
        %1854 = vmatpush1.msra.mxu0 0.0
        %1855 = vmatprep.subr.mxu0 0.0
        %1856 = vmatpush1.msra.mxu0 0.0
        %1857 = vmatprep.subr.mxu0 0.0
        %1858 = vmatpush1.msra.mxu0 0.0
        %1859 = vmatprep.subr.mxu0 0.0
        %1860 = vmatpush1.msra.mxu0 0.0
        %1861 = vmatprep.subr.mxu0 0.0
        %1862 = vmatpush1.msra.mxu0 0.0
        %1863 = vmatprep.subr.mxu0 0.0
        %1864 = vmatpush1.msra.mxu0 0.0
        %1865 = vmatprep.subr.mxu0 0.0
        %1866 = vmatpush1.msra.mxu0 0.0
        %1867 = vmatprep.subr.mxu0 0.0
        %1868 = vmatpush1.msra.mxu0 0.0
        %1869 = vmatprep.subr.mxu0 0.0
        %1870 = vmatpush1.msra.mxu0 0.0
        %1871 = vmatprep.subr.mxu0 0.0
        %1872 = vmatpush1.msra.mxu0 0.0
        %1873 = vmatprep.subr.mxu0 0.0
        %1874 = vmatpush1.msra.mxu0 0.0
        %1875 = vmatprep.subr.mxu0 0.0
        %1876 = vmatpush1.msra.mxu0 0.0
        %1877 = vmatprep.subr.mxu0 0.0
        %1878 = vmatpush1.msra.mxu0 0.0
        %1879 = vmatprep.subr.mxu0 0.0
        %1880 = vmatpush1.msra.mxu0 0.0
        %1881 = vmatprep.subr.mxu0 0.0
        %1882 = vmatpush1.msra.mxu0 0.0
        %1883 = vmatprep.subr.mxu0 0.0
        %1884 = vmatpush1.msra.mxu0 0.0
        %1885 = vmatprep.subr.mxu0 0.0
        %1886 = vmatpush1.msra.mxu0 0.0
        %1887 = vmatprep.subr.mxu0 0.0
        %1888 = vmatpush1.msra.mxu0 0.0
        %1889 = vmatprep.subr.mxu0 0.0
        %1890 = vmatpush1.msra.mxu0 0.0
        %1891 = vmatprep.mubr.f32.mxu0 0.0
        %1892 = vmatmul.mubr.f32.gmra.mrb[0].mxu0 %v1825
        %v1893 = vpop.f32.mrb[0].mxu0
        %v1894 = vadd.f32 0.0, %v1893
        %v1895 = vpop.f32.mrb[0].mxu0
        %1896 = vdwg.mxu0
        %v1897 = vadd.f32 %v1817, %v1894
        %v1898 = vld [vmem:[%s1820 + $0x1] sm:$0xff]
        %s1899 = scalar_lea.vmem %s3, 56
        %v1900 = vld [vmem:[%s1899] sm:$0xff]
        %v1902 = vsel %vm661, %v1898, 0
        %1904 = vmatprep.subr.mxu0 0.0
        %1905 = vmatpush1.msra.mxu0 %v1900
        %1906 = vmatprep.subr.mxu0 0.0
        %1907 = vmatpush1.msra.mxu0 0.0
        %1908 = vmatprep.subr.mxu0 0.0
        %1909 = vmatpush1.msra.mxu0 0.0
        %1910 = vmatprep.subr.mxu0 0.0
        %1911 = vmatpush1.msra.mxu0 0.0
        %1912 = vmatprep.subr.mxu0 0.0
        %1913 = vmatpush1.msra.mxu0 0.0
        %1914 = vmatprep.subr.mxu0 0.0
        %1915 = vmatpush1.msra.mxu0 0.0
        %1916 = vmatprep.subr.mxu0 0.0
        %1917 = vmatpush1.msra.mxu0 0.0
        %1918 = vmatprep.subr.mxu0 0.0
        %1919 = vmatpush1.msra.mxu0 0.0
        %1920 = vmatprep.subr.mxu0 0.0
        %1921 = vmatpush1.msra.mxu0 0.0
        %1922 = vmatprep.subr.mxu0 0.0
        %1923 = vmatpush1.msra.mxu0 0.0
        %1924 = vmatprep.subr.mxu0 0.0
        %1925 = vmatpush1.msra.mxu0 0.0
        %1926 = vmatprep.subr.mxu0 0.0
        %1927 = vmatpush1.msra.mxu0 0.0
        %1928 = vmatprep.subr.mxu0 0.0
        %1929 = vmatpush1.msra.mxu0 0.0
        %1930 = vmatprep.subr.mxu0 0.0
        %1931 = vmatpush1.msra.mxu0 0.0
        %1932 = vmatprep.subr.mxu0 0.0
        %1933 = vmatpush1.msra.mxu0 0.0
        %1934 = vmatprep.subr.mxu0 0.0
        %1935 = vmatpush1.msra.mxu0 0.0
        %1936 = vmatprep.subr.mxu0 0.0
        %1937 = vmatpush1.msra.mxu0 0.0
        %1938 = vmatprep.subr.mxu0 0.0
        %1939 = vmatpush1.msra.mxu0 0.0
        %1940 = vmatprep.subr.mxu0 0.0
        %1941 = vmatpush1.msra.mxu0 0.0
        %1942 = vmatprep.subr.mxu0 0.0
        %1943 = vmatpush1.msra.mxu0 0.0
        %1944 = vmatprep.subr.mxu0 0.0
        %1945 = vmatpush1.msra.mxu0 0.0
        %1946 = vmatprep.subr.mxu0 0.0
        %1947 = vmatpush1.msra.mxu0 0.0
        %1948 = vmatprep.subr.mxu0 0.0
        %1949 = vmatpush1.msra.mxu0 0.0
        %1950 = vmatprep.subr.mxu0 0.0
        %1951 = vmatpush1.msra.mxu0 0.0
        %1952 = vmatprep.subr.mxu0 0.0
        %1953 = vmatpush1.msra.mxu0 0.0
        %1954 = vmatprep.subr.mxu0 0.0
        %1955 = vmatpush1.msra.mxu0 0.0
        %1956 = vmatprep.subr.mxu0 0.0
        %1957 = vmatpush1.msra.mxu0 0.0
        %1958 = vmatprep.subr.mxu0 0.0
        %1959 = vmatpush1.msra.mxu0 0.0
        %1960 = vmatprep.subr.mxu0 0.0
        %1961 = vmatpush1.msra.mxu0 0.0
        %1962 = vmatprep.subr.mxu0 0.0
        %1963 = vmatpush1.msra.mxu0 0.0
        %1964 = vmatprep.subr.mxu0 0.0
        %1965 = vmatpush1.msra.mxu0 0.0
        %1966 = vmatprep.subr.mxu0 0.0
        %1967 = vmatpush1.msra.mxu0 0.0
        %1968 = vmatprep.mubr.f32.mxu0 0.0
        %1969 = vmatmul.mubr.f32.gmra.mrb[0].mxu0 %v1902
        %v1970 = vpop.f32.mrb[0].mxu0
        %v1971 = vadd.f32 0.0, %v1970
        %v1972 = vpop.f32.mrb[0].mxu0
        %1973 = vdwg.mxu0
        %v1974 = vadd.f32 %v1897, %v1971
        %v1975 = vld [vmem:[%s1820 + $0x2] sm:$0xff]
        %s1976 = scalar_lea.vmem %s3, 64
        %v1977 = vld [vmem:[%s1976] sm:$0xff]
        %v1979 = vsel %vm661, %v1975, 0
        %1981 = vmatprep.subr.mxu0 0.0
        %1982 = vmatpush1.msra.mxu0 %v1977
        %1983 = vmatprep.subr.mxu0 0.0
        %1984 = vmatpush1.msra.mxu0 0.0
        %1985 = vmatprep.subr.mxu0 0.0
        %1986 = vmatpush1.msra.mxu0 0.0
        %1987 = vmatprep.subr.mxu0 0.0
        %1988 = vmatpush1.msra.mxu0 0.0
        %1989 = vmatprep.subr.mxu0 0.0
        %1990 = vmatpush1.msra.mxu0 0.0
        %1991 = vmatprep.subr.mxu0 0.0
        %1992 = vmatpush1.msra.mxu0 0.0
        %1993 = vmatprep.subr.mxu0 0.0
        %1994 = vmatpush1.msra.mxu0 0.0
        %1995 = vmatprep.subr.mxu0 0.0
        %1996 = vmatpush1.msra.mxu0 0.0
        %1997 = vmatprep.subr.mxu0 0.0
        %1998 = vmatpush1.msra.mxu0 0.0
        %1999 = vmatprep.subr.mxu0 0.0
        %2000 = vmatpush1.msra.mxu0 0.0
        %2001 = vmatprep.subr.mxu0 0.0
        %2002 = vmatpush1.msra.mxu0 0.0
        %2003 = vmatprep.subr.mxu0 0.0
        %2004 = vmatpush1.msra.mxu0 0.0
        %2005 = vmatprep.subr.mxu0 0.0
        %2006 = vmatpush1.msra.mxu0 0.0
        %2007 = vmatprep.subr.mxu0 0.0
        %2008 = vmatpush1.msra.mxu0 0.0
        %2009 = vmatprep.subr.mxu0 0.0
        %2010 = vmatpush1.msra.mxu0 0.0
        %2011 = vmatprep.subr.mxu0 0.0
        %2012 = vmatpush1.msra.mxu0 0.0
        %2013 = vmatprep.subr.mxu0 0.0
        %2014 = vmatpush1.msra.mxu0 0.0
        %2015 = vmatprep.subr.mxu0 0.0
        %2016 = vmatpush1.msra.mxu0 0.0
        %2017 = vmatprep.subr.mxu0 0.0
        %2018 = vmatpush1.msra.mxu0 0.0
        %2019 = vmatprep.subr.mxu0 0.0
        %2020 = vmatpush1.msra.mxu0 0.0
        %2021 = vmatprep.subr.mxu0 0.0
        %2022 = vmatpush1.msra.mxu0 0.0
        %2023 = vmatprep.subr.mxu0 0.0
        %2024 = vmatpush1.msra.mxu0 0.0
        %2025 = vmatprep.subr.mxu0 0.0
        %2026 = vmatpush1.msra.mxu0 0.0
        %2027 = vmatprep.subr.mxu0 0.0
        %2028 = vmatpush1.msra.mxu0 0.0
        %2029 = vmatprep.subr.mxu0 0.0
        %2030 = vmatpush1.msra.mxu0 0.0
        %2031 = vmatprep.subr.mxu0 0.0
        %2032 = vmatpush1.msra.mxu0 0.0
        %2033 = vmatprep.subr.mxu0 0.0
        %2034 = vmatpush1.msra.mxu0 0.0
        %2035 = vmatprep.subr.mxu0 0.0
        %2036 = vmatpush1.msra.mxu0 0.0
        %2037 = vmatprep.subr.mxu0 0.0
        %2038 = vmatpush1.msra.mxu0 0.0
        %2039 = vmatprep.subr.mxu0 0.0
        %2040 = vmatpush1.msra.mxu0 0.0
        %2041 = vmatprep.subr.mxu0 0.0
        %2042 = vmatpush1.msra.mxu0 0.0
        %2043 = vmatprep.subr.mxu0 0.0
        %2044 = vmatpush1.msra.mxu0 0.0
        %2045 = vmatprep.mubr.f32.mxu0 0.0
        %2046 = vmatmul.mubr.f32.gmra.mrb[0].mxu0 %v1979
        %v2047 = vpop.f32.mrb[0].mxu0
        %v2048 = vadd.f32 0.0, %v2047
        %v2049 = vpop.f32.mrb[0].mxu0
        %2050 = vdwg.mxu0
        %v2051 = vadd.f32 %v1974, %v2048
        %v2052 = vmax.f32 %v2051, 0.0
        %s2053 = scalar_lea.vmem [#allocation5], %s1585
        %2054 = vst.msk [vmem:[%s2053 + $0x1] sm:$0xff] %vm737, %v2052
      $region115: #{unet_forward.1} parent=95 // loop_footer
        %s1344 = sadd.s32 1, %s1340
      $region116: #{unet_forward.1} parent=95 // loop_footer_branch
        %1339 = sbr.rel target = $region112
      $region117: #{unet_forward.1} parent=95 // loop_exit
        _
      loop: start=0, step=1, limit=4
      $region118: #{unet_forward.1} parent=95 // loop_pre_header
        _
      $region119: #{unet_forward.1} parent=95 // loop_header
        %s2056 = sphi 0, %s2060
        %p2057 = scmp.ge.s32.totalorder %s2056, 4
      $region120: #{unet_forward.1} parent=95 // loop_header_branch
        %2059 = sbr.rel (%p2057) target = $region124
      $region121: #{unet_forward.1} parent=95 // loop_body
        %s2061 = smul.u32 %s2056, 2
        %s2062 = sadd.s32 %s2061, 1
        %s2063 = smul.u32 %s2062, 16
        %s2064 = scalar_lea.vmem [#allocation5], %s2063
        %v2065 = vld [vmem:[%s2064 + $0x1] sm:$0xff]
        %s2066 = sadd.s32 %s2061, 2
        %s2067 = smul.u32 %s2066, 16
        %s2068 = scalar_lea.vmem [#allocation5], %s2067
        %v2069 = vld [vmem:[%s2068 + $0x1] sm:$0xff]
        %v2070 = vmax.f32 %v2065, %v2069
        %v2072 = vsel %vm661, %v846, 0
        %2074 = vmatprep.subr.mxu0 0.0
        %2075 = vmatpush1.msra.mxu0 %v2070
        %2076 = vmatprep.subr.mxu0 0.0
        %2077 = vmatpush1.msra.mxu0 0.0
        %2078 = vmatprep.subr.mxu0 0.0
        %2079 = vmatpush1.msra.mxu0 0.0
        %2080 = vmatprep.subr.mxu0 0.0
        %2081 = vmatpush1.msra.mxu0 0.0
        %2082 = vmatprep.subr.mxu0 0.0
        %2083 = vmatpush1.msra.mxu0 0.0
        %2084 = vmatprep.subr.mxu0 0.0
        %2085 = vmatpush1.msra.mxu0 0.0
        %2086 = vmatprep.subr.mxu0 0.0
        %2087 = vmatpush1.msra.mxu0 0.0
        %2088 = vmatprep.subr.mxu0 0.0
        %2089 = vmatpush1.msra.mxu0 0.0
        %2090 = vmatprep.subr.mxu0 0.0
        %2091 = vmatpush1.msra.mxu0 0.0
        %2092 = vmatprep.subr.mxu0 0.0
        %2093 = vmatpush1.msra.mxu0 0.0
        %2094 = vmatprep.subr.mxu0 0.0
        %2095 = vmatpush1.msra.mxu0 0.0
        %2096 = vmatprep.subr.mxu0 0.0
        %2097 = vmatpush1.msra.mxu0 0.0
        %2098 = vmatprep.subr.mxu0 0.0
        %2099 = vmatpush1.msra.mxu0 0.0
        %2100 = vmatprep.subr.mxu0 0.0
        %2101 = vmatpush1.msra.mxu0 0.0
        %2102 = vmatprep.subr.mxu0 0.0
        %2103 = vmatpush1.msra.mxu0 0.0
        %2104 = vmatprep.subr.mxu0 0.0
        %2105 = vmatpush1.msra.mxu0 0.0
        %2106 = vmatprep.subr.mxu0 0.0
        %2107 = vmatpush1.msra.mxu0 0.0
        %2108 = vmatprep.subr.mxu0 0.0
        %2109 = vmatpush1.msra.mxu0 0.0
        %2110 = vmatprep.subr.mxu0 0.0
        %2111 = vmatpush1.msra.mxu0 0.0
        %2112 = vmatprep.subr.mxu0 0.0
        %2113 = vmatpush1.msra.mxu0 0.0
        %2114 = vmatprep.subr.mxu0 0.0
        %2115 = vmatpush1.msra.mxu0 0.0
        %2116 = vmatprep.subr.mxu0 0.0
        %2117 = vmatpush1.msra.mxu0 0.0
        %2118 = vmatprep.subr.mxu0 0.0
        %2119 = vmatpush1.msra.mxu0 0.0
        %2120 = vmatprep.subr.mxu0 0.0
        %2121 = vmatpush1.msra.mxu0 0.0
        %2122 = vmatprep.subr.mxu0 0.0
        %2123 = vmatpush1.msra.mxu0 0.0
        %2124 = vmatprep.subr.mxu0 0.0
        %2125 = vmatpush1.msra.mxu0 0.0
        %2126 = vmatprep.subr.mxu0 0.0
        %2127 = vmatpush1.msra.mxu0 0.0
        %2128 = vmatprep.subr.mxu0 0.0
        %2129 = vmatpush1.msra.mxu0 0.0
        %2130 = vmatprep.subr.mxu0 0.0
        %2131 = vmatpush1.msra.mxu0 0.0
        %2132 = vmatprep.subr.mxu0 0.0
        %2133 = vmatpush1.msra.mxu0 0.0
        %2134 = vmatprep.subr.mxu0 0.0
        %2135 = vmatpush1.msra.mxu0 0.0
        %2136 = vmatprep.subr.mxu0 0.0
        %2137 = vmatpush1.msra.mxu0 0.0
        %2138 = vmatprep.mubr.f32.mxu0 0.0
        %2139 = vmatmul.mubr.f32.gmra.mrb[0].mxu0 %v2072
        %v2140 = vpop.f32.mrb[0].mxu0
        %v2141 = vadd.f32 0.0, %v2140
        %v2142 = vpop.f32.mrb[0].mxu0
        %2143 = vdwg.mxu0
        %v2145 = vsel %vm661, %v849, 0
        %2147 = vmatprep.subr.mxu0 0.0
        %2148 = vmatpush1.msra.mxu0 %v2070
        %2149 = vmatprep.subr.mxu0 0.0
        %2150 = vmatpush1.msra.mxu0 0.0
        %2151 = vmatprep.subr.mxu0 0.0
        %2152 = vmatpush1.msra.mxu0 0.0
        %2153 = vmatprep.subr.mxu0 0.0
        %2154 = vmatpush1.msra.mxu0 0.0
        %2155 = vmatprep.subr.mxu0 0.0
        %2156 = vmatpush1.msra.mxu0 0.0
        %2157 = vmatprep.subr.mxu0 0.0
        %2158 = vmatpush1.msra.mxu0 0.0
        %2159 = vmatprep.subr.mxu0 0.0
        %2160 = vmatpush1.msra.mxu0 0.0
        %2161 = vmatprep.subr.mxu0 0.0
        %2162 = vmatpush1.msra.mxu0 0.0
        %2163 = vmatprep.subr.mxu0 0.0
        %2164 = vmatpush1.msra.mxu0 0.0
        %2165 = vmatprep.subr.mxu0 0.0
        %2166 = vmatpush1.msra.mxu0 0.0
        %2167 = vmatprep.subr.mxu0 0.0
        %2168 = vmatpush1.msra.mxu0 0.0
        %2169 = vmatprep.subr.mxu0 0.0
        %2170 = vmatpush1.msra.mxu0 0.0
        %2171 = vmatprep.subr.mxu0 0.0
        %2172 = vmatpush1.msra.mxu0 0.0
        %2173 = vmatprep.subr.mxu0 0.0
        %2174 = vmatpush1.msra.mxu0 0.0
        %2175 = vmatprep.subr.mxu0 0.0
        %2176 = vmatpush1.msra.mxu0 0.0
        %2177 = vmatprep.subr.mxu0 0.0
        %2178 = vmatpush1.msra.mxu0 0.0
        %2179 = vmatprep.subr.mxu0 0.0
        %2180 = vmatpush1.msra.mxu0 0.0
        %2181 = vmatprep.subr.mxu0 0.0
        %2182 = vmatpush1.msra.mxu0 0.0
        %2183 = vmatprep.subr.mxu0 0.0
        %2184 = vmatpush1.msra.mxu0 0.0
        %2185 = vmatprep.subr.mxu0 0.0
        %2186 = vmatpush1.msra.mxu0 0.0
        %2187 = vmatprep.subr.mxu0 0.0
        %2188 = vmatpush1.msra.mxu0 0.0
        %2189 = vmatprep.subr.mxu0 0.0
        %2190 = vmatpush1.msra.mxu0 0.0
        %2191 = vmatprep.subr.mxu0 0.0
        %2192 = vmatpush1.msra.mxu0 0.0
        %2193 = vmatprep.subr.mxu0 0.0
        %2194 = vmatpush1.msra.mxu0 0.0
        %2195 = vmatprep.subr.mxu0 0.0
        %2196 = vmatpush1.msra.mxu0 0.0
        %2197 = vmatprep.subr.mxu0 0.0
        %2198 = vmatpush1.msra.mxu0 0.0
        %2199 = vmatprep.subr.mxu0 0.0
        %2200 = vmatpush1.msra.mxu0 0.0
        %2201 = vmatprep.subr.mxu0 0.0
        %2202 = vmatpush1.msra.mxu0 0.0
        %2203 = vmatprep.subr.mxu0 0.0
        %2204 = vmatpush1.msra.mxu0 0.0
        %2205 = vmatprep.subr.mxu0 0.0
        %2206 = vmatpush1.msra.mxu0 0.0
        %2207 = vmatprep.subr.mxu0 0.0
        %2208 = vmatpush1.msra.mxu0 0.0
        %2209 = vmatprep.subr.mxu0 0.0
        %2210 = vmatpush1.msra.mxu0 0.0
        %2211 = vmatprep.mubr.f32.mxu0 0.0
        %2212 = vmatmul.mubr.f32.gmra.mrb[0].mxu0 %v2145
        %v2213 = vpop.f32.mrb[0].mxu0
        %v2214 = vadd.f32 0.0, %v2213
        %v2215 = vpop.f32.mrb[0].mxu0
        %2216 = vdwg.mxu0
        %v2217 = vmax.f32 %v2141, %v2214
        %s2218 = sadd.s32 %s2056, 1
        %s2219 = smul.u32 %s2218, 8
        %s2220 = scalar_lea.vmem [#allocation6], %s2219
        %vm2221 = vcmask 125952
        %2222 = vst.msk [vmem:[%s2220 + $0x1] sm:$0xf] %vm2221, %v2217
      $region122: #{unet_forward.1} parent=95 // loop_footer
        %s2060 = sadd.s32 1, %s2056
      $region123: #{unet_forward.1} parent=95 // loop_footer_branch
        %2055 = sbr.rel target = $region119
      $region124: #{unet_forward.1} parent=95 // loop_exit
        _
      %v2223 = vld [vmem:[%s6] sm:$0x1]
      loop: start=0, step=1, limit=4
      $region125: #{unet_forward.1} parent=95 // loop_pre_header
        _
      $region126: #{unet_forward.1} parent=95 // loop_header
        %s2225 = sphi 0, %s2229
        %p2226 = scmp.ge.s32.totalorder %s2225, 4
      $region127: #{unet_forward.1} parent=95 // loop_header_branch
        %2228 = sbr.rel (%p2226) target = $region131
      $region128: #{unet_forward.1} parent=95 // loop_body
        %v2231 = vlaneseq
        %v2232 = vshrl.u32 %v2231, 7
        %v2233 = vsub.s32 0, %v2232
        %v2234 = vrot.slane %v2223, %v2233
        %v2236 = vadd.f32 %v2234, 0.0
        %s2237 = smul.u32 %s2225, 8
        %s2238 = scalar_lea.vmem [#allocation6], %s2237
        %v2239 = vld [vmem:[%s2238] sm:$0xf]
        %v2240 = vld [vmem:[%s5] sm:$0xff]
        %v2241 = vld [vmem:[%s5 + $0x8] sm:$0xff]
        %v2243 = vsel %vm737, %v2239, 0
        %2245 = vmatprep.subr.mxu0 0.0
        %2246 = vmatpush1.msra.mxu0 %v2240
        %2247 = vmatprep.subr.mxu0 0.0
        %2248 = vmatpush1.msra.mxu0 %v2241
        %2249 = vmatprep.subr.mxu0 0.0
        %2250 = vmatpush1.msra.mxu0 0.0
        %2251 = vmatprep.subr.mxu0 0.0
        %2252 = vmatpush1.msra.mxu0 0.0
        %2253 = vmatprep.subr.mxu0 0.0
        %2254 = vmatpush1.msra.mxu0 0.0
        %2255 = vmatprep.subr.mxu0 0.0
        %2256 = vmatpush1.msra.mxu0 0.0
        %2257 = vmatprep.subr.mxu0 0.0
        %2258 = vmatpush1.msra.mxu0 0.0
        %2259 = vmatprep.subr.mxu0 0.0
        %2260 = vmatpush1.msra.mxu0 0.0
        %2261 = vmatprep.subr.mxu0 0.0
        %2262 = vmatpush1.msra.mxu0 0.0
        %2263 = vmatprep.subr.mxu0 0.0
        %2264 = vmatpush1.msra.mxu0 0.0
        %2265 = vmatprep.subr.mxu0 0.0
        %2266 = vmatpush1.msra.mxu0 0.0
        %2267 = vmatprep.subr.mxu0 0.0
        %2268 = vmatpush1.msra.mxu0 0.0
        %2269 = vmatprep.subr.mxu0 0.0
        %2270 = vmatpush1.msra.mxu0 0.0
        %2271 = vmatprep.subr.mxu0 0.0
        %2272 = vmatpush1.msra.mxu0 0.0
        %2273 = vmatprep.subr.mxu0 0.0
        %2274 = vmatpush1.msra.mxu0 0.0
        %2275 = vmatprep.subr.mxu0 0.0
        %2276 = vmatpush1.msra.mxu0 0.0
        %2277 = vmatprep.subr.mxu0 0.0
        %2278 = vmatpush1.msra.mxu0 0.0
        %2279 = vmatprep.subr.mxu0 0.0
        %2280 = vmatpush1.msra.mxu0 0.0
        %2281 = vmatprep.subr.mxu0 0.0
        %2282 = vmatpush1.msra.mxu0 0.0
        %2283 = vmatprep.subr.mxu0 0.0
        %2284 = vmatpush1.msra.mxu0 0.0
        %2285 = vmatprep.subr.mxu0 0.0
        %2286 = vmatpush1.msra.mxu0 0.0
        %2287 = vmatprep.subr.mxu0 0.0
        %2288 = vmatpush1.msra.mxu0 0.0
        %2289 = vmatprep.subr.mxu0 0.0
        %2290 = vmatpush1.msra.mxu0 0.0
        %2291 = vmatprep.subr.mxu0 0.0
        %2292 = vmatpush1.msra.mxu0 0.0
        %2293 = vmatprep.subr.mxu0 0.0
        %2294 = vmatpush1.msra.mxu0 0.0
        %2295 = vmatprep.subr.mxu0 0.0
        %2296 = vmatpush1.msra.mxu0 0.0
        %2297 = vmatprep.subr.mxu0 0.0
        %2298 = vmatpush1.msra.mxu0 0.0
        %2299 = vmatprep.subr.mxu0 0.0
        %2300 = vmatpush1.msra.mxu0 0.0
        %2301 = vmatprep.subr.mxu0 0.0
        %2302 = vmatpush1.msra.mxu0 0.0
        %2303 = vmatprep.subr.mxu0 0.0
        %2304 = vmatpush1.msra.mxu0 0.0
        %2305 = vmatprep.subr.mxu0 0.0
        %2306 = vmatpush1.msra.mxu0 0.0
        %2307 = vmatprep.subr.mxu0 0.0
        %2308 = vmatpush1.msra.mxu0 0.0
        %2309 = vmatprep.mubr.f32.mxu0 0.0
        %2310 = vmatmul.mubr.f32.gmra.mrb[0].mxu0 %v2243
        %v2311 = vpop.f32.mrb[0].mxu0
        %v2312 = vadd.f32 0.0, %v2311
        %v2313 = vpop.f32.mrb[0].mxu0
        %2314 = vdwg.mxu0
        %v2315 = vadd.f32 %v2236, %v2312
        %v2316 = vld [vmem:[%s2238 + $0x1] sm:$0xf]
        %s2317 = scalar_lea.vmem %s5, 16
        %v2318 = vld [vmem:[%s2317] sm:$0xff]
        %v2319 = vld [vmem:[%s2317 + $0x8] sm:$0xff]
        %v2321 = vsel %vm737, %v2316, 0
        %2323 = vmatprep.subr.mxu0 0.0
        %2324 = vmatpush1.msra.mxu0 %v2318
        %2325 = vmatprep.subr.mxu0 0.0
        %2326 = vmatpush1.msra.mxu0 %v2319
        %2327 = vmatprep.subr.mxu0 0.0
        %2328 = vmatpush1.msra.mxu0 0.0
        %2329 = vmatprep.subr.mxu0 0.0
        %2330 = vmatpush1.msra.mxu0 0.0
        %2331 = vmatprep.subr.mxu0 0.0
        %2332 = vmatpush1.msra.mxu0 0.0
        %2333 = vmatprep.subr.mxu0 0.0
        %2334 = vmatpush1.msra.mxu0 0.0
        %2335 = vmatprep.subr.mxu0 0.0
        %2336 = vmatpush1.msra.mxu0 0.0
        %2337 = vmatprep.subr.mxu0 0.0
        %2338 = vmatpush1.msra.mxu0 0.0
        %2339 = vmatprep.subr.mxu0 0.0
        %2340 = vmatpush1.msra.mxu0 0.0
        %2341 = vmatprep.subr.mxu0 0.0
        %2342 = vmatpush1.msra.mxu0 0.0
        %2343 = vmatprep.subr.mxu0 0.0
        %2344 = vmatpush1.msra.mxu0 0.0
        %2345 = vmatprep.subr.mxu0 0.0
        %2346 = vmatpush1.msra.mxu0 0.0
        %2347 = vmatprep.subr.mxu0 0.0
        %2348 = vmatpush1.msra.mxu0 0.0
        %2349 = vmatprep.subr.mxu0 0.0
        %2350 = vmatpush1.msra.mxu0 0.0
        %2351 = vmatprep.subr.mxu0 0.0
        %2352 = vmatpush1.msra.mxu0 0.0
        %2353 = vmatprep.subr.mxu0 0.0
        %2354 = vmatpush1.msra.mxu0 0.0
        %2355 = vmatprep.subr.mxu0 0.0
        %2356 = vmatpush1.msra.mxu0 0.0
        %2357 = vmatprep.subr.mxu0 0.0
        %2358 = vmatpush1.msra.mxu0 0.0
        %2359 = vmatprep.subr.mxu0 0.0
        %2360 = vmatpush1.msra.mxu0 0.0
        %2361 = vmatprep.subr.mxu0 0.0
        %2362 = vmatpush1.msra.mxu0 0.0
        %2363 = vmatprep.subr.mxu0 0.0
        %2364 = vmatpush1.msra.mxu0 0.0
        %2365 = vmatprep.subr.mxu0 0.0
        %2366 = vmatpush1.msra.mxu0 0.0
        %2367 = vmatprep.subr.mxu0 0.0
        %2368 = vmatpush1.msra.mxu0 0.0
        %2369 = vmatprep.subr.mxu0 0.0
        %2370 = vmatpush1.msra.mxu0 0.0
        %2371 = vmatprep.subr.mxu0 0.0
        %2372 = vmatpush1.msra.mxu0 0.0
        %2373 = vmatprep.subr.mxu0 0.0
        %2374 = vmatpush1.msra.mxu0 0.0
        %2375 = vmatprep.subr.mxu0 0.0
        %2376 = vmatpush1.msra.mxu0 0.0
        %2377 = vmatprep.subr.mxu0 0.0
        %2378 = vmatpush1.msra.mxu0 0.0
        %2379 = vmatprep.subr.mxu0 0.0
        %2380 = vmatpush1.msra.mxu0 0.0
        %2381 = vmatprep.subr.mxu0 0.0
        %2382 = vmatpush1.msra.mxu0 0.0
        %2383 = vmatprep.subr.mxu0 0.0
        %2384 = vmatpush1.msra.mxu0 0.0
        %2385 = vmatprep.subr.mxu0 0.0
        %2386 = vmatpush1.msra.mxu0 0.0
        %2387 = vmatprep.mubr.f32.mxu0 0.0
        %2388 = vmatmul.mubr.f32.gmra.mrb[0].mxu0 %v2321
        %v2389 = vpop.f32.mrb[0].mxu0
        %v2390 = vadd.f32 0.0, %v2389
        %v2391 = vpop.f32.mrb[0].mxu0
        %2392 = vdwg.mxu0
        %v2393 = vadd.f32 %v2315, %v2390
        %v2394 = vld [vmem:[%s2238 + $0x2] sm:$0xf]
        %s2395 = scalar_lea.vmem %s5, 32
        %v2396 = vld [vmem:[%s2395] sm:$0xff]
        %v2397 = vld [vmem:[%s2395 + $0x8] sm:$0xff]
        %v2399 = vsel %vm737, %v2394, 0
        %2401 = vmatprep.subr.mxu0 0.0
        %2402 = vmatpush1.msra.mxu0 %v2396
        %2403 = vmatprep.subr.mxu0 0.0
        %2404 = vmatpush1.msra.mxu0 %v2397
        %2405 = vmatprep.subr.mxu0 0.0
        %2406 = vmatpush1.msra.mxu0 0.0
        %2407 = vmatprep.subr.mxu0 0.0
        %2408 = vmatpush1.msra.mxu0 0.0
        %2409 = vmatprep.subr.mxu0 0.0
        %2410 = vmatpush1.msra.mxu0 0.0
        %2411 = vmatprep.subr.mxu0 0.0
        %2412 = vmatpush1.msra.mxu0 0.0
        %2413 = vmatprep.subr.mxu0 0.0
        %2414 = vmatpush1.msra.mxu0 0.0
        %2415 = vmatprep.subr.mxu0 0.0
        %2416 = vmatpush1.msra.mxu0 0.0
        %2417 = vmatprep.subr.mxu0 0.0
        %2418 = vmatpush1.msra.mxu0 0.0
        %2419 = vmatprep.subr.mxu0 0.0
        %2420 = vmatpush1.msra.mxu0 0.0
        %2421 = vmatprep.subr.mxu0 0.0
        %2422 = vmatpush1.msra.mxu0 0.0
        %2423 = vmatprep.subr.mxu0 0.0
        %2424 = vmatpush1.msra.mxu0 0.0
        %2425 = vmatprep.subr.mxu0 0.0
        %2426 = vmatpush1.msra.mxu0 0.0
        %2427 = vmatprep.subr.mxu0 0.0
        %2428 = vmatpush1.msra.mxu0 0.0
        %2429 = vmatprep.subr.mxu0 0.0
        %2430 = vmatpush1.msra.mxu0 0.0
        %2431 = vmatprep.subr.mxu0 0.0
        %2432 = vmatpush1.msra.mxu0 0.0
        %2433 = vmatprep.subr.mxu0 0.0
        %2434 = vmatpush1.msra.mxu0 0.0
        %2435 = vmatprep.subr.mxu0 0.0
        %2436 = vmatpush1.msra.mxu0 0.0
        %2437 = vmatprep.subr.mxu0 0.0
        %2438 = vmatpush1.msra.mxu0 0.0
        %2439 = vmatprep.subr.mxu0 0.0
        %2440 = vmatpush1.msra.mxu0 0.0
        %2441 = vmatprep.subr.mxu0 0.0
        %2442 = vmatpush1.msra.mxu0 0.0
        %2443 = vmatprep.subr.mxu0 0.0
        %2444 = vmatpush1.msra.mxu0 0.0
        %2445 = vmatprep.subr.mxu0 0.0
        %2446 = vmatpush1.msra.mxu0 0.0
        %2447 = vmatprep.subr.mxu0 0.0
        %2448 = vmatpush1.msra.mxu0 0.0
        %2449 = vmatprep.subr.mxu0 0.0
        %2450 = vmatpush1.msra.mxu0 0.0
        %2451 = vmatprep.subr.mxu0 0.0
        %2452 = vmatpush1.msra.mxu0 0.0
        %2453 = vmatprep.subr.mxu0 0.0
        %2454 = vmatpush1.msra.mxu0 0.0
        %2455 = vmatprep.subr.mxu0 0.0
        %2456 = vmatpush1.msra.mxu0 0.0
        %2457 = vmatprep.subr.mxu0 0.0
        %2458 = vmatpush1.msra.mxu0 0.0
        %2459 = vmatprep.subr.mxu0 0.0
        %2460 = vmatpush1.msra.mxu0 0.0
        %2461 = vmatprep.subr.mxu0 0.0
        %2462 = vmatpush1.msra.mxu0 0.0
        %2463 = vmatprep.subr.mxu0 0.0
        %2464 = vmatpush1.msra.mxu0 0.0
        %2465 = vmatprep.mubr.f32.mxu0 0.0
        %2466 = vmatmul.mubr.f32.gmra.mrb[0].mxu0 %v2399
        %v2467 = vpop.f32.mrb[0].mxu0
        %v2468 = vadd.f32 0.0, %v2467
        %v2469 = vpop.f32.mrb[0].mxu0
        %2470 = vdwg.mxu0
        %v2471 = vadd.f32 %v2393, %v2468
        %s2472 = sadd.s32 %s2225, 1
        %s2473 = smul.u32 %s2472, 8
        %s2474 = scalar_lea.vmem [#allocation6], %s2473
        %v2475 = vld [vmem:[%s2474] sm:$0xf]
        %s2476 = scalar_lea.vmem %s5, 48
        %v2477 = vld [vmem:[%s2476] sm:$0xff]
        %v2478 = vld [vmem:[%s2476 + $0x8] sm:$0xff]
        %v2480 = vsel %vm737, %v2475, 0
        %2482 = vmatprep.subr.mxu0 0.0
        %2483 = vmatpush1.msra.mxu0 %v2477
        %2484 = vmatprep.subr.mxu0 0.0
        %2485 = vmatpush1.msra.mxu0 %v2478
        %2486 = vmatprep.subr.mxu0 0.0
        %2487 = vmatpush1.msra.mxu0 0.0
        %2488 = vmatprep.subr.mxu0 0.0
        %2489 = vmatpush1.msra.mxu0 0.0
        %2490 = vmatprep.subr.mxu0 0.0
        %2491 = vmatpush1.msra.mxu0 0.0
        %2492 = vmatprep.subr.mxu0 0.0
        %2493 = vmatpush1.msra.mxu0 0.0
        %2494 = vmatprep.subr.mxu0 0.0
        %2495 = vmatpush1.msra.mxu0 0.0
        %2496 = vmatprep.subr.mxu0 0.0
        %2497 = vmatpush1.msra.mxu0 0.0
        %2498 = vmatprep.subr.mxu0 0.0
        %2499 = vmatpush1.msra.mxu0 0.0
        %2500 = vmatprep.subr.mxu0 0.0
        %2501 = vmatpush1.msra.mxu0 0.0
        %2502 = vmatprep.subr.mxu0 0.0
        %2503 = vmatpush1.msra.mxu0 0.0
        %2504 = vmatprep.subr.mxu0 0.0
        %2505 = vmatpush1.msra.mxu0 0.0
        %2506 = vmatprep.subr.mxu0 0.0
        %2507 = vmatpush1.msra.mxu0 0.0
        %2508 = vmatprep.subr.mxu0 0.0
        %2509 = vmatpush1.msra.mxu0 0.0
        %2510 = vmatprep.subr.mxu0 0.0
        %2511 = vmatpush1.msra.mxu0 0.0
        %2512 = vmatprep.subr.mxu0 0.0
        %2513 = vmatpush1.msra.mxu0 0.0
        %2514 = vmatprep.subr.mxu0 0.0
        %2515 = vmatpush1.msra.mxu0 0.0
        %2516 = vmatprep.subr.mxu0 0.0
        %2517 = vmatpush1.msra.mxu0 0.0
        %2518 = vmatprep.subr.mxu0 0.0
        %2519 = vmatpush1.msra.mxu0 0.0
        %2520 = vmatprep.subr.mxu0 0.0
        %2521 = vmatpush1.msra.mxu0 0.0
        %2522 = vmatprep.subr.mxu0 0.0
        %2523 = vmatpush1.msra.mxu0 0.0
        %2524 = vmatprep.subr.mxu0 0.0
        %2525 = vmatpush1.msra.mxu0 0.0
        %2526 = vmatprep.subr.mxu0 0.0
        %2527 = vmatpush1.msra.mxu0 0.0
        %2528 = vmatprep.subr.mxu0 0.0
        %2529 = vmatpush1.msra.mxu0 0.0
        %2530 = vmatprep.subr.mxu0 0.0
        %2531 = vmatpush1.msra.mxu0 0.0
        %2532 = vmatprep.subr.mxu0 0.0
        %2533 = vmatpush1.msra.mxu0 0.0
        %2534 = vmatprep.subr.mxu0 0.0
        %2535 = vmatpush1.msra.mxu0 0.0
        %2536 = vmatprep.subr.mxu0 0.0
        %2537 = vmatpush1.msra.mxu0 0.0
        %2538 = vmatprep.subr.mxu0 0.0
        %2539 = vmatpush1.msra.mxu0 0.0
        %2540 = vmatprep.subr.mxu0 0.0
        %2541 = vmatpush1.msra.mxu0 0.0
        %2542 = vmatprep.subr.mxu0 0.0
        %2543 = vmatpush1.msra.mxu0 0.0
        %2544 = vmatprep.subr.mxu0 0.0
        %2545 = vmatpush1.msra.mxu0 0.0
        %2546 = vmatprep.mubr.f32.mxu0 0.0
        %2547 = vmatmul.mubr.f32.gmra.mrb[0].mxu0 %v2480
        %v2548 = vpop.f32.mrb[0].mxu0
        %v2549 = vadd.f32 0.0, %v2548
        %v2550 = vpop.f32.mrb[0].mxu0
        %2551 = vdwg.mxu0
        %v2552 = vadd.f32 %v2471, %v2549
        %v2553 = vld [vmem:[%s2474 + $0x1] sm:$0xf]
        %s2554 = scalar_lea.vmem %s5, 64
        %v2555 = vld [vmem:[%s2554] sm:$0xff]
        %v2556 = vld [vmem:[%s2554 + $0x8] sm:$0xff]
        %v2558 = vsel %vm737, %v2553, 0
        %2560 = vmatprep.subr.mxu0 0.0
        %2561 = vmatpush1.msra.mxu0 %v2555
        %2562 = vmatprep.subr.mxu0 0.0
        %2563 = vmatpush1.msra.mxu0 %v2556
        %2564 = vmatprep.subr.mxu0 0.0
        %2565 = vmatpush1.msra.mxu0 0.0
        %2566 = vmatprep.subr.mxu0 0.0
        %2567 = vmatpush1.msra.mxu0 0.0
        %2568 = vmatprep.subr.mxu0 0.0
        %2569 = vmatpush1.msra.mxu0 0.0
        %2570 = vmatprep.subr.mxu0 0.0
        %2571 = vmatpush1.msra.mxu0 0.0
        %2572 = vmatprep.subr.mxu0 0.0
        %2573 = vmatpush1.msra.mxu0 0.0
        %2574 = vmatprep.subr.mxu0 0.0
        %2575 = vmatpush1.msra.mxu0 0.0
        %2576 = vmatprep.subr.mxu0 0.0
        %2577 = vmatpush1.msra.mxu0 0.0
        %2578 = vmatprep.subr.mxu0 0.0
        %2579 = vmatpush1.msra.mxu0 0.0
        %2580 = vmatprep.subr.mxu0 0.0
        %2581 = vmatpush1.msra.mxu0 0.0
        %2582 = vmatprep.subr.mxu0 0.0
        %2583 = vmatpush1.msra.mxu0 0.0
        %2584 = vmatprep.subr.mxu0 0.0
        %2585 = vmatpush1.msra.mxu0 0.0
        %2586 = vmatprep.subr.mxu0 0.0
        %2587 = vmatpush1.msra.mxu0 0.0
        %2588 = vmatprep.subr.mxu0 0.0
        %2589 = vmatpush1.msra.mxu0 0.0
        %2590 = vmatprep.subr.mxu0 0.0
        %2591 = vmatpush1.msra.mxu0 0.0
        %2592 = vmatprep.subr.mxu0 0.0
        %2593 = vmatpush1.msra.mxu0 0.0
        %2594 = vmatprep.subr.mxu0 0.0
        %2595 = vmatpush1.msra.mxu0 0.0
        %2596 = vmatprep.subr.mxu0 0.0
        %2597 = vmatpush1.msra.mxu0 0.0
        %2598 = vmatprep.subr.mxu0 0.0
        %2599 = vmatpush1.msra.mxu0 0.0
        %2600 = vmatprep.subr.mxu0 0.0
        %2601 = vmatpush1.msra.mxu0 0.0
        %2602 = vmatprep.subr.mxu0 0.0
        %2603 = vmatpush1.msra.mxu0 0.0
        %2604 = vmatprep.subr.mxu0 0.0
        %2605 = vmatpush1.msra.mxu0 0.0
        %2606 = vmatprep.subr.mxu0 0.0
        %2607 = vmatpush1.msra.mxu0 0.0
        %2608 = vmatprep.subr.mxu0 0.0
        %2609 = vmatpush1.msra.mxu0 0.0
        %2610 = vmatprep.subr.mxu0 0.0
        %2611 = vmatpush1.msra.mxu0 0.0
        %2612 = vmatprep.subr.mxu0 0.0
        %2613 = vmatpush1.msra.mxu0 0.0
        %2614 = vmatprep.subr.mxu0 0.0
        %2615 = vmatpush1.msra.mxu0 0.0
        %2616 = vmatprep.subr.mxu0 0.0
        %2617 = vmatpush1.msra.mxu0 0.0
        %2618 = vmatprep.subr.mxu0 0.0
        %2619 = vmatpush1.msra.mxu0 0.0
        %2620 = vmatprep.subr.mxu0 0.0
        %2621 = vmatpush1.msra.mxu0 0.0
        %2622 = vmatprep.subr.mxu0 0.0
        %2623 = vmatpush1.msra.mxu0 0.0
        %2624 = vmatprep.mubr.f32.mxu0 0.0
        %2625 = vmatmul.mubr.f32.gmra.mrb[0].mxu0 %v2558
        %v2626 = vpop.f32.mrb[0].mxu0
        %v2627 = vadd.f32 0.0, %v2626
        %v2628 = vpop.f32.mrb[0].mxu0
        %2629 = vdwg.mxu0
        %v2630 = vadd.f32 %v2552, %v2627
        %v2631 = vld [vmem:[%s2474 + $0x2] sm:$0xf]
        %s2632 = scalar_lea.vmem %s5, 80
        %v2633 = vld [vmem:[%s2632] sm:$0xff]
        %v2634 = vld [vmem:[%s2632 + $0x8] sm:$0xff]
        %v2636 = vsel %vm737, %v2631, 0
        %2638 = vmatprep.subr.mxu0 0.0
        %2639 = vmatpush1.msra.mxu0 %v2633
        %2640 = vmatprep.subr.mxu0 0.0
        %2641 = vmatpush1.msra.mxu0 %v2634
        %2642 = vmatprep.subr.mxu0 0.0
        %2643 = vmatpush1.msra.mxu0 0.0
        %2644 = vmatprep.subr.mxu0 0.0
        %2645 = vmatpush1.msra.mxu0 0.0
        %2646 = vmatprep.subr.mxu0 0.0
        %2647 = vmatpush1.msra.mxu0 0.0
        %2648 = vmatprep.subr.mxu0 0.0
        %2649 = vmatpush1.msra.mxu0 0.0
        %2650 = vmatprep.subr.mxu0 0.0
        %2651 = vmatpush1.msra.mxu0 0.0
        %2652 = vmatprep.subr.mxu0 0.0
        %2653 = vmatpush1.msra.mxu0 0.0
        %2654 = vmatprep.subr.mxu0 0.0
        %2655 = vmatpush1.msra.mxu0 0.0
        %2656 = vmatprep.subr.mxu0 0.0
        %2657 = vmatpush1.msra.mxu0 0.0
        %2658 = vmatprep.subr.mxu0 0.0
        %2659 = vmatpush1.msra.mxu0 0.0
        %2660 = vmatprep.subr.mxu0 0.0
        %2661 = vmatpush1.msra.mxu0 0.0
        %2662 = vmatprep.subr.mxu0 0.0
        %2663 = vmatpush1.msra.mxu0 0.0
        %2664 = vmatprep.subr.mxu0 0.0
        %2665 = vmatpush1.msra.mxu0 0.0
        %2666 = vmatprep.subr.mxu0 0.0
        %2667 = vmatpush1.msra.mxu0 0.0
        %2668 = vmatprep.subr.mxu0 0.0
        %2669 = vmatpush1.msra.mxu0 0.0
        %2670 = vmatprep.subr.mxu0 0.0
        %2671 = vmatpush1.msra.mxu0 0.0
        %2672 = vmatprep.subr.mxu0 0.0
        %2673 = vmatpush1.msra.mxu0 0.0
        %2674 = vmatprep.subr.mxu0 0.0
        %2675 = vmatpush1.msra.mxu0 0.0
        %2676 = vmatprep.subr.mxu0 0.0
        %2677 = vmatpush1.msra.mxu0 0.0
        %2678 = vmatprep.subr.mxu0 0.0
        %2679 = vmatpush1.msra.mxu0 0.0
        %2680 = vmatprep.subr.mxu0 0.0
        %2681 = vmatpush1.msra.mxu0 0.0
        %2682 = vmatprep.subr.mxu0 0.0
        %2683 = vmatpush1.msra.mxu0 0.0
        %2684 = vmatprep.subr.mxu0 0.0
        %2685 = vmatpush1.msra.mxu0 0.0
        %2686 = vmatprep.subr.mxu0 0.0
        %2687 = vmatpush1.msra.mxu0 0.0
        %2688 = vmatprep.subr.mxu0 0.0
        %2689 = vmatpush1.msra.mxu0 0.0
        %2690 = vmatprep.subr.mxu0 0.0
        %2691 = vmatpush1.msra.mxu0 0.0
        %2692 = vmatprep.subr.mxu0 0.0
        %2693 = vmatpush1.msra.mxu0 0.0
        %2694 = vmatprep.subr.mxu0 0.0
        %2695 = vmatpush1.msra.mxu0 0.0
        %2696 = vmatprep.subr.mxu0 0.0
        %2697 = vmatpush1.msra.mxu0 0.0
        %2698 = vmatprep.subr.mxu0 0.0
        %2699 = vmatpush1.msra.mxu0 0.0
        %2700 = vmatprep.subr.mxu0 0.0
        %2701 = vmatpush1.msra.mxu0 0.0
        %2702 = vmatprep.mubr.f32.mxu0 0.0
        %2703 = vmatmul.mubr.f32.gmra.mrb[0].mxu0 %v2636
        %v2704 = vpop.f32.mrb[0].mxu0
        %v2705 = vadd.f32 0.0, %v2704
        %v2706 = vpop.f32.mrb[0].mxu0
        %2707 = vdwg.mxu0
        %v2708 = vadd.f32 %v2630, %v2705
        %s2709 = sadd.s32 %s2225, 2
        %s2710 = smul.u32 %s2709, 8
        %s2711 = scalar_lea.vmem [#allocation6], %s2710
        %v2712 = vld [vmem:[%s2711] sm:$0xf]
        %s2713 = scalar_lea.vmem %s5, 96
        %v2714 = vld [vmem:[%s2713] sm:$0xff]
        %v2715 = vld [vmem:[%s2713 + $0x8] sm:$0xff]
        %v2717 = vsel %vm737, %v2712, 0
        %2719 = vmatprep.subr.mxu0 0.0
        %2720 = vmatpush1.msra.mxu0 %v2714
        %2721 = vmatprep.subr.mxu0 0.0
        %2722 = vmatpush1.msra.mxu0 %v2715
        %2723 = vmatprep.subr.mxu0 0.0
        %2724 = vmatpush1.msra.mxu0 0.0
        %2725 = vmatprep.subr.mxu0 0.0
        %2726 = vmatpush1.msra.mxu0 0.0
        %2727 = vmatprep.subr.mxu0 0.0
        %2728 = vmatpush1.msra.mxu0 0.0
        %2729 = vmatprep.subr.mxu0 0.0
        %2730 = vmatpush1.msra.mxu0 0.0
        %2731 = vmatprep.subr.mxu0 0.0
        %2732 = vmatpush1.msra.mxu0 0.0
        %2733 = vmatprep.subr.mxu0 0.0
        %2734 = vmatpush1.msra.mxu0 0.0
        %2735 = vmatprep.subr.mxu0 0.0
        %2736 = vmatpush1.msra.mxu0 0.0
        %2737 = vmatprep.subr.mxu0 0.0
        %2738 = vmatpush1.msra.mxu0 0.0
        %2739 = vmatprep.subr.mxu0 0.0
        %2740 = vmatpush1.msra.mxu0 0.0
        %2741 = vmatprep.subr.mxu0 0.0
        %2742 = vmatpush1.msra.mxu0 0.0
        %2743 = vmatprep.subr.mxu0 0.0
        %2744 = vmatpush1.msra.mxu0 0.0
        %2745 = vmatprep.subr.mxu0 0.0
        %2746 = vmatpush1.msra.mxu0 0.0
        %2747 = vmatprep.subr.mxu0 0.0
        %2748 = vmatpush1.msra.mxu0 0.0
        %2749 = vmatprep.subr.mxu0 0.0
        %2750 = vmatpush1.msra.mxu0 0.0
        %2751 = vmatprep.subr.mxu0 0.0
        %2752 = vmatpush1.msra.mxu0 0.0
        %2753 = vmatprep.subr.mxu0 0.0
        %2754 = vmatpush1.msra.mxu0 0.0
        %2755 = vmatprep.subr.mxu0 0.0
        %2756 = vmatpush1.msra.mxu0 0.0
        %2757 = vmatprep.subr.mxu0 0.0
        %2758 = vmatpush1.msra.mxu0 0.0
        %2759 = vmatprep.subr.mxu0 0.0
        %2760 = vmatpush1.msra.mxu0 0.0
        %2761 = vmatprep.subr.mxu0 0.0
        %2762 = vmatpush1.msra.mxu0 0.0
        %2763 = vmatprep.subr.mxu0 0.0
        %2764 = vmatpush1.msra.mxu0 0.0
        %2765 = vmatprep.subr.mxu0 0.0
        %2766 = vmatpush1.msra.mxu0 0.0
        %2767 = vmatprep.subr.mxu0 0.0
        %2768 = vmatpush1.msra.mxu0 0.0
        %2769 = vmatprep.subr.mxu0 0.0
        %2770 = vmatpush1.msra.mxu0 0.0
        %2771 = vmatprep.subr.mxu0 0.0
        %2772 = vmatpush1.msra.mxu0 0.0
        %2773 = vmatprep.subr.mxu0 0.0
        %2774 = vmatpush1.msra.mxu0 0.0
        %2775 = vmatprep.subr.mxu0 0.0
        %2776 = vmatpush1.msra.mxu0 0.0
        %2777 = vmatprep.subr.mxu0 0.0
        %2778 = vmatpush1.msra.mxu0 0.0
        %2779 = vmatprep.subr.mxu0 0.0
        %2780 = vmatpush1.msra.mxu0 0.0
        %2781 = vmatprep.subr.mxu0 0.0
        %2782 = vmatpush1.msra.mxu0 0.0
        %2783 = vmatprep.mubr.f32.mxu0 0.0
        %2784 = vmatmul.mubr.f32.gmra.mrb[0].mxu0 %v2717
        %v2785 = vpop.f32.mrb[0].mxu0
        %v2786 = vadd.f32 0.0, %v2785
        %v2787 = vpop.f32.mrb[0].mxu0
        %2788 = vdwg.mxu0
        %v2789 = vadd.f32 %v2708, %v2786
        %v2790 = vld [vmem:[%s2711 + $0x1] sm:$0xf]
        %s2791 = scalar_lea.vmem %s5, 112
        %v2792 = vld [vmem:[%s2791] sm:$0xff]
        %v2793 = vld [vmem:[%s2791 + $0x8] sm:$0xff]
        %v2795 = vsel %vm737, %v2790, 0
        %2797 = vmatprep.subr.mxu0 0.0
        %2798 = vmatpush1.msra.mxu0 %v2792
        %2799 = vmatprep.subr.mxu0 0.0
        %2800 = vmatpush1.msra.mxu0 %v2793
        %2801 = vmatprep.subr.mxu0 0.0
        %2802 = vmatpush1.msra.mxu0 0.0
        %2803 = vmatprep.subr.mxu0 0.0
        %2804 = vmatpush1.msra.mxu0 0.0
        %2805 = vmatprep.subr.mxu0 0.0
        %2806 = vmatpush1.msra.mxu0 0.0
        %2807 = vmatprep.subr.mxu0 0.0
        %2808 = vmatpush1.msra.mxu0 0.0
        %2809 = vmatprep.subr.mxu0 0.0
        %2810 = vmatpush1.msra.mxu0 0.0
        %2811 = vmatprep.subr.mxu0 0.0
        %2812 = vmatpush1.msra.mxu0 0.0
        %2813 = vmatprep.subr.mxu0 0.0
        %2814 = vmatpush1.msra.mxu0 0.0
        %2815 = vmatprep.subr.mxu0 0.0
        %2816 = vmatpush1.msra.mxu0 0.0
        %2817 = vmatprep.subr.mxu0 0.0
        %2818 = vmatpush1.msra.mxu0 0.0
        %2819 = vmatprep.subr.mxu0 0.0
        %2820 = vmatpush1.msra.mxu0 0.0
        %2821 = vmatprep.subr.mxu0 0.0
        %2822 = vmatpush1.msra.mxu0 0.0
        %2823 = vmatprep.subr.mxu0 0.0
        %2824 = vmatpush1.msra.mxu0 0.0
        %2825 = vmatprep.subr.mxu0 0.0
        %2826 = vmatpush1.msra.mxu0 0.0
        %2827 = vmatprep.subr.mxu0 0.0
        %2828 = vmatpush1.msra.mxu0 0.0
        %2829 = vmatprep.subr.mxu0 0.0
        %2830 = vmatpush1.msra.mxu0 0.0
        %2831 = vmatprep.subr.mxu0 0.0
        %2832 = vmatpush1.msra.mxu0 0.0
        %2833 = vmatprep.subr.mxu0 0.0
        %2834 = vmatpush1.msra.mxu0 0.0
        %2835 = vmatprep.subr.mxu0 0.0
        %2836 = vmatpush1.msra.mxu0 0.0
        %2837 = vmatprep.subr.mxu0 0.0
        %2838 = vmatpush1.msra.mxu0 0.0
        %2839 = vmatprep.subr.mxu0 0.0
        %2840 = vmatpush1.msra.mxu0 0.0
        %2841 = vmatprep.subr.mxu0 0.0
        %2842 = vmatpush1.msra.mxu0 0.0
        %2843 = vmatprep.subr.mxu0 0.0
        %2844 = vmatpush1.msra.mxu0 0.0
        %2845 = vmatprep.subr.mxu0 0.0
        %2846 = vmatpush1.msra.mxu0 0.0
        %2847 = vmatprep.subr.mxu0 0.0
        %2848 = vmatpush1.msra.mxu0 0.0
        %2849 = vmatprep.subr.mxu0 0.0
        %2850 = vmatpush1.msra.mxu0 0.0
        %2851 = vmatprep.subr.mxu0 0.0
        %2852 = vmatpush1.msra.mxu0 0.0
        %2853 = vmatprep.subr.mxu0 0.0
        %2854 = vmatpush1.msra.mxu0 0.0
        %2855 = vmatprep.subr.mxu0 0.0
        %2856 = vmatpush1.msra.mxu0 0.0
        %2857 = vmatprep.subr.mxu0 0.0
        %2858 = vmatpush1.msra.mxu0 0.0
        %2859 = vmatprep.subr.mxu0 0.0
        %2860 = vmatpush1.msra.mxu0 0.0
        %2861 = vmatprep.mubr.f32.mxu0 0.0
        %2862 = vmatmul.mubr.f32.gmra.mrb[0].mxu0 %v2795
        %v2863 = vpop.f32.mrb[0].mxu0
        %v2864 = vadd.f32 0.0, %v2863
        %v2865 = vpop.f32.mrb[0].mxu0
        %2866 = vdwg.mxu0
        %v2867 = vadd.f32 %v2789, %v2864
        %v2868 = vld [vmem:[%s2711 + $0x2] sm:$0xf]
        %s2869 = scalar_lea.vmem %s5, 128
        %v2870 = vld [vmem:[%s2869] sm:$0xff]
        %v2871 = vld [vmem:[%s2869 + $0x8] sm:$0xff]
        %v2873 = vsel %vm737, %v2868, 0
        %2875 = vmatprep.subr.mxu0 0.0
        %2876 = vmatpush1.msra.mxu0 %v2870
        %2877 = vmatprep.subr.mxu0 0.0
        %2878 = vmatpush1.msra.mxu0 %v2871
        %2879 = vmatprep.subr.mxu0 0.0
        %2880 = vmatpush1.msra.mxu0 0.0
        %2881 = vmatprep.subr.mxu0 0.0
        %2882 = vmatpush1.msra.mxu0 0.0
        %2883 = vmatprep.subr.mxu0 0.0
        %2884 = vmatpush1.msra.mxu0 0.0
        %2885 = vmatprep.subr.mxu0 0.0
        %2886 = vmatpush1.msra.mxu0 0.0
        %2887 = vmatprep.subr.mxu0 0.0
        %2888 = vmatpush1.msra.mxu0 0.0
        %2889 = vmatprep.subr.mxu0 0.0
        %2890 = vmatpush1.msra.mxu0 0.0
        %2891 = vmatprep.subr.mxu0 0.0
        %2892 = vmatpush1.msra.mxu0 0.0
        %2893 = vmatprep.subr.mxu0 0.0
        %2894 = vmatpush1.msra.mxu0 0.0
        %2895 = vmatprep.subr.mxu0 0.0
        %2896 = vmatpush1.msra.mxu0 0.0
        %2897 = vmatprep.subr.mxu0 0.0
        %2898 = vmatpush1.msra.mxu0 0.0
        %2899 = vmatprep.subr.mxu0 0.0
        %2900 = vmatpush1.msra.mxu0 0.0
        %2901 = vmatprep.subr.mxu0 0.0
        %2902 = vmatpush1.msra.mxu0 0.0
        %2903 = vmatprep.subr.mxu0 0.0
        %2904 = vmatpush1.msra.mxu0 0.0
        %2905 = vmatprep.subr.mxu0 0.0
        %2906 = vmatpush1.msra.mxu0 0.0
        %2907 = vmatprep.subr.mxu0 0.0
        %2908 = vmatpush1.msra.mxu0 0.0
        %2909 = vmatprep.subr.mxu0 0.0
        %2910 = vmatpush1.msra.mxu0 0.0
        %2911 = vmatprep.subr.mxu0 0.0
        %2912 = vmatpush1.msra.mxu0 0.0
        %2913 = vmatprep.subr.mxu0 0.0
        %2914 = vmatpush1.msra.mxu0 0.0
        %2915 = vmatprep.subr.mxu0 0.0
        %2916 = vmatpush1.msra.mxu0 0.0
        %2917 = vmatprep.subr.mxu0 0.0
        %2918 = vmatpush1.msra.mxu0 0.0
        %2919 = vmatprep.subr.mxu0 0.0
        %2920 = vmatpush1.msra.mxu0 0.0
        %2921 = vmatprep.subr.mxu0 0.0
        %2922 = vmatpush1.msra.mxu0 0.0
        %2923 = vmatprep.subr.mxu0 0.0
        %2924 = vmatpush1.msra.mxu0 0.0
        %2925 = vmatprep.subr.mxu0 0.0
        %2926 = vmatpush1.msra.mxu0 0.0
        %2927 = vmatprep.subr.mxu0 0.0
        %2928 = vmatpush1.msra.mxu0 0.0
        %2929 = vmatprep.subr.mxu0 0.0
        %2930 = vmatpush1.msra.mxu0 0.0
        %2931 = vmatprep.subr.mxu0 0.0
        %2932 = vmatpush1.msra.mxu0 0.0
        %2933 = vmatprep.subr.mxu0 0.0
        %2934 = vmatpush1.msra.mxu0 0.0
        %2935 = vmatprep.subr.mxu0 0.0
        %2936 = vmatpush1.msra.mxu0 0.0
        %2937 = vmatprep.subr.mxu0 0.0
        %2938 = vmatpush1.msra.mxu0 0.0
        %2939 = vmatprep.mubr.f32.mxu0 0.0
        %2940 = vmatmul.mubr.f32.gmra.mrb[0].mxu0 %v2873
        %v2941 = vpop.f32.mrb[0].mxu0
        %v2942 = vadd.f32 0.0, %v2941
        %v2943 = vpop.f32.mrb[0].mxu0
        %2944 = vdwg.mxu0
        %v2945 = vadd.f32 %v2867, %v2942
        %v2946 = vmax.f32 %v2945, 0.0
        %s2947 = smul.u32 %s2225, 4
        %s2948 = scalar_lea.vmem [#allocation7], %s2947
        %vm2949 = vcmask 257024
        %2950 = vst.msk [vmem:[%s2948] sm:$0xf] %vm2949, %v2946
      $region129: #{unet_forward.1} parent=95 // loop_footer
        %s2229 = sadd.s32 1, %s2225
      $region130: #{unet_forward.1} parent=95 // loop_footer_branch
        %2224 = sbr.rel target = $region126
      $region131: #{unet_forward.1} parent=95 // loop_exit
        _
      %v2951 = vld [vmem:[%s7] sm:$0xff]
      %v2952 = vld [vmem:[%s7 + $0x8] sm:$0xff]
      %v2953 = vld [vmem:[%s7 + $0x10] sm:$0xff]
      %v2954 = vld [vmem:[%s7 + $0x18] sm:$0xff]
      %v2955 = vld [vmem:[%s8] sm:$0x1]
      loop: start=0, step=1, limit=4
      $region132: #{unet_forward.1} parent=95 // loop_pre_header
        _
      $region133: #{unet_forward.1} parent=95 // loop_header
        %s2957 = sphi 0, %s2961
        %p2958 = scmp.ge.s32.totalorder %s2957, 4
      $region134: #{unet_forward.1} parent=95 // loop_header_branch
        %2960 = sbr.rel (%p2958) target = $region138
      $region135: #{unet_forward.1} parent=95 // loop_body
        %s2962 = smul.u32 %s2957, 4
        %s2963 = scalar_lea.vmem [#allocation7], %s2962
        %v2964 = vld [vmem:[%s2963] sm:$0xf]
        %v2966 = vlaneseq
        %v2967 = vshrl.u32 %v2966, 7
        %v2968 = vsub.s32 0, %v2967
        %v2969 = vrot.slane %v2955, %v2968
        %vm2971 = vcmask 261120
        %v2973 = vsel %vm2971, %v2964, 0
        %2975 = vmatprep.subr.mxu0 0.0
        %2976 = vmatpush1.msra.mxu0 %v2951
        %2977 = vmatprep.subr.mxu0 0.0
        %2978 = vmatpush1.msra.mxu0 %v2952
        %2979 = vmatprep.subr.mxu0 0.0
        %2980 = vmatpush1.msra.mxu0 %v2953
        %2981 = vmatprep.subr.mxu0 0.0
        %2982 = vmatpush1.msra.mxu0 %v2954
        %2983 = vmatprep.subr.mxu0 0.0
        %2984 = vmatpush1.msra.mxu0 0.0
        %2985 = vmatprep.subr.mxu0 0.0
        %2986 = vmatpush1.msra.mxu0 0.0
        %2987 = vmatprep.subr.mxu0 0.0
        %2988 = vmatpush1.msra.mxu0 0.0
        %2989 = vmatprep.subr.mxu0 0.0
        %2990 = vmatpush1.msra.mxu0 0.0
        %2991 = vmatprep.subr.mxu0 0.0
        %2992 = vmatpush1.msra.mxu0 0.0
        %2993 = vmatprep.subr.mxu0 0.0
        %2994 = vmatpush1.msra.mxu0 0.0
        %2995 = vmatprep.subr.mxu0 0.0
        %2996 = vmatpush1.msra.mxu0 0.0
        %2997 = vmatprep.subr.mxu0 0.0
        %2998 = vmatpush1.msra.mxu0 0.0
        %2999 = vmatprep.subr.mxu0 0.0
        %3000 = vmatpush1.msra.mxu0 0.0
        %3001 = vmatprep.subr.mxu0 0.0
        %3002 = vmatpush1.msra.mxu0 0.0
        %3003 = vmatprep.subr.mxu0 0.0
        %3004 = vmatpush1.msra.mxu0 0.0
        %3005 = vmatprep.subr.mxu0 0.0
        %3006 = vmatpush1.msra.mxu0 0.0
        %3007 = vmatprep.subr.mxu0 0.0
        %3008 = vmatpush1.msra.mxu0 0.0
        %3009 = vmatprep.subr.mxu0 0.0
        %3010 = vmatpush1.msra.mxu0 0.0
        %3011 = vmatprep.subr.mxu0 0.0
        %3012 = vmatpush1.msra.mxu0 0.0
        %3013 = vmatprep.subr.mxu0 0.0
        %3014 = vmatpush1.msra.mxu0 0.0
        %3015 = vmatprep.subr.mxu0 0.0
        %3016 = vmatpush1.msra.mxu0 0.0
        %3017 = vmatprep.subr.mxu0 0.0
        %3018 = vmatpush1.msra.mxu0 0.0
        %3019 = vmatprep.subr.mxu0 0.0
        %3020 = vmatpush1.msra.mxu0 0.0
        %3021 = vmatprep.subr.mxu0 0.0
        %3022 = vmatpush1.msra.mxu0 0.0
        %3023 = vmatprep.subr.mxu0 0.0
        %3024 = vmatpush1.msra.mxu0 0.0
        %3025 = vmatprep.subr.mxu0 0.0
        %3026 = vmatpush1.msra.mxu0 0.0
        %3027 = vmatprep.subr.mxu0 0.0
        %3028 = vmatpush1.msra.mxu0 0.0
        %3029 = vmatprep.subr.mxu0 0.0
        %3030 = vmatpush1.msra.mxu0 0.0
        %3031 = vmatprep.subr.mxu0 0.0
        %3032 = vmatpush1.msra.mxu0 0.0
        %3033 = vmatprep.subr.mxu0 0.0
        %3034 = vmatpush1.msra.mxu0 0.0
        %3035 = vmatprep.subr.mxu0 0.0
        %3036 = vmatpush1.msra.mxu0 0.0
        %3037 = vmatprep.subr.mxu0 0.0
        %3038 = vmatpush1.msra.mxu0 0.0
        %3039 = vmatprep.mubr.f32.mxu0 0.0
        %3040 = vmatmul.mubr.f32.gmra.mrb[0].mxu0 %v2973
        %v3041 = vpop.f32.mrb[0].mxu0
        %v3042 = vadd.f32 %v2969, %v3041
        %v3043 = vpop.f32.mrb[0].mxu0
        %3044 = vdwg.mxu0
        %vm3045 = vcmask 31744
        %v3047 = vsel %vm3045, %v855, 0
        %vm3049 = vcmask 1043456
        %v3051 = vsel %vm3049, %v3042, 0
        %3053 = vmatprep.subr.mxu0 0.0
        %3054 = vmatpush1.msra.mxu0 %v3051
        %3055 = vmatprep.subr.mxu0 0.0
        %3056 = vmatpush1.msra.mxu0 0.0
        %3057 = vmatprep.subr.mxu0 0.0
        %3058 = vmatpush1.msra.mxu0 0.0
        %3059 = vmatprep.subr.mxu0 0.0
        %3060 = vmatpush1.msra.mxu0 0.0
        %3061 = vmatprep.subr.mxu0 0.0
        %3062 = vmatpush1.msra.mxu0 0.0
        %3063 = vmatprep.subr.mxu0 0.0
        %3064 = vmatpush1.msra.mxu0 0.0
        %3065 = vmatprep.subr.mxu0 0.0
        %3066 = vmatpush1.msra.mxu0 0.0
        %3067 = vmatprep.subr.mxu0 0.0
        %3068 = vmatpush1.msra.mxu0 0.0
        %3069 = vmatprep.subr.mxu0 0.0
        %3070 = vmatpush1.msra.mxu0 0.0
        %3071 = vmatprep.subr.mxu0 0.0
        %3072 = vmatpush1.msra.mxu0 0.0
        %3073 = vmatprep.subr.mxu0 0.0
        %3074 = vmatpush1.msra.mxu0 0.0
        %3075 = vmatprep.subr.mxu0 0.0
        %3076 = vmatpush1.msra.mxu0 0.0
        %3077 = vmatprep.subr.mxu0 0.0
        %3078 = vmatpush1.msra.mxu0 0.0
        %3079 = vmatprep.subr.mxu0 0.0
        %3080 = vmatpush1.msra.mxu0 0.0
        %3081 = vmatprep.subr.mxu0 0.0
        %3082 = vmatpush1.msra.mxu0 0.0
        %3083 = vmatprep.subr.mxu0 0.0
        %3084 = vmatpush1.msra.mxu0 0.0
        %3085 = vmatprep.subr.mxu0 0.0
        %3086 = vmatpush1.msra.mxu0 0.0
        %3087 = vmatprep.subr.mxu0 0.0
        %3088 = vmatpush1.msra.mxu0 0.0
        %3089 = vmatprep.subr.mxu0 0.0
        %3090 = vmatpush1.msra.mxu0 0.0
        %3091 = vmatprep.subr.mxu0 0.0
        %3092 = vmatpush1.msra.mxu0 0.0
        %3093 = vmatprep.subr.mxu0 0.0
        %3094 = vmatpush1.msra.mxu0 0.0
        %3095 = vmatprep.subr.mxu0 0.0
        %3096 = vmatpush1.msra.mxu0 0.0
        %3097 = vmatprep.subr.mxu0 0.0
        %3098 = vmatpush1.msra.mxu0 0.0
        %3099 = vmatprep.subr.mxu0 0.0
        %3100 = vmatpush1.msra.mxu0 0.0
        %3101 = vmatprep.subr.mxu0 0.0
        %3102 = vmatpush1.msra.mxu0 0.0
        %3103 = vmatprep.subr.mxu0 0.0
        %3104 = vmatpush1.msra.mxu0 0.0
        %3105 = vmatprep.subr.mxu0 0.0
        %3106 = vmatpush1.msra.mxu0 0.0
        %3107 = vmatprep.subr.mxu0 0.0
        %3108 = vmatpush1.msra.mxu0 0.0
        %3109 = vmatprep.subr.mxu0 0.0
        %3110 = vmatpush1.msra.mxu0 0.0
        %3111 = vmatprep.subr.mxu0 0.0
        %3112 = vmatpush1.msra.mxu0 0.0
        %3113 = vmatprep.subr.mxu0 0.0
        %3114 = vmatpush1.msra.mxu0 0.0
        %3115 = vmatprep.subr.mxu0 0.0
        %3116 = vmatpush1.msra.mxu0 0.0
        %3117 = vmatprep.mubr.f32.mxu0 0.0
        %3118 = vmatmul.mubr.f32.gmra.mrb[0].mxu0 %v3047
        %v3119 = vpop.f32.mrb[0].mxu0
        %v3120 = vadd.f32 0.0, %v3119
        %v3121 = vpop.f32.mrb[0].mxu0
        %3122 = vdwg.mxu0
        %s3123 = smul.u32 %s2957, 2
        %s3124 = sadd.s32 %s3123, 1
        %s3125 = smul.u32 %s3124, 16
        %s3126 = scalar_lea.vmem [#allocation8], %s3125
        %3127 = vst.msk [vmem:[%s3126 + $0x1] sm:$0xff] %vm737, %v3120
        %s3128 = sadd.s32 %s3123, 2
        %s3129 = smul.u32 %s3128, 16
        %s3130 = scalar_lea.vmem [#allocation8], %s3129
        %3131 = vst.msk [vmem:[%s3130 + $0x1] sm:$0xff] %vm737, %v3120
      $region136: #{unet_forward.1} parent=95 // loop_footer
        %s2961 = sadd.s32 1, %s2957
      $region137: #{unet_forward.1} parent=95 // loop_footer_branch
        %2956 = sbr.rel target = $region133
      $region138: #{unet_forward.1} parent=95 // loop_exit
        _
      %v3132 = vld [vmem:[%s11] sm:$0x1]
      loop: start=0, step=1, limit=8
      $region139: #{unet_forward.1} parent=95 // loop_pre_header
        _
      $region140: #{unet_forward.1} parent=95 // loop_header
        %s3134 = sphi 0, %s3138
        %p3135 = scmp.ge.s32.totalorder %s3134, 8
      $region141: #{unet_forward.1} parent=95 // loop_header_branch
        %3137 = sbr.rel (%p3135) target = $region145
      $region142: #{unet_forward.1} parent=95 // loop_body
        %v3140 = vlaneseq
        %v3141 = vshrl.u32 %v3140, 7
        %v3142 = vsub.s32 0, %v3141
        %v3143 = vrot.slane %v3132, %v3142
        %v3145 = vadd.f32 %v3143, 0.0
        %s3146 = smul.u32 %s3134, 16
        %s3147 = scalar_lea.vmem [#allocation8], %s3146
        %v3148 = vld [vmem:[%s3147] sm:$0xff]
        %v3149 = vld [vmem:[%s9] sm:$0xff]
        %v3150 = vld [vmem:[%s9 + $0x8] sm:$0xff]
        %v3152 = vsel %vm737, %v3148, 0
        %3154 = vmatprep.subr.mxu0 0.0
        %3155 = vmatpush1.msra.mxu0 %v3149
        %3156 = vmatprep.subr.mxu0 0.0
        %3157 = vmatpush1.msra.mxu0 %v3150
        %3158 = vmatprep.subr.mxu0 0.0
        %3159 = vmatpush1.msra.mxu0 0.0
        %3160 = vmatprep.subr.mxu0 0.0
        %3161 = vmatpush1.msra.mxu0 0.0
        %3162 = vmatprep.subr.mxu0 0.0
        %3163 = vmatpush1.msra.mxu0 0.0
        %3164 = vmatprep.subr.mxu0 0.0
        %3165 = vmatpush1.msra.mxu0 0.0
        %3166 = vmatprep.subr.mxu0 0.0
        %3167 = vmatpush1.msra.mxu0 0.0
        %3168 = vmatprep.subr.mxu0 0.0
        %3169 = vmatpush1.msra.mxu0 0.0
        %3170 = vmatprep.subr.mxu0 0.0
        %3171 = vmatpush1.msra.mxu0 0.0
        %3172 = vmatprep.subr.mxu0 0.0
        %3173 = vmatpush1.msra.mxu0 0.0
        %3174 = vmatprep.subr.mxu0 0.0
        %3175 = vmatpush1.msra.mxu0 0.0
        %3176 = vmatprep.subr.mxu0 0.0
        %3177 = vmatpush1.msra.mxu0 0.0
        %3178 = vmatprep.subr.mxu0 0.0
        %3179 = vmatpush1.msra.mxu0 0.0
        %3180 = vmatprep.subr.mxu0 0.0
        %3181 = vmatpush1.msra.mxu0 0.0
        %3182 = vmatprep.subr.mxu0 0.0
        %3183 = vmatpush1.msra.mxu0 0.0
        %3184 = vmatprep.subr.mxu0 0.0
        %3185 = vmatpush1.msra.mxu0 0.0
        %3186 = vmatprep.subr.mxu0 0.0
        %3187 = vmatpush1.msra.mxu0 0.0
        %3188 = vmatprep.subr.mxu0 0.0
        %3189 = vmatpush1.msra.mxu0 0.0
        %3190 = vmatprep.subr.mxu0 0.0
        %3191 = vmatpush1.msra.mxu0 0.0
        %3192 = vmatprep.subr.mxu0 0.0
        %3193 = vmatpush1.msra.mxu0 0.0
        %3194 = vmatprep.subr.mxu0 0.0
        %3195 = vmatpush1.msra.mxu0 0.0
        %3196 = vmatprep.subr.mxu0 0.0
        %3197 = vmatpush1.msra.mxu0 0.0
        %3198 = vmatprep.subr.mxu0 0.0
        %3199 = vmatpush1.msra.mxu0 0.0
        %3200 = vmatprep.subr.mxu0 0.0
        %3201 = vmatpush1.msra.mxu0 0.0
        %3202 = vmatprep.subr.mxu0 0.0
        %3203 = vmatpush1.msra.mxu0 0.0
        %3204 = vmatprep.subr.mxu0 0.0
        %3205 = vmatpush1.msra.mxu0 0.0
        %3206 = vmatprep.subr.mxu0 0.0
        %3207 = vmatpush1.msra.mxu0 0.0
        %3208 = vmatprep.subr.mxu0 0.0
        %3209 = vmatpush1.msra.mxu0 0.0
        %3210 = vmatprep.subr.mxu0 0.0
        %3211 = vmatpush1.msra.mxu0 0.0
        %3212 = vmatprep.subr.mxu0 0.0
        %3213 = vmatpush1.msra.mxu0 0.0
        %3214 = vmatprep.subr.mxu0 0.0
        %3215 = vmatpush1.msra.mxu0 0.0
        %3216 = vmatprep.subr.mxu0 0.0
        %3217 = vmatpush1.msra.mxu0 0.0
        %3218 = vmatprep.mubr.f32.mxu0 0.0
        %3219 = vmatmul.mubr.f32.gmra.mrb[0].mxu0 %v3152
        %v3220 = vpop.f32.mrb[0].mxu0
        %v3221 = vadd.f32 0.0, %v3220
        %v3222 = vpop.f32.mrb[0].mxu0
        %3223 = vdwg.mxu0
        %v3224 = vadd.f32 %v3145, %v3221
        %v3225 = vld [vmem:[%s3147 + $0x1] sm:$0xff]
        %s3226 = scalar_lea.vmem %s9, 16
        %v3227 = vld [vmem:[%s3226] sm:$0xff]
        %v3228 = vld [vmem:[%s3226 + $0x8] sm:$0xff]
        %v3230 = vsel %vm737, %v3225, 0
        %3232 = vmatprep.subr.mxu0 0.0
        %3233 = vmatpush1.msra.mxu0 %v3227
        %3234 = vmatprep.subr.mxu0 0.0
        %3235 = vmatpush1.msra.mxu0 %v3228
        %3236 = vmatprep.subr.mxu0 0.0
        %3237 = vmatpush1.msra.mxu0 0.0
        %3238 = vmatprep.subr.mxu0 0.0
        %3239 = vmatpush1.msra.mxu0 0.0
        %3240 = vmatprep.subr.mxu0 0.0
        %3241 = vmatpush1.msra.mxu0 0.0
        %3242 = vmatprep.subr.mxu0 0.0
        %3243 = vmatpush1.msra.mxu0 0.0
        %3244 = vmatprep.subr.mxu0 0.0
        %3245 = vmatpush1.msra.mxu0 0.0
        %3246 = vmatprep.subr.mxu0 0.0
        %3247 = vmatpush1.msra.mxu0 0.0
        %3248 = vmatprep.subr.mxu0 0.0
        %3249 = vmatpush1.msra.mxu0 0.0
        %3250 = vmatprep.subr.mxu0 0.0
        %3251 = vmatpush1.msra.mxu0 0.0
        %3252 = vmatprep.subr.mxu0 0.0
        %3253 = vmatpush1.msra.mxu0 0.0
        %3254 = vmatprep.subr.mxu0 0.0
        %3255 = vmatpush1.msra.mxu0 0.0
        %3256 = vmatprep.subr.mxu0 0.0
        %3257 = vmatpush1.msra.mxu0 0.0
        %3258 = vmatprep.subr.mxu0 0.0
        %3259 = vmatpush1.msra.mxu0 0.0
        %3260 = vmatprep.subr.mxu0 0.0
        %3261 = vmatpush1.msra.mxu0 0.0
        %3262 = vmatprep.subr.mxu0 0.0
        %3263 = vmatpush1.msra.mxu0 0.0
        %3264 = vmatprep.subr.mxu0 0.0
        %3265 = vmatpush1.msra.mxu0 0.0
        %3266 = vmatprep.subr.mxu0 0.0
        %3267 = vmatpush1.msra.mxu0 0.0
        %3268 = vmatprep.subr.mxu0 0.0
        %3269 = vmatpush1.msra.mxu0 0.0
        %3270 = vmatprep.subr.mxu0 0.0
        %3271 = vmatpush1.msra.mxu0 0.0
        %3272 = vmatprep.subr.mxu0 0.0
        %3273 = vmatpush1.msra.mxu0 0.0
        %3274 = vmatprep.subr.mxu0 0.0
        %3275 = vmatpush1.msra.mxu0 0.0
        %3276 = vmatprep.subr.mxu0 0.0
        %3277 = vmatpush1.msra.mxu0 0.0
        %3278 = vmatprep.subr.mxu0 0.0
        %3279 = vmatpush1.msra.mxu0 0.0
        %3280 = vmatprep.subr.mxu0 0.0
        %3281 = vmatpush1.msra.mxu0 0.0
        %3282 = vmatprep.subr.mxu0 0.0
        %3283 = vmatpush1.msra.mxu0 0.0
        %3284 = vmatprep.subr.mxu0 0.0
        %3285 = vmatpush1.msra.mxu0 0.0
        %3286 = vmatprep.subr.mxu0 0.0
        %3287 = vmatpush1.msra.mxu0 0.0
        %3288 = vmatprep.subr.mxu0 0.0
        %3289 = vmatpush1.msra.mxu0 0.0
        %3290 = vmatprep.subr.mxu0 0.0
        %3291 = vmatpush1.msra.mxu0 0.0
        %3292 = vmatprep.subr.mxu0 0.0
        %3293 = vmatpush1.msra.mxu0 0.0
        %3294 = vmatprep.subr.mxu0 0.0
        %3295 = vmatpush1.msra.mxu0 0.0
        %3296 = vmatprep.mubr.f32.mxu0 0.0
        %3297 = vmatmul.mubr.f32.gmra.mrb[0].mxu0 %v3230
        %v3298 = vpop.f32.mrb[0].mxu0
        %v3299 = vadd.f32 0.0, %v3298
        %v3300 = vpop.f32.mrb[0].mxu0
        %3301 = vdwg.mxu0
        %v3302 = vadd.f32 %v3224, %v3299
        %v3303 = vld [vmem:[%s3147 + $0x2] sm:$0xff]
        %s3304 = scalar_lea.vmem %s9, 32
        %v3305 = vld [vmem:[%s3304] sm:$0xff]
        %v3306 = vld [vmem:[%s3304 + $0x8] sm:$0xff]
        %v3308 = vsel %vm737, %v3303, 0
        %3310 = vmatprep.subr.mxu0 0.0
        %3311 = vmatpush1.msra.mxu0 %v3305
        %3312 = vmatprep.subr.mxu0 0.0
        %3313 = vmatpush1.msra.mxu0 %v3306
        %3314 = vmatprep.subr.mxu0 0.0
        %3315 = vmatpush1.msra.mxu0 0.0
        %3316 = vmatprep.subr.mxu0 0.0
        %3317 = vmatpush1.msra.mxu0 0.0
        %3318 = vmatprep.subr.mxu0 0.0
        %3319 = vmatpush1.msra.mxu0 0.0
        %3320 = vmatprep.subr.mxu0 0.0
        %3321 = vmatpush1.msra.mxu0 0.0
        %3322 = vmatprep.subr.mxu0 0.0
        %3323 = vmatpush1.msra.mxu0 0.0
        %3324 = vmatprep.subr.mxu0 0.0
        %3325 = vmatpush1.msra.mxu0 0.0
        %3326 = vmatprep.subr.mxu0 0.0
        %3327 = vmatpush1.msra.mxu0 0.0
        %3328 = vmatprep.subr.mxu0 0.0
        %3329 = vmatpush1.msra.mxu0 0.0
        %3330 = vmatprep.subr.mxu0 0.0
        %3331 = vmatpush1.msra.mxu0 0.0
        %3332 = vmatprep.subr.mxu0 0.0
        %3333 = vmatpush1.msra.mxu0 0.0
        %3334 = vmatprep.subr.mxu0 0.0
        %3335 = vmatpush1.msra.mxu0 0.0
        %3336 = vmatprep.subr.mxu0 0.0
        %3337 = vmatpush1.msra.mxu0 0.0
        %3338 = vmatprep.subr.mxu0 0.0
        %3339 = vmatpush1.msra.mxu0 0.0
        %3340 = vmatprep.subr.mxu0 0.0
        %3341 = vmatpush1.msra.mxu0 0.0
        %3342 = vmatprep.subr.mxu0 0.0
        %3343 = vmatpush1.msra.mxu0 0.0
        %3344 = vmatprep.subr.mxu0 0.0
        %3345 = vmatpush1.msra.mxu0 0.0
        %3346 = vmatprep.subr.mxu0 0.0
        %3347 = vmatpush1.msra.mxu0 0.0
        %3348 = vmatprep.subr.mxu0 0.0
        %3349 = vmatpush1.msra.mxu0 0.0
        %3350 = vmatprep.subr.mxu0 0.0
        %3351 = vmatpush1.msra.mxu0 0.0
        %3352 = vmatprep.subr.mxu0 0.0
        %3353 = vmatpush1.msra.mxu0 0.0
        %3354 = vmatprep.subr.mxu0 0.0
        %3355 = vmatpush1.msra.mxu0 0.0
        %3356 = vmatprep.subr.mxu0 0.0
        %3357 = vmatpush1.msra.mxu0 0.0
        %3358 = vmatprep.subr.mxu0 0.0
        %3359 = vmatpush1.msra.mxu0 0.0
        %3360 = vmatprep.subr.mxu0 0.0
        %3361 = vmatpush1.msra.mxu0 0.0
        %3362 = vmatprep.subr.mxu0 0.0
        %3363 = vmatpush1.msra.mxu0 0.0
        %3364 = vmatprep.subr.mxu0 0.0
        %3365 = vmatpush1.msra.mxu0 0.0
        %3366 = vmatprep.subr.mxu0 0.0
        %3367 = vmatpush1.msra.mxu0 0.0
        %3368 = vmatprep.subr.mxu0 0.0
        %3369 = vmatpush1.msra.mxu0 0.0
        %3370 = vmatprep.subr.mxu0 0.0
        %3371 = vmatpush1.msra.mxu0 0.0
        %3372 = vmatprep.subr.mxu0 0.0
        %3373 = vmatpush1.msra.mxu0 0.0
        %3374 = vmatprep.mubr.f32.mxu0 0.0
        %3375 = vmatmul.mubr.f32.gmra.mrb[0].mxu0 %v3308
        %v3376 = vpop.f32.mrb[0].mxu0
        %v3377 = vadd.f32 0.0, %v3376
        %v3378 = vpop.f32.mrb[0].mxu0
        %3379 = vdwg.mxu0
        %v3380 = vadd.f32 %v3302, %v3377
        %s3381 = sadd.s32 %s3134, 1
        %s3382 = smul.u32 %s3381, 16
        %s3383 = scalar_lea.vmem [#allocation8], %s3382
        %v3384 = vld [vmem:[%s3383] sm:$0xff]
        %s3385 = scalar_lea.vmem %s9, 48
        %v3386 = vld [vmem:[%s3385] sm:$0xff]
        %v3387 = vld [vmem:[%s3385 + $0x8] sm:$0xff]
        %v3389 = vsel %vm737, %v3384, 0
        %3391 = vmatprep.subr.mxu0 0.0
        %3392 = vmatpush1.msra.mxu0 %v3386
        %3393 = vmatprep.subr.mxu0 0.0
        %3394 = vmatpush1.msra.mxu0 %v3387
        %3395 = vmatprep.subr.mxu0 0.0
        %3396 = vmatpush1.msra.mxu0 0.0
        %3397 = vmatprep.subr.mxu0 0.0
        %3398 = vmatpush1.msra.mxu0 0.0
        %3399 = vmatprep.subr.mxu0 0.0
        %3400 = vmatpush1.msra.mxu0 0.0
        %3401 = vmatprep.subr.mxu0 0.0
        %3402 = vmatpush1.msra.mxu0 0.0
        %3403 = vmatprep.subr.mxu0 0.0
        %3404 = vmatpush1.msra.mxu0 0.0
        %3405 = vmatprep.subr.mxu0 0.0
        %3406 = vmatpush1.msra.mxu0 0.0
        %3407 = vmatprep.subr.mxu0 0.0
        %3408 = vmatpush1.msra.mxu0 0.0
        %3409 = vmatprep.subr.mxu0 0.0
        %3410 = vmatpush1.msra.mxu0 0.0
        %3411 = vmatprep.subr.mxu0 0.0
        %3412 = vmatpush1.msra.mxu0 0.0
        %3413 = vmatprep.subr.mxu0 0.0
        %3414 = vmatpush1.msra.mxu0 0.0
        %3415 = vmatprep.subr.mxu0 0.0
        %3416 = vmatpush1.msra.mxu0 0.0
        %3417 = vmatprep.subr.mxu0 0.0
        %3418 = vmatpush1.msra.mxu0 0.0
        %3419 = vmatprep.subr.mxu0 0.0
        %3420 = vmatpush1.msra.mxu0 0.0
        %3421 = vmatprep.subr.mxu0 0.0
        %3422 = vmatpush1.msra.mxu0 0.0
        %3423 = vmatprep.subr.mxu0 0.0
        %3424 = vmatpush1.msra.mxu0 0.0
        %3425 = vmatprep.subr.mxu0 0.0
        %3426 = vmatpush1.msra.mxu0 0.0
        %3427 = vmatprep.subr.mxu0 0.0
        %3428 = vmatpush1.msra.mxu0 0.0
        %3429 = vmatprep.subr.mxu0 0.0
        %3430 = vmatpush1.msra.mxu0 0.0
        %3431 = vmatprep.subr.mxu0 0.0
        %3432 = vmatpush1.msra.mxu0 0.0
        %3433 = vmatprep.subr.mxu0 0.0
        %3434 = vmatpush1.msra.mxu0 0.0
        %3435 = vmatprep.subr.mxu0 0.0
        %3436 = vmatpush1.msra.mxu0 0.0
        %3437 = vmatprep.subr.mxu0 0.0
        %3438 = vmatpush1.msra.mxu0 0.0
        %3439 = vmatprep.subr.mxu0 0.0
        %3440 = vmatpush1.msra.mxu0 0.0
        %3441 = vmatprep.subr.mxu0 0.0
        %3442 = vmatpush1.msra.mxu0 0.0
        %3443 = vmatprep.subr.mxu0 0.0
        %3444 = vmatpush1.msra.mxu0 0.0
        %3445 = vmatprep.subr.mxu0 0.0
        %3446 = vmatpush1.msra.mxu0 0.0
        %3447 = vmatprep.subr.mxu0 0.0
        %3448 = vmatpush1.msra.mxu0 0.0
        %3449 = vmatprep.subr.mxu0 0.0
        %3450 = vmatpush1.msra.mxu0 0.0
        %3451 = vmatprep.subr.mxu0 0.0
        %3452 = vmatpush1.msra.mxu0 0.0
        %3453 = vmatprep.subr.mxu0 0.0
        %3454 = vmatpush1.msra.mxu0 0.0
        %3455 = vmatprep.mubr.f32.mxu0 0.0
        %3456 = vmatmul.mubr.f32.gmra.mrb[0].mxu0 %v3389
        %v3457 = vpop.f32.mrb[0].mxu0
        %v3458 = vadd.f32 0.0, %v3457
        %v3459 = vpop.f32.mrb[0].mxu0
        %3460 = vdwg.mxu0
        %v3461 = vadd.f32 %v3380, %v3458
        %v3462 = vld [vmem:[%s3383 + $0x1] sm:$0xff]
        %s3463 = scalar_lea.vmem %s9, 64
        %v3464 = vld [vmem:[%s3463] sm:$0xff]
        %v3465 = vld [vmem:[%s3463 + $0x8] sm:$0xff]
        %v3467 = vsel %vm737, %v3462, 0
        %3469 = vmatprep.subr.mxu0 0.0
        %3470 = vmatpush1.msra.mxu0 %v3464
        %3471 = vmatprep.subr.mxu0 0.0
        %3472 = vmatpush1.msra.mxu0 %v3465
        %3473 = vmatprep.subr.mxu0 0.0
        %3474 = vmatpush1.msra.mxu0 0.0
        %3475 = vmatprep.subr.mxu0 0.0
        %3476 = vmatpush1.msra.mxu0 0.0
        %3477 = vmatprep.subr.mxu0 0.0
        %3478 = vmatpush1.msra.mxu0 0.0
        %3479 = vmatprep.subr.mxu0 0.0
        %3480 = vmatpush1.msra.mxu0 0.0
        %3481 = vmatprep.subr.mxu0 0.0
        %3482 = vmatpush1.msra.mxu0 0.0
        %3483 = vmatprep.subr.mxu0 0.0
        %3484 = vmatpush1.msra.mxu0 0.0
        %3485 = vmatprep.subr.mxu0 0.0
        %3486 = vmatpush1.msra.mxu0 0.0
        %3487 = vmatprep.subr.mxu0 0.0
        %3488 = vmatpush1.msra.mxu0 0.0
        %3489 = vmatprep.subr.mxu0 0.0
        %3490 = vmatpush1.msra.mxu0 0.0
        %3491 = vmatprep.subr.mxu0 0.0
        %3492 = vmatpush1.msra.mxu0 0.0
        %3493 = vmatprep.subr.mxu0 0.0
        %3494 = vmatpush1.msra.mxu0 0.0
        %3495 = vmatprep.subr.mxu0 0.0
        %3496 = vmatpush1.msra.mxu0 0.0
        %3497 = vmatprep.subr.mxu0 0.0
        %3498 = vmatpush1.msra.mxu0 0.0
        %3499 = vmatprep.subr.mxu0 0.0
        %3500 = vmatpush1.msra.mxu0 0.0
        %3501 = vmatprep.subr.mxu0 0.0
        %3502 = vmatpush1.msra.mxu0 0.0
        %3503 = vmatprep.subr.mxu0 0.0
        %3504 = vmatpush1.msra.mxu0 0.0
        %3505 = vmatprep.subr.mxu0 0.0
        %3506 = vmatpush1.msra.mxu0 0.0
        %3507 = vmatprep.subr.mxu0 0.0
        %3508 = vmatpush1.msra.mxu0 0.0
        %3509 = vmatprep.subr.mxu0 0.0
        %3510 = vmatpush1.msra.mxu0 0.0
        %3511 = vmatprep.subr.mxu0 0.0
        %3512 = vmatpush1.msra.mxu0 0.0
        %3513 = vmatprep.subr.mxu0 0.0
        %3514 = vmatpush1.msra.mxu0 0.0
        %3515 = vmatprep.subr.mxu0 0.0
        %3516 = vmatpush1.msra.mxu0 0.0
        %3517 = vmatprep.subr.mxu0 0.0
        %3518 = vmatpush1.msra.mxu0 0.0
        %3519 = vmatprep.subr.mxu0 0.0
        %3520 = vmatpush1.msra.mxu0 0.0
        %3521 = vmatprep.subr.mxu0 0.0
        %3522 = vmatpush1.msra.mxu0 0.0
        %3523 = vmatprep.subr.mxu0 0.0
        %3524 = vmatpush1.msra.mxu0 0.0
        %3525 = vmatprep.subr.mxu0 0.0
        %3526 = vmatpush1.msra.mxu0 0.0
        %3527 = vmatprep.subr.mxu0 0.0
        %3528 = vmatpush1.msra.mxu0 0.0
        %3529 = vmatprep.subr.mxu0 0.0
        %3530 = vmatpush1.msra.mxu0 0.0
        %3531 = vmatprep.subr.mxu0 0.0
        %3532 = vmatpush1.msra.mxu0 0.0
        %3533 = vmatprep.mubr.f32.mxu0 0.0
        %3534 = vmatmul.mubr.f32.gmra.mrb[0].mxu0 %v3467
        %v3535 = vpop.f32.mrb[0].mxu0
        %v3536 = vadd.f32 0.0, %v3535
        %v3537 = vpop.f32.mrb[0].mxu0
        %3538 = vdwg.mxu0
        %v3539 = vadd.f32 %v3461, %v3536
        %v3540 = vld [vmem:[%s3383 + $0x2] sm:$0xff]
        %s3541 = scalar_lea.vmem %s9, 80
        %v3542 = vld [vmem:[%s3541] sm:$0xff]
        %v3543 = vld [vmem:[%s3541 + $0x8] sm:$0xff]
        %v3545 = vsel %vm737, %v3540, 0
        %3547 = vmatprep.subr.mxu0 0.0
        %3548 = vmatpush1.msra.mxu0 %v3542
        %3549 = vmatprep.subr.mxu0 0.0
        %3550 = vmatpush1.msra.mxu0 %v3543
        %3551 = vmatprep.subr.mxu0 0.0
        %3552 = vmatpush1.msra.mxu0 0.0
        %3553 = vmatprep.subr.mxu0 0.0
        %3554 = vmatpush1.msra.mxu0 0.0
        %3555 = vmatprep.subr.mxu0 0.0
        %3556 = vmatpush1.msra.mxu0 0.0
        %3557 = vmatprep.subr.mxu0 0.0
        %3558 = vmatpush1.msra.mxu0 0.0
        %3559 = vmatprep.subr.mxu0 0.0
        %3560 = vmatpush1.msra.mxu0 0.0
        %3561 = vmatprep.subr.mxu0 0.0
        %3562 = vmatpush1.msra.mxu0 0.0
        %3563 = vmatprep.subr.mxu0 0.0
        %3564 = vmatpush1.msra.mxu0 0.0
        %3565 = vmatprep.subr.mxu0 0.0
        %3566 = vmatpush1.msra.mxu0 0.0
        %3567 = vmatprep.subr.mxu0 0.0
        %3568 = vmatpush1.msra.mxu0 0.0
        %3569 = vmatprep.subr.mxu0 0.0
        %3570 = vmatpush1.msra.mxu0 0.0
        %3571 = vmatprep.subr.mxu0 0.0
        %3572 = vmatpush1.msra.mxu0 0.0
        %3573 = vmatprep.subr.mxu0 0.0
        %3574 = vmatpush1.msra.mxu0 0.0
        %3575 = vmatprep.subr.mxu0 0.0
        %3576 = vmatpush1.msra.mxu0 0.0
        %3577 = vmatprep.subr.mxu0 0.0
        %3578 = vmatpush1.msra.mxu0 0.0
        %3579 = vmatprep.subr.mxu0 0.0
        %3580 = vmatpush1.msra.mxu0 0.0
        %3581 = vmatprep.subr.mxu0 0.0
        %3582 = vmatpush1.msra.mxu0 0.0
        %3583 = vmatprep.subr.mxu0 0.0
        %3584 = vmatpush1.msra.mxu0 0.0
        %3585 = vmatprep.subr.mxu0 0.0
        %3586 = vmatpush1.msra.mxu0 0.0
        %3587 = vmatprep.subr.mxu0 0.0
        %3588 = vmatpush1.msra.mxu0 0.0
        %3589 = vmatprep.subr.mxu0 0.0
        %3590 = vmatpush1.msra.mxu0 0.0
        %3591 = vmatprep.subr.mxu0 0.0
        %3592 = vmatpush1.msra.mxu0 0.0
        %3593 = vmatprep.subr.mxu0 0.0
        %3594 = vmatpush1.msra.mxu0 0.0
        %3595 = vmatprep.subr.mxu0 0.0
        %3596 = vmatpush1.msra.mxu0 0.0
        %3597 = vmatprep.subr.mxu0 0.0
        %3598 = vmatpush1.msra.mxu0 0.0
        %3599 = vmatprep.subr.mxu0 0.0
        %3600 = vmatpush1.msra.mxu0 0.0
        %3601 = vmatprep.subr.mxu0 0.0
        %3602 = vmatpush1.msra.mxu0 0.0
        %3603 = vmatprep.subr.mxu0 0.0
        %3604 = vmatpush1.msra.mxu0 0.0
        %3605 = vmatprep.subr.mxu0 0.0
        %3606 = vmatpush1.msra.mxu0 0.0
        %3607 = vmatprep.subr.mxu0 0.0
        %3608 = vmatpush1.msra.mxu0 0.0
        %3609 = vmatprep.subr.mxu0 0.0
        %3610 = vmatpush1.msra.mxu0 0.0
        %3611 = vmatprep.mubr.f32.mxu0 0.0
        %3612 = vmatmul.mubr.f32.gmra.mrb[0].mxu0 %v3545
        %v3613 = vpop.f32.mrb[0].mxu0
        %v3614 = vadd.f32 0.0, %v3613
        %v3615 = vpop.f32.mrb[0].mxu0
        %3616 = vdwg.mxu0
        %v3617 = vadd.f32 %v3539, %v3614
        %s3618 = sadd.s32 %s3134, 2
        %s3619 = smul.u32 %s3618, 16
        %s3620 = scalar_lea.vmem [#allocation8], %s3619
        %v3621 = vld [vmem:[%s3620] sm:$0xff]
        %s3622 = scalar_lea.vmem %s9, 96
        %v3623 = vld [vmem:[%s3622] sm:$0xff]
        %v3624 = vld [vmem:[%s3622 + $0x8] sm:$0xff]
        %v3626 = vsel %vm737, %v3621, 0
        %3628 = vmatprep.subr.mxu0 0.0
        %3629 = vmatpush1.msra.mxu0 %v3623
        %3630 = vmatprep.subr.mxu0 0.0
        %3631 = vmatpush1.msra.mxu0 %v3624
        %3632 = vmatprep.subr.mxu0 0.0
        %3633 = vmatpush1.msra.mxu0 0.0
        %3634 = vmatprep.subr.mxu0 0.0
        %3635 = vmatpush1.msra.mxu0 0.0
        %3636 = vmatprep.subr.mxu0 0.0
        %3637 = vmatpush1.msra.mxu0 0.0
        %3638 = vmatprep.subr.mxu0 0.0
        %3639 = vmatpush1.msra.mxu0 0.0
        %3640 = vmatprep.subr.mxu0 0.0
        %3641 = vmatpush1.msra.mxu0 0.0
        %3642 = vmatprep.subr.mxu0 0.0
        %3643 = vmatpush1.msra.mxu0 0.0
        %3644 = vmatprep.subr.mxu0 0.0
        %3645 = vmatpush1.msra.mxu0 0.0
        %3646 = vmatprep.subr.mxu0 0.0
        %3647 = vmatpush1.msra.mxu0 0.0
        %3648 = vmatprep.subr.mxu0 0.0
        %3649 = vmatpush1.msra.mxu0 0.0
        %3650 = vmatprep.subr.mxu0 0.0
        %3651 = vmatpush1.msra.mxu0 0.0
        %3652 = vmatprep.subr.mxu0 0.0
        %3653 = vmatpush1.msra.mxu0 0.0
        %3654 = vmatprep.subr.mxu0 0.0
        %3655 = vmatpush1.msra.mxu0 0.0
        %3656 = vmatprep.subr.mxu0 0.0
        %3657 = vmatpush1.msra.mxu0 0.0
        %3658 = vmatprep.subr.mxu0 0.0
        %3659 = vmatpush1.msra.mxu0 0.0
        %3660 = vmatprep.subr.mxu0 0.0
        %3661 = vmatpush1.msra.mxu0 0.0
        %3662 = vmatprep.subr.mxu0 0.0
        %3663 = vmatpush1.msra.mxu0 0.0
        %3664 = vmatprep.subr.mxu0 0.0
        %3665 = vmatpush1.msra.mxu0 0.0
        %3666 = vmatprep.subr.mxu0 0.0
        %3667 = vmatpush1.msra.mxu0 0.0
        %3668 = vmatprep.subr.mxu0 0.0
        %3669 = vmatpush1.msra.mxu0 0.0
        %3670 = vmatprep.subr.mxu0 0.0
        %3671 = vmatpush1.msra.mxu0 0.0
        %3672 = vmatprep.subr.mxu0 0.0
        %3673 = vmatpush1.msra.mxu0 0.0
        %3674 = vmatprep.subr.mxu0 0.0
        %3675 = vmatpush1.msra.mxu0 0.0
        %3676 = vmatprep.subr.mxu0 0.0
        %3677 = vmatpush1.msra.mxu0 0.0
        %3678 = vmatprep.subr.mxu0 0.0
        %3679 = vmatpush1.msra.mxu0 0.0
        %3680 = vmatprep.subr.mxu0 0.0
        %3681 = vmatpush1.msra.mxu0 0.0
        %3682 = vmatprep.subr.mxu0 0.0
        %3683 = vmatpush1.msra.mxu0 0.0
        %3684 = vmatprep.subr.mxu0 0.0
        %3685 = vmatpush1.msra.mxu0 0.0
        %3686 = vmatprep.subr.mxu0 0.0
        %3687 = vmatpush1.msra.mxu0 0.0
        %3688 = vmatprep.subr.mxu0 0.0
        %3689 = vmatpush1.msra.mxu0 0.0
        %3690 = vmatprep.subr.mxu0 0.0
        %3691 = vmatpush1.msra.mxu0 0.0
        %3692 = vmatprep.mubr.f32.mxu0 0.0
        %3693 = vmatmul.mubr.f32.gmra.mrb[0].mxu0 %v3626
        %v3694 = vpop.f32.mrb[0].mxu0
        %v3695 = vadd.f32 0.0, %v3694
        %v3696 = vpop.f32.mrb[0].mxu0
        %3697 = vdwg.mxu0
        %v3698 = vadd.f32 %v3617, %v3695
        %v3699 = vld [vmem:[%s3620 + $0x1] sm:$0xff]
        %s3700 = scalar_lea.vmem %s9, 112
        %v3701 = vld [vmem:[%s3700] sm:$0xff]
        %v3702 = vld [vmem:[%s3700 + $0x8] sm:$0xff]
        %v3704 = vsel %vm737, %v3699, 0
        %3706 = vmatprep.subr.mxu0 0.0
        %3707 = vmatpush1.msra.mxu0 %v3701
        %3708 = vmatprep.subr.mxu0 0.0
        %3709 = vmatpush1.msra.mxu0 %v3702
        %3710 = vmatprep.subr.mxu0 0.0
        %3711 = vmatpush1.msra.mxu0 0.0
        %3712 = vmatprep.subr.mxu0 0.0
        %3713 = vmatpush1.msra.mxu0 0.0
        %3714 = vmatprep.subr.mxu0 0.0
        %3715 = vmatpush1.msra.mxu0 0.0
        %3716 = vmatprep.subr.mxu0 0.0
        %3717 = vmatpush1.msra.mxu0 0.0
        %3718 = vmatprep.subr.mxu0 0.0
        %3719 = vmatpush1.msra.mxu0 0.0
        %3720 = vmatprep.subr.mxu0 0.0
        %3721 = vmatpush1.msra.mxu0 0.0
        %3722 = vmatprep.subr.mxu0 0.0
        %3723 = vmatpush1.msra.mxu0 0.0
        %3724 = vmatprep.subr.mxu0 0.0
        %3725 = vmatpush1.msra.mxu0 0.0
        %3726 = vmatprep.subr.mxu0 0.0
        %3727 = vmatpush1.msra.mxu0 0.0
        %3728 = vmatprep.subr.mxu0 0.0
        %3729 = vmatpush1.msra.mxu0 0.0
        %3730 = vmatprep.subr.mxu0 0.0
        %3731 = vmatpush1.msra.mxu0 0.0
        %3732 = vmatprep.subr.mxu0 0.0
        %3733 = vmatpush1.msra.mxu0 0.0
        %3734 = vmatprep.subr.mxu0 0.0
        %3735 = vmatpush1.msra.mxu0 0.0
        %3736 = vmatprep.subr.mxu0 0.0
        %3737 = vmatpush1.msra.mxu0 0.0
        %3738 = vmatprep.subr.mxu0 0.0
        %3739 = vmatpush1.msra.mxu0 0.0
        %3740 = vmatprep.subr.mxu0 0.0
        %3741 = vmatpush1.msra.mxu0 0.0
        %3742 = vmatprep.subr.mxu0 0.0
        %3743 = vmatpush1.msra.mxu0 0.0
        %3744 = vmatprep.subr.mxu0 0.0
        %3745 = vmatpush1.msra.mxu0 0.0
        %3746 = vmatprep.subr.mxu0 0.0
        %3747 = vmatpush1.msra.mxu0 0.0
        %3748 = vmatprep.subr.mxu0 0.0
        %3749 = vmatpush1.msra.mxu0 0.0
        %3750 = vmatprep.subr.mxu0 0.0
        %3751 = vmatpush1.msra.mxu0 0.0
        %3752 = vmatprep.subr.mxu0 0.0
        %3753 = vmatpush1.msra.mxu0 0.0
        %3754 = vmatprep.subr.mxu0 0.0
        %3755 = vmatpush1.msra.mxu0 0.0
        %3756 = vmatprep.subr.mxu0 0.0
        %3757 = vmatpush1.msra.mxu0 0.0
        %3758 = vmatprep.subr.mxu0 0.0
        %3759 = vmatpush1.msra.mxu0 0.0
        %3760 = vmatprep.subr.mxu0 0.0
        %3761 = vmatpush1.msra.mxu0 0.0
        %3762 = vmatprep.subr.mxu0 0.0
        %3763 = vmatpush1.msra.mxu0 0.0
        %3764 = vmatprep.subr.mxu0 0.0
        %3765 = vmatpush1.msra.mxu0 0.0
        %3766 = vmatprep.subr.mxu0 0.0
        %3767 = vmatpush1.msra.mxu0 0.0
        %3768 = vmatprep.subr.mxu0 0.0
        %3769 = vmatpush1.msra.mxu0 0.0
        %3770 = vmatprep.mubr.f32.mxu0 0.0
        %3771 = vmatmul.mubr.f32.gmra.mrb[0].mxu0 %v3704
        %v3772 = vpop.f32.mrb[0].mxu0
        %v3773 = vadd.f32 0.0, %v3772
        %v3774 = vpop.f32.mrb[0].mxu0
        %3775 = vdwg.mxu0
        %v3776 = vadd.f32 %v3698, %v3773
        %v3777 = vld [vmem:[%s3620 + $0x2] sm:$0xff]
        %s3778 = scalar_lea.vmem %s9, 128
        %v3779 = vld [vmem:[%s3778] sm:$0xff]
        %v3780 = vld [vmem:[%s3778 + $0x8] sm:$0xff]
        %v3782 = vsel %vm737, %v3777, 0
        %3784 = vmatprep.subr.mxu0 0.0
        %3785 = vmatpush1.msra.mxu0 %v3779
        %3786 = vmatprep.subr.mxu0 0.0
        %3787 = vmatpush1.msra.mxu0 %v3780
        %3788 = vmatprep.subr.mxu0 0.0
        %3789 = vmatpush1.msra.mxu0 0.0
        %3790 = vmatprep.subr.mxu0 0.0
        %3791 = vmatpush1.msra.mxu0 0.0
        %3792 = vmatprep.subr.mxu0 0.0
        %3793 = vmatpush1.msra.mxu0 0.0
        %3794 = vmatprep.subr.mxu0 0.0
        %3795 = vmatpush1.msra.mxu0 0.0
        %3796 = vmatprep.subr.mxu0 0.0
        %3797 = vmatpush1.msra.mxu0 0.0
        %3798 = vmatprep.subr.mxu0 0.0
        %3799 = vmatpush1.msra.mxu0 0.0
        %3800 = vmatprep.subr.mxu0 0.0
        %3801 = vmatpush1.msra.mxu0 0.0
        %3802 = vmatprep.subr.mxu0 0.0
        %3803 = vmatpush1.msra.mxu0 0.0
        %3804 = vmatprep.subr.mxu0 0.0
        %3805 = vmatpush1.msra.mxu0 0.0
        %3806 = vmatprep.subr.mxu0 0.0
        %3807 = vmatpush1.msra.mxu0 0.0
        %3808 = vmatprep.subr.mxu0 0.0
        %3809 = vmatpush1.msra.mxu0 0.0
        %3810 = vmatprep.subr.mxu0 0.0
        %3811 = vmatpush1.msra.mxu0 0.0
        %3812 = vmatprep.subr.mxu0 0.0
        %3813 = vmatpush1.msra.mxu0 0.0
        %3814 = vmatprep.subr.mxu0 0.0
        %3815 = vmatpush1.msra.mxu0 0.0
        %3816 = vmatprep.subr.mxu0 0.0
        %3817 = vmatpush1.msra.mxu0 0.0
        %3818 = vmatprep.subr.mxu0 0.0
        %3819 = vmatpush1.msra.mxu0 0.0
        %3820 = vmatprep.subr.mxu0 0.0
        %3821 = vmatpush1.msra.mxu0 0.0
        %3822 = vmatprep.subr.mxu0 0.0
        %3823 = vmatpush1.msra.mxu0 0.0
        %3824 = vmatprep.subr.mxu0 0.0
        %3825 = vmatpush1.msra.mxu0 0.0
        %3826 = vmatprep.subr.mxu0 0.0
        %3827 = vmatpush1.msra.mxu0 0.0
        %3828 = vmatprep.subr.mxu0 0.0
        %3829 = vmatpush1.msra.mxu0 0.0
        %3830 = vmatprep.subr.mxu0 0.0
        %3831 = vmatpush1.msra.mxu0 0.0
        %3832 = vmatprep.subr.mxu0 0.0
        %3833 = vmatpush1.msra.mxu0 0.0
        %3834 = vmatprep.subr.mxu0 0.0
        %3835 = vmatpush1.msra.mxu0 0.0
        %3836 = vmatprep.subr.mxu0 0.0
        %3837 = vmatpush1.msra.mxu0 0.0
        %3838 = vmatprep.subr.mxu0 0.0
        %3839 = vmatpush1.msra.mxu0 0.0
        %3840 = vmatprep.subr.mxu0 0.0
        %3841 = vmatpush1.msra.mxu0 0.0
        %3842 = vmatprep.subr.mxu0 0.0
        %3843 = vmatpush1.msra.mxu0 0.0
        %3844 = vmatprep.subr.mxu0 0.0
        %3845 = vmatpush1.msra.mxu0 0.0
        %3846 = vmatprep.subr.mxu0 0.0
        %3847 = vmatpush1.msra.mxu0 0.0
        %3848 = vmatprep.mubr.f32.mxu0 0.0
        %3849 = vmatmul.mubr.f32.gmra.mrb[0].mxu0 %v3782
        %v3850 = vpop.f32.mrb[0].mxu0
        %v3851 = vadd.f32 0.0, %v3850
        %v3852 = vpop.f32.mrb[0].mxu0
        %3853 = vdwg.mxu0
        %v3854 = vadd.f32 %v3776, %v3851
        %s3855 = scalar_lea.vmem [#allocation5], %s3146
        %v3856 = vld [vmem:[%s3855] sm:$0xff]
        %v3857 = vld [vmem:[%s10] sm:$0xff]
        %v3858 = vld [vmem:[%s10 + $0x8] sm:$0xff]
        %v3860 = vsel %vm737, %v3856, 0
        %3862 = vmatprep.subr.mxu0 0.0
        %3863 = vmatpush1.msra.mxu0 %v3857
        %3864 = vmatprep.subr.mxu0 0.0
        %3865 = vmatpush1.msra.mxu0 %v3858
        %3866 = vmatprep.subr.mxu0 0.0
        %3867 = vmatpush1.msra.mxu0 0.0
        %3868 = vmatprep.subr.mxu0 0.0
        %3869 = vmatpush1.msra.mxu0 0.0
        %3870 = vmatprep.subr.mxu0 0.0
        %3871 = vmatpush1.msra.mxu0 0.0
        %3872 = vmatprep.subr.mxu0 0.0
        %3873 = vmatpush1.msra.mxu0 0.0
        %3874 = vmatprep.subr.mxu0 0.0
        %3875 = vmatpush1.msra.mxu0 0.0
        %3876 = vmatprep.subr.mxu0 0.0
        %3877 = vmatpush1.msra.mxu0 0.0
        %3878 = vmatprep.subr.mxu0 0.0
        %3879 = vmatpush1.msra.mxu0 0.0
        %3880 = vmatprep.subr.mxu0 0.0
        %3881 = vmatpush1.msra.mxu0 0.0
        %3882 = vmatprep.subr.mxu0 0.0
        %3883 = vmatpush1.msra.mxu0 0.0
        %3884 = vmatprep.subr.mxu0 0.0
        %3885 = vmatpush1.msra.mxu0 0.0
        %3886 = vmatprep.subr.mxu0 0.0
        %3887 = vmatpush1.msra.mxu0 0.0
        %3888 = vmatprep.subr.mxu0 0.0
        %3889 = vmatpush1.msra.mxu0 0.0
        %3890 = vmatprep.subr.mxu0 0.0
        %3891 = vmatpush1.msra.mxu0 0.0
        %3892 = vmatprep.subr.mxu0 0.0
        %3893 = vmatpush1.msra.mxu0 0.0
        %3894 = vmatprep.subr.mxu0 0.0
        %3895 = vmatpush1.msra.mxu0 0.0
        %3896 = vmatprep.subr.mxu0 0.0
        %3897 = vmatpush1.msra.mxu0 0.0
        %3898 = vmatprep.subr.mxu0 0.0
        %3899 = vmatpush1.msra.mxu0 0.0
        %3900 = vmatprep.subr.mxu0 0.0
        %3901 = vmatpush1.msra.mxu0 0.0
        %3902 = vmatprep.subr.mxu0 0.0
        %3903 = vmatpush1.msra.mxu0 0.0
        %3904 = vmatprep.subr.mxu0 0.0
        %3905 = vmatpush1.msra.mxu0 0.0
        %3906 = vmatprep.subr.mxu0 0.0
        %3907 = vmatpush1.msra.mxu0 0.0
        %3908 = vmatprep.subr.mxu0 0.0
        %3909 = vmatpush1.msra.mxu0 0.0
        %3910 = vmatprep.subr.mxu0 0.0
        %3911 = vmatpush1.msra.mxu0 0.0
        %3912 = vmatprep.subr.mxu0 0.0
        %3913 = vmatpush1.msra.mxu0 0.0
        %3914 = vmatprep.subr.mxu0 0.0
        %3915 = vmatpush1.msra.mxu0 0.0
        %3916 = vmatprep.subr.mxu0 0.0
        %3917 = vmatpush1.msra.mxu0 0.0
        %3918 = vmatprep.subr.mxu0 0.0
        %3919 = vmatpush1.msra.mxu0 0.0
        %3920 = vmatprep.subr.mxu0 0.0
        %3921 = vmatpush1.msra.mxu0 0.0
        %3922 = vmatprep.subr.mxu0 0.0
        %3923 = vmatpush1.msra.mxu0 0.0
        %3924 = vmatprep.subr.mxu0 0.0
        %3925 = vmatpush1.msra.mxu0 0.0
        %3926 = vmatprep.mubr.f32.mxu0 0.0
        %3927 = vmatmul.mubr.f32.gmra.mrb[0].mxu0 %v3860
        %v3928 = vpop.f32.mrb[0].mxu0
        %v3929 = vadd.f32 0.0, %v3928
        %v3930 = vpop.f32.mrb[0].mxu0
        %3931 = vdwg.mxu0
        %v3932 = vadd.f32 %v3854, %v3929
        %v3933 = vld [vmem:[%s3855 + $0x1] sm:$0xff]
        %s3934 = scalar_lea.vmem %s10, 16
        %v3935 = vld [vmem:[%s3934] sm:$0xff]
        %v3936 = vld [vmem:[%s3934 + $0x8] sm:$0xff]
        %v3938 = vsel %vm737, %v3933, 0
        %3940 = vmatprep.subr.mxu0 0.0
        %3941 = vmatpush1.msra.mxu0 %v3935
        %3942 = vmatprep.subr.mxu0 0.0
        %3943 = vmatpush1.msra.mxu0 %v3936
        %3944 = vmatprep.subr.mxu0 0.0
        %3945 = vmatpush1.msra.mxu0 0.0
        %3946 = vmatprep.subr.mxu0 0.0
        %3947 = vmatpush1.msra.mxu0 0.0
        %3948 = vmatprep.subr.mxu0 0.0
        %3949 = vmatpush1.msra.mxu0 0.0
        %3950 = vmatprep.subr.mxu0 0.0
        %3951 = vmatpush1.msra.mxu0 0.0
        %3952 = vmatprep.subr.mxu0 0.0
        %3953 = vmatpush1.msra.mxu0 0.0
        %3954 = vmatprep.subr.mxu0 0.0
        %3955 = vmatpush1.msra.mxu0 0.0
        %3956 = vmatprep.subr.mxu0 0.0
        %3957 = vmatpush1.msra.mxu0 0.0
        %3958 = vmatprep.subr.mxu0 0.0
        %3959 = vmatpush1.msra.mxu0 0.0
        %3960 = vmatprep.subr.mxu0 0.0
        %3961 = vmatpush1.msra.mxu0 0.0
        %3962 = vmatprep.subr.mxu0 0.0
        %3963 = vmatpush1.msra.mxu0 0.0
        %3964 = vmatprep.subr.mxu0 0.0
        %3965 = vmatpush1.msra.mxu0 0.0
        %3966 = vmatprep.subr.mxu0 0.0
        %3967 = vmatpush1.msra.mxu0 0.0
        %3968 = vmatprep.subr.mxu0 0.0
        %3969 = vmatpush1.msra.mxu0 0.0
        %3970 = vmatprep.subr.mxu0 0.0
        %3971 = vmatpush1.msra.mxu0 0.0
        %3972 = vmatprep.subr.mxu0 0.0
        %3973 = vmatpush1.msra.mxu0 0.0
        %3974 = vmatprep.subr.mxu0 0.0
        %3975 = vmatpush1.msra.mxu0 0.0
        %3976 = vmatprep.subr.mxu0 0.0
        %3977 = vmatpush1.msra.mxu0 0.0
        %3978 = vmatprep.subr.mxu0 0.0
        %3979 = vmatpush1.msra.mxu0 0.0
        %3980 = vmatprep.subr.mxu0 0.0
        %3981 = vmatpush1.msra.mxu0 0.0
        %3982 = vmatprep.subr.mxu0 0.0
        %3983 = vmatpush1.msra.mxu0 0.0
        %3984 = vmatprep.subr.mxu0 0.0
        %3985 = vmatpush1.msra.mxu0 0.0
        %3986 = vmatprep.subr.mxu0 0.0
        %3987 = vmatpush1.msra.mxu0 0.0
        %3988 = vmatprep.subr.mxu0 0.0
        %3989 = vmatpush1.msra.mxu0 0.0
        %3990 = vmatprep.subr.mxu0 0.0
        %3991 = vmatpush1.msra.mxu0 0.0
        %3992 = vmatprep.subr.mxu0 0.0
        %3993 = vmatpush1.msra.mxu0 0.0
        %3994 = vmatprep.subr.mxu0 0.0
        %3995 = vmatpush1.msra.mxu0 0.0
        %3996 = vmatprep.subr.mxu0 0.0
        %3997 = vmatpush1.msra.mxu0 0.0
        %3998 = vmatprep.subr.mxu0 0.0
        %3999 = vmatpush1.msra.mxu0 0.0
        %4000 = vmatprep.subr.mxu0 0.0
        %4001 = vmatpush1.msra.mxu0 0.0
        %4002 = vmatprep.subr.mxu0 0.0
        %4003 = vmatpush1.msra.mxu0 0.0
        %4004 = vmatprep.mubr.f32.mxu0 0.0
        %4005 = vmatmul.mubr.f32.gmra.mrb[0].mxu0 %v3938
        %v4006 = vpop.f32.mrb[0].mxu0
        %v4007 = vadd.f32 0.0, %v4006
        %v4008 = vpop.f32.mrb[0].mxu0
        %4009 = vdwg.mxu0
        %v4010 = vadd.f32 %v3932, %v4007
        %v4011 = vld [vmem:[%s3855 + $0x2] sm:$0xff]
        %s4012 = scalar_lea.vmem %s10, 32
        %v4013 = vld [vmem:[%s4012] sm:$0xff]
        %v4014 = vld [vmem:[%s4012 + $0x8] sm:$0xff]
        %v4016 = vsel %vm737, %v4011, 0
        %4018 = vmatprep.subr.mxu0 0.0
        %4019 = vmatpush1.msra.mxu0 %v4013
        %4020 = vmatprep.subr.mxu0 0.0
        %4021 = vmatpush1.msra.mxu0 %v4014
        %4022 = vmatprep.subr.mxu0 0.0
        %4023 = vmatpush1.msra.mxu0 0.0
        %4024 = vmatprep.subr.mxu0 0.0
        %4025 = vmatpush1.msra.mxu0 0.0
        %4026 = vmatprep.subr.mxu0 0.0
        %4027 = vmatpush1.msra.mxu0 0.0
        %4028 = vmatprep.subr.mxu0 0.0
        %4029 = vmatpush1.msra.mxu0 0.0
        %4030 = vmatprep.subr.mxu0 0.0
        %4031 = vmatpush1.msra.mxu0 0.0
        %4032 = vmatprep.subr.mxu0 0.0
        %4033 = vmatpush1.msra.mxu0 0.0
        %4034 = vmatprep.subr.mxu0 0.0
        %4035 = vmatpush1.msra.mxu0 0.0
        %4036 = vmatprep.subr.mxu0 0.0
        %4037 = vmatpush1.msra.mxu0 0.0
        %4038 = vmatprep.subr.mxu0 0.0
        %4039 = vmatpush1.msra.mxu0 0.0
        %4040 = vmatprep.subr.mxu0 0.0
        %4041 = vmatpush1.msra.mxu0 0.0
        %4042 = vmatprep.subr.mxu0 0.0
        %4043 = vmatpush1.msra.mxu0 0.0
        %4044 = vmatprep.subr.mxu0 0.0
        %4045 = vmatpush1.msra.mxu0 0.0
        %4046 = vmatprep.subr.mxu0 0.0
        %4047 = vmatpush1.msra.mxu0 0.0
        %4048 = vmatprep.subr.mxu0 0.0
        %4049 = vmatpush1.msra.mxu0 0.0
        %4050 = vmatprep.subr.mxu0 0.0
        %4051 = vmatpush1.msra.mxu0 0.0
        %4052 = vmatprep.subr.mxu0 0.0
        %4053 = vmatpush1.msra.mxu0 0.0
        %4054 = vmatprep.subr.mxu0 0.0
        %4055 = vmatpush1.msra.mxu0 0.0
        %4056 = vmatprep.subr.mxu0 0.0
        %4057 = vmatpush1.msra.mxu0 0.0
        %4058 = vmatprep.subr.mxu0 0.0
        %4059 = vmatpush1.msra.mxu0 0.0
        %4060 = vmatprep.subr.mxu0 0.0
        %4061 = vmatpush1.msra.mxu0 0.0
        %4062 = vmatprep.subr.mxu0 0.0
        %4063 = vmatpush1.msra.mxu0 0.0
        %4064 = vmatprep.subr.mxu0 0.0
        %4065 = vmatpush1.msra.mxu0 0.0
        %4066 = vmatprep.subr.mxu0 0.0
        %4067 = vmatpush1.msra.mxu0 0.0
        %4068 = vmatprep.subr.mxu0 0.0
        %4069 = vmatpush1.msra.mxu0 0.0
        %4070 = vmatprep.subr.mxu0 0.0
        %4071 = vmatpush1.msra.mxu0 0.0
        %4072 = vmatprep.subr.mxu0 0.0
        %4073 = vmatpush1.msra.mxu0 0.0
        %4074 = vmatprep.subr.mxu0 0.0
        %4075 = vmatpush1.msra.mxu0 0.0
        %4076 = vmatprep.subr.mxu0 0.0
        %4077 = vmatpush1.msra.mxu0 0.0
        %4078 = vmatprep.subr.mxu0 0.0
        %4079 = vmatpush1.msra.mxu0 0.0
        %4080 = vmatprep.subr.mxu0 0.0
        %4081 = vmatpush1.msra.mxu0 0.0
        %4082 = vmatprep.mubr.f32.mxu0 0.0
        %4083 = vmatmul.mubr.f32.gmra.mrb[0].mxu0 %v4016
        %v4084 = vpop.f32.mrb[0].mxu0
        %v4085 = vadd.f32 0.0, %v4084
        %v4086 = vpop.f32.mrb[0].mxu0
        %4087 = vdwg.mxu0
        %v4088 = vadd.f32 %v4010, %v4085
        %s4089 = scalar_lea.vmem [#allocation5], %s3382
        %v4090 = vld [vmem:[%s4089] sm:$0xff]
        %s4091 = scalar_lea.vmem %s10, 48
        %v4092 = vld [vmem:[%s4091] sm:$0xff]
        %v4093 = vld [vmem:[%s4091 + $0x8] sm:$0xff]
        %v4095 = vsel %vm737, %v4090, 0
        %4097 = vmatprep.subr.mxu0 0.0
        %4098 = vmatpush1.msra.mxu0 %v4092
        %4099 = vmatprep.subr.mxu0 0.0
        %4100 = vmatpush1.msra.mxu0 %v4093
        %4101 = vmatprep.subr.mxu0 0.0
        %4102 = vmatpush1.msra.mxu0 0.0
        %4103 = vmatprep.subr.mxu0 0.0
        %4104 = vmatpush1.msra.mxu0 0.0
        %4105 = vmatprep.subr.mxu0 0.0
        %4106 = vmatpush1.msra.mxu0 0.0
        %4107 = vmatprep.subr.mxu0 0.0
        %4108 = vmatpush1.msra.mxu0 0.0
        %4109 = vmatprep.subr.mxu0 0.0
        %4110 = vmatpush1.msra.mxu0 0.0
        %4111 = vmatprep.subr.mxu0 0.0
        %4112 = vmatpush1.msra.mxu0 0.0
        %4113 = vmatprep.subr.mxu0 0.0
        %4114 = vmatpush1.msra.mxu0 0.0
        %4115 = vmatprep.subr.mxu0 0.0
        %4116 = vmatpush1.msra.mxu0 0.0
        %4117 = vmatprep.subr.mxu0 0.0
        %4118 = vmatpush1.msra.mxu0 0.0
        %4119 = vmatprep.subr.mxu0 0.0
        %4120 = vmatpush1.msra.mxu0 0.0
        %4121 = vmatprep.subr.mxu0 0.0
        %4122 = vmatpush1.msra.mxu0 0.0
        %4123 = vmatprep.subr.mxu0 0.0
        %4124 = vmatpush1.msra.mxu0 0.0
        %4125 = vmatprep.subr.mxu0 0.0
        %4126 = vmatpush1.msra.mxu0 0.0
        %4127 = vmatprep.subr.mxu0 0.0
        %4128 = vmatpush1.msra.mxu0 0.0
        %4129 = vmatprep.subr.mxu0 0.0
        %4130 = vmatpush1.msra.mxu0 0.0
        %4131 = vmatprep.subr.mxu0 0.0
        %4132 = vmatpush1.msra.mxu0 0.0
        %4133 = vmatprep.subr.mxu0 0.0
        %4134 = vmatpush1.msra.mxu0 0.0
        %4135 = vmatprep.subr.mxu0 0.0
        %4136 = vmatpush1.msra.mxu0 0.0
        %4137 = vmatprep.subr.mxu0 0.0
        %4138 = vmatpush1.msra.mxu0 0.0
        %4139 = vmatprep.subr.mxu0 0.0
        %4140 = vmatpush1.msra.mxu0 0.0
        %4141 = vmatprep.subr.mxu0 0.0
        %4142 = vmatpush1.msra.mxu0 0.0
        %4143 = vmatprep.subr.mxu0 0.0
        %4144 = vmatpush1.msra.mxu0 0.0
        %4145 = vmatprep.subr.mxu0 0.0
        %4146 = vmatpush1.msra.mxu0 0.0
        %4147 = vmatprep.subr.mxu0 0.0
        %4148 = vmatpush1.msra.mxu0 0.0
        %4149 = vmatprep.subr.mxu0 0.0
        %4150 = vmatpush1.msra.mxu0 0.0
        %4151 = vmatprep.subr.mxu0 0.0
        %4152 = vmatpush1.msra.mxu0 0.0
        %4153 = vmatprep.subr.mxu0 0.0
        %4154 = vmatpush1.msra.mxu0 0.0
        %4155 = vmatprep.subr.mxu0 0.0
        %4156 = vmatpush1.msra.mxu0 0.0
        %4157 = vmatprep.subr.mxu0 0.0
        %4158 = vmatpush1.msra.mxu0 0.0
        %4159 = vmatprep.subr.mxu0 0.0
        %4160 = vmatpush1.msra.mxu0 0.0
        %4161 = vmatprep.mubr.f32.mxu0 0.0
        %4162 = vmatmul.mubr.f32.gmra.mrb[0].mxu0 %v4095
        %v4163 = vpop.f32.mrb[0].mxu0
        %v4164 = vadd.f32 0.0, %v4163
        %v4165 = vpop.f32.mrb[0].mxu0
        %4166 = vdwg.mxu0
        %v4167 = vadd.f32 %v4088, %v4164
        %v4168 = vld [vmem:[%s4089 + $0x1] sm:$0xff]
        %s4169 = scalar_lea.vmem %s10, 64
        %v4170 = vld [vmem:[%s4169] sm:$0xff]
        %v4171 = vld [vmem:[%s4169 + $0x8] sm:$0xff]
        %v4173 = vsel %vm737, %v4168, 0
        %4175 = vmatprep.subr.mxu0 0.0
        %4176 = vmatpush1.msra.mxu0 %v4170
        %4177 = vmatprep.subr.mxu0 0.0
        %4178 = vmatpush1.msra.mxu0 %v4171
        %4179 = vmatprep.subr.mxu0 0.0
        %4180 = vmatpush1.msra.mxu0 0.0
        %4181 = vmatprep.subr.mxu0 0.0
        %4182 = vmatpush1.msra.mxu0 0.0
        %4183 = vmatprep.subr.mxu0 0.0
        %4184 = vmatpush1.msra.mxu0 0.0
        %4185 = vmatprep.subr.mxu0 0.0
        %4186 = vmatpush1.msra.mxu0 0.0
        %4187 = vmatprep.subr.mxu0 0.0
        %4188 = vmatpush1.msra.mxu0 0.0
        %4189 = vmatprep.subr.mxu0 0.0
        %4190 = vmatpush1.msra.mxu0 0.0
        %4191 = vmatprep.subr.mxu0 0.0
        %4192 = vmatpush1.msra.mxu0 0.0
        %4193 = vmatprep.subr.mxu0 0.0
        %4194 = vmatpush1.msra.mxu0 0.0
        %4195 = vmatprep.subr.mxu0 0.0
        %4196 = vmatpush1.msra.mxu0 0.0
        %4197 = vmatprep.subr.mxu0 0.0
        %4198 = vmatpush1.msra.mxu0 0.0
        %4199 = vmatprep.subr.mxu0 0.0
        %4200 = vmatpush1.msra.mxu0 0.0
        %4201 = vmatprep.subr.mxu0 0.0
        %4202 = vmatpush1.msra.mxu0 0.0
        %4203 = vmatprep.subr.mxu0 0.0
        %4204 = vmatpush1.msra.mxu0 0.0
        %4205 = vmatprep.subr.mxu0 0.0
        %4206 = vmatpush1.msra.mxu0 0.0
        %4207 = vmatprep.subr.mxu0 0.0
        %4208 = vmatpush1.msra.mxu0 0.0
        %4209 = vmatprep.subr.mxu0 0.0
        %4210 = vmatpush1.msra.mxu0 0.0
        %4211 = vmatprep.subr.mxu0 0.0
        %4212 = vmatpush1.msra.mxu0 0.0
        %4213 = vmatprep.subr.mxu0 0.0
        %4214 = vmatpush1.msra.mxu0 0.0
        %4215 = vmatprep.subr.mxu0 0.0
        %4216 = vmatpush1.msra.mxu0 0.0
        %4217 = vmatprep.subr.mxu0 0.0
        %4218 = vmatpush1.msra.mxu0 0.0
        %4219 = vmatprep.subr.mxu0 0.0
        %4220 = vmatpush1.msra.mxu0 0.0
        %4221 = vmatprep.subr.mxu0 0.0
        %4222 = vmatpush1.msra.mxu0 0.0
        %4223 = vmatprep.subr.mxu0 0.0
        %4224 = vmatpush1.msra.mxu0 0.0
        %4225 = vmatprep.subr.mxu0 0.0
        %4226 = vmatpush1.msra.mxu0 0.0
        %4227 = vmatprep.subr.mxu0 0.0
        %4228 = vmatpush1.msra.mxu0 0.0
        %4229 = vmatprep.subr.mxu0 0.0
        %4230 = vmatpush1.msra.mxu0 0.0
        %4231 = vmatprep.subr.mxu0 0.0
        %4232 = vmatpush1.msra.mxu0 0.0
        %4233 = vmatprep.subr.mxu0 0.0
        %4234 = vmatpush1.msra.mxu0 0.0
        %4235 = vmatprep.subr.mxu0 0.0
        %4236 = vmatpush1.msra.mxu0 0.0
        %4237 = vmatprep.subr.mxu0 0.0
        %4238 = vmatpush1.msra.mxu0 0.0
        %4239 = vmatprep.mubr.f32.mxu0 0.0
        %4240 = vmatmul.mubr.f32.gmra.mrb[0].mxu0 %v4173
        %v4241 = vpop.f32.mrb[0].mxu0
        %v4242 = vadd.f32 0.0, %v4241
        %v4243 = vpop.f32.mrb[0].mxu0
        %4244 = vdwg.mxu0
        %v4245 = vadd.f32 %v4167, %v4242
        %v4246 = vld [vmem:[%s4089 + $0x2] sm:$0xff]
        %s4247 = scalar_lea.vmem %s10, 80
        %v4248 = vld [vmem:[%s4247] sm:$0xff]
        %v4249 = vld [vmem:[%s4247 + $0x8] sm:$0xff]
        %v4251 = vsel %vm737, %v4246, 0
        %4253 = vmatprep.subr.mxu0 0.0
        %4254 = vmatpush1.msra.mxu0 %v4248
        %4255 = vmatprep.subr.mxu0 0.0
        %4256 = vmatpush1.msra.mxu0 %v4249
        %4257 = vmatprep.subr.mxu0 0.0
        %4258 = vmatpush1.msra.mxu0 0.0
        %4259 = vmatprep.subr.mxu0 0.0
        %4260 = vmatpush1.msra.mxu0 0.0
        %4261 = vmatprep.subr.mxu0 0.0
        %4262 = vmatpush1.msra.mxu0 0.0
        %4263 = vmatprep.subr.mxu0 0.0
        %4264 = vmatpush1.msra.mxu0 0.0
        %4265 = vmatprep.subr.mxu0 0.0
        %4266 = vmatpush1.msra.mxu0 0.0
        %4267 = vmatprep.subr.mxu0 0.0
        %4268 = vmatpush1.msra.mxu0 0.0
        %4269 = vmatprep.subr.mxu0 0.0
        %4270 = vmatpush1.msra.mxu0 0.0
        %4271 = vmatprep.subr.mxu0 0.0
        %4272 = vmatpush1.msra.mxu0 0.0
        %4273 = vmatprep.subr.mxu0 0.0
        %4274 = vmatpush1.msra.mxu0 0.0
        %4275 = vmatprep.subr.mxu0 0.0
        %4276 = vmatpush1.msra.mxu0 0.0
        %4277 = vmatprep.subr.mxu0 0.0
        %4278 = vmatpush1.msra.mxu0 0.0
        %4279 = vmatprep.subr.mxu0 0.0
        %4280 = vmatpush1.msra.mxu0 0.0
        %4281 = vmatprep.subr.mxu0 0.0
        %4282 = vmatpush1.msra.mxu0 0.0
        %4283 = vmatprep.subr.mxu0 0.0
        %4284 = vmatpush1.msra.mxu0 0.0
        %4285 = vmatprep.subr.mxu0 0.0
        %4286 = vmatpush1.msra.mxu0 0.0
        %4287 = vmatprep.subr.mxu0 0.0
        %4288 = vmatpush1.msra.mxu0 0.0
        %4289 = vmatprep.subr.mxu0 0.0
        %4290 = vmatpush1.msra.mxu0 0.0
        %4291 = vmatprep.subr.mxu0 0.0
        %4292 = vmatpush1.msra.mxu0 0.0
        %4293 = vmatprep.subr.mxu0 0.0
        %4294 = vmatpush1.msra.mxu0 0.0
        %4295 = vmatprep.subr.mxu0 0.0
        %4296 = vmatpush1.msra.mxu0 0.0
        %4297 = vmatprep.subr.mxu0 0.0
        %4298 = vmatpush1.msra.mxu0 0.0
        %4299 = vmatprep.subr.mxu0 0.0
        %4300 = vmatpush1.msra.mxu0 0.0
        %4301 = vmatprep.subr.mxu0 0.0
        %4302 = vmatpush1.msra.mxu0 0.0
        %4303 = vmatprep.subr.mxu0 0.0
        %4304 = vmatpush1.msra.mxu0 0.0
        %4305 = vmatprep.subr.mxu0 0.0
        %4306 = vmatpush1.msra.mxu0 0.0
        %4307 = vmatprep.subr.mxu0 0.0
        %4308 = vmatpush1.msra.mxu0 0.0
        %4309 = vmatprep.subr.mxu0 0.0
        %4310 = vmatpush1.msra.mxu0 0.0
        %4311 = vmatprep.subr.mxu0 0.0
        %4312 = vmatpush1.msra.mxu0 0.0
        %4313 = vmatprep.subr.mxu0 0.0
        %4314 = vmatpush1.msra.mxu0 0.0
        %4315 = vmatprep.subr.mxu0 0.0
        %4316 = vmatpush1.msra.mxu0 0.0
        %4317 = vmatprep.mubr.f32.mxu0 0.0
        %4318 = vmatmul.mubr.f32.gmra.mrb[0].mxu0 %v4251
        %v4319 = vpop.f32.mrb[0].mxu0
        %v4320 = vadd.f32 0.0, %v4319
        %v4321 = vpop.f32.mrb[0].mxu0
        %4322 = vdwg.mxu0
        %v4323 = vadd.f32 %v4245, %v4320
        %s4324 = scalar_lea.vmem [#allocation5], %s3619
        %v4325 = vld [vmem:[%s4324] sm:$0xff]
        %s4326 = scalar_lea.vmem %s10, 96
        %v4327 = vld [vmem:[%s4326] sm:$0xff]
        %v4328 = vld [vmem:[%s4326 + $0x8] sm:$0xff]
        %v4330 = vsel %vm737, %v4325, 0
        %4332 = vmatprep.subr.mxu0 0.0
        %4333 = vmatpush1.msra.mxu0 %v4327
        %4334 = vmatprep.subr.mxu0 0.0
        %4335 = vmatpush1.msra.mxu0 %v4328
        %4336 = vmatprep.subr.mxu0 0.0
        %4337 = vmatpush1.msra.mxu0 0.0
        %4338 = vmatprep.subr.mxu0 0.0
        %4339 = vmatpush1.msra.mxu0 0.0
        %4340 = vmatprep.subr.mxu0 0.0
        %4341 = vmatpush1.msra.mxu0 0.0
        %4342 = vmatprep.subr.mxu0 0.0
        %4343 = vmatpush1.msra.mxu0 0.0
        %4344 = vmatprep.subr.mxu0 0.0
        %4345 = vmatpush1.msra.mxu0 0.0
        %4346 = vmatprep.subr.mxu0 0.0
        %4347 = vmatpush1.msra.mxu0 0.0
        %4348 = vmatprep.subr.mxu0 0.0
        %4349 = vmatpush1.msra.mxu0 0.0
        %4350 = vmatprep.subr.mxu0 0.0
        %4351 = vmatpush1.msra.mxu0 0.0
        %4352 = vmatprep.subr.mxu0 0.0
        %4353 = vmatpush1.msra.mxu0 0.0
        %4354 = vmatprep.subr.mxu0 0.0
        %4355 = vmatpush1.msra.mxu0 0.0
        %4356 = vmatprep.subr.mxu0 0.0
        %4357 = vmatpush1.msra.mxu0 0.0
        %4358 = vmatprep.subr.mxu0 0.0
        %4359 = vmatpush1.msra.mxu0 0.0
        %4360 = vmatprep.subr.mxu0 0.0
        %4361 = vmatpush1.msra.mxu0 0.0
        %4362 = vmatprep.subr.mxu0 0.0
        %4363 = vmatpush1.msra.mxu0 0.0
        %4364 = vmatprep.subr.mxu0 0.0
        %4365 = vmatpush1.msra.mxu0 0.0
        %4366 = vmatprep.subr.mxu0 0.0
        %4367 = vmatpush1.msra.mxu0 0.0
        %4368 = vmatprep.subr.mxu0 0.0
        %4369 = vmatpush1.msra.mxu0 0.0
        %4370 = vmatprep.subr.mxu0 0.0
        %4371 = vmatpush1.msra.mxu0 0.0
        %4372 = vmatprep.subr.mxu0 0.0
        %4373 = vmatpush1.msra.mxu0 0.0
        %4374 = vmatprep.subr.mxu0 0.0
        %4375 = vmatpush1.msra.mxu0 0.0
        %4376 = vmatprep.subr.mxu0 0.0
        %4377 = vmatpush1.msra.mxu0 0.0
        %4378 = vmatprep.subr.mxu0 0.0
        %4379 = vmatpush1.msra.mxu0 0.0
        %4380 = vmatprep.subr.mxu0 0.0
        %4381 = vmatpush1.msra.mxu0 0.0
        %4382 = vmatprep.subr.mxu0 0.0
        %4383 = vmatpush1.msra.mxu0 0.0
        %4384 = vmatprep.subr.mxu0 0.0
        %4385 = vmatpush1.msra.mxu0 0.0
        %4386 = vmatprep.subr.mxu0 0.0
        %4387 = vmatpush1.msra.mxu0 0.0
        %4388 = vmatprep.subr.mxu0 0.0
        %4389 = vmatpush1.msra.mxu0 0.0
        %4390 = vmatprep.subr.mxu0 0.0
        %4391 = vmatpush1.msra.mxu0 0.0
        %4392 = vmatprep.subr.mxu0 0.0
        %4393 = vmatpush1.msra.mxu0 0.0
        %4394 = vmatprep.subr.mxu0 0.0
        %4395 = vmatpush1.msra.mxu0 0.0
        %4396 = vmatprep.mubr.f32.mxu0 0.0
        %4397 = vmatmul.mubr.f32.gmra.mrb[0].mxu0 %v4330
        %v4398 = vpop.f32.mrb[0].mxu0
        %v4399 = vadd.f32 0.0, %v4398
        %v4400 = vpop.f32.mrb[0].mxu0
        %4401 = vdwg.mxu0
        %v4402 = vadd.f32 %v4323, %v4399
        %v4403 = vld [vmem:[%s4324 + $0x1] sm:$0xff]
        %s4404 = scalar_lea.vmem %s10, 112
        %v4405 = vld [vmem:[%s4404] sm:$0xff]
        %v4406 = vld [vmem:[%s4404 + $0x8] sm:$0xff]
        %v4408 = vsel %vm737, %v4403, 0
        %4410 = vmatprep.subr.mxu0 0.0
        %4411 = vmatpush1.msra.mxu0 %v4405
        %4412 = vmatprep.subr.mxu0 0.0
        %4413 = vmatpush1.msra.mxu0 %v4406
        %4414 = vmatprep.subr.mxu0 0.0
        %4415 = vmatpush1.msra.mxu0 0.0
        %4416 = vmatprep.subr.mxu0 0.0
        %4417 = vmatpush1.msra.mxu0 0.0
        %4418 = vmatprep.subr.mxu0 0.0
        %4419 = vmatpush1.msra.mxu0 0.0
        %4420 = vmatprep.subr.mxu0 0.0
        %4421 = vmatpush1.msra.mxu0 0.0
        %4422 = vmatprep.subr.mxu0 0.0
        %4423 = vmatpush1.msra.mxu0 0.0
        %4424 = vmatprep.subr.mxu0 0.0
        %4425 = vmatpush1.msra.mxu0 0.0
        %4426 = vmatprep.subr.mxu0 0.0
        %4427 = vmatpush1.msra.mxu0 0.0
        %4428 = vmatprep.subr.mxu0 0.0
        %4429 = vmatpush1.msra.mxu0 0.0
        %4430 = vmatprep.subr.mxu0 0.0
        %4431 = vmatpush1.msra.mxu0 0.0
        %4432 = vmatprep.subr.mxu0 0.0
        %4433 = vmatpush1.msra.mxu0 0.0
        %4434 = vmatprep.subr.mxu0 0.0
        %4435 = vmatpush1.msra.mxu0 0.0
        %4436 = vmatprep.subr.mxu0 0.0
        %4437 = vmatpush1.msra.mxu0 0.0
        %4438 = vmatprep.subr.mxu0 0.0
        %4439 = vmatpush1.msra.mxu0 0.0
        %4440 = vmatprep.subr.mxu0 0.0
        %4441 = vmatpush1.msra.mxu0 0.0
        %4442 = vmatprep.subr.mxu0 0.0
        %4443 = vmatpush1.msra.mxu0 0.0
        %4444 = vmatprep.subr.mxu0 0.0
        %4445 = vmatpush1.msra.mxu0 0.0
        %4446 = vmatprep.subr.mxu0 0.0
        %4447 = vmatpush1.msra.mxu0 0.0
        %4448 = vmatprep.subr.mxu0 0.0
        %4449 = vmatpush1.msra.mxu0 0.0
        %4450 = vmatprep.subr.mxu0 0.0
        %4451 = vmatpush1.msra.mxu0 0.0
        %4452 = vmatprep.subr.mxu0 0.0
        %4453 = vmatpush1.msra.mxu0 0.0
        %4454 = vmatprep.subr.mxu0 0.0
        %4455 = vmatpush1.msra.mxu0 0.0
        %4456 = vmatprep.subr.mxu0 0.0
        %4457 = vmatpush1.msra.mxu0 0.0
        %4458 = vmatprep.subr.mxu0 0.0
        %4459 = vmatpush1.msra.mxu0 0.0
        %4460 = vmatprep.subr.mxu0 0.0
        %4461 = vmatpush1.msra.mxu0 0.0
        %4462 = vmatprep.subr.mxu0 0.0
        %4463 = vmatpush1.msra.mxu0 0.0
        %4464 = vmatprep.subr.mxu0 0.0
        %4465 = vmatpush1.msra.mxu0 0.0
        %4466 = vmatprep.subr.mxu0 0.0
        %4467 = vmatpush1.msra.mxu0 0.0
        %4468 = vmatprep.subr.mxu0 0.0
        %4469 = vmatpush1.msra.mxu0 0.0
        %4470 = vmatprep.subr.mxu0 0.0
        %4471 = vmatpush1.msra.mxu0 0.0
        %4472 = vmatprep.subr.mxu0 0.0
        %4473 = vmatpush1.msra.mxu0 0.0
        %4474 = vmatprep.mubr.f32.mxu0 0.0
        %4475 = vmatmul.mubr.f32.gmra.mrb[0].mxu0 %v4408
        %v4476 = vpop.f32.mrb[0].mxu0
        %v4477 = vadd.f32 0.0, %v4476
        %v4478 = vpop.f32.mrb[0].mxu0
        %4479 = vdwg.mxu0
        %v4480 = vadd.f32 %v4402, %v4477
        %v4481 = vld [vmem:[%s4324 + $0x2] sm:$0xff]
        %s4482 = scalar_lea.vmem %s10, 128
        %v4483 = vld [vmem:[%s4482] sm:$0xff]
        %v4484 = vld [vmem:[%s4482 + $0x8] sm:$0xff]
        %v4486 = vsel %vm737, %v4481, 0
        %4488 = vmatprep.subr.mxu0 0.0
        %4489 = vmatpush1.msra.mxu0 %v4483
        %4490 = vmatprep.subr.mxu0 0.0
        %4491 = vmatpush1.msra.mxu0 %v4484
        %4492 = vmatprep.subr.mxu0 0.0
        %4493 = vmatpush1.msra.mxu0 0.0
        %4494 = vmatprep.subr.mxu0 0.0
        %4495 = vmatpush1.msra.mxu0 0.0
        %4496 = vmatprep.subr.mxu0 0.0
        %4497 = vmatpush1.msra.mxu0 0.0
        %4498 = vmatprep.subr.mxu0 0.0
        %4499 = vmatpush1.msra.mxu0 0.0
        %4500 = vmatprep.subr.mxu0 0.0
        %4501 = vmatpush1.msra.mxu0 0.0
        %4502 = vmatprep.subr.mxu0 0.0
        %4503 = vmatpush1.msra.mxu0 0.0
        %4504 = vmatprep.subr.mxu0 0.0
        %4505 = vmatpush1.msra.mxu0 0.0
        %4506 = vmatprep.subr.mxu0 0.0
        %4507 = vmatpush1.msra.mxu0 0.0
        %4508 = vmatprep.subr.mxu0 0.0
        %4509 = vmatpush1.msra.mxu0 0.0
        %4510 = vmatprep.subr.mxu0 0.0
        %4511 = vmatpush1.msra.mxu0 0.0
        %4512 = vmatprep.subr.mxu0 0.0
        %4513 = vmatpush1.msra.mxu0 0.0
        %4514 = vmatprep.subr.mxu0 0.0
        %4515 = vmatpush1.msra.mxu0 0.0
        %4516 = vmatprep.subr.mxu0 0.0
        %4517 = vmatpush1.msra.mxu0 0.0
        %4518 = vmatprep.subr.mxu0 0.0
        %4519 = vmatpush1.msra.mxu0 0.0
        %4520 = vmatprep.subr.mxu0 0.0
        %4521 = vmatpush1.msra.mxu0 0.0
        %4522 = vmatprep.subr.mxu0 0.0
        %4523 = vmatpush1.msra.mxu0 0.0
        %4524 = vmatprep.subr.mxu0 0.0
        %4525 = vmatpush1.msra.mxu0 0.0
        %4526 = vmatprep.subr.mxu0 0.0
        %4527 = vmatpush1.msra.mxu0 0.0
        %4528 = vmatprep.subr.mxu0 0.0
        %4529 = vmatpush1.msra.mxu0 0.0
        %4530 = vmatprep.subr.mxu0 0.0
        %4531 = vmatpush1.msra.mxu0 0.0
        %4532 = vmatprep.subr.mxu0 0.0
        %4533 = vmatpush1.msra.mxu0 0.0
        %4534 = vmatprep.subr.mxu0 0.0
        %4535 = vmatpush1.msra.mxu0 0.0
        %4536 = vmatprep.subr.mxu0 0.0
        %4537 = vmatpush1.msra.mxu0 0.0
        %4538 = vmatprep.subr.mxu0 0.0
        %4539 = vmatpush1.msra.mxu0 0.0
        %4540 = vmatprep.subr.mxu0 0.0
        %4541 = vmatpush1.msra.mxu0 0.0
        %4542 = vmatprep.subr.mxu0 0.0
        %4543 = vmatpush1.msra.mxu0 0.0
        %4544 = vmatprep.subr.mxu0 0.0
        %4545 = vmatpush1.msra.mxu0 0.0
        %4546 = vmatprep.subr.mxu0 0.0
        %4547 = vmatpush1.msra.mxu0 0.0
        %4548 = vmatprep.subr.mxu0 0.0
        %4549 = vmatpush1.msra.mxu0 0.0
        %4550 = vmatprep.subr.mxu0 0.0
        %4551 = vmatpush1.msra.mxu0 0.0
        %4552 = vmatprep.mubr.f32.mxu0 0.0
        %4553 = vmatmul.mubr.f32.gmra.mrb[0].mxu0 %v4486
        %v4554 = vpop.f32.mrb[0].mxu0
        %v4555 = vadd.f32 0.0, %v4554
        %v4556 = vpop.f32.mrb[0].mxu0
        %4557 = vdwg.mxu0
        %v4558 = vadd.f32 %v4480, %v4555
        %v4559 = vmax.f32 %v4558, 0.0
        %s4560 = smul.u32 %s3134, 8
        %s4561 = scalar_lea.vmem [#allocation9], %s4560
        %4562 = vst.msk [vmem:[%s4561] sm:$0xff] %vm737, %v4559
      $region143: #{unet_forward.1} parent=95 // loop_footer
        %s3138 = sadd.s32 1, %s3134
      $region144: #{unet_forward.1} parent=95 // loop_footer_branch
        %3133 = sbr.rel target = $region140
      $region145: #{unet_forward.1} parent=95 // loop_exit
        _
      %v4563 = vld [vmem:[%s12] sm:$0xff]
      %v4564 = vld [vmem:[%s12 + $0x8] sm:$0xff]
      %v4565 = vld [vmem:[%s13] sm:$0x1]
      loop: start=0, step=1, limit=8
      $region146: #{unet_forward.1} parent=95 // loop_pre_header
        _
      $region147: #{unet_forward.1} parent=95 // loop_header
        %s4567 = sphi 0, %s4571
        %p4568 = scmp.ge.s32.totalorder %s4567, 8
      $region148: #{unet_forward.1} parent=95 // loop_header_branch
        %4570 = sbr.rel (%p4568) target = $region152
      $region149: #{unet_forward.1} parent=95 // loop_body
        %s4572 = smul.u32 %s4567, 8
        %s4573 = scalar_lea.vmem [#allocation9], %s4572
        %v4574 = vld [vmem:[%s4573] sm:$0xff]
        %v4576 = vlaneseq
        %v4577 = vshrl.u32 %v4576, 7
        %v4578 = vsub.s32 0, %v4577
        %v4579 = vrot.slane %v4565, %v4578
        %v4582 = vsel %vm737, %v4574, 0
        %4584 = vmatprep.subr.mxu0 0.0
        %4585 = vmatpush1.msra.mxu0 %v4563
        %4586 = vmatprep.subr.mxu0 0.0
        %4587 = vmatpush1.msra.mxu0 %v4564
        %4588 = vmatprep.subr.mxu0 0.0
        %4589 = vmatpush1.msra.mxu0 0.0
        %4590 = vmatprep.subr.mxu0 0.0
        %4591 = vmatpush1.msra.mxu0 0.0
        %4592 = vmatprep.subr.mxu0 0.0
        %4593 = vmatpush1.msra.mxu0 0.0
        %4594 = vmatprep.subr.mxu0 0.0
        %4595 = vmatpush1.msra.mxu0 0.0
        %4596 = vmatprep.subr.mxu0 0.0
        %4597 = vmatpush1.msra.mxu0 0.0
        %4598 = vmatprep.subr.mxu0 0.0
        %4599 = vmatpush1.msra.mxu0 0.0
        %4600 = vmatprep.subr.mxu0 0.0
        %4601 = vmatpush1.msra.mxu0 0.0
        %4602 = vmatprep.subr.mxu0 0.0
        %4603 = vmatpush1.msra.mxu0 0.0
        %4604 = vmatprep.subr.mxu0 0.0
        %4605 = vmatpush1.msra.mxu0 0.0
        %4606 = vmatprep.subr.mxu0 0.0
        %4607 = vmatpush1.msra.mxu0 0.0
        %4608 = vmatprep.subr.mxu0 0.0
        %4609 = vmatpush1.msra.mxu0 0.0
        %4610 = vmatprep.subr.mxu0 0.0
        %4611 = vmatpush1.msra.mxu0 0.0
        %4612 = vmatprep.subr.mxu0 0.0
        %4613 = vmatpush1.msra.mxu0 0.0
        %4614 = vmatprep.subr.mxu0 0.0
        %4615 = vmatpush1.msra.mxu0 0.0
        %4616 = vmatprep.subr.mxu0 0.0
        %4617 = vmatpush1.msra.mxu0 0.0
        %4618 = vmatprep.subr.mxu0 0.0
        %4619 = vmatpush1.msra.mxu0 0.0
        %4620 = vmatprep.subr.mxu0 0.0
        %4621 = vmatpush1.msra.mxu0 0.0
        %4622 = vmatprep.subr.mxu0 0.0
        %4623 = vmatpush1.msra.mxu0 0.0
        %4624 = vmatprep.subr.mxu0 0.0
        %4625 = vmatpush1.msra.mxu0 0.0
        %4626 = vmatprep.subr.mxu0 0.0
        %4627 = vmatpush1.msra.mxu0 0.0
        %4628 = vmatprep.subr.mxu0 0.0
        %4629 = vmatpush1.msra.mxu0 0.0
        %4630 = vmatprep.subr.mxu0 0.0
        %4631 = vmatpush1.msra.mxu0 0.0
        %4632 = vmatprep.subr.mxu0 0.0
        %4633 = vmatpush1.msra.mxu0 0.0
        %4634 = vmatprep.subr.mxu0 0.0
        %4635 = vmatpush1.msra.mxu0 0.0
        %4636 = vmatprep.subr.mxu0 0.0
        %4637 = vmatpush1.msra.mxu0 0.0
        %4638 = vmatprep.subr.mxu0 0.0
        %4639 = vmatpush1.msra.mxu0 0.0
        %4640 = vmatprep.subr.mxu0 0.0
        %4641 = vmatpush1.msra.mxu0 0.0
        %4642 = vmatprep.subr.mxu0 0.0
        %4643 = vmatpush1.msra.mxu0 0.0
        %4644 = vmatprep.subr.mxu0 0.0
        %4645 = vmatpush1.msra.mxu0 0.0
        %4646 = vmatprep.subr.mxu0 0.0
        %4647 = vmatpush1.msra.mxu0 0.0
        %4648 = vmatprep.mubr.f32.mxu0 0.0
        %4649 = vmatmul.mubr.f32.gmra.mrb[0].mxu0 %v4582
        %v4650 = vpop.f32.mrb[0].mxu0
        %v4651 = vadd.f32 %v4579, %v4650
        %v4652 = vpop.f32.mrb[0].mxu0
        %4653 = vdwg.mxu0
        %v4655 = vsel %vm661, %v855, 0
        %v4658 = vsel %vm661, %v860, 0
        %4660 = vmatprep.subr.mxu0 0.0
        %4661 = vmatpush1.msra.mxu0 %v4651
        %4662 = vmatprep.subr.mxu0 0.0
        %4663 = vmatpush1.msra.mxu0 0.0
        %4664 = vmatprep.subr.mxu0 0.0
        %4665 = vmatpush1.msra.mxu0 0.0
        %4666 = vmatprep.subr.mxu0 0.0
        %4667 = vmatpush1.msra.mxu0 0.0
        %4668 = vmatprep.subr.mxu0 0.0
        %4669 = vmatpush1.msra.mxu0 0.0
        %4670 = vmatprep.subr.mxu0 0.0
        %4671 = vmatpush1.msra.mxu0 0.0
        %4672 = vmatprep.subr.mxu0 0.0
        %4673 = vmatpush1.msra.mxu0 0.0
        %4674 = vmatprep.subr.mxu0 0.0
        %4675 = vmatpush1.msra.mxu0 0.0
        %4676 = vmatprep.subr.mxu0 0.0
        %4677 = vmatpush1.msra.mxu0 0.0
        %4678 = vmatprep.subr.mxu0 0.0
        %4679 = vmatpush1.msra.mxu0 0.0
        %4680 = vmatprep.subr.mxu0 0.0
        %4681 = vmatpush1.msra.mxu0 0.0
        %4682 = vmatprep.subr.mxu0 0.0
        %4683 = vmatpush1.msra.mxu0 0.0
        %4684 = vmatprep.subr.mxu0 0.0
        %4685 = vmatpush1.msra.mxu0 0.0
        %4686 = vmatprep.subr.mxu0 0.0
        %4687 = vmatpush1.msra.mxu0 0.0
        %4688 = vmatprep.subr.mxu0 0.0
        %4689 = vmatpush1.msra.mxu0 0.0
        %4690 = vmatprep.subr.mxu0 0.0
        %4691 = vmatpush1.msra.mxu0 0.0
        %4692 = vmatprep.subr.mxu0 0.0
        %4693 = vmatpush1.msra.mxu0 0.0
        %4694 = vmatprep.subr.mxu0 0.0
        %4695 = vmatpush1.msra.mxu0 0.0
        %4696 = vmatprep.subr.mxu0 0.0
        %4697 = vmatpush1.msra.mxu0 0.0
        %4698 = vmatprep.subr.mxu0 0.0
        %4699 = vmatpush1.msra.mxu0 0.0
        %4700 = vmatprep.subr.mxu0 0.0
        %4701 = vmatpush1.msra.mxu0 0.0
        %4702 = vmatprep.subr.mxu0 0.0
        %4703 = vmatpush1.msra.mxu0 0.0
        %4704 = vmatprep.subr.mxu0 0.0
        %4705 = vmatpush1.msra.mxu0 0.0
        %4706 = vmatprep.subr.mxu0 0.0
        %4707 = vmatpush1.msra.mxu0 0.0
        %4708 = vmatprep.subr.mxu0 0.0
        %4709 = vmatpush1.msra.mxu0 0.0
        %4710 = vmatprep.subr.mxu0 0.0
        %4711 = vmatpush1.msra.mxu0 0.0
        %4712 = vmatprep.subr.mxu0 0.0
        %4713 = vmatpush1.msra.mxu0 0.0
        %4714 = vmatprep.subr.mxu0 0.0
        %4715 = vmatpush1.msra.mxu0 0.0
        %4716 = vmatprep.subr.mxu0 0.0
        %4717 = vmatpush1.msra.mxu0 0.0
        %4718 = vmatprep.subr.mxu0 0.0
        %4719 = vmatpush1.msra.mxu0 0.0
        %4720 = vmatprep.subr.mxu0 0.0
        %4721 = vmatpush1.msra.mxu0 0.0
        %4722 = vmatprep.subr.mxu0 0.0
        %4723 = vmatpush1.msra.mxu0 0.0
        %4724 = vmatprep.mubr.f32.mxu0 0.0
        %4725 = vmatmul.mubr.f32.gmra.mrb[0].mxu0 %v4655
        %v4726 = vpop.f32.mrb[0].mxu0
        %v4727 = vadd.f32 0.0, %v4726
        %v4728 = vpop.f32.mrb[0].mxu0
        %4729 = vmatprep.mubr.f32.mxu0 0.0
        %4730 = vmatmul.mubr.f32.gmra.mrb[0].mxu0 %v4658
        %v4731 = vpop.f32.mrb[0].mxu0
        %v4732 = vadd.f32 0.0, %v4731
        %v4733 = vpop.f32.mrb[0].mxu0
        %4734 = vdwg.mxu0
        %s4735 = smul.u32 %s4567, 2
        %s4736 = sadd.s32 %s4735, 1
        %s4737 = smul.u32 %s4736, 24
        %s4738 = scalar_lea.vmem [#allocation10], %s4737
        %4739 = vst.msk [vmem:[%s4738 + $0x1] sm:$0xff] %vm661, %v4727
        %4740 = vst.msk [vmem:[%s4738 + $0x9] sm:$0xff] %vm661, %v4732
        %s4741 = sadd.s32 %s4735, 2
        %s4742 = smul.u32 %s4741, 24
        %s4743 = scalar_lea.vmem [#allocation10], %s4742
        %4744 = vst.msk [vmem:[%s4743 + $0x1] sm:$0xff] %vm661, %v4727
        %4745 = vst.msk [vmem:[%s4743 + $0x9] sm:$0xff] %vm661, %v4732
      $region150: #{unet_forward.1} parent=95 // loop_footer
        %s4571 = sadd.s32 1, %s4567
      $region151: #{unet_forward.1} parent=95 // loop_footer_branch
        %4566 = sbr.rel target = $region147
      $region152: #{unet_forward.1} parent=95 // loop_exit
        _
      %v4746 = vld [vmem:[%s16] sm:$0x1]
      loop: start=0, step=1, limit=16
      $region153: #{unet_forward.1} parent=95 // loop_pre_header
        _
      $region154: #{unet_forward.1} parent=95 // loop_header
        %s4748 = sphi 0, %s4752
        %p4749 = scmp.ge.s32.totalorder %s4748, 16
      $region155: #{unet_forward.1} parent=95 // loop_header_branch
        %4751 = sbr.rel (%p4749) target = $region159
      $region156: #{unet_forward.1} parent=95 // loop_body
        %v4754 = vlaneseq
        %v4755 = vshrl.u32 %v4754, 7
        %v4756 = vsub.s32 0, %v4755
        %v4757 = vrot.slane %v4746, %v4756
        %v4759 = vadd.f32 %v4757, 0.0
        %s4760 = smul.u32 %s4748, 24
        %s4761 = scalar_lea.vmem [#allocation10], %s4760
        %v4762 = vld [vmem:[%s4761] sm:$0xff]
        %v4763 = vld [vmem:[%s4761 + $0x8] sm:$0xff]
        %v4764 = vld [vmem:[%s14] sm:$0xff]
        %v4766 = vsel %vm661, %v4762, 0
        %v4769 = vsel %vm661, %v4763, 0
        %4771 = vmatprep.subr.mxu0 0.0
        %4772 = vmatpush1.msra.mxu0 %v4764
        %4773 = vmatprep.subr.mxu0 0.0
        %4774 = vmatpush1.msra.mxu0 0.0
        %4775 = vmatprep.subr.mxu0 0.0
        %4776 = vmatpush1.msra.mxu0 0.0
        %4777 = vmatprep.subr.mxu0 0.0
        %4778 = vmatpush1.msra.mxu0 0.0
        %4779 = vmatprep.subr.mxu0 0.0
        %4780 = vmatpush1.msra.mxu0 0.0
        %4781 = vmatprep.subr.mxu0 0.0
        %4782 = vmatpush1.msra.mxu0 0.0
        %4783 = vmatprep.subr.mxu0 0.0
        %4784 = vmatpush1.msra.mxu0 0.0
        %4785 = vmatprep.subr.mxu0 0.0
        %4786 = vmatpush1.msra.mxu0 0.0
        %4787 = vmatprep.subr.mxu0 0.0
        %4788 = vmatpush1.msra.mxu0 0.0
        %4789 = vmatprep.subr.mxu0 0.0
        %4790 = vmatpush1.msra.mxu0 0.0
        %4791 = vmatprep.subr.mxu0 0.0
        %4792 = vmatpush1.msra.mxu0 0.0
        %4793 = vmatprep.subr.mxu0 0.0
        %4794 = vmatpush1.msra.mxu0 0.0
        %4795 = vmatprep.subr.mxu0 0.0
        %4796 = vmatpush1.msra.mxu0 0.0
        %4797 = vmatprep.subr.mxu0 0.0
        %4798 = vmatpush1.msra.mxu0 0.0
        %4799 = vmatprep.subr.mxu0 0.0
        %4800 = vmatpush1.msra.mxu0 0.0
        %4801 = vmatprep.subr.mxu0 0.0
        %4802 = vmatpush1.msra.mxu0 0.0
        %4803 = vmatprep.subr.mxu0 0.0
        %4804 = vmatpush1.msra.mxu0 0.0
        %4805 = vmatprep.subr.mxu0 0.0
        %4806 = vmatpush1.msra.mxu0 0.0
        %4807 = vmatprep.subr.mxu0 0.0
        %4808 = vmatpush1.msra.mxu0 0.0
        %4809 = vmatprep.subr.mxu0 0.0
        %4810 = vmatpush1.msra.mxu0 0.0
        %4811 = vmatprep.subr.mxu0 0.0
        %4812 = vmatpush1.msra.mxu0 0.0
        %4813 = vmatprep.subr.mxu0 0.0
        %4814 = vmatpush1.msra.mxu0 0.0
        %4815 = vmatprep.subr.mxu0 0.0
        %4816 = vmatpush1.msra.mxu0 0.0
        %4817 = vmatprep.subr.mxu0 0.0
        %4818 = vmatpush1.msra.mxu0 0.0
        %4819 = vmatprep.subr.mxu0 0.0
        %4820 = vmatpush1.msra.mxu0 0.0
        %4821 = vmatprep.subr.mxu0 0.0
        %4822 = vmatpush1.msra.mxu0 0.0
        %4823 = vmatprep.subr.mxu0 0.0
        %4824 = vmatpush1.msra.mxu0 0.0
        %4825 = vmatprep.subr.mxu0 0.0
        %4826 = vmatpush1.msra.mxu0 0.0
        %4827 = vmatprep.subr.mxu0 0.0
        %4828 = vmatpush1.msra.mxu0 0.0
        %4829 = vmatprep.subr.mxu0 0.0
        %4830 = vmatpush1.msra.mxu0 0.0
        %4831 = vmatprep.subr.mxu0 0.0
        %4832 = vmatpush1.msra.mxu0 0.0
        %4833 = vmatprep.subr.mxu0 0.0
        %4834 = vmatpush1.msra.mxu0 0.0
        %4835 = vmatprep.mubr.f32.mxu0 0.0
        %4836 = vmatmul.mubr.f32.gmra.mrb[0].mxu0 %v4766
        %v4837 = vpop.f32.mrb[0].mxu0
        %v4838 = vadd.f32 0.0, %v4837
        %v4839 = vpop.f32.mrb[0].mxu0
        %4840 = vmatprep.mubr.f32.mxu0 0.0
        %4841 = vmatmul.mubr.f32.gmra.mrb[0].mxu0 %v4769
        %v4842 = vpop.f32.mrb[0].mxu0
        %v4843 = vadd.f32 0.0, %v4842
        %v4844 = vpop.f32.mrb[0].mxu0
        %4845 = vdwg.mxu0
        %v4846 = vadd.f32 %v4759, %v4838
        %v4847 = vadd.f32 %v4759, %v4843
        %v4848 = vld [vmem:[%s4761 + $0x1] sm:$0xff]
        %v4849 = vld [vmem:[%s4761 + $0x9] sm:$0xff]
        %s4850 = scalar_lea.vmem %s14, 8
        %v4851 = vld [vmem:[%s4850] sm:$0xff]
        %v4853 = vsel %vm661, %v4848, 0
        %v4856 = vsel %vm661, %v4849, 0
        %4858 = vmatprep.subr.mxu0 0.0
        %4859 = vmatpush1.msra.mxu0 %v4851
        %4860 = vmatprep.subr.mxu0 0.0
        %4861 = vmatpush1.msra.mxu0 0.0
        %4862 = vmatprep.subr.mxu0 0.0
        %4863 = vmatpush1.msra.mxu0 0.0
        %4864 = vmatprep.subr.mxu0 0.0
        %4865 = vmatpush1.msra.mxu0 0.0
        %4866 = vmatprep.subr.mxu0 0.0
        %4867 = vmatpush1.msra.mxu0 0.0
        %4868 = vmatprep.subr.mxu0 0.0
        %4869 = vmatpush1.msra.mxu0 0.0
        %4870 = vmatprep.subr.mxu0 0.0
        %4871 = vmatpush1.msra.mxu0 0.0
        %4872 = vmatprep.subr.mxu0 0.0
        %4873 = vmatpush1.msra.mxu0 0.0
        %4874 = vmatprep.subr.mxu0 0.0
        %4875 = vmatpush1.msra.mxu0 0.0
        %4876 = vmatprep.subr.mxu0 0.0
        %4877 = vmatpush1.msra.mxu0 0.0
        %4878 = vmatprep.subr.mxu0 0.0
        %4879 = vmatpush1.msra.mxu0 0.0
        %4880 = vmatprep.subr.mxu0 0.0
        %4881 = vmatpush1.msra.mxu0 0.0
        %4882 = vmatprep.subr.mxu0 0.0
        %4883 = vmatpush1.msra.mxu0 0.0
        %4884 = vmatprep.subr.mxu0 0.0
        %4885 = vmatpush1.msra.mxu0 0.0
        %4886 = vmatprep.subr.mxu0 0.0
        %4887 = vmatpush1.msra.mxu0 0.0
        %4888 = vmatprep.subr.mxu0 0.0
        %4889 = vmatpush1.msra.mxu0 0.0
        %4890 = vmatprep.subr.mxu0 0.0
        %4891 = vmatpush1.msra.mxu0 0.0
        %4892 = vmatprep.subr.mxu0 0.0
        %4893 = vmatpush1.msra.mxu0 0.0
        %4894 = vmatprep.subr.mxu0 0.0
        %4895 = vmatpush1.msra.mxu0 0.0
        %4896 = vmatprep.subr.mxu0 0.0
        %4897 = vmatpush1.msra.mxu0 0.0
        %4898 = vmatprep.subr.mxu0 0.0
        %4899 = vmatpush1.msra.mxu0 0.0
        %4900 = vmatprep.subr.mxu0 0.0
        %4901 = vmatpush1.msra.mxu0 0.0
        %4902 = vmatprep.subr.mxu0 0.0
        %4903 = vmatpush1.msra.mxu0 0.0
        %4904 = vmatprep.subr.mxu0 0.0
        %4905 = vmatpush1.msra.mxu0 0.0
        %4906 = vmatprep.subr.mxu0 0.0
        %4907 = vmatpush1.msra.mxu0 0.0
        %4908 = vmatprep.subr.mxu0 0.0
        %4909 = vmatpush1.msra.mxu0 0.0
        %4910 = vmatprep.subr.mxu0 0.0
        %4911 = vmatpush1.msra.mxu0 0.0
        %4912 = vmatprep.subr.mxu0 0.0
        %4913 = vmatpush1.msra.mxu0 0.0
        %4914 = vmatprep.subr.mxu0 0.0
        %4915 = vmatpush1.msra.mxu0 0.0
        %4916 = vmatprep.subr.mxu0 0.0
        %4917 = vmatpush1.msra.mxu0 0.0
        %4918 = vmatprep.subr.mxu0 0.0
        %4919 = vmatpush1.msra.mxu0 0.0
        %4920 = vmatprep.subr.mxu0 0.0
        %4921 = vmatpush1.msra.mxu0 0.0
        %4922 = vmatprep.mubr.f32.mxu0 0.0
        %4923 = vmatmul.mubr.f32.gmra.mrb[0].mxu0 %v4853
        %v4924 = vpop.f32.mrb[0].mxu0
        %v4925 = vadd.f32 0.0, %v4924
        %v4926 = vpop.f32.mrb[0].mxu0
        %4927 = vmatprep.mubr.f32.mxu0 0.0
        %4928 = vmatmul.mubr.f32.gmra.mrb[0].mxu0 %v4856
        %v4929 = vpop.f32.mrb[0].mxu0
        %v4930 = vadd.f32 0.0, %v4929
        %v4931 = vpop.f32.mrb[0].mxu0
        %4932 = vdwg.mxu0
        %v4933 = vadd.f32 %v4846, %v4925
        %v4934 = vadd.f32 %v4847, %v4930
        %v4935 = vld [vmem:[%s4761 + $0x2] sm:$0xff]
        %v4936 = vld [vmem:[%s4761 + $0xa] sm:$0xff]
        %s4937 = scalar_lea.vmem %s14, 16
        %v4938 = vld [vmem:[%s4937] sm:$0xff]
        %v4940 = vsel %vm661, %v4935, 0
        %v4943 = vsel %vm661, %v4936, 0
        %4945 = vmatprep.subr.mxu0 0.0
        %4946 = vmatpush1.msra.mxu0 %v4938
        %4947 = vmatprep.subr.mxu0 0.0
        %4948 = vmatpush1.msra.mxu0 0.0
        %4949 = vmatprep.subr.mxu0 0.0
        %4950 = vmatpush1.msra.mxu0 0.0
        %4951 = vmatprep.subr.mxu0 0.0
        %4952 = vmatpush1.msra.mxu0 0.0
        %4953 = vmatprep.subr.mxu0 0.0
        %4954 = vmatpush1.msra.mxu0 0.0
        %4955 = vmatprep.subr.mxu0 0.0
        %4956 = vmatpush1.msra.mxu0 0.0
        %4957 = vmatprep.subr.mxu0 0.0
        %4958 = vmatpush1.msra.mxu0 0.0
        %4959 = vmatprep.subr.mxu0 0.0
        %4960 = vmatpush1.msra.mxu0 0.0
        %4961 = vmatprep.subr.mxu0 0.0
        %4962 = vmatpush1.msra.mxu0 0.0
        %4963 = vmatprep.subr.mxu0 0.0
        %4964 = vmatpush1.msra.mxu0 0.0
        %4965 = vmatprep.subr.mxu0 0.0
        %4966 = vmatpush1.msra.mxu0 0.0
        %4967 = vmatprep.subr.mxu0 0.0
        %4968 = vmatpush1.msra.mxu0 0.0
        %4969 = vmatprep.subr.mxu0 0.0
        %4970 = vmatpush1.msra.mxu0 0.0
        %4971 = vmatprep.subr.mxu0 0.0
        %4972 = vmatpush1.msra.mxu0 0.0
        %4973 = vmatprep.subr.mxu0 0.0
        %4974 = vmatpush1.msra.mxu0 0.0
        %4975 = vmatprep.subr.mxu0 0.0
        %4976 = vmatpush1.msra.mxu0 0.0
        %4977 = vmatprep.subr.mxu0 0.0
        %4978 = vmatpush1.msra.mxu0 0.0
        %4979 = vmatprep.subr.mxu0 0.0
        %4980 = vmatpush1.msra.mxu0 0.0
        %4981 = vmatprep.subr.mxu0 0.0
        %4982 = vmatpush1.msra.mxu0 0.0
        %4983 = vmatprep.subr.mxu0 0.0
        %4984 = vmatpush1.msra.mxu0 0.0
        %4985 = vmatprep.subr.mxu0 0.0
        %4986 = vmatpush1.msra.mxu0 0.0
        %4987 = vmatprep.subr.mxu0 0.0
        %4988 = vmatpush1.msra.mxu0 0.0
        %4989 = vmatprep.subr.mxu0 0.0
        %4990 = vmatpush1.msra.mxu0 0.0
        %4991 = vmatprep.subr.mxu0 0.0
        %4992 = vmatpush1.msra.mxu0 0.0
        %4993 = vmatprep.subr.mxu0 0.0
        %4994 = vmatpush1.msra.mxu0 0.0
        %4995 = vmatprep.subr.mxu0 0.0
        %4996 = vmatpush1.msra.mxu0 0.0
        %4997 = vmatprep.subr.mxu0 0.0
        %4998 = vmatpush1.msra.mxu0 0.0
        %4999 = vmatprep.subr.mxu0 0.0
        %5000 = vmatpush1.msra.mxu0 0.0
        %5001 = vmatprep.subr.mxu0 0.0
        %5002 = vmatpush1.msra.mxu0 0.0
        %5003 = vmatprep.subr.mxu0 0.0
        %5004 = vmatpush1.msra.mxu0 0.0
        %5005 = vmatprep.subr.mxu0 0.0
        %5006 = vmatpush1.msra.mxu0 0.0
        %5007 = vmatprep.subr.mxu0 0.0
        %5008 = vmatpush1.msra.mxu0 0.0
        %5009 = vmatprep.mubr.f32.mxu0 0.0
        %5010 = vmatmul.mubr.f32.gmra.mrb[0].mxu0 %v4940
        %v5011 = vpop.f32.mrb[0].mxu0
        %v5012 = vadd.f32 0.0, %v5011
        %v5013 = vpop.f32.mrb[0].mxu0
        %5014 = vmatprep.mubr.f32.mxu0 0.0
        %5015 = vmatmul.mubr.f32.gmra.mrb[0].mxu0 %v4943
        %v5016 = vpop.f32.mrb[0].mxu0
        %v5017 = vadd.f32 0.0, %v5016
        %v5018 = vpop.f32.mrb[0].mxu0
        %5019 = vdwg.mxu0
        %v5020 = vadd.f32 %v4933, %v5012
        %v5021 = vadd.f32 %v4934, %v5017
        %s5022 = sadd.s32 %s4748, 1
        %s5023 = smul.u32 %s5022, 24
        %s5024 = scalar_lea.vmem [#allocation10], %s5023
        %v5025 = vld [vmem:[%s5024] sm:$0xff]
        %v5026 = vld [vmem:[%s5024 + $0x8] sm:$0xff]
        %s5027 = scalar_lea.vmem %s14, 24
        %v5028 = vld [vmem:[%s5027] sm:$0xff]
        %v5030 = vsel %vm661, %v5025, 0
        %v5033 = vsel %vm661, %v5026, 0
        %5035 = vmatprep.subr.mxu0 0.0
        %5036 = vmatpush1.msra.mxu0 %v5028
        %5037 = vmatprep.subr.mxu0 0.0
        %5038 = vmatpush1.msra.mxu0 0.0
        %5039 = vmatprep.subr.mxu0 0.0
        %5040 = vmatpush1.msra.mxu0 0.0
        %5041 = vmatprep.subr.mxu0 0.0
        %5042 = vmatpush1.msra.mxu0 0.0
        %5043 = vmatprep.subr.mxu0 0.0
        %5044 = vmatpush1.msra.mxu0 0.0
        %5045 = vmatprep.subr.mxu0 0.0
        %5046 = vmatpush1.msra.mxu0 0.0
        %5047 = vmatprep.subr.mxu0 0.0
        %5048 = vmatpush1.msra.mxu0 0.0
        %5049 = vmatprep.subr.mxu0 0.0
        %5050 = vmatpush1.msra.mxu0 0.0
        %5051 = vmatprep.subr.mxu0 0.0
        %5052 = vmatpush1.msra.mxu0 0.0
        %5053 = vmatprep.subr.mxu0 0.0
        %5054 = vmatpush1.msra.mxu0 0.0
        %5055 = vmatprep.subr.mxu0 0.0
        %5056 = vmatpush1.msra.mxu0 0.0
        %5057 = vmatprep.subr.mxu0 0.0
        %5058 = vmatpush1.msra.mxu0 0.0
        %5059 = vmatprep.subr.mxu0 0.0
        %5060 = vmatpush1.msra.mxu0 0.0
        %5061 = vmatprep.subr.mxu0 0.0
        %5062 = vmatpush1.msra.mxu0 0.0
        %5063 = vmatprep.subr.mxu0 0.0
        %5064 = vmatpush1.msra.mxu0 0.0
        %5065 = vmatprep.subr.mxu0 0.0
        %5066 = vmatpush1.msra.mxu0 0.0
        %5067 = vmatprep.subr.mxu0 0.0
        %5068 = vmatpush1.msra.mxu0 0.0
        %5069 = vmatprep.subr.mxu0 0.0
        %5070 = vmatpush1.msra.mxu0 0.0
        %5071 = vmatprep.subr.mxu0 0.0
        %5072 = vmatpush1.msra.mxu0 0.0
        %5073 = vmatprep.subr.mxu0 0.0
        %5074 = vmatpush1.msra.mxu0 0.0
        %5075 = vmatprep.subr.mxu0 0.0
        %5076 = vmatpush1.msra.mxu0 0.0
        %5077 = vmatprep.subr.mxu0 0.0
        %5078 = vmatpush1.msra.mxu0 0.0
        %5079 = vmatprep.subr.mxu0 0.0
        %5080 = vmatpush1.msra.mxu0 0.0
        %5081 = vmatprep.subr.mxu0 0.0
        %5082 = vmatpush1.msra.mxu0 0.0
        %5083 = vmatprep.subr.mxu0 0.0
        %5084 = vmatpush1.msra.mxu0 0.0
        %5085 = vmatprep.subr.mxu0 0.0
        %5086 = vmatpush1.msra.mxu0 0.0
        %5087 = vmatprep.subr.mxu0 0.0
        %5088 = vmatpush1.msra.mxu0 0.0
        %5089 = vmatprep.subr.mxu0 0.0
        %5090 = vmatpush1.msra.mxu0 0.0
        %5091 = vmatprep.subr.mxu0 0.0
        %5092 = vmatpush1.msra.mxu0 0.0
        %5093 = vmatprep.subr.mxu0 0.0
        %5094 = vmatpush1.msra.mxu0 0.0
        %5095 = vmatprep.subr.mxu0 0.0
        %5096 = vmatpush1.msra.mxu0 0.0
        %5097 = vmatprep.subr.mxu0 0.0
        %5098 = vmatpush1.msra.mxu0 0.0
        %5099 = vmatprep.mubr.f32.mxu0 0.0
        %5100 = vmatmul.mubr.f32.gmra.mrb[0].mxu0 %v5030
        %v5101 = vpop.f32.mrb[0].mxu0
        %v5102 = vadd.f32 0.0, %v5101
        %v5103 = vpop.f32.mrb[0].mxu0
        %5104 = vmatprep.mubr.f32.mxu0 0.0
        %5105 = vmatmul.mubr.f32.gmra.mrb[0].mxu0 %v5033
        %v5106 = vpop.f32.mrb[0].mxu0
        %v5107 = vadd.f32 0.0, %v5106
        %v5108 = vpop.f32.mrb[0].mxu0
        %5109 = vdwg.mxu0
        %v5110 = vadd.f32 %v5020, %v5102
        %v5111 = vadd.f32 %v5021, %v5107
        %v5112 = vld [vmem:[%s5024 + $0x1] sm:$0xff]
        %v5113 = vld [vmem:[%s5024 + $0x9] sm:$0xff]
        %s5114 = scalar_lea.vmem %s14, 32
        %v5115 = vld [vmem:[%s5114] sm:$0xff]
        %v5117 = vsel %vm661, %v5112, 0
        %v5120 = vsel %vm661, %v5113, 0
        %5122 = vmatprep.subr.mxu0 0.0
        %5123 = vmatpush1.msra.mxu0 %v5115
        %5124 = vmatprep.subr.mxu0 0.0
        %5125 = vmatpush1.msra.mxu0 0.0
        %5126 = vmatprep.subr.mxu0 0.0
        %5127 = vmatpush1.msra.mxu0 0.0
        %5128 = vmatprep.subr.mxu0 0.0
        %5129 = vmatpush1.msra.mxu0 0.0
        %5130 = vmatprep.subr.mxu0 0.0
        %5131 = vmatpush1.msra.mxu0 0.0
        %5132 = vmatprep.subr.mxu0 0.0
        %5133 = vmatpush1.msra.mxu0 0.0
        %5134 = vmatprep.subr.mxu0 0.0
        %5135 = vmatpush1.msra.mxu0 0.0
        %5136 = vmatprep.subr.mxu0 0.0
        %5137 = vmatpush1.msra.mxu0 0.0
        %5138 = vmatprep.subr.mxu0 0.0
        %5139 = vmatpush1.msra.mxu0 0.0
        %5140 = vmatprep.subr.mxu0 0.0
        %5141 = vmatpush1.msra.mxu0 0.0
        %5142 = vmatprep.subr.mxu0 0.0
        %5143 = vmatpush1.msra.mxu0 0.0
        %5144 = vmatprep.subr.mxu0 0.0
        %5145 = vmatpush1.msra.mxu0 0.0
        %5146 = vmatprep.subr.mxu0 0.0
        %5147 = vmatpush1.msra.mxu0 0.0
        %5148 = vmatprep.subr.mxu0 0.0
        %5149 = vmatpush1.msra.mxu0 0.0
        %5150 = vmatprep.subr.mxu0 0.0
        %5151 = vmatpush1.msra.mxu0 0.0
        %5152 = vmatprep.subr.mxu0 0.0
        %5153 = vmatpush1.msra.mxu0 0.0
        %5154 = vmatprep.subr.mxu0 0.0
        %5155 = vmatpush1.msra.mxu0 0.0
        %5156 = vmatprep.subr.mxu0 0.0
        %5157 = vmatpush1.msra.mxu0 0.0
        %5158 = vmatprep.subr.mxu0 0.0
        %5159 = vmatpush1.msra.mxu0 0.0
        %5160 = vmatprep.subr.mxu0 0.0
        %5161 = vmatpush1.msra.mxu0 0.0
        %5162 = vmatprep.subr.mxu0 0.0
        %5163 = vmatpush1.msra.mxu0 0.0
        %5164 = vmatprep.subr.mxu0 0.0
        %5165 = vmatpush1.msra.mxu0 0.0
        %5166 = vmatprep.subr.mxu0 0.0
        %5167 = vmatpush1.msra.mxu0 0.0
        %5168 = vmatprep.subr.mxu0 0.0
        %5169 = vmatpush1.msra.mxu0 0.0
        %5170 = vmatprep.subr.mxu0 0.0
        %5171 = vmatpush1.msra.mxu0 0.0
        %5172 = vmatprep.subr.mxu0 0.0
        %5173 = vmatpush1.msra.mxu0 0.0
        %5174 = vmatprep.subr.mxu0 0.0
        %5175 = vmatpush1.msra.mxu0 0.0
        %5176 = vmatprep.subr.mxu0 0.0
        %5177 = vmatpush1.msra.mxu0 0.0
        %5178 = vmatprep.subr.mxu0 0.0
        %5179 = vmatpush1.msra.mxu0 0.0
        %5180 = vmatprep.subr.mxu0 0.0
        %5181 = vmatpush1.msra.mxu0 0.0
        %5182 = vmatprep.subr.mxu0 0.0
        %5183 = vmatpush1.msra.mxu0 0.0
        %5184 = vmatprep.subr.mxu0 0.0
        %5185 = vmatpush1.msra.mxu0 0.0
        %5186 = vmatprep.mubr.f32.mxu0 0.0
        %5187 = vmatmul.mubr.f32.gmra.mrb[0].mxu0 %v5117
        %v5188 = vpop.f32.mrb[0].mxu0
        %v5189 = vadd.f32 0.0, %v5188
        %v5190 = vpop.f32.mrb[0].mxu0
        %5191 = vmatprep.mubr.f32.mxu0 0.0
        %5192 = vmatmul.mubr.f32.gmra.mrb[0].mxu0 %v5120
        %v5193 = vpop.f32.mrb[0].mxu0
        %v5194 = vadd.f32 0.0, %v5193
        %v5195 = vpop.f32.mrb[0].mxu0
        %5196 = vdwg.mxu0
        %v5197 = vadd.f32 %v5110, %v5189
        %v5198 = vadd.f32 %v5111, %v5194
        %v5199 = vld [vmem:[%s5024 + $0x2] sm:$0xff]
        %v5200 = vld [vmem:[%s5024 + $0xa] sm:$0xff]
        %s5201 = scalar_lea.vmem %s14, 40
        %v5202 = vld [vmem:[%s5201] sm:$0xff]
        %v5204 = vsel %vm661, %v5199, 0
        %v5207 = vsel %vm661, %v5200, 0
        %5209 = vmatprep.subr.mxu0 0.0
        %5210 = vmatpush1.msra.mxu0 %v5202
        %5211 = vmatprep.subr.mxu0 0.0
        %5212 = vmatpush1.msra.mxu0 0.0
        %5213 = vmatprep.subr.mxu0 0.0
        %5214 = vmatpush1.msra.mxu0 0.0
        %5215 = vmatprep.subr.mxu0 0.0
        %5216 = vmatpush1.msra.mxu0 0.0
        %5217 = vmatprep.subr.mxu0 0.0
        %5218 = vmatpush1.msra.mxu0 0.0
        %5219 = vmatprep.subr.mxu0 0.0
        %5220 = vmatpush1.msra.mxu0 0.0
        %5221 = vmatprep.subr.mxu0 0.0
        %5222 = vmatpush1.msra.mxu0 0.0
        %5223 = vmatprep.subr.mxu0 0.0
        %5224 = vmatpush1.msra.mxu0 0.0
        %5225 = vmatprep.subr.mxu0 0.0
        %5226 = vmatpush1.msra.mxu0 0.0
        %5227 = vmatprep.subr.mxu0 0.0
        %5228 = vmatpush1.msra.mxu0 0.0
        %5229 = vmatprep.subr.mxu0 0.0
        %5230 = vmatpush1.msra.mxu0 0.0
        %5231 = vmatprep.subr.mxu0 0.0
        %5232 = vmatpush1.msra.mxu0 0.0
        %5233 = vmatprep.subr.mxu0 0.0
        %5234 = vmatpush1.msra.mxu0 0.0
        %5235 = vmatprep.subr.mxu0 0.0
        %5236 = vmatpush1.msra.mxu0 0.0
        %5237 = vmatprep.subr.mxu0 0.0
        %5238 = vmatpush1.msra.mxu0 0.0
        %5239 = vmatprep.subr.mxu0 0.0
        %5240 = vmatpush1.msra.mxu0 0.0
        %5241 = vmatprep.subr.mxu0 0.0
        %5242 = vmatpush1.msra.mxu0 0.0
        %5243 = vmatprep.subr.mxu0 0.0
        %5244 = vmatpush1.msra.mxu0 0.0
        %5245 = vmatprep.subr.mxu0 0.0
        %5246 = vmatpush1.msra.mxu0 0.0
        %5247 = vmatprep.subr.mxu0 0.0
        %5248 = vmatpush1.msra.mxu0 0.0
        %5249 = vmatprep.subr.mxu0 0.0
        %5250 = vmatpush1.msra.mxu0 0.0
        %5251 = vmatprep.subr.mxu0 0.0
        %5252 = vmatpush1.msra.mxu0 0.0
        %5253 = vmatprep.subr.mxu0 0.0
        %5254 = vmatpush1.msra.mxu0 0.0
        %5255 = vmatprep.subr.mxu0 0.0
        %5256 = vmatpush1.msra.mxu0 0.0
        %5257 = vmatprep.subr.mxu0 0.0
        %5258 = vmatpush1.msra.mxu0 0.0
        %5259 = vmatprep.subr.mxu0 0.0
        %5260 = vmatpush1.msra.mxu0 0.0
        %5261 = vmatprep.subr.mxu0 0.0
        %5262 = vmatpush1.msra.mxu0 0.0
        %5263 = vmatprep.subr.mxu0 0.0
        %5264 = vmatpush1.msra.mxu0 0.0
        %5265 = vmatprep.subr.mxu0 0.0
        %5266 = vmatpush1.msra.mxu0 0.0
        %5267 = vmatprep.subr.mxu0 0.0
        %5268 = vmatpush1.msra.mxu0 0.0
        %5269 = vmatprep.subr.mxu0 0.0
        %5270 = vmatpush1.msra.mxu0 0.0
        %5271 = vmatprep.subr.mxu0 0.0
        %5272 = vmatpush1.msra.mxu0 0.0
        %5273 = vmatprep.mubr.f32.mxu0 0.0
        %5274 = vmatmul.mubr.f32.gmra.mrb[0].mxu0 %v5204
        %v5275 = vpop.f32.mrb[0].mxu0
        %v5276 = vadd.f32 0.0, %v5275
        %v5277 = vpop.f32.mrb[0].mxu0
        %5278 = vmatprep.mubr.f32.mxu0 0.0
        %5279 = vmatmul.mubr.f32.gmra.mrb[0].mxu0 %v5207
        %v5280 = vpop.f32.mrb[0].mxu0
        %v5281 = vadd.f32 0.0, %v5280
        %v5282 = vpop.f32.mrb[0].mxu0
        %5283 = vdwg.mxu0
        %v5284 = vadd.f32 %v5197, %v5276
        %v5285 = vadd.f32 %v5198, %v5281
        %s5286 = sadd.s32 %s4748, 2
        %s5287 = smul.u32 %s5286, 24
        %s5288 = scalar_lea.vmem [#allocation10], %s5287
        %v5289 = vld [vmem:[%s5288] sm:$0xff]
        %v5290 = vld [vmem:[%s5288 + $0x8] sm:$0xff]
        %s5291 = scalar_lea.vmem %s14, 48
        %v5292 = vld [vmem:[%s5291] sm:$0xff]
        %v5294 = vsel %vm661, %v5289, 0
        %v5297 = vsel %vm661, %v5290, 0
        %5299 = vmatprep.subr.mxu0 0.0
        %5300 = vmatpush1.msra.mxu0 %v5292
        %5301 = vmatprep.subr.mxu0 0.0
        %5302 = vmatpush1.msra.mxu0 0.0
        %5303 = vmatprep.subr.mxu0 0.0
        %5304 = vmatpush1.msra.mxu0 0.0
        %5305 = vmatprep.subr.mxu0 0.0
        %5306 = vmatpush1.msra.mxu0 0.0
        %5307 = vmatprep.subr.mxu0 0.0
        %5308 = vmatpush1.msra.mxu0 0.0
        %5309 = vmatprep.subr.mxu0 0.0
        %5310 = vmatpush1.msra.mxu0 0.0
        %5311 = vmatprep.subr.mxu0 0.0
        %5312 = vmatpush1.msra.mxu0 0.0
        %5313 = vmatprep.subr.mxu0 0.0
        %5314 = vmatpush1.msra.mxu0 0.0
        %5315 = vmatprep.subr.mxu0 0.0
        %5316 = vmatpush1.msra.mxu0 0.0
        %5317 = vmatprep.subr.mxu0 0.0
        %5318 = vmatpush1.msra.mxu0 0.0
        %5319 = vmatprep.subr.mxu0 0.0
        %5320 = vmatpush1.msra.mxu0 0.0
        %5321 = vmatprep.subr.mxu0 0.0
        %5322 = vmatpush1.msra.mxu0 0.0
        %5323 = vmatprep.subr.mxu0 0.0
        %5324 = vmatpush1.msra.mxu0 0.0
        %5325 = vmatprep.subr.mxu0 0.0
        %5326 = vmatpush1.msra.mxu0 0.0
        %5327 = vmatprep.subr.mxu0 0.0
        %5328 = vmatpush1.msra.mxu0 0.0
        %5329 = vmatprep.subr.mxu0 0.0
        %5330 = vmatpush1.msra.mxu0 0.0
        %5331 = vmatprep.subr.mxu0 0.0
        %5332 = vmatpush1.msra.mxu0 0.0
        %5333 = vmatprep.subr.mxu0 0.0
        %5334 = vmatpush1.msra.mxu0 0.0
        %5335 = vmatprep.subr.mxu0 0.0
        %5336 = vmatpush1.msra.mxu0 0.0
        %5337 = vmatprep.subr.mxu0 0.0
        %5338 = vmatpush1.msra.mxu0 0.0
        %5339 = vmatprep.subr.mxu0 0.0
        %5340 = vmatpush1.msra.mxu0 0.0
        %5341 = vmatprep.subr.mxu0 0.0
        %5342 = vmatpush1.msra.mxu0 0.0
        %5343 = vmatprep.subr.mxu0 0.0
        %5344 = vmatpush1.msra.mxu0 0.0
        %5345 = vmatprep.subr.mxu0 0.0
        %5346 = vmatpush1.msra.mxu0 0.0
        %5347 = vmatprep.subr.mxu0 0.0
        %5348 = vmatpush1.msra.mxu0 0.0
        %5349 = vmatprep.subr.mxu0 0.0
        %5350 = vmatpush1.msra.mxu0 0.0
        %5351 = vmatprep.subr.mxu0 0.0
        %5352 = vmatpush1.msra.mxu0 0.0
        %5353 = vmatprep.subr.mxu0 0.0
        %5354 = vmatpush1.msra.mxu0 0.0
        %5355 = vmatprep.subr.mxu0 0.0
        %5356 = vmatpush1.msra.mxu0 0.0
        %5357 = vmatprep.subr.mxu0 0.0
        %5358 = vmatpush1.msra.mxu0 0.0
        %5359 = vmatprep.subr.mxu0 0.0
        %5360 = vmatpush1.msra.mxu0 0.0
        %5361 = vmatprep.subr.mxu0 0.0
        %5362 = vmatpush1.msra.mxu0 0.0
        %5363 = vmatprep.mubr.f32.mxu0 0.0
        %5364 = vmatmul.mubr.f32.gmra.mrb[0].mxu0 %v5294
        %v5365 = vpop.f32.mrb[0].mxu0
        %v5366 = vadd.f32 0.0, %v5365
        %v5367 = vpop.f32.mrb[0].mxu0
        %5368 = vmatprep.mubr.f32.mxu0 0.0
        %5369 = vmatmul.mubr.f32.gmra.mrb[0].mxu0 %v5297
        %v5370 = vpop.f32.mrb[0].mxu0
        %v5371 = vadd.f32 0.0, %v5370
        %v5372 = vpop.f32.mrb[0].mxu0
        %5373 = vdwg.mxu0
        %v5374 = vadd.f32 %v5284, %v5366
        %v5375 = vadd.f32 %v5285, %v5371
        %v5376 = vld [vmem:[%s5288 + $0x1] sm:$0xff]
        %v5377 = vld [vmem:[%s5288 + $0x9] sm:$0xff]
        %s5378 = scalar_lea.vmem %s14, 56
        %v5379 = vld [vmem:[%s5378] sm:$0xff]
        %v5381 = vsel %vm661, %v5376, 0
        %v5384 = vsel %vm661, %v5377, 0
        %5386 = vmatprep.subr.mxu0 0.0
        %5387 = vmatpush1.msra.mxu0 %v5379
        %5388 = vmatprep.subr.mxu0 0.0
        %5389 = vmatpush1.msra.mxu0 0.0
        %5390 = vmatprep.subr.mxu0 0.0
        %5391 = vmatpush1.msra.mxu0 0.0
        %5392 = vmatprep.subr.mxu0 0.0
        %5393 = vmatpush1.msra.mxu0 0.0
        %5394 = vmatprep.subr.mxu0 0.0
        %5395 = vmatpush1.msra.mxu0 0.0
        %5396 = vmatprep.subr.mxu0 0.0
        %5397 = vmatpush1.msra.mxu0 0.0
        %5398 = vmatprep.subr.mxu0 0.0
        %5399 = vmatpush1.msra.mxu0 0.0
        %5400 = vmatprep.subr.mxu0 0.0
        %5401 = vmatpush1.msra.mxu0 0.0
        %5402 = vmatprep.subr.mxu0 0.0
        %5403 = vmatpush1.msra.mxu0 0.0
        %5404 = vmatprep.subr.mxu0 0.0
        %5405 = vmatpush1.msra.mxu0 0.0
        %5406 = vmatprep.subr.mxu0 0.0
        %5407 = vmatpush1.msra.mxu0 0.0
        %5408 = vmatprep.subr.mxu0 0.0
        %5409 = vmatpush1.msra.mxu0 0.0
        %5410 = vmatprep.subr.mxu0 0.0
        %5411 = vmatpush1.msra.mxu0 0.0
        %5412 = vmatprep.subr.mxu0 0.0
        %5413 = vmatpush1.msra.mxu0 0.0
        %5414 = vmatprep.subr.mxu0 0.0
        %5415 = vmatpush1.msra.mxu0 0.0
        %5416 = vmatprep.subr.mxu0 0.0
        %5417 = vmatpush1.msra.mxu0 0.0
        %5418 = vmatprep.subr.mxu0 0.0
        %5419 = vmatpush1.msra.mxu0 0.0
        %5420 = vmatprep.subr.mxu0 0.0
        %5421 = vmatpush1.msra.mxu0 0.0
        %5422 = vmatprep.subr.mxu0 0.0
        %5423 = vmatpush1.msra.mxu0 0.0
        %5424 = vmatprep.subr.mxu0 0.0
        %5425 = vmatpush1.msra.mxu0 0.0
        %5426 = vmatprep.subr.mxu0 0.0
        %5427 = vmatpush1.msra.mxu0 0.0
        %5428 = vmatprep.subr.mxu0 0.0
        %5429 = vmatpush1.msra.mxu0 0.0
        %5430 = vmatprep.subr.mxu0 0.0
        %5431 = vmatpush1.msra.mxu0 0.0
        %5432 = vmatprep.subr.mxu0 0.0
        %5433 = vmatpush1.msra.mxu0 0.0
        %5434 = vmatprep.subr.mxu0 0.0
        %5435 = vmatpush1.msra.mxu0 0.0
        %5436 = vmatprep.subr.mxu0 0.0
        %5437 = vmatpush1.msra.mxu0 0.0
        %5438 = vmatprep.subr.mxu0 0.0
        %5439 = vmatpush1.msra.mxu0 0.0
        %5440 = vmatprep.subr.mxu0 0.0
        %5441 = vmatpush1.msra.mxu0 0.0
        %5442 = vmatprep.subr.mxu0 0.0
        %5443 = vmatpush1.msra.mxu0 0.0
        %5444 = vmatprep.subr.mxu0 0.0
        %5445 = vmatpush1.msra.mxu0 0.0
        %5446 = vmatprep.subr.mxu0 0.0
        %5447 = vmatpush1.msra.mxu0 0.0
        %5448 = vmatprep.subr.mxu0 0.0
        %5449 = vmatpush1.msra.mxu0 0.0
        %5450 = vmatprep.mubr.f32.mxu0 0.0
        %5451 = vmatmul.mubr.f32.gmra.mrb[0].mxu0 %v5381
        %v5452 = vpop.f32.mrb[0].mxu0
        %v5453 = vadd.f32 0.0, %v5452
        %v5454 = vpop.f32.mrb[0].mxu0
        %5455 = vmatprep.mubr.f32.mxu0 0.0
        %5456 = vmatmul.mubr.f32.gmra.mrb[0].mxu0 %v5384
        %v5457 = vpop.f32.mrb[0].mxu0
        %v5458 = vadd.f32 0.0, %v5457
        %v5459 = vpop.f32.mrb[0].mxu0
        %5460 = vdwg.mxu0
        %v5461 = vadd.f32 %v5374, %v5453
        %v5462 = vadd.f32 %v5375, %v5458
        %v5463 = vld [vmem:[%s5288 + $0x2] sm:$0xff]
        %v5464 = vld [vmem:[%s5288 + $0xa] sm:$0xff]
        %s5465 = scalar_lea.vmem %s14, 64
        %v5466 = vld [vmem:[%s5465] sm:$0xff]
        %v5468 = vsel %vm661, %v5463, 0
        %v5471 = vsel %vm661, %v5464, 0
        %5473 = vmatprep.subr.mxu0 0.0
        %5474 = vmatpush1.msra.mxu0 %v5466
        %5475 = vmatprep.subr.mxu0 0.0
        %5476 = vmatpush1.msra.mxu0 0.0
        %5477 = vmatprep.subr.mxu0 0.0
        %5478 = vmatpush1.msra.mxu0 0.0
        %5479 = vmatprep.subr.mxu0 0.0
        %5480 = vmatpush1.msra.mxu0 0.0
        %5481 = vmatprep.subr.mxu0 0.0
        %5482 = vmatpush1.msra.mxu0 0.0
        %5483 = vmatprep.subr.mxu0 0.0
        %5484 = vmatpush1.msra.mxu0 0.0
        %5485 = vmatprep.subr.mxu0 0.0
        %5486 = vmatpush1.msra.mxu0 0.0
        %5487 = vmatprep.subr.mxu0 0.0
        %5488 = vmatpush1.msra.mxu0 0.0
        %5489 = vmatprep.subr.mxu0 0.0
        %5490 = vmatpush1.msra.mxu0 0.0
        %5491 = vmatprep.subr.mxu0 0.0
        %5492 = vmatpush1.msra.mxu0 0.0
        %5493 = vmatprep.subr.mxu0 0.0
        %5494 = vmatpush1.msra.mxu0 0.0
        %5495 = vmatprep.subr.mxu0 0.0
        %5496 = vmatpush1.msra.mxu0 0.0
        %5497 = vmatprep.subr.mxu0 0.0
        %5498 = vmatpush1.msra.mxu0 0.0
        %5499 = vmatprep.subr.mxu0 0.0
        %5500 = vmatpush1.msra.mxu0 0.0
        %5501 = vmatprep.subr.mxu0 0.0
        %5502 = vmatpush1.msra.mxu0 0.0
        %5503 = vmatprep.subr.mxu0 0.0
        %5504 = vmatpush1.msra.mxu0 0.0
        %5505 = vmatprep.subr.mxu0 0.0
        %5506 = vmatpush1.msra.mxu0 0.0
        %5507 = vmatprep.subr.mxu0 0.0
        %5508 = vmatpush1.msra.mxu0 0.0
        %5509 = vmatprep.subr.mxu0 0.0
        %5510 = vmatpush1.msra.mxu0 0.0
        %5511 = vmatprep.subr.mxu0 0.0
        %5512 = vmatpush1.msra.mxu0 0.0
        %5513 = vmatprep.subr.mxu0 0.0
        %5514 = vmatpush1.msra.mxu0 0.0
        %5515 = vmatprep.subr.mxu0 0.0
        %5516 = vmatpush1.msra.mxu0 0.0
        %5517 = vmatprep.subr.mxu0 0.0
        %5518 = vmatpush1.msra.mxu0 0.0
        %5519 = vmatprep.subr.mxu0 0.0
        %5520 = vmatpush1.msra.mxu0 0.0
        %5521 = vmatprep.subr.mxu0 0.0
        %5522 = vmatpush1.msra.mxu0 0.0
        %5523 = vmatprep.subr.mxu0 0.0
        %5524 = vmatpush1.msra.mxu0 0.0
        %5525 = vmatprep.subr.mxu0 0.0
        %5526 = vmatpush1.msra.mxu0 0.0
        %5527 = vmatprep.subr.mxu0 0.0
        %5528 = vmatpush1.msra.mxu0 0.0
        %5529 = vmatprep.subr.mxu0 0.0
        %5530 = vmatpush1.msra.mxu0 0.0
        %5531 = vmatprep.subr.mxu0 0.0
        %5532 = vmatpush1.msra.mxu0 0.0
        %5533 = vmatprep.subr.mxu0 0.0
        %5534 = vmatpush1.msra.mxu0 0.0
        %5535 = vmatprep.subr.mxu0 0.0
        %5536 = vmatpush1.msra.mxu0 0.0
        %5537 = vmatprep.mubr.f32.mxu0 0.0
        %5538 = vmatmul.mubr.f32.gmra.mrb[0].mxu0 %v5468
        %v5539 = vpop.f32.mrb[0].mxu0
        %v5540 = vadd.f32 0.0, %v5539
        %v5541 = vpop.f32.mrb[0].mxu0
        %5542 = vmatprep.mubr.f32.mxu0 0.0
        %5543 = vmatmul.mubr.f32.gmra.mrb[0].mxu0 %v5471
        %v5544 = vpop.f32.mrb[0].mxu0
        %v5545 = vadd.f32 0.0, %v5544
        %v5546 = vpop.f32.mrb[0].mxu0
        %5547 = vdwg.mxu0
        %v5548 = vadd.f32 %v5461, %v5540
        %v5549 = vadd.f32 %v5462, %v5545
        %s5550 = scalar_lea.vmem [#allocation3], %s4760
        %v5551 = vld [vmem:[%s5550] sm:$0xff]
        %v5552 = vld [vmem:[%s5550 + $0x8] sm:$0xff]
        %v5553 = vld [vmem:[%s15] sm:$0xff]
        %v5555 = vsel %vm661, %v5551, 0
        %v5558 = vsel %vm661, %v5552, 0
        %5560 = vmatprep.subr.mxu0 0.0
        %5561 = vmatpush1.msra.mxu0 %v5553
        %5562 = vmatprep.subr.mxu0 0.0
        %5563 = vmatpush1.msra.mxu0 0.0
        %5564 = vmatprep.subr.mxu0 0.0
        %5565 = vmatpush1.msra.mxu0 0.0
        %5566 = vmatprep.subr.mxu0 0.0
        %5567 = vmatpush1.msra.mxu0 0.0
        %5568 = vmatprep.subr.mxu0 0.0
        %5569 = vmatpush1.msra.mxu0 0.0
        %5570 = vmatprep.subr.mxu0 0.0
        %5571 = vmatpush1.msra.mxu0 0.0
        %5572 = vmatprep.subr.mxu0 0.0
        %5573 = vmatpush1.msra.mxu0 0.0
        %5574 = vmatprep.subr.mxu0 0.0
        %5575 = vmatpush1.msra.mxu0 0.0
        %5576 = vmatprep.subr.mxu0 0.0
        %5577 = vmatpush1.msra.mxu0 0.0
        %5578 = vmatprep.subr.mxu0 0.0
        %5579 = vmatpush1.msra.mxu0 0.0
        %5580 = vmatprep.subr.mxu0 0.0
        %5581 = vmatpush1.msra.mxu0 0.0
        %5582 = vmatprep.subr.mxu0 0.0
        %5583 = vmatpush1.msra.mxu0 0.0
        %5584 = vmatprep.subr.mxu0 0.0
        %5585 = vmatpush1.msra.mxu0 0.0
        %5586 = vmatprep.subr.mxu0 0.0
        %5587 = vmatpush1.msra.mxu0 0.0
        %5588 = vmatprep.subr.mxu0 0.0
        %5589 = vmatpush1.msra.mxu0 0.0
        %5590 = vmatprep.subr.mxu0 0.0
        %5591 = vmatpush1.msra.mxu0 0.0
        %5592 = vmatprep.subr.mxu0 0.0
        %5593 = vmatpush1.msra.mxu0 0.0
        %5594 = vmatprep.subr.mxu0 0.0
        %5595 = vmatpush1.msra.mxu0 0.0
        %5596 = vmatprep.subr.mxu0 0.0
        %5597 = vmatpush1.msra.mxu0 0.0
        %5598 = vmatprep.subr.mxu0 0.0
        %5599 = vmatpush1.msra.mxu0 0.0
        %5600 = vmatprep.subr.mxu0 0.0
        %5601 = vmatpush1.msra.mxu0 0.0
        %5602 = vmatprep.subr.mxu0 0.0
        %5603 = vmatpush1.msra.mxu0 0.0
        %5604 = vmatprep.subr.mxu0 0.0
        %5605 = vmatpush1.msra.mxu0 0.0
        %5606 = vmatprep.subr.mxu0 0.0
        %5607 = vmatpush1.msra.mxu0 0.0
        %5608 = vmatprep.subr.mxu0 0.0
        %5609 = vmatpush1.msra.mxu0 0.0
        %5610 = vmatprep.subr.mxu0 0.0
        %5611 = vmatpush1.msra.mxu0 0.0
        %5612 = vmatprep.subr.mxu0 0.0
        %5613 = vmatpush1.msra.mxu0 0.0
        %5614 = vmatprep.subr.mxu0 0.0
        %5615 = vmatpush1.msra.mxu0 0.0
        %5616 = vmatprep.subr.mxu0 0.0
        %5617 = vmatpush1.msra.mxu0 0.0
        %5618 = vmatprep.subr.mxu0 0.0
        %5619 = vmatpush1.msra.mxu0 0.0
        %5620 = vmatprep.subr.mxu0 0.0
        %5621 = vmatpush1.msra.mxu0 0.0
        %5622 = vmatprep.subr.mxu0 0.0
        %5623 = vmatpush1.msra.mxu0 0.0
        %5624 = vmatprep.mubr.f32.mxu0 0.0
        %5625 = vmatmul.mubr.f32.gmra.mrb[0].mxu0 %v5555
        %v5626 = vpop.f32.mrb[0].mxu0
        %v5627 = vadd.f32 0.0, %v5626
        %v5628 = vpop.f32.mrb[0].mxu0
        %5629 = vmatprep.mubr.f32.mxu0 0.0
        %5630 = vmatmul.mubr.f32.gmra.mrb[0].mxu0 %v5558
        %v5631 = vpop.f32.mrb[0].mxu0
        %v5632 = vadd.f32 0.0, %v5631
        %v5633 = vpop.f32.mrb[0].mxu0
        %5634 = vdwg.mxu0
        %v5635 = vadd.f32 %v5548, %v5627
        %v5636 = vadd.f32 %v5549, %v5632
        %v5637 = vld [vmem:[%s5550 + $0x1] sm:$0xff]
        %v5638 = vld [vmem:[%s5550 + $0x9] sm:$0xff]
        %s5639 = scalar_lea.vmem %s15, 8
        %v5640 = vld [vmem:[%s5639] sm:$0xff]
        %v5642 = vsel %vm661, %v5637, 0
        %v5645 = vsel %vm661, %v5638, 0
        %5647 = vmatprep.subr.mxu0 0.0
        %5648 = vmatpush1.msra.mxu0 %v5640
        %5649 = vmatprep.subr.mxu0 0.0
        %5650 = vmatpush1.msra.mxu0 0.0
        %5651 = vmatprep.subr.mxu0 0.0
        %5652 = vmatpush1.msra.mxu0 0.0
        %5653 = vmatprep.subr.mxu0 0.0
        %5654 = vmatpush1.msra.mxu0 0.0
        %5655 = vmatprep.subr.mxu0 0.0
        %5656 = vmatpush1.msra.mxu0 0.0
        %5657 = vmatprep.subr.mxu0 0.0
        %5658 = vmatpush1.msra.mxu0 0.0
        %5659 = vmatprep.subr.mxu0 0.0
        %5660 = vmatpush1.msra.mxu0 0.0
        %5661 = vmatprep.subr.mxu0 0.0
        %5662 = vmatpush1.msra.mxu0 0.0
        %5663 = vmatprep.subr.mxu0 0.0
        %5664 = vmatpush1.msra.mxu0 0.0
        %5665 = vmatprep.subr.mxu0 0.0
        %5666 = vmatpush1.msra.mxu0 0.0
        %5667 = vmatprep.subr.mxu0 0.0
        %5668 = vmatpush1.msra.mxu0 0.0
        %5669 = vmatprep.subr.mxu0 0.0
        %5670 = vmatpush1.msra.mxu0 0.0
        %5671 = vmatprep.subr.mxu0 0.0
        %5672 = vmatpush1.msra.mxu0 0.0
        %5673 = vmatprep.subr.mxu0 0.0
        %5674 = vmatpush1.msra.mxu0 0.0
        %5675 = vmatprep.subr.mxu0 0.0
        %5676 = vmatpush1.msra.mxu0 0.0
        %5677 = vmatprep.subr.mxu0 0.0
        %5678 = vmatpush1.msra.mxu0 0.0
        %5679 = vmatprep.subr.mxu0 0.0
        %5680 = vmatpush1.msra.mxu0 0.0
        %5681 = vmatprep.subr.mxu0 0.0
        %5682 = vmatpush1.msra.mxu0 0.0
        %5683 = vmatprep.subr.mxu0 0.0
        %5684 = vmatpush1.msra.mxu0 0.0
        %5685 = vmatprep.subr.mxu0 0.0
        %5686 = vmatpush1.msra.mxu0 0.0
        %5687 = vmatprep.subr.mxu0 0.0
        %5688 = vmatpush1.msra.mxu0 0.0
        %5689 = vmatprep.subr.mxu0 0.0
        %5690 = vmatpush1.msra.mxu0 0.0
        %5691 = vmatprep.subr.mxu0 0.0
        %5692 = vmatpush1.msra.mxu0 0.0
        %5693 = vmatprep.subr.mxu0 0.0
        %5694 = vmatpush1.msra.mxu0 0.0
        %5695 = vmatprep.subr.mxu0 0.0
        %5696 = vmatpush1.msra.mxu0 0.0
        %5697 = vmatprep.subr.mxu0 0.0
        %5698 = vmatpush1.msra.mxu0 0.0
        %5699 = vmatprep.subr.mxu0 0.0
        %5700 = vmatpush1.msra.mxu0 0.0
        %5701 = vmatprep.subr.mxu0 0.0
        %5702 = vmatpush1.msra.mxu0 0.0
        %5703 = vmatprep.subr.mxu0 0.0
        %5704 = vmatpush1.msra.mxu0 0.0
        %5705 = vmatprep.subr.mxu0 0.0
        %5706 = vmatpush1.msra.mxu0 0.0
        %5707 = vmatprep.subr.mxu0 0.0
        %5708 = vmatpush1.msra.mxu0 0.0
        %5709 = vmatprep.subr.mxu0 0.0
        %5710 = vmatpush1.msra.mxu0 0.0
        %5711 = vmatprep.mubr.f32.mxu0 0.0
        %5712 = vmatmul.mubr.f32.gmra.mrb[0].mxu0 %v5642
        %v5713 = vpop.f32.mrb[0].mxu0
        %v5714 = vadd.f32 0.0, %v5713
        %v5715 = vpop.f32.mrb[0].mxu0
        %5716 = vmatprep.mubr.f32.mxu0 0.0
        %5717 = vmatmul.mubr.f32.gmra.mrb[0].mxu0 %v5645
        %v5718 = vpop.f32.mrb[0].mxu0
        %v5719 = vadd.f32 0.0, %v5718
        %v5720 = vpop.f32.mrb[0].mxu0
        %5721 = vdwg.mxu0
        %v5722 = vadd.f32 %v5635, %v5714
        %v5723 = vadd.f32 %v5636, %v5719
        %v5724 = vld [vmem:[%s5550 + $0x2] sm:$0xff]
        %v5725 = vld [vmem:[%s5550 + $0xa] sm:$0xff]
        %s5726 = scalar_lea.vmem %s15, 16
        %v5727 = vld [vmem:[%s5726] sm:$0xff]
        %v5729 = vsel %vm661, %v5724, 0
        %v5732 = vsel %vm661, %v5725, 0
        %5734 = vmatprep.subr.mxu0 0.0
        %5735 = vmatpush1.msra.mxu0 %v5727
        %5736 = vmatprep.subr.mxu0 0.0
        %5737 = vmatpush1.msra.mxu0 0.0
        %5738 = vmatprep.subr.mxu0 0.0
        %5739 = vmatpush1.msra.mxu0 0.0
        %5740 = vmatprep.subr.mxu0 0.0
        %5741 = vmatpush1.msra.mxu0 0.0
        %5742 = vmatprep.subr.mxu0 0.0
        %5743 = vmatpush1.msra.mxu0 0.0
        %5744 = vmatprep.subr.mxu0 0.0
        %5745 = vmatpush1.msra.mxu0 0.0
        %5746 = vmatprep.subr.mxu0 0.0
        %5747 = vmatpush1.msra.mxu0 0.0
        %5748 = vmatprep.subr.mxu0 0.0
        %5749 = vmatpush1.msra.mxu0 0.0
        %5750 = vmatprep.subr.mxu0 0.0
        %5751 = vmatpush1.msra.mxu0 0.0
        %5752 = vmatprep.subr.mxu0 0.0
        %5753 = vmatpush1.msra.mxu0 0.0
        %5754 = vmatprep.subr.mxu0 0.0
        %5755 = vmatpush1.msra.mxu0 0.0
        %5756 = vmatprep.subr.mxu0 0.0
        %5757 = vmatpush1.msra.mxu0 0.0
        %5758 = vmatprep.subr.mxu0 0.0
        %5759 = vmatpush1.msra.mxu0 0.0
        %5760 = vmatprep.subr.mxu0 0.0
        %5761 = vmatpush1.msra.mxu0 0.0
        %5762 = vmatprep.subr.mxu0 0.0
        %5763 = vmatpush1.msra.mxu0 0.0
        %5764 = vmatprep.subr.mxu0 0.0
        %5765 = vmatpush1.msra.mxu0 0.0
        %5766 = vmatprep.subr.mxu0 0.0
        %5767 = vmatpush1.msra.mxu0 0.0
        %5768 = vmatprep.subr.mxu0 0.0
        %5769 = vmatpush1.msra.mxu0 0.0
        %5770 = vmatprep.subr.mxu0 0.0
        %5771 = vmatpush1.msra.mxu0 0.0
        %5772 = vmatprep.subr.mxu0 0.0
        %5773 = vmatpush1.msra.mxu0 0.0
        %5774 = vmatprep.subr.mxu0 0.0
        %5775 = vmatpush1.msra.mxu0 0.0
        %5776 = vmatprep.subr.mxu0 0.0
        %5777 = vmatpush1.msra.mxu0 0.0
        %5778 = vmatprep.subr.mxu0 0.0
        %5779 = vmatpush1.msra.mxu0 0.0
        %5780 = vmatprep.subr.mxu0 0.0
        %5781 = vmatpush1.msra.mxu0 0.0
        %5782 = vmatprep.subr.mxu0 0.0
        %5783 = vmatpush1.msra.mxu0 0.0
        %5784 = vmatprep.subr.mxu0 0.0
        %5785 = vmatpush1.msra.mxu0 0.0
        %5786 = vmatprep.subr.mxu0 0.0
        %5787 = vmatpush1.msra.mxu0 0.0
        %5788 = vmatprep.subr.mxu0 0.0
        %5789 = vmatpush1.msra.mxu0 0.0
        %5790 = vmatprep.subr.mxu0 0.0
        %5791 = vmatpush1.msra.mxu0 0.0
        %5792 = vmatprep.subr.mxu0 0.0
        %5793 = vmatpush1.msra.mxu0 0.0
        %5794 = vmatprep.subr.mxu0 0.0
        %5795 = vmatpush1.msra.mxu0 0.0
        %5796 = vmatprep.subr.mxu0 0.0
        %5797 = vmatpush1.msra.mxu0 0.0
        %5798 = vmatprep.mubr.f32.mxu0 0.0
        %5799 = vmatmul.mubr.f32.gmra.mrb[0].mxu0 %v5729
        %v5800 = vpop.f32.mrb[0].mxu0
        %v5801 = vadd.f32 0.0, %v5800
        %v5802 = vpop.f32.mrb[0].mxu0
        %5803 = vmatprep.mubr.f32.mxu0 0.0
        %5804 = vmatmul.mubr.f32.gmra.mrb[0].mxu0 %v5732
        %v5805 = vpop.f32.mrb[0].mxu0
        %v5806 = vadd.f32 0.0, %v5805
        %v5807 = vpop.f32.mrb[0].mxu0
        %5808 = vdwg.mxu0
        %v5809 = vadd.f32 %v5722, %v5801
        %v5810 = vadd.f32 %v5723, %v5806
        %s5811 = scalar_lea.vmem [#allocation3], %s5023
        %v5812 = vld [vmem:[%s5811] sm:$0xff]
        %v5813 = vld [vmem:[%s5811 + $0x8] sm:$0xff]
        %s5814 = scalar_lea.vmem %s15, 24
        %v5815 = vld [vmem:[%s5814] sm:$0xff]
        %v5817 = vsel %vm661, %v5812, 0
        %v5820 = vsel %vm661, %v5813, 0
        %5822 = vmatprep.subr.mxu0 0.0
        %5823 = vmatpush1.msra.mxu0 %v5815
        %5824 = vmatprep.subr.mxu0 0.0
        %5825 = vmatpush1.msra.mxu0 0.0
        %5826 = vmatprep.subr.mxu0 0.0
        %5827 = vmatpush1.msra.mxu0 0.0
        %5828 = vmatprep.subr.mxu0 0.0
        %5829 = vmatpush1.msra.mxu0 0.0
        %5830 = vmatprep.subr.mxu0 0.0
        %5831 = vmatpush1.msra.mxu0 0.0
        %5832 = vmatprep.subr.mxu0 0.0
        %5833 = vmatpush1.msra.mxu0 0.0
        %5834 = vmatprep.subr.mxu0 0.0
        %5835 = vmatpush1.msra.mxu0 0.0
        %5836 = vmatprep.subr.mxu0 0.0
        %5837 = vmatpush1.msra.mxu0 0.0
        %5838 = vmatprep.subr.mxu0 0.0
        %5839 = vmatpush1.msra.mxu0 0.0
        %5840 = vmatprep.subr.mxu0 0.0
        %5841 = vmatpush1.msra.mxu0 0.0
        %5842 = vmatprep.subr.mxu0 0.0
        %5843 = vmatpush1.msra.mxu0 0.0
        %5844 = vmatprep.subr.mxu0 0.0
        %5845 = vmatpush1.msra.mxu0 0.0
        %5846 = vmatprep.subr.mxu0 0.0
        %5847 = vmatpush1.msra.mxu0 0.0
        %5848 = vmatprep.subr.mxu0 0.0
        %5849 = vmatpush1.msra.mxu0 0.0
        %5850 = vmatprep.subr.mxu0 0.0
        %5851 = vmatpush1.msra.mxu0 0.0
        %5852 = vmatprep.subr.mxu0 0.0
        %5853 = vmatpush1.msra.mxu0 0.0
        %5854 = vmatprep.subr.mxu0 0.0
        %5855 = vmatpush1.msra.mxu0 0.0
        %5856 = vmatprep.subr.mxu0 0.0
        %5857 = vmatpush1.msra.mxu0 0.0
        %5858 = vmatprep.subr.mxu0 0.0
        %5859 = vmatpush1.msra.mxu0 0.0
        %5860 = vmatprep.subr.mxu0 0.0
        %5861 = vmatpush1.msra.mxu0 0.0
        %5862 = vmatprep.subr.mxu0 0.0
        %5863 = vmatpush1.msra.mxu0 0.0
        %5864 = vmatprep.subr.mxu0 0.0
        %5865 = vmatpush1.msra.mxu0 0.0
        %5866 = vmatprep.subr.mxu0 0.0
        %5867 = vmatpush1.msra.mxu0 0.0
        %5868 = vmatprep.subr.mxu0 0.0
        %5869 = vmatpush1.msra.mxu0 0.0
        %5870 = vmatprep.subr.mxu0 0.0
        %5871 = vmatpush1.msra.mxu0 0.0
        %5872 = vmatprep.subr.mxu0 0.0
        %5873 = vmatpush1.msra.mxu0 0.0
        %5874 = vmatprep.subr.mxu0 0.0
        %5875 = vmatpush1.msra.mxu0 0.0
        %5876 = vmatprep.subr.mxu0 0.0
        %5877 = vmatpush1.msra.mxu0 0.0
        %5878 = vmatprep.subr.mxu0 0.0
        %5879 = vmatpush1.msra.mxu0 0.0
        %5880 = vmatprep.subr.mxu0 0.0
        %5881 = vmatpush1.msra.mxu0 0.0
        %5882 = vmatprep.subr.mxu0 0.0
        %5883 = vmatpush1.msra.mxu0 0.0
        %5884 = vmatprep.subr.mxu0 0.0
        %5885 = vmatpush1.msra.mxu0 0.0
        %5886 = vmatprep.mubr.f32.mxu0 0.0
        %5887 = vmatmul.mubr.f32.gmra.mrb[0].mxu0 %v5817
        %v5888 = vpop.f32.mrb[0].mxu0
        %v5889 = vadd.f32 0.0, %v5888
        %v5890 = vpop.f32.mrb[0].mxu0
        %5891 = vmatprep.mubr.f32.mxu0 0.0
        %5892 = vmatmul.mubr.f32.gmra.mrb[0].mxu0 %v5820
        %v5893 = vpop.f32.mrb[0].mxu0
        %v5894 = vadd.f32 0.0, %v5893
        %v5895 = vpop.f32.mrb[0].mxu0
        %5896 = vdwg.mxu0
        %v5897 = vadd.f32 %v5809, %v5889
        %v5898 = vadd.f32 %v5810, %v5894
        %v5899 = vld [vmem:[%s5811 + $0x1] sm:$0xff]
        %v5900 = vld [vmem:[%s5811 + $0x9] sm:$0xff]
        %s5901 = scalar_lea.vmem %s15, 32
        %v5902 = vld [vmem:[%s5901] sm:$0xff]
        %v5904 = vsel %vm661, %v5899, 0
        %v5907 = vsel %vm661, %v5900, 0
        %5909 = vmatprep.subr.mxu0 0.0
        %5910 = vmatpush1.msra.mxu0 %v5902
        %5911 = vmatprep.subr.mxu0 0.0
        %5912 = vmatpush1.msra.mxu0 0.0
        %5913 = vmatprep.subr.mxu0 0.0
        %5914 = vmatpush1.msra.mxu0 0.0
        %5915 = vmatprep.subr.mxu0 0.0
        %5916 = vmatpush1.msra.mxu0 0.0
        %5917 = vmatprep.subr.mxu0 0.0
        %5918 = vmatpush1.msra.mxu0 0.0
        %5919 = vmatprep.subr.mxu0 0.0
        %5920 = vmatpush1.msra.mxu0 0.0
        %5921 = vmatprep.subr.mxu0 0.0
        %5922 = vmatpush1.msra.mxu0 0.0
        %5923 = vmatprep.subr.mxu0 0.0
        %5924 = vmatpush1.msra.mxu0 0.0
        %5925 = vmatprep.subr.mxu0 0.0
        %5926 = vmatpush1.msra.mxu0 0.0
        %5927 = vmatprep.subr.mxu0 0.0
        %5928 = vmatpush1.msra.mxu0 0.0
        %5929 = vmatprep.subr.mxu0 0.0
        %5930 = vmatpush1.msra.mxu0 0.0
        %5931 = vmatprep.subr.mxu0 0.0
        %5932 = vmatpush1.msra.mxu0 0.0
        %5933 = vmatprep.subr.mxu0 0.0
        %5934 = vmatpush1.msra.mxu0 0.0
        %5935 = vmatprep.subr.mxu0 0.0
        %5936 = vmatpush1.msra.mxu0 0.0
        %5937 = vmatprep.subr.mxu0 0.0
        %5938 = vmatpush1.msra.mxu0 0.0
        %5939 = vmatprep.subr.mxu0 0.0
        %5940 = vmatpush1.msra.mxu0 0.0
        %5941 = vmatprep.subr.mxu0 0.0
        %5942 = vmatpush1.msra.mxu0 0.0
        %5943 = vmatprep.subr.mxu0 0.0
        %5944 = vmatpush1.msra.mxu0 0.0
        %5945 = vmatprep.subr.mxu0 0.0
        %5946 = vmatpush1.msra.mxu0 0.0
        %5947 = vmatprep.subr.mxu0 0.0
        %5948 = vmatpush1.msra.mxu0 0.0
        %5949 = vmatprep.subr.mxu0 0.0
        %5950 = vmatpush1.msra.mxu0 0.0
        %5951 = vmatprep.subr.mxu0 0.0
        %5952 = vmatpush1.msra.mxu0 0.0
        %5953 = vmatprep.subr.mxu0 0.0
        %5954 = vmatpush1.msra.mxu0 0.0
        %5955 = vmatprep.subr.mxu0 0.0
        %5956 = vmatpush1.msra.mxu0 0.0
        %5957 = vmatprep.subr.mxu0 0.0
        %5958 = vmatpush1.msra.mxu0 0.0
        %5959 = vmatprep.subr.mxu0 0.0
        %5960 = vmatpush1.msra.mxu0 0.0
        %5961 = vmatprep.subr.mxu0 0.0
        %5962 = vmatpush1.msra.mxu0 0.0
        %5963 = vmatprep.subr.mxu0 0.0
        %5964 = vmatpush1.msra.mxu0 0.0
        %5965 = vmatprep.subr.mxu0 0.0
        %5966 = vmatpush1.msra.mxu0 0.0
        %5967 = vmatprep.subr.mxu0 0.0
        %5968 = vmatpush1.msra.mxu0 0.0
        %5969 = vmatprep.subr.mxu0 0.0
        %5970 = vmatpush1.msra.mxu0 0.0
        %5971 = vmatprep.subr.mxu0 0.0
        %5972 = vmatpush1.msra.mxu0 0.0
        %5973 = vmatprep.mubr.f32.mxu0 0.0
        %5974 = vmatmul.mubr.f32.gmra.mrb[0].mxu0 %v5904
        %v5975 = vpop.f32.mrb[0].mxu0
        %v5976 = vadd.f32 0.0, %v5975
        %v5977 = vpop.f32.mrb[0].mxu0
        %5978 = vmatprep.mubr.f32.mxu0 0.0
        %5979 = vmatmul.mubr.f32.gmra.mrb[0].mxu0 %v5907
        %v5980 = vpop.f32.mrb[0].mxu0
        %v5981 = vadd.f32 0.0, %v5980
        %v5982 = vpop.f32.mrb[0].mxu0
        %5983 = vdwg.mxu0
        %v5984 = vadd.f32 %v5897, %v5976
        %v5985 = vadd.f32 %v5898, %v5981
        %v5986 = vld [vmem:[%s5811 + $0x2] sm:$0xff]
        %v5987 = vld [vmem:[%s5811 + $0xa] sm:$0xff]
        %s5988 = scalar_lea.vmem %s15, 40
        %v5989 = vld [vmem:[%s5988] sm:$0xff]
        %v5991 = vsel %vm661, %v5986, 0
        %v5994 = vsel %vm661, %v5987, 0
        %5996 = vmatprep.subr.mxu0 0.0
        %5997 = vmatpush1.msra.mxu0 %v5989
        %5998 = vmatprep.subr.mxu0 0.0
        %5999 = vmatpush1.msra.mxu0 0.0
        %6000 = vmatprep.subr.mxu0 0.0
        %6001 = vmatpush1.msra.mxu0 0.0
        %6002 = vmatprep.subr.mxu0 0.0
        %6003 = vmatpush1.msra.mxu0 0.0
        %6004 = vmatprep.subr.mxu0 0.0
        %6005 = vmatpush1.msra.mxu0 0.0
        %6006 = vmatprep.subr.mxu0 0.0
        %6007 = vmatpush1.msra.mxu0 0.0
        %6008 = vmatprep.subr.mxu0 0.0
        %6009 = vmatpush1.msra.mxu0 0.0
        %6010 = vmatprep.subr.mxu0 0.0
        %6011 = vmatpush1.msra.mxu0 0.0
        %6012 = vmatprep.subr.mxu0 0.0
        %6013 = vmatpush1.msra.mxu0 0.0
        %6014 = vmatprep.subr.mxu0 0.0
        %6015 = vmatpush1.msra.mxu0 0.0
        %6016 = vmatprep.subr.mxu0 0.0
        %6017 = vmatpush1.msra.mxu0 0.0
        %6018 = vmatprep.subr.mxu0 0.0
        %6019 = vmatpush1.msra.mxu0 0.0
        %6020 = vmatprep.subr.mxu0 0.0
        %6021 = vmatpush1.msra.mxu0 0.0
        %6022 = vmatprep.subr.mxu0 0.0
        %6023 = vmatpush1.msra.mxu0 0.0
        %6024 = vmatprep.subr.mxu0 0.0
        %6025 = vmatpush1.msra.mxu0 0.0
        %6026 = vmatprep.subr.mxu0 0.0
        %6027 = vmatpush1.msra.mxu0 0.0
        %6028 = vmatprep.subr.mxu0 0.0
        %6029 = vmatpush1.msra.mxu0 0.0
        %6030 = vmatprep.subr.mxu0 0.0
        %6031 = vmatpush1.msra.mxu0 0.0
        %6032 = vmatprep.subr.mxu0 0.0
        %6033 = vmatpush1.msra.mxu0 0.0
        %6034 = vmatprep.subr.mxu0 0.0
        %6035 = vmatpush1.msra.mxu0 0.0
        %6036 = vmatprep.subr.mxu0 0.0
        %6037 = vmatpush1.msra.mxu0 0.0
        %6038 = vmatprep.subr.mxu0 0.0
        %6039 = vmatpush1.msra.mxu0 0.0
        %6040 = vmatprep.subr.mxu0 0.0
        %6041 = vmatpush1.msra.mxu0 0.0
        %6042 = vmatprep.subr.mxu0 0.0
        %6043 = vmatpush1.msra.mxu0 0.0
        %6044 = vmatprep.subr.mxu0 0.0
        %6045 = vmatpush1.msra.mxu0 0.0
        %6046 = vmatprep.subr.mxu0 0.0
        %6047 = vmatpush1.msra.mxu0 0.0
        %6048 = vmatprep.subr.mxu0 0.0
        %6049 = vmatpush1.msra.mxu0 0.0
        %6050 = vmatprep.subr.mxu0 0.0
        %6051 = vmatpush1.msra.mxu0 0.0
        %6052 = vmatprep.subr.mxu0 0.0
        %6053 = vmatpush1.msra.mxu0 0.0
        %6054 = vmatprep.subr.mxu0 0.0
        %6055 = vmatpush1.msra.mxu0 0.0
        %6056 = vmatprep.subr.mxu0 0.0
        %6057 = vmatpush1.msra.mxu0 0.0
        %6058 = vmatprep.subr.mxu0 0.0
        %6059 = vmatpush1.msra.mxu0 0.0
        %6060 = vmatprep.mubr.f32.mxu0 0.0
        %6061 = vmatmul.mubr.f32.gmra.mrb[0].mxu0 %v5991
        %v6062 = vpop.f32.mrb[0].mxu0
        %v6063 = vadd.f32 0.0, %v6062
        %v6064 = vpop.f32.mrb[0].mxu0
        %6065 = vmatprep.mubr.f32.mxu0 0.0
        %6066 = vmatmul.mubr.f32.gmra.mrb[0].mxu0 %v5994
        %v6067 = vpop.f32.mrb[0].mxu0
        %v6068 = vadd.f32 0.0, %v6067
        %v6069 = vpop.f32.mrb[0].mxu0
        %6070 = vdwg.mxu0
        %v6071 = vadd.f32 %v5984, %v6063
        %v6072 = vadd.f32 %v5985, %v6068
        %s6073 = scalar_lea.vmem [#allocation3], %s5287
        %v6074 = vld [vmem:[%s6073] sm:$0xff]
        %v6075 = vld [vmem:[%s6073 + $0x8] sm:$0xff]
        %s6076 = scalar_lea.vmem %s15, 48
        %v6077 = vld [vmem:[%s6076] sm:$0xff]
        %v6079 = vsel %vm661, %v6074, 0
        %v6082 = vsel %vm661, %v6075, 0
        %6084 = vmatprep.subr.mxu0 0.0
        %6085 = vmatpush1.msra.mxu0 %v6077
        %6086 = vmatprep.subr.mxu0 0.0
        %6087 = vmatpush1.msra.mxu0 0.0
        %6088 = vmatprep.subr.mxu0 0.0
        %6089 = vmatpush1.msra.mxu0 0.0
        %6090 = vmatprep.subr.mxu0 0.0
        %6091 = vmatpush1.msra.mxu0 0.0
        %6092 = vmatprep.subr.mxu0 0.0
        %6093 = vmatpush1.msra.mxu0 0.0
        %6094 = vmatprep.subr.mxu0 0.0
        %6095 = vmatpush1.msra.mxu0 0.0
        %6096 = vmatprep.subr.mxu0 0.0
        %6097 = vmatpush1.msra.mxu0 0.0
        %6098 = vmatprep.subr.mxu0 0.0
        %6099 = vmatpush1.msra.mxu0 0.0
        %6100 = vmatprep.subr.mxu0 0.0
        %6101 = vmatpush1.msra.mxu0 0.0
        %6102 = vmatprep.subr.mxu0 0.0
        %6103 = vmatpush1.msra.mxu0 0.0
        %6104 = vmatprep.subr.mxu0 0.0
        %6105 = vmatpush1.msra.mxu0 0.0
        %6106 = vmatprep.subr.mxu0 0.0
        %6107 = vmatpush1.msra.mxu0 0.0
        %6108 = vmatprep.subr.mxu0 0.0
        %6109 = vmatpush1.msra.mxu0 0.0
        %6110 = vmatprep.subr.mxu0 0.0
        %6111 = vmatpush1.msra.mxu0 0.0
        %6112 = vmatprep.subr.mxu0 0.0
        %6113 = vmatpush1.msra.mxu0 0.0
        %6114 = vmatprep.subr.mxu0 0.0
        %6115 = vmatpush1.msra.mxu0 0.0
        %6116 = vmatprep.subr.mxu0 0.0
        %6117 = vmatpush1.msra.mxu0 0.0
        %6118 = vmatprep.subr.mxu0 0.0
        %6119 = vmatpush1.msra.mxu0 0.0
        %6120 = vmatprep.subr.mxu0 0.0
        %6121 = vmatpush1.msra.mxu0 0.0
        %6122 = vmatprep.subr.mxu0 0.0
        %6123 = vmatpush1.msra.mxu0 0.0
        %6124 = vmatprep.subr.mxu0 0.0
        %6125 = vmatpush1.msra.mxu0 0.0
        %6126 = vmatprep.subr.mxu0 0.0
        %6127 = vmatpush1.msra.mxu0 0.0
        %6128 = vmatprep.subr.mxu0 0.0
        %6129 = vmatpush1.msra.mxu0 0.0
        %6130 = vmatprep.subr.mxu0 0.0
        %6131 = vmatpush1.msra.mxu0 0.0
        %6132 = vmatprep.subr.mxu0 0.0
        %6133 = vmatpush1.msra.mxu0 0.0
        %6134 = vmatprep.subr.mxu0 0.0
        %6135 = vmatpush1.msra.mxu0 0.0
        %6136 = vmatprep.subr.mxu0 0.0
        %6137 = vmatpush1.msra.mxu0 0.0
        %6138 = vmatprep.subr.mxu0 0.0
        %6139 = vmatpush1.msra.mxu0 0.0
        %6140 = vmatprep.subr.mxu0 0.0
        %6141 = vmatpush1.msra.mxu0 0.0
        %6142 = vmatprep.subr.mxu0 0.0
        %6143 = vmatpush1.msra.mxu0 0.0
        %6144 = vmatprep.subr.mxu0 0.0
        %6145 = vmatpush1.msra.mxu0 0.0
        %6146 = vmatprep.subr.mxu0 0.0
        %6147 = vmatpush1.msra.mxu0 0.0
        %6148 = vmatprep.mubr.f32.mxu0 0.0
        %6149 = vmatmul.mubr.f32.gmra.mrb[0].mxu0 %v6079
        %v6150 = vpop.f32.mrb[0].mxu0
        %v6151 = vadd.f32 0.0, %v6150
        %v6152 = vpop.f32.mrb[0].mxu0
        %6153 = vmatprep.mubr.f32.mxu0 0.0
        %6154 = vmatmul.mubr.f32.gmra.mrb[0].mxu0 %v6082
        %v6155 = vpop.f32.mrb[0].mxu0
        %v6156 = vadd.f32 0.0, %v6155
        %v6157 = vpop.f32.mrb[0].mxu0
        %6158 = vdwg.mxu0
        %v6159 = vadd.f32 %v6071, %v6151
        %v6160 = vadd.f32 %v6072, %v6156
        %v6161 = vld [vmem:[%s6073 + $0x1] sm:$0xff]
        %v6162 = vld [vmem:[%s6073 + $0x9] sm:$0xff]
        %s6163 = scalar_lea.vmem %s15, 56
        %v6164 = vld [vmem:[%s6163] sm:$0xff]
        %v6166 = vsel %vm661, %v6161, 0
        %v6169 = vsel %vm661, %v6162, 0
        %6171 = vmatprep.subr.mxu0 0.0
        %6172 = vmatpush1.msra.mxu0 %v6164
        %6173 = vmatprep.subr.mxu0 0.0
        %6174 = vmatpush1.msra.mxu0 0.0
        %6175 = vmatprep.subr.mxu0 0.0
        %6176 = vmatpush1.msra.mxu0 0.0
        %6177 = vmatprep.subr.mxu0 0.0
        %6178 = vmatpush1.msra.mxu0 0.0
        %6179 = vmatprep.subr.mxu0 0.0
        %6180 = vmatpush1.msra.mxu0 0.0
        %6181 = vmatprep.subr.mxu0 0.0
        %6182 = vmatpush1.msra.mxu0 0.0
        %6183 = vmatprep.subr.mxu0 0.0
        %6184 = vmatpush1.msra.mxu0 0.0
        %6185 = vmatprep.subr.mxu0 0.0
        %6186 = vmatpush1.msra.mxu0 0.0
        %6187 = vmatprep.subr.mxu0 0.0
        %6188 = vmatpush1.msra.mxu0 0.0
        %6189 = vmatprep.subr.mxu0 0.0
        %6190 = vmatpush1.msra.mxu0 0.0
        %6191 = vmatprep.subr.mxu0 0.0
        %6192 = vmatpush1.msra.mxu0 0.0
        %6193 = vmatprep.subr.mxu0 0.0
        %6194 = vmatpush1.msra.mxu0 0.0
        %6195 = vmatprep.subr.mxu0 0.0
        %6196 = vmatpush1.msra.mxu0 0.0
        %6197 = vmatprep.subr.mxu0 0.0
        %6198 = vmatpush1.msra.mxu0 0.0
        %6199 = vmatprep.subr.mxu0 0.0
        %6200 = vmatpush1.msra.mxu0 0.0
        %6201 = vmatprep.subr.mxu0 0.0
        %6202 = vmatpush1.msra.mxu0 0.0
        %6203 = vmatprep.subr.mxu0 0.0
        %6204 = vmatpush1.msra.mxu0 0.0
        %6205 = vmatprep.subr.mxu0 0.0
        %6206 = vmatpush1.msra.mxu0 0.0
        %6207 = vmatprep.subr.mxu0 0.0
        %6208 = vmatpush1.msra.mxu0 0.0
        %6209 = vmatprep.subr.mxu0 0.0
        %6210 = vmatpush1.msra.mxu0 0.0
        %6211 = vmatprep.subr.mxu0 0.0
        %6212 = vmatpush1.msra.mxu0 0.0
        %6213 = vmatprep.subr.mxu0 0.0
        %6214 = vmatpush1.msra.mxu0 0.0
        %6215 = vmatprep.subr.mxu0 0.0
        %6216 = vmatpush1.msra.mxu0 0.0
        %6217 = vmatprep.subr.mxu0 0.0
        %6218 = vmatpush1.msra.mxu0 0.0
        %6219 = vmatprep.subr.mxu0 0.0
        %6220 = vmatpush1.msra.mxu0 0.0
        %6221 = vmatprep.subr.mxu0 0.0
        %6222 = vmatpush1.msra.mxu0 0.0
        %6223 = vmatprep.subr.mxu0 0.0
        %6224 = vmatpush1.msra.mxu0 0.0
        %6225 = vmatprep.subr.mxu0 0.0
        %6226 = vmatpush1.msra.mxu0 0.0
        %6227 = vmatprep.subr.mxu0 0.0
        %6228 = vmatpush1.msra.mxu0 0.0
        %6229 = vmatprep.subr.mxu0 0.0
        %6230 = vmatpush1.msra.mxu0 0.0
        %6231 = vmatprep.subr.mxu0 0.0
        %6232 = vmatpush1.msra.mxu0 0.0
        %6233 = vmatprep.subr.mxu0 0.0
        %6234 = vmatpush1.msra.mxu0 0.0
        %6235 = vmatprep.mubr.f32.mxu0 0.0
        %6236 = vmatmul.mubr.f32.gmra.mrb[0].mxu0 %v6166
        %v6237 = vpop.f32.mrb[0].mxu0
        %v6238 = vadd.f32 0.0, %v6237
        %v6239 = vpop.f32.mrb[0].mxu0
        %6240 = vmatprep.mubr.f32.mxu0 0.0
        %6241 = vmatmul.mubr.f32.gmra.mrb[0].mxu0 %v6169
        %v6242 = vpop.f32.mrb[0].mxu0
        %v6243 = vadd.f32 0.0, %v6242
        %v6244 = vpop.f32.mrb[0].mxu0
        %6245 = vdwg.mxu0
        %v6246 = vadd.f32 %v6159, %v6238
        %v6247 = vadd.f32 %v6160, %v6243
        %v6248 = vld [vmem:[%s6073 + $0x2] sm:$0xff]
        %v6249 = vld [vmem:[%s6073 + $0xa] sm:$0xff]
        %s6250 = scalar_lea.vmem %s15, 64
        %v6251 = vld [vmem:[%s6250] sm:$0xff]
        %v6253 = vsel %vm661, %v6248, 0
        %v6256 = vsel %vm661, %v6249, 0
        %6258 = vmatprep.subr.mxu0 0.0
        %6259 = vmatpush1.msra.mxu0 %v6251
        %6260 = vmatprep.subr.mxu0 0.0
        %6261 = vmatpush1.msra.mxu0 0.0
        %6262 = vmatprep.subr.mxu0 0.0
        %6263 = vmatpush1.msra.mxu0 0.0
        %6264 = vmatprep.subr.mxu0 0.0
        %6265 = vmatpush1.msra.mxu0 0.0
        %6266 = vmatprep.subr.mxu0 0.0
        %6267 = vmatpush1.msra.mxu0 0.0
        %6268 = vmatprep.subr.mxu0 0.0
        %6269 = vmatpush1.msra.mxu0 0.0
        %6270 = vmatprep.subr.mxu0 0.0
        %6271 = vmatpush1.msra.mxu0 0.0
        %6272 = vmatprep.subr.mxu0 0.0
        %6273 = vmatpush1.msra.mxu0 0.0
        %6274 = vmatprep.subr.mxu0 0.0
        %6275 = vmatpush1.msra.mxu0 0.0
        %6276 = vmatprep.subr.mxu0 0.0
        %6277 = vmatpush1.msra.mxu0 0.0
        %6278 = vmatprep.subr.mxu0 0.0
        %6279 = vmatpush1.msra.mxu0 0.0
        %6280 = vmatprep.subr.mxu0 0.0
        %6281 = vmatpush1.msra.mxu0 0.0
        %6282 = vmatprep.subr.mxu0 0.0
        %6283 = vmatpush1.msra.mxu0 0.0
        %6284 = vmatprep.subr.mxu0 0.0
        %6285 = vmatpush1.msra.mxu0 0.0
        %6286 = vmatprep.subr.mxu0 0.0
        %6287 = vmatpush1.msra.mxu0 0.0
        %6288 = vmatprep.subr.mxu0 0.0
        %6289 = vmatpush1.msra.mxu0 0.0
        %6290 = vmatprep.subr.mxu0 0.0
        %6291 = vmatpush1.msra.mxu0 0.0
        %6292 = vmatprep.subr.mxu0 0.0
        %6293 = vmatpush1.msra.mxu0 0.0
        %6294 = vmatprep.subr.mxu0 0.0
        %6295 = vmatpush1.msra.mxu0 0.0
        %6296 = vmatprep.subr.mxu0 0.0
        %6297 = vmatpush1.msra.mxu0 0.0
        %6298 = vmatprep.subr.mxu0 0.0
        %6299 = vmatpush1.msra.mxu0 0.0
        %6300 = vmatprep.subr.mxu0 0.0
        %6301 = vmatpush1.msra.mxu0 0.0
        %6302 = vmatprep.subr.mxu0 0.0
        %6303 = vmatpush1.msra.mxu0 0.0
        %6304 = vmatprep.subr.mxu0 0.0
        %6305 = vmatpush1.msra.mxu0 0.0
        %6306 = vmatprep.subr.mxu0 0.0
        %6307 = vmatpush1.msra.mxu0 0.0
        %6308 = vmatprep.subr.mxu0 0.0
        %6309 = vmatpush1.msra.mxu0 0.0
        %6310 = vmatprep.subr.mxu0 0.0
        %6311 = vmatpush1.msra.mxu0 0.0
        %6312 = vmatprep.subr.mxu0 0.0
        %6313 = vmatpush1.msra.mxu0 0.0
        %6314 = vmatprep.subr.mxu0 0.0
        %6315 = vmatpush1.msra.mxu0 0.0
        %6316 = vmatprep.subr.mxu0 0.0
        %6317 = vmatpush1.msra.mxu0 0.0
        %6318 = vmatprep.subr.mxu0 0.0
        %6319 = vmatpush1.msra.mxu0 0.0
        %6320 = vmatprep.subr.mxu0 0.0
        %6321 = vmatpush1.msra.mxu0 0.0
        %6322 = vmatprep.mubr.f32.mxu0 0.0
        %6323 = vmatmul.mubr.f32.gmra.mrb[0].mxu0 %v6253
        %v6324 = vpop.f32.mrb[0].mxu0
        %v6325 = vadd.f32 0.0, %v6324
        %v6326 = vpop.f32.mrb[0].mxu0
        %6327 = vmatprep.mubr.f32.mxu0 0.0
        %6328 = vmatmul.mubr.f32.gmra.mrb[0].mxu0 %v6256
        %v6329 = vpop.f32.mrb[0].mxu0
        %v6330 = vadd.f32 0.0, %v6329
        %v6331 = vpop.f32.mrb[0].mxu0
        %6332 = vdwg.mxu0
        %v6333 = vadd.f32 %v6246, %v6325
        %v6334 = vadd.f32 %v6247, %v6330
        %v6335 = vmax.f32 %v6333, 0.0
        %v6336 = vmax.f32 %v6334, 0.0
        %s6337 = smul.u32 %s4748, 16
        %s6338 = scalar_lea.vmem [#allocation11], %s6337
        %6339 = vst.msk [vmem:[%s6338] sm:$0xff] %vm661, %v6335
        %6340 = vst.msk [vmem:[%s6338 + $0x8] sm:$0xff] %vm661, %v6336
      $region157: #{unet_forward.1} parent=95 // loop_footer
        %s4752 = sadd.s32 1, %s4748
      $region158: #{unet_forward.1} parent=95 // loop_footer_branch
        %4747 = sbr.rel target = $region154
      $region159: #{unet_forward.1} parent=95 // loop_exit
        _
      %v6341 = vld [vmem:[#allocation11] sm:$0xff]
      %v6342 = vld [vmem:[#allocation11 + $0x8] sm:$0xff]
      %v6343 = vld [vmem:[#allocation11 + $0x10] sm:$0xff]
      %v6344 = vld [vmem:[#allocation11 + $0x18] sm:$0xff]
      %v6345 = vld [vmem:[#allocation11 + $0x20] sm:$0xff]
      %v6346 = vld [vmem:[#allocation11 + $0x28] sm:$0xff]
      %v6347 = vld [vmem:[#allocation11 + $0x30] sm:$0xff]
      %v6348 = vld [vmem:[#allocation11 + $0x38] sm:$0xff]
      %v6349 = vld [vmem:[#allocation11 + $0x40] sm:$0xff]
      %v6350 = vld [vmem:[#allocation11 + $0x48] sm:$0xff]
      %v6351 = vld [vmem:[#allocation11 + $0x50] sm:$0xff]
      %v6352 = vld [vmem:[#allocation11 + $0x58] sm:$0xff]
      %v6353 = vld [vmem:[#allocation11 + $0x60] sm:$0xff]
      %v6354 = vld [vmem:[#allocation11 + $0x68] sm:$0xff]
      %v6355 = vld [vmem:[#allocation11 + $0x70] sm:$0xff]
      %v6356 = vld [vmem:[#allocation11 + $0x78] sm:$0xff]
      %v6357 = vld [vmem:[#allocation11 + $0x80] sm:$0xff]
      %v6358 = vld [vmem:[#allocation11 + $0x88] sm:$0xff]
      %v6359 = vld [vmem:[#allocation11 + $0x90] sm:$0xff]
      %v6360 = vld [vmem:[#allocation11 + $0x98] sm:$0xff]
      %v6361 = vld [vmem:[#allocation11 + $0xa0] sm:$0xff]
      %v6362 = vld [vmem:[#allocation11 + $0xa8] sm:$0xff]
      %v6363 = vld [vmem:[#allocation11 + $0xb0] sm:$0xff]
      %v6364 = vld [vmem:[#allocation11 + $0xb8] sm:$0xff]
      %v6365 = vld [vmem:[#allocation11 + $0xc0] sm:$0xff]
      %v6366 = vld [vmem:[#allocation11 + $0xc8] sm:$0xff]
      %v6367 = vld [vmem:[#allocation11 + $0xd0] sm:$0xff]
      %v6368 = vld [vmem:[#allocation11 + $0xd8] sm:$0xff]
      %v6369 = vld [vmem:[#allocation11 + $0xe0] sm:$0xff]
      %v6370 = vld [vmem:[#allocation11 + $0xe8] sm:$0xff]
      %v6371 = vld [vmem:[#allocation11 + $0xf0] sm:$0xff]
      %v6372 = vld [vmem:[#allocation11 + $0xf8] sm:$0xff]
      %v6373 = vld [vmem:[%s17] sm:$0x1]
      %v6375 = vlaneseq
      %v6376 = vshrl.u32 %v6375, 7
      %v6377 = vsub.s32 0, %v6376
      %v6378 = vrot.slane %v6373, %v6377
      %v6380 = vmul.f32 %v6341, %v6378
      %v6381 = vmul.f32 %v6342, %v6378
      %v6382 = vmul.f32 %v6343, %v6378
      %v6383 = vmul.f32 %v6344, %v6378
      %v6384 = vmul.f32 %v6345, %v6378
      %v6385 = vmul.f32 %v6346, %v6378
      %v6386 = vmul.f32 %v6347, %v6378
      %v6387 = vmul.f32 %v6348, %v6378
      %v6388 = vmul.f32 %v6349, %v6378
      %v6389 = vmul.f32 %v6350, %v6378
      %v6390 = vmul.f32 %v6351, %v6378
      %v6391 = vmul.f32 %v6352, %v6378
      %v6392 = vmul.f32 %v6353, %v6378
      %v6393 = vmul.f32 %v6354, %v6378
      %v6394 = vmul.f32 %v6355, %v6378
      %v6395 = vmul.f32 %v6356, %v6378
      %v6396 = vmul.f32 %v6357, %v6378
      %v6397 = vmul.f32 %v6358, %v6378
      %v6398 = vmul.f32 %v6359, %v6378
      %v6399 = vmul.f32 %v6360, %v6378
      %v6400 = vmul.f32 %v6361, %v6378
      %v6401 = vmul.f32 %v6362, %v6378
      %v6402 = vmul.f32 %v6363, %v6378
      %v6403 = vmul.f32 %v6364, %v6378
      %v6404 = vmul.f32 %v6365, %v6378
      %v6405 = vmul.f32 %v6366, %v6378
      %v6406 = vmul.f32 %v6367, %v6378
      %v6407 = vmul.f32 %v6368, %v6378
      %v6408 = vmul.f32 %v6369, %v6378
      %v6409 = vmul.f32 %v6370, %v6378
      %v6410 = vmul.f32 %v6371, %v6378
      %v6411 = vmul.f32 %v6372, %v6378
      %v6412 = vsel %vm661, %v6380, 0.0
      %6413 = vadd.xlane.f32.xlu0 %v6412
      %v6414 = vpop.xlane.xlu0 %6413
      %v6415 = vsel %vm661, %v6381, 0.0
      %6416 = vadd.xlane.f32.xlu0 %v6415
      %v6417 = vpop.xlane.xlu0 %6416
      %v6418 = vsel %vm661, %v6382, 0.0
      %6419 = vadd.xlane.f32.xlu0 %v6418
      %v6420 = vpop.xlane.xlu0 %6419
      %v6421 = vsel %vm661, %v6383, 0.0
      %6422 = vadd.xlane.f32.xlu0 %v6421
      %v6423 = vpop.xlane.xlu0 %6422
      %v6424 = vsel %vm661, %v6384, 0.0
      %6425 = vadd.xlane.f32.xlu0 %v6424
      %v6426 = vpop.xlane.xlu0 %6425
      %v6427 = vsel %vm661, %v6385, 0.0
      %6428 = vadd.xlane.f32.xlu0 %v6427
      %v6429 = vpop.xlane.xlu0 %6428
      %v6430 = vsel %vm661, %v6386, 0.0
      %6431 = vadd.xlane.f32.xlu0 %v6430
      %v6432 = vpop.xlane.xlu0 %6431
      %v6433 = vsel %vm661, %v6387, 0.0
      %6434 = vadd.xlane.f32.xlu0 %v6433
      %v6435 = vpop.xlane.xlu0 %6434
      %v6436 = vsel %vm661, %v6388, 0.0
      %6437 = vadd.xlane.f32.xlu0 %v6436
      %v6438 = vpop.xlane.xlu0 %6437
      %v6439 = vsel %vm661, %v6389, 0.0
      %6440 = vadd.xlane.f32.xlu0 %v6439
      %v6441 = vpop.xlane.xlu0 %6440
      %v6442 = vsel %vm661, %v6390, 0.0
      %6443 = vadd.xlane.f32.xlu0 %v6442
      %v6444 = vpop.xlane.xlu0 %6443
      %v6445 = vsel %vm661, %v6391, 0.0
      %6446 = vadd.xlane.f32.xlu0 %v6445
      %v6447 = vpop.xlane.xlu0 %6446
      %v6448 = vsel %vm661, %v6392, 0.0
      %6449 = vadd.xlane.f32.xlu0 %v6448
      %v6450 = vpop.xlane.xlu0 %6449
      %v6451 = vsel %vm661, %v6393, 0.0
      %6452 = vadd.xlane.f32.xlu0 %v6451
      %v6453 = vpop.xlane.xlu0 %6452
      %v6454 = vsel %vm661, %v6394, 0.0
      %6455 = vadd.xlane.f32.xlu0 %v6454
      %v6456 = vpop.xlane.xlu0 %6455
      %v6457 = vsel %vm661, %v6395, 0.0
      %6458 = vadd.xlane.f32.xlu0 %v6457
      %v6459 = vpop.xlane.xlu0 %6458
      %v6460 = vsel %vm661, %v6396, 0.0
      %6461 = vadd.xlane.f32.xlu0 %v6460
      %v6462 = vpop.xlane.xlu0 %6461
      %v6463 = vsel %vm661, %v6397, 0.0
      %6464 = vadd.xlane.f32.xlu0 %v6463
      %v6465 = vpop.xlane.xlu0 %6464
      %v6466 = vsel %vm661, %v6398, 0.0
      %6467 = vadd.xlane.f32.xlu0 %v6466
      %v6468 = vpop.xlane.xlu0 %6467
      %v6469 = vsel %vm661, %v6399, 0.0
      %6470 = vadd.xlane.f32.xlu0 %v6469
      %v6471 = vpop.xlane.xlu0 %6470
      %v6472 = vsel %vm661, %v6400, 0.0
      %6473 = vadd.xlane.f32.xlu0 %v6472
      %v6474 = vpop.xlane.xlu0 %6473
      %v6475 = vsel %vm661, %v6401, 0.0
      %6476 = vadd.xlane.f32.xlu0 %v6475
      %v6477 = vpop.xlane.xlu0 %6476
      %v6478 = vsel %vm661, %v6402, 0.0
      %6479 = vadd.xlane.f32.xlu0 %v6478
      %v6480 = vpop.xlane.xlu0 %6479
      %v6481 = vsel %vm661, %v6403, 0.0
      %6482 = vadd.xlane.f32.xlu0 %v6481
      %v6483 = vpop.xlane.xlu0 %6482
      %v6484 = vsel %vm661, %v6404, 0.0
      %6485 = vadd.xlane.f32.xlu0 %v6484
      %v6486 = vpop.xlane.xlu0 %6485
      %v6487 = vsel %vm661, %v6405, 0.0
      %6488 = vadd.xlane.f32.xlu0 %v6487
      %v6489 = vpop.xlane.xlu0 %6488
      %v6490 = vsel %vm661, %v6406, 0.0
      %6491 = vadd.xlane.f32.xlu0 %v6490
      %v6492 = vpop.xlane.xlu0 %6491
      %v6493 = vsel %vm661, %v6407, 0.0
      %6494 = vadd.xlane.f32.xlu0 %v6493
      %v6495 = vpop.xlane.xlu0 %6494
      %v6496 = vsel %vm661, %v6408, 0.0
      %6497 = vadd.xlane.f32.xlu0 %v6496
      %v6498 = vpop.xlane.xlu0 %6497
      %v6499 = vsel %vm661, %v6409, 0.0
      %6500 = vadd.xlane.f32.xlu0 %v6499
      %v6501 = vpop.xlane.xlu0 %6500
      %v6502 = vsel %vm661, %v6410, 0.0
      %6503 = vadd.xlane.f32.xlu0 %v6502
      %v6504 = vpop.xlane.xlu0 %6503
      %v6505 = vsel %vm661, %v6411, 0.0
      %6506 = vadd.xlane.f32.xlu0 %v6505
      %v6507 = vpop.xlane.xlu0 %6506
      %v6508 = vld [vmem:[#allocation12] sm:$0x1]
      %v6510 = vlaneseq
      %v6511 = vshrl.u32 %v6510, 7
      %v6512 = vsub.s32 0, %v6511
      %v6513 = vrot.slane %v6508, %v6512
      %v6515 = vadd.f32 %v6414, %v6513
      %v6516 = vadd.f32 %v6417, %v6513
      %v6517 = vadd.f32 %v6420, %v6513
      %v6518 = vadd.f32 %v6423, %v6513
      %v6519 = vadd.f32 %v6426, %v6513
      %v6520 = vadd.f32 %v6429, %v6513
      %v6521 = vadd.f32 %v6432, %v6513
      %v6522 = vadd.f32 %v6435, %v6513
      %v6523 = vadd.f32 %v6438, %v6513
      %v6524 = vadd.f32 %v6441, %v6513
      %v6525 = vadd.f32 %v6444, %v6513
      %v6526 = vadd.f32 %v6447, %v6513
      %v6527 = vadd.f32 %v6450, %v6513
      %v6528 = vadd.f32 %v6453, %v6513
      %v6529 = vadd.f32 %v6456, %v6513
      %v6530 = vadd.f32 %v6459, %v6513
      %v6531 = vadd.f32 %v6462, %v6513
      %v6532 = vadd.f32 %v6465, %v6513
      %v6533 = vadd.f32 %v6468, %v6513
      %v6534 = vadd.f32 %v6471, %v6513
      %v6535 = vadd.f32 %v6474, %v6513
      %v6536 = vadd.f32 %v6477, %v6513
      %v6537 = vadd.f32 %v6480, %v6513
      %v6538 = vadd.f32 %v6483, %v6513
      %v6539 = vadd.f32 %v6486, %v6513
      %v6540 = vadd.f32 %v6489, %v6513
      %v6541 = vadd.f32 %v6492, %v6513
      %v6542 = vadd.f32 %v6495, %v6513
      %v6543 = vadd.f32 %v6498, %v6513
      %v6544 = vadd.f32 %v6501, %v6513
      %v6545 = vadd.f32 %v6504, %v6513
      %v6546 = vadd.f32 %v6507, %v6513
      %6547 = vst.msk [vmem:[%s604] sm:$0xff] %vm605, %v6515
      %6548 = vst.msk [vmem:[%s604 + $0x8] sm:$0xff] %vm605, %v6516
      %6549 = vst.msk [vmem:[%s604 + $0x10] sm:$0xff] %vm605, %v6517
      %6550 = vst.msk [vmem:[%s604 + $0x18] sm:$0xff] %vm605, %v6518
      %6551 = vst.msk [vmem:[%s604 + $0x20] sm:$0xff] %vm605, %v6519
      %6552 = vst.msk [vmem:[%s604 + $0x28] sm:$0xff] %vm605, %v6520
      %6553 = vst.msk [vmem:[%s604 + $0x30] sm:$0xff] %vm605, %v6521
      %6554 = vst.msk [vmem:[%s604 + $0x38] sm:$0xff] %vm605, %v6522
      %6555 = vst.msk [vmem:[%s604 + $0x40] sm:$0xff] %vm605, %v6523
      %6556 = vst.msk [vmem:[%s604 + $0x48] sm:$0xff] %vm605, %v6524
      %6557 = vst.msk [vmem:[%s604 + $0x50] sm:$0xff] %vm605, %v6525
      %6558 = vst.msk [vmem:[%s604 + $0x58] sm:$0xff] %vm605, %v6526
      %6559 = vst.msk [vmem:[%s604 + $0x60] sm:$0xff] %vm605, %v6527
      %6560 = vst.msk [vmem:[%s604 + $0x68] sm:$0xff] %vm605, %v6528
      %6561 = vst.msk [vmem:[%s604 + $0x70] sm:$0xff] %vm605, %v6529
      %6562 = vst.msk [vmem:[%s604 + $0x78] sm:$0xff] %vm605, %v6530
      %6563 = vst.msk [vmem:[%s604 + $0x80] sm:$0xff] %vm605, %v6531
      %6564 = vst.msk [vmem:[%s604 + $0x88] sm:$0xff] %vm605, %v6532
      %6565 = vst.msk [vmem:[%s604 + $0x90] sm:$0xff] %vm605, %v6533
      %6566 = vst.msk [vmem:[%s604 + $0x98] sm:$0xff] %vm605, %v6534
      %6567 = vst.msk [vmem:[%s604 + $0xa0] sm:$0xff] %vm605, %v6535
      %6568 = vst.msk [vmem:[%s604 + $0xa8] sm:$0xff] %vm605, %v6536
      %6569 = vst.msk [vmem:[%s604 + $0xb0] sm:$0xff] %vm605, %v6537
      %6570 = vst.msk [vmem:[%s604 + $0xb8] sm:$0xff] %vm605, %v6538
      %6571 = vst.msk [vmem:[%s604 + $0xc0] sm:$0xff] %vm605, %v6539
      %6572 = vst.msk [vmem:[%s604 + $0xc8] sm:$0xff] %vm605, %v6540
      %6573 = vst.msk [vmem:[%s604 + $0xd0] sm:$0xff] %vm605, %v6541
      %6574 = vst.msk [vmem:[%s604 + $0xd8] sm:$0xff] %vm605, %v6542
      %6575 = vst.msk [vmem:[%s604 + $0xe0] sm:$0xff] %vm605, %v6543
      %6576 = vst.msk [vmem:[%s604 + $0xe8] sm:$0xff] %vm605, %v6544
      %6577 = vst.msk [vmem:[%s604 + $0xf0] sm:$0xff] %vm605, %v6545
      %6578 = vst.msk [vmem:[%s604 + $0xf8] sm:$0xff] %vm605, %v6546
      %p6579 = scmp.lt.s32.totalorder %s32, 1
      %s6580 = scalar_select %p6579, %s32, 1
      %s6581 = smul.addr %s6580, 32
      %s6582 = smul.addr %s6581, 8
      %s6583 = scalar_lea.vmem %s19, %s6582
      // Predicated region
      $region160: #{unet_forward.1} parent=95 // pred_check
        %p6584 = pneg %p454
      $region161: #{unet_forward.1} parent=95 // pred_check_branch
        %6586 = sbr.rel (%p6584) target = $region163
      $region162: #{unet_forward.1} parent=95 // pred_region
        _
      $region163: #{unet_forward.1} parent=95 // pred_fallthru
        _
    $region96: #{unet_forward.1} parent=5 // pred_fallthru
      _
    %p6587 = scmp.le.s32.totalorder 2, %s27
    // Predicated region
    $region164: #{unet_forward.1} parent=5 // pred_check
      %p6588 = pneg %p6587
    $region165: #{unet_forward.1} parent=5 // pred_check_branch
      %6590 = sbr.rel (%p6588) target = $region167
    $region166: #{unet_forward.1} parent=5 // pred_region
      %s6591 = ssub.s32 %s27, 2
      // Predicated region
      $region168: #{unet_forward.1} parent=166 // pred_check
        %p6592 = pneg %p460
      $region169: #{unet_forward.1} parent=166 // pred_check_branch
        %6594 = sbr.rel (%p6592) target = $region171
      $region170: #{unet_forward.1} parent=166 // pred_region
        %p6595 = scmp.lt.s32.totalorder %s33, 1
        %s6596 = scalar_select %p6595, %s33, 1
        %s6597 = smul.addr %s6596, 32
        %s6598 = smul.addr %s6597, 8
        %s6599 = scalar_lea.vmem %s19, %s6598
      $region171: #{unet_forward.1} parent=166 // pred_fallthru
        _
    $region167: #{unet_forward.1} parent=5 // pred_fallthru
      _
  $region6: #{unet_forward.1} parent=0 // loop_footer
    %s31 = sadd.s32 1, %s27
  $region7: #{unet_forward.1} parent=0 // loop_footer_branch
    %26 = sbr.rel target = $region3
  $region8: #{unet_forward.1} parent=0 // loop_exit
    _

</llo_original>
